<compile_context>
chip_gen: v7x
topology: tpu7x:2x2x1
jax: 0.10.0
libtpu: 0.0.40
codegen_flags: <defaults>
</compile_context>

<pallas_src>
import functools

import numpy as np

import jax
import jax.numpy as jnp
from jax.experimental import pallas as pl
from jax.experimental.pallas import tpu as pltpu

_LN_EPS = 1e-5


@functools.lru_cache(maxsize=None)
def _vmem_limit_bytes():
    """Scoped-VMEM limit derived from the chip (v5e/v6e: 128 MiB, v7x: 64 MiB)."""
    cap = 64 * 1024 * 1024  # conservative default (v7x per-TC)
    try:
        info = pltpu.get_tpu_info()
        c = getattr(info, "vmem_capacity_bytes", None)
        if c:
            cap = int(c)
    except Exception:
        pass
    return min((cap * 3) // 4, 100 * 1024 * 1024)


# ---------------------------------------------------------------------------
# Kernel 1: fused LayerNorm-1 + window multi-head self attention (W-MSA/SW-MSA)
# ---------------------------------------------------------------------------
def _wmsa_kernel(x_ref, g1_ref, b1_ref, wqkv_ref, bqkv_ref, bias_ref,
                 wproj_ref, bproj_ref, o_ref, slab_ref, *,
                 num_windows, num_heads, head_dim, tokens, bias_windows, eps):
    """One grid step == `num_windows` windows.

    x_ref:     (WB*N, C)        bf16  pre-norm tokens of WB windows, row-flat
    g1/b1:     (1, C)           f32   LayerNorm-1 gamma / beta
    wqkv_ref:  (C, 3C)          bf16  fused q/k/v weight (q columns pre-scaled)
    bqkv_ref:  (1, 3C)          f32   fused q/k/v bias   (q part pre-scaled)
    bias_ref:  (H, nWb, N, N)   f32   rel-pos bias (+ shift mask), nWb in {1, nW}
    wproj_ref: (C, C)           bf16  output projection (input channels (h, d))
    bproj_ref: (1, C)           f32   output projection bias
    o_ref:     (WB*N, C)        bf16  output
    slab_ref:  (WB*N, C)        bf16  VMEM scratch: merged per-head outputs
    """
    WB, H, D, N = num_windows, num_heads, head_dim, tokens
    C = H * D
    nWb = bias_windows

    # LayerNorm-1 (per-token; commutes with the cyclic shift / window partition
    # permutations done in the wrapper). f32 math on the bf16-streamed input.
    x = x_ref[...].astype(jnp.float32)
    mu = jnp.mean(x, axis=-1, keepdims=True)
    xc = x - mu
    var = jnp.mean(xc * xc, axis=-1, keepdims=True)
    xn = xc * jax.lax.rsqrt(var + eps) * g1_ref[...] + b1_ref[...]

    # Single fused q/k/v projection: (WB*N, C) @ (C, 3C), f32 accumulation.
    qkv = jnp.dot(xn.astype(jnp.bfloat16), wqkv_ref[...],
                  preferred_element_type=jnp.float32) + bqkv_ref[...]

    # Per-head attention (static unroll, H is small). Uses the proven 3-D
    # single-batch-dim dot_general pattern; per-head outputs land in the slab.
    for h in range(H):
        q = qkv[:, h * D:(h + 1) * D].reshape(WB, N, D).astype(jnp.bfloat16)
        k = qkv[:, C + h * D:C + (h + 1) * D].reshape(WB, N, D).astype(jnp.bfloat16)
        v = qkv[:, 2 * C + h * D:2 * C + (h + 1) * D].reshape(WB, N, D).astype(jnp.bfloat16)

        # Scores for all WB windows at once (qk scale folded into Q weights).
        s = jnp.einsum("wnd,wmd->wnm", q, k,
                       preferred_element_type=jnp.float32)        # (WB, N, N)
        # Untiled bias (+ shift mask): windows are batch-major / window-minor
        # and WB % nWb == 0, so window i in this block has mask row (i % nWb).
        s = (s.reshape(WB // nWb, nWb, N, N) + bias_ref[h]).reshape(WB, N, N)

        # Numerically-stable softmax in f32; reciprocal on the EUP.
        s = s - jnp.max(s, axis=-1, keepdims=True)
        p = jnp.exp(s)
        p = p * pl.reciprocal(jnp.sum(p, axis=-1, keepdims=True), approx=True)

        o_h = jnp.einsum("wnm,wmd->wnd", p.astype(jnp.bfloat16), v,
                         preferred_element_type=jnp.float32)      # (WB, N, D)
        slab_ref[:, h * D:(h + 1) * D] = (
            o_h.reshape(WB * N, D).astype(slab_ref.dtype))

    # Head merge fused into one output projection: (WB*N, C) @ (C, C).
    y = jnp.dot(slab_ref[...], wproj_ref[...],
                preferred_element_type=jnp.float32)
    o_ref[...] = (y + bproj_ref[...]).astype(o_ref.dtype)


def _relative_position_index(Wh, Ww):
    coords = np.stack(np.meshgrid(np.arange(Wh), np.arange(Ww), indexing="ij"))
    cf = coords.reshape(2, -1)
    rel = (cf[:, :, None] - cf[:, None, :]).transpose(1, 2, 0)
    idx = (rel[..., 0] + Wh - 1) * (2 * Ww - 1) + (rel[..., 1] + Ww - 1)
    return idx.reshape(-1)                                         # (N*N,)


def _relative_position_bias(table, Wh, Ww, num_heads):
    N = Wh * Ww
    idx = _relative_position_index(Wh, Ww)
    rpb = table[idx].reshape(N, N, num_heads)
    return rpb.transpose(2, 0, 1).astype(jnp.float32)              # (H, N, N)


def _choose_window_block(num_windows, step, tokens, channels, num_heads,
                         bias_windows, vmem_budget):
    """Pick how many windows (a multiple of `step`) to process per grid step."""
    N, C, H = tokens, channels, num_heads
    D = C // H
    # Resident bytes independent of WB: double-buffered weights + bias slab.
    fixed = (2 * 2 * (C * 3 * C + C * C)                 # wqkv + wproj (bf16, x2)
             + 2 * 4 * (3 * C + 4 * C)                   # small f32 vectors (x2)
             + 2 * 4 * H * bias_windows * N * N)         # rel-pos bias (+mask)
    # Per-window bytes: bf16 in/out DMA buffers (double-buffered) + the f32/bf16
    # intermediates live within a grid step (x, xn, qkv, scores, slab, y).
    per_win = (N * C * (2 * 2 + 2 * 2)                   # x / out bf16, x2 each
               + N * C * (4 + 4 + 4 + 2 + 4)             # x_f32, xn, y, slab, ...
               + N * 3 * C * 4                           # qkv f32
               + 2 * (2 * N * N * 4 + 3 * N * D * 2))    # s/p f32 + q/k/v bf16
    budget = max(vmem_budget - fixed, per_win)
    cap = max(step, budget // per_win)
    cands = [m for m in range(step, num_windows + 1, step)
             if num_windows % m == 0]
    fit = [m for m in cands if m <= cap] or [cands[0]]
    # Prefer >= 2 grid steps so the "parallel" axis can split across the two
    # TensorCores on v7x; costs only one ~0.35us step on single-TC v5e/v6e.
    pref = [m for m in fit if num_windows // m >= 2]
    return max(pref) if pref else max(fit)


def window_attention_pallas(x, params, window_size, num_heads, *, norm_gamma,
                            norm_beta, mask=None, qk_scale=None):
    """x: (B_, N, C) pre-norm windows (batch-major / window-minor ordering);
    mask: (nW, N, N) or None.  Returns bf16 (B_, N, C)."""
    B_, N, C = x.shape
    Wh, Ww = window_size
    assert N == Wh * Ww
    H = num_heads
    D = C // H
    scale = qk_scale if qk_scale is not None else D ** (-0.5)

    rel_bias = _relative_position_bias(params["rel_pos_bias_table"], Wh, Ww, H)

    if mask is not None:
        nW = int(mask.shape[0])
        assert B_ % nW == 0, "windows must be ordered batch-major, window-minor"
        bias = rel_bias[:, None, :, :] + mask.astype(jnp.float32)[None, :, :, :]
        step = nW                                                # (H, nW, N, N)
    else:
        bias = rel_bias[:, None, :, :]                           # (H, 1, N, N)
        step = 1
    nWb = int(bias.shape[1])

    WB = _choose_window_block(B_, step, N, C, H, nWb,
                              vmem_budget=_vmem_limit_bytes() // 2)
    assert B_ % WB == 0 and WB % nWb == 0
    grid = (B_ // WB,)

    # Fused q/k/v weight (C, 3C); qk scale folded into the Q rows/bias.
    qkv_w = params["qkv_w"].astype(jnp.float32)                  # (3C, C)
    qkv_b = params["qkv_b"].astype(jnp.float32)                  # (3C,)
    qkv_w = qkv_w.at[:C].multiply(scale)
    qkv_b = qkv_b.at[:C].multiply(scale)
    wqkv = qkv_w.T.astype(jnp.bfloat16)                          # (C, 3C)
    bqkv = qkv_b.reshape(1, 3 * C)

    wproj = params["proj_w"].T.astype(jnp.bfloat16)              # (C, C)
    bproj = params["proj_b"].reshape(1, C).astype(jnp.float32)

    g1 = norm_gamma.reshape(1, C).astype(jnp.float32)
    b1 = norm_beta.reshape(1, C).astype(jnp.float32)

    xf = x.reshape(B_ * N, C).astype(jnp.bfloat16)

    kernel = functools.partial(_wmsa_kernel, num_windows=WB, num_heads=H,
                               head_dim=D, tokens=N, bias_windows=nWb,
                               eps=_LN_EPS)

    out = pl.pallas_call(
        kernel,
        out_shape=jax.ShapeDtypeStruct((B_ * N, C), jnp.bfloat16),
        grid_spec=pltpu.PrefetchScalarGridSpec(
            num_scalar_prefetch=0,
            grid=grid,
            in_specs=[
                pl.BlockSpec((WB * N, C), lambda b: (b, 0)),          # x rows
                pl.BlockSpec((1, C), lambda b: (0, 0)),               # ln gamma
                pl.BlockSpec((1, C), lambda b: (0, 0)),               # ln beta
                pl.BlockSpec((C, 3 * C), lambda b: (0, 0)),           # qkv weight
                pl.BlockSpec((1, 3 * C), lambda b: (0, 0)),           # qkv bias
                pl.BlockSpec((H, nWb, N, N), lambda b: (0, 0, 0, 0)), # bias(+mask)
                pl.BlockSpec((C, C), lambda b: (0, 0)),               # proj weight
                pl.BlockSpec((1, C), lambda b: (0, 0)),               # proj bias
            ],
            out_specs=pl.BlockSpec((WB * N, C), lambda b: (b, 0)),
            scratch_shapes=[pltpu.VMEM((WB * N, C), jnp.bfloat16)],   # head slab
        ),
        compiler_params=pltpu.CompilerParams(
            dimension_semantics=("parallel",),
            vmem_limit_bytes=_vmem_limit_bytes()),
    )(xf, g1, b1, wqkv, bqkv, bias, wproj, bproj)

    return out.reshape(B_, N, C)


# ---------------------------------------------------------------------------
# Kernel 2: fused LayerNorm-2 + MLP (ReLU) + residual
# ---------------------------------------------------------------------------
def _ln_mlp_kernel(x_ref, g_ref, b_ref, w1_ref, b1_ref, w2_ref, b2_ref, o_ref,
                   *, eps):
    x = x_ref[...].astype(jnp.float32)                    # (TM, C), bf16 stream
    mu = jnp.mean(x, axis=-1, keepdims=True)
    xc = x - mu
    var = jnp.mean(xc * xc, axis=-1, keepdims=True)
    xn = xc * jax.lax.rsqrt(var + eps) * g_ref[...] + b_ref[...]

    h = jnp.dot(xn.astype(jnp.bfloat16), w1_ref[...],
                preferred_element_type=jnp.float32) + b1_ref[...]
    h = jnp.maximum(h, 0.0)
    y = jnp.dot(h.astype(jnp.bfloat16), w2_ref[...],
                preferred_element_type=jnp.float32) + b2_ref[...]
    o_ref[...] = (x + y).astype(o_ref.dtype)


def _choose_row_tile(num_rows, per_row_bytes, vmem_budget):
    if num_rows % 8 != 0:
        return num_rows                       # full-dim block is always legal
    cap = max(8, vmem_budget // max(per_row_bytes, 1))
    divs = [t for t in range(8, num_rows + 1, 8) if num_rows % t == 0]
    fit = [t for t in divs if t <= cap] or [divs[0]]
    pref = [t for t in fit if num_rows // t >= 2]       # keep >= 2 steps (v7x)
    return max(pref) if pref else max(fit)


def ln_mlp_residual_pallas(x, gamma, beta, fc1_w, fc1_b, fc2_w, fc2_b,
                           eps=_LN_EPS):
    """Returns x + fc2(relu(fc1(LayerNorm(x)))).  x: (B, L, C)."""
    B, L, C = x.shape
    hidden = fc1_w.shape[0]
    M = B * L

    # bf16 in (x2 buf) + f32 out (x2 buf) + f32 intermediates per row.
    per_row = C * (4 + 8 + 12) + hidden * 6
    fixed = 2 * 2 * 2 * C * hidden + 4 * (3 * C + hidden)
    budget = max(_vmem_limit_bytes() // 2 - fixed, per_row * 8)
    TM = _choose_row_tile(M, per_row, budget)

    xf = x.reshape(M, C).astype(jnp.bfloat16)             # halve HBM read stream

    w1 = fc1_w.T.astype(jnp.bfloat16)                      # (C, hidden)
    b1 = fc1_b.reshape(1, hidden).astype(jnp.float32)
    w2 = fc2_w.T.astype(jnp.bfloat16)                      # (hidden, C)
    b2 = fc2_b.reshape(1, C).astype(jnp.float32)
    g = gamma.reshape(1, C).astype(jnp.float32)
    b = beta.reshape(1, C).astype(jnp.float32)

    out = pl.pallas_call(
        functools.partial(_ln_mlp_kernel, eps=eps),
        out_shape=jax.ShapeDtypeStruct((M, C), x.dtype),
        grid_spec=pltpu.PrefetchScalarGridSpec(
            num_scalar_prefetch=0,
            grid=(M // TM,),
            in_specs=[
                pl.BlockSpec((TM, C), lambda i: (i, 0)),
                pl.BlockSpec((1, C), lambda i: (0, 0)),
                pl.BlockSpec((1, C), lambda i: (0, 0)),
                pl.BlockSpec((C, hidden), lambda i: (0, 0)),
                pl.BlockSpec((1, hidden), lambda i: (0, 0)),
                pl.BlockSpec((hidden, C), lambda i: (0, 0)),
                pl.BlockSpec((1, C), lambda i: (0, 0)),
            ],
            out_specs=pl.BlockSpec((TM, C), lambda i: (i, 0)),
        ),
        compiler_params=pltpu.CompilerParams(
            dimension_semantics=("parallel",),
            vmem_limit_bytes=_vmem_limit_bytes()),
    )(xf, g, b, w1, b1, w2, b2)
    return out.reshape(B, L, C)


# ---------------------------------------------------------------------------
# JAX glue: window bookkeeping + block / layer forward (kernel and reference)
# ---------------------------------------------------------------------------
def _layer_norm(x, gamma, beta, eps=_LN_EPS):
    mu = jnp.mean(x, axis=-1, keepdims=True)
    xc = x - mu
    var = jnp.mean(xc * xc, axis=-1, keepdims=True)
    return xc * jax.lax.rsqrt(var + eps) * gamma + beta


def _window_partition(x, ws):
    B, H, W, C = x.shape
    x = x.reshape(B, H // ws, ws, W // ws, ws, C)
    return x.transpose(0, 1, 3, 2, 4, 5).reshape(-1, ws, ws, C)


def _window_reverse(windows, ws, H, W):
    B = windows.shape[0] // ((H // ws) * (W // ws))
    x = windows.reshape(B, H // ws, W // ws, ws, ws, -1)
    return x.transpose(0, 1, 3, 2, 4, 5).reshape(B, H, W, -1)


def _shift_attn_mask(Hr, Wr, ws, shift):
    """Shift-window attention mask exactly as in SwinTransformerBlock.__init__."""
    img = np.zeros((1, Hr, Wr, 1), np.float32)
    cnt = 0
    for hs in (slice(0, -ws), slice(-ws, -shift), slice(-shift, None)):
        for wsl in (slice(0, -ws), slice(-ws, -shift), slice(-shift, None)):
            img[:, hs, wsl, :] = cnt
            cnt += 1
    mw = img.reshape(1, Hr // ws, ws, Wr // ws, ws, 1)
    mw = mw.transpose(0, 1, 3, 2, 4, 5).reshape(-1, ws * ws)
    diff = mw[:, None, :] - mw[:, :, None]
    return jnp.asarray(np.where(diff != 0, -100.0, 0.0).astype(np.float32))


def window_attention_ref(x, params, window_size, num_heads, mask=None,
                         qk_scale=None):
    """Pure-JAX reference mirroring the PyTorch WindowAttention.forward."""
    B_, N, C = x.shape
    Wh, Ww = window_size
    D = C // num_heads
    scale = qk_scale if qk_scale is not None else D ** (-0.5)

    qkv = x @ params["qkv_w"].T + params["qkv_b"]
    qkv = qkv.reshape(B_, N, 3, num_heads, D).transpose(2, 0, 3, 1, 4)
    q, k, v = qkv[0], qkv[1], qkv[2]
    q = q * scale
    attn = jnp.einsum("bhnd,bhmd->bhnm", q, k)
    rpb = _relative_position_bias(params["rel_pos_bias_table"], Wh, Ww, num_heads)
    attn = attn + rpb[None]
    if mask is not None:
        nW = mask.shape[0]
        attn = attn.reshape(B_ // nW, nW, num_heads, N, N) + mask[None, :, None]
        attn = attn.reshape(-1, num_heads, N, N)
    attn = jax.nn.softmax(attn, axis=-1)
    out = jnp.einsum("bhnm,bhmd->bhnd", attn, v)
    out = out.transpose(0, 2, 1, 3).reshape(B_, N, C)
    return out @ params["proj_w"].T + params["proj_b"]


def _mlp_ref(x, p):
    h = jnp.maximum(x @ p["fc1_w"].T + p["fc1_b"], 0.0)
    return h @ p["fc2_w"].T + p["fc2_b"]


def swin_block_forward(x, p, *, input_resolution, num_heads, window_size,
                       shift_size, use_pallas):
    Hr, Wr = input_resolution
    B, L, C = x.shape
    assert L == Hr * Wr, "input feature has wrong size"
    ws = window_size
    # This TransUNet variant only supports resolutions divisible by the window
    # size (its F.pad path would break the later .view); keep the same contract.
    assert Hr % ws == 0 and Wr % ws == 0

    shortcut = x

    if shift_size > 0:
        attn_mask = _shift_attn_mask(Hr, Wr, ws, shift_size)
    else:
        attn_mask = None

    if use_pallas:
        # LayerNorm-1 is fused into the attention kernel; since LN is per-token
        # it commutes with the cyclic shift and the window-partition permutation.
        xs = x.reshape(B, Hr, Wr, C)
        if shift_size > 0:
            xs = jnp.roll(xs, shift=(-shift_size, -shift_size), axis=(1, 2))
        xw = _window_partition(xs, ws).reshape(-1, ws * ws, C)
        aw = window_attention_pallas(xw, p["attn"], (ws, ws), num_heads,
                                     norm_gamma=p["norm1_g"],
                                     norm_beta=p["norm1_b"], mask=attn_mask)
    else:
        xn = _layer_norm(x, p["norm1_g"], p["norm1_b"]).reshape(B, Hr, Wr, C)
        if shift_size > 0:
            xn = jnp.roll(xn, shift=(-shift_size, -shift_size), axis=(1, 2))
        xw = _window_partition(xn, ws).reshape(-1, ws * ws, C)
        aw = window_attention_ref(xw, p["attn"], (ws, ws), num_heads,
                                  mask=attn_mask)

    xr = _window_reverse(aw.reshape(-1, ws, ws, C), ws, Hr, Wr)
    if shift_size > 0:
        xr = jnp.roll(xr, shift=(shift_size, shift_size), axis=(1, 2))

    # drop_path is identity at p = 0.0.
    x = shortcut + xr.reshape(B, L, C).astype(shortcut.dtype)

    if use_pallas:
        x = ln_mlp_residual_pallas(x, p["norm2_g"], p["norm2_b"],
                                   p["fc1_w"], p["fc1_b"],
                                   p["fc2_w"], p["fc2_b"])
    else:
        x = x + _mlp_ref(_layer_norm(x, p["norm2_g"], p["norm2_b"]), p)
    return x


def basic_layer_forward(x, params, *, input_resolution, num_heads, window_size,
                        use_pallas=True):
    ws = window_size
    if min(input_resolution) <= window_size:
        ws = min(input_resolution)
    for i, bp in enumerate(params["blocks"]):
        shift = 0 if (i % 2 == 0 or min(input_resolution) <= window_size) \
            else window_size // 2
        x = swin_block_forward(x, bp, input_resolution=input_resolution,
                               num_heads=num_heads, window_size=ws,
                               shift_size=shift, use_pallas=use_pallas)
    return x


# ---------------------------------------------------------------------------
# Parameter init (deterministic) and self-test
# ---------------------------------------------------------------------------
def init_basic_layer_params(key, *, dim, input_resolution, depth, num_heads,
                            window_size, mlp_ratio):
    ws = window_size
    if min(input_resolution) <= window_size:
        ws = min(input_resolution)
    hidden = int(dim * mlp_ratio)
    table_len = (2 * ws - 1) * (2 * ws - 1)
    blocks = []
    for i in range(depth):
        ks = jax.random.split(jax.random.fold_in(key, i), 13)
        blocks.append({
            "norm1_g": 1.0 + 0.1 * jax.random.normal(ks[0], (dim,), jnp.float32),
            "norm1_b": 0.1 * jax.random.normal(ks[1], (dim,), jnp.float32),
            "attn": {
                "rel_pos_bias_table": 0.02 * jax.random.truncated_normal(
                    ks[2], -2.0, 2.0, (table_len, num_heads), jnp.float32),
                "qkv_w": 0.06 * jax.random.normal(ks[3], (3 * dim, dim), jnp.float32),
                "qkv_b": 0.06 * jax.random.normal(ks[4], (3 * dim,), jnp.float32),
                "proj_w": 0.06 * jax.random.normal(ks[5], (dim, dim), jnp.float32),
                "proj_b": 0.06 * jax.random.normal(ks[6], (dim,), jnp.float32),
            },
            "norm2_g": 1.0 + 0.1 * jax.random.normal(ks[7], (dim,), jnp.float32),
            "norm2_b": 0.1 * jax.random.normal(ks[8], (dim,), jnp.float32),
            "fc1_w": 0.06 * jax.random.normal(ks[9], (hidden, dim), jnp.float32),
            "fc1_b": 0.06 * jax.random.normal(ks[10], (hidden,), jnp.float32),
            "fc2_w": 0.06 * jax.random.normal(ks[11], (dim, hidden), jnp.float32),
            "fc2_b": 0.06 * jax.random.normal(ks[12], (dim,), jnp.float32),
        })
    return {"blocks": blocks}


if __name__ == "__main__":
    # Small, module-consistent shapes: dim=32, 4 heads, 8x8 resolution, 4x4
    # windows, depth=2 (block 0: W-MSA, block 1: SW-MSA with shift=2), batch=2.
    dim = 32
    input_resolution = (8, 8)
    depth = 2
    num_heads = 4
    window_size = 4
    mlp_ratio = 4.0
    B = 2
    L = input_resolution[0] * input_resolution[1]

    key = jax.random.PRNGKey(0)
    kx, kp = jax.random.split(key)
    x = jax.random.normal(kx, (B, L, dim), jnp.float32)
    params = init_basic_layer_params(
        kp, dim=dim, input_resolution=input_resolution, depth=depth,
        num_heads=num_heads, window_size=window_size, mlp_ratio=mlp_ratio)

    fwd = jax.jit(functools.partial(
        basic_layer_forward, input_resolution=input_resolution,
        num_heads=num_heads, window_size=window_size, use_pallas=True))
    out = jax.block_until_ready(fwd(x, params))

    ref = basic_layer_forward(x, params, input_resolution=input_resolution,
                              num_heads=num_heads, window_size=window_size,
                              use_pallas=False)

    assert out.shape == (B, L, dim)
    # Kernel path streams activations at bf16 (per the perf review) while the
    # reference is pure f32, so allow bf16-level absolute error.
    err = float(jnp.max(jnp.abs(out - ref)))
    assert err < 1e-1, f"kernel vs reference mismatch: max |diff| = {err}"
    print("KERNEL_OK")
</pallas_src>

<mosaic_0001>
module attributes {stable_mosaic.version = 11 : i64} {
  func.func @_wmsa_kernel(%arg0: i32, %arg1: memref<64x32xbf16, #tpu.memory_space<vmem>>, %arg2: memref<1x32xf32, #tpu.memory_space<vmem>>, %arg3: memref<1x32xf32, #tpu.memory_space<vmem>>, %arg4: memref<32x96xbf16, #tpu.memory_space<vmem>>, %arg5: memref<1x96xf32, #tpu.memory_space<vmem>>, %arg6: memref<4x1x16x16xf32, #tpu.memory_space<vmem>>, %arg7: memref<32x32xbf16, #tpu.memory_space<vmem>>, %arg8: memref<1x32xf32, #tpu.memory_space<vmem>>, %arg9: memref<64x32xbf16, #tpu.memory_space<vmem>>, %arg10: memref<64x32xbf16, #tpu.memory_space<vmem>>) attributes {dimension_semantics = [#tpu.dimension_semantics<parallel>], iteration_bounds = array<i64: 2>, scalar_prefetch = 0 : i64, scratch_operands = 1 : i64, tpu.core_type = #tpu.core_type<tc>, window_params = [{transform_indices = @transform_0, window_bounds = array<i64: 64, 32>}, {pipeline_mode = #tpu.pipeline_mode<synchronous>, transform_indices = @transform_1, window_bounds = array<i64: 1, 32>}, {pipeline_mode = #tpu.pipeline_mode<synchronous>, transform_indices = @transform_2, window_bounds = array<i64: 1, 32>}, {pipeline_mode = #tpu.pipeline_mode<synchronous>, transform_indices = @transform_3, window_bounds = array<i64: 32, 96>}, {pipeline_mode = #tpu.pipeline_mode<synchronous>, transform_indices = @transform_4, window_bounds = array<i64: 1, 96>}, {pipeline_mode = #tpu.pipeline_mode<synchronous>, transform_indices = @transform_5, window_bounds = array<i64: 4, 1, 16, 16>}, {pipeline_mode = #tpu.pipeline_mode<synchronous>, transform_indices = @transform_6, window_bounds = array<i64: 32, 32>}, {pipeline_mode = #tpu.pipeline_mode<synchronous>, transform_indices = @transform_7, window_bounds = array<i64: 1, 32>}, {transform_indices = @transform_8, window_bounds = array<i64: 64, 32>}]} {
    %c0 = arith.constant 0 : index
    %c0_0 = arith.constant 0 : index
    %0 = vector.load %arg1[%c0, %c0_0] : memref<64x32xbf16, #tpu.memory_space<vmem>>, vector<64x32xbf16>
    %1 = arith.extf %0 : vector<64x32xbf16> to vector<64x32xf32>
    %cst = arith.constant dense<0.000000e+00> : vector<64xf32>
    %2 = vector.multi_reduction <add>, %1, %cst [1] : vector<64x32xf32> to vector<64xf32>
    %3 = vector.shape_cast %2 : vector<64xf32> to vector<64x1xf32>
    %cst_1 = arith.constant 3.200000e+01 : f32
    %4 = vector.broadcast %cst_1 : f32 to vector<64x1xf32>
    %5 = arith.divf %3, %4 : vector<64x1xf32>
    %6 = vector.broadcast %5 : vector<64x1xf32> to vector<64x32xf32>
    %7 = arith.subf %1, %6 : vector<64x32xf32>
    %8 = arith.mulf %7, %7 : vector<64x32xf32>
    %cst_2 = arith.constant dense<0.000000e+00> : vector<64xf32>
    %9 = vector.multi_reduction <add>, %8, %cst_2 [1] : vector<64x32xf32> to vector<64xf32>
    %10 = vector.shape_cast %9 : vector<64xf32> to vector<64x1xf32>
    %cst_3 = arith.constant 3.200000e+01 : f32
    %11 = vector.broadcast %cst_3 : f32 to vector<64x1xf32>
    %12 = arith.divf %10, %11 : vector<64x1xf32>
    %cst_4 = arith.constant 9.99999974E-6 : f32
    %13 = vector.broadcast %cst_4 : f32 to vector<64x1xf32>
    %14 = arith.addf %12, %13 : vector<64x1xf32>
    %15 = math.rsqrt %14 : vector<64x1xf32>
    %16 = vector.broadcast %15 : vector<64x1xf32> to vector<64x32xf32>
    %17 = arith.mulf %7, %16 : vector<64x32xf32>
    %c0_5 = arith.constant 0 : index
    %c0_6 = arith.constant 0 : index
    %18 = vector.load %arg2[%c0_5, %c0_6] : memref<1x32xf32, #tpu.memory_space<vmem>>, vector<1x32xf32>
    %19 = vector.broadcast %18 : vector<1x32xf32> to vector<64x32xf32>
    %20 = arith.mulf %17, %19 : vector<64x32xf32>
    %c0_7 = arith.constant 0 : index
    %c0_8 = arith.constant 0 : index
    %21 = vector.load %arg3[%c0_7, %c0_8] : memref<1x32xf32, #tpu.memory_space<vmem>>, vector<1x32xf32>
    %22 = vector.broadcast %21 : vector<1x32xf32> to vector<64x32xf32>
    %23 = arith.addf %20, %22 : vector<64x32xf32>
    %24 = arith.truncf %23 : vector<64x32xf32> to vector<64x32xbf16>
    %c0_9 = arith.constant 0 : index
    %c0_10 = arith.constant 0 : index
    %25 = vector.load %arg4[%c0_9, %c0_10] : memref<32x96xbf16, #tpu.memory_space<vmem>>, vector<32x96xbf16>
    %cst_11 = arith.constant dense<0.000000e+00> : vector<64x96xf32>
    %26 = tpu.matmul %24, %25, %cst_11 {dimension_numbers = #tpu.dot_dimension_numbers<[1], [0], [0], [1], [0, 0, 1, 1], [], []>} : vector<64x32xbf16>, vector<32x96xbf16>, vector<64x96xf32> -> vector<64x96xf32>
    %c0_12 = arith.constant 0 : index
    %c0_13 = arith.constant 0 : index
    %27 = vector.load %arg5[%c0_12, %c0_13] : memref<1x96xf32, #tpu.memory_space<vmem>>, vector<1x96xf32>
    %28 = vector.broadcast %27 : vector<1x96xf32> to vector<64x96xf32>
    %29 = arith.addf %26, %28 : vector<64x96xf32>
    %30 = vector.extract_strided_slice %29 {offsets = [0, 0], sizes = [64, 8], strides = [1, 1]} : vector<64x96xf32> to vector<64x8xf32>
    %31 = vector.shape_cast %30 : vector<64x8xf32> to vector<4x16x8xf32>
    %32 = arith.truncf %31 : vector<4x16x8xf32> to vector<4x16x8xbf16>
    %33 = vector.extract_strided_slice %29 {offsets = [0, 32], sizes = [64, 8], strides = [1, 1]} : vector<64x96xf32> to vector<64x8xf32>
    %34 = vector.shape_cast %33 : vector<64x8xf32> to vector<4x16x8xf32>
    %35 = arith.truncf %34 : vector<4x16x8xf32> to vector<4x16x8xbf16>
    %36 = vector.extract_strided_slice %29 {offsets = [0, 64], sizes = [64, 8], strides = [1, 1]} : vector<64x96xf32> to vector<64x8xf32>
    %37 = vector.shape_cast %36 : vector<64x8xf32> to vector<4x16x8xf32>
    %38 = arith.truncf %37 : vector<4x16x8xf32> to vector<4x16x8xbf16>
    "tpu.trace_start"() <{level = 10 : i32, message = "wnd,wmd->wnm"}> : () -> ()
    %cst_14 = arith.constant dense<0.000000e+00> : vector<4x16x16xf32>
    %39 = tpu.matmul %32, %35, %cst_14 {dimension_numbers = #tpu.dot_dimension_numbers<[2], [2], [1], [1], [0, 0, 0, 1, 1, 1], [0], [0]>} : vector<4x16x8xbf16>, vector<4x16x8xbf16>, vector<4x16x16xf32> -> vector<4x16x16xf32>
    "tpu.trace_stop"() : () -> ()
    %40 = vector.shape_cast %39 : vector<4x16x16xf32> to vector<4x1x16x16xf32>
    %c0_15 = arith.constant 0 : index
    %c0_16 = arith.constant 0 : index
    %c0_17 = arith.constant 0 : index
    %c0_18 = arith.constant 0 : index
    %41 = vector.load %arg6[%c0_15, %c0_16, %c0_17, %c0_18] : memref<4x1x16x16xf32, #tpu.memory_space<vmem>>, vector<1x1x16x16xf32>
    %42 = vector.shape_cast %41 : vector<1x1x16x16xf32> to vector<1x16x16xf32>
    %43 = vector.shape_cast %42 : vector<1x16x16xf32> to vector<1x1x16x16xf32>
    %44 = vector.broadcast %43 : vector<1x1x16x16xf32> to vector<4x1x16x16xf32>
    %45 = arith.addf %40, %44 : vector<4x1x16x16xf32>
    %46 = vector.shape_cast %45 : vector<4x1x16x16xf32> to vector<4x16x16xf32>
    %cst_19 = arith.constant dense<0xFF800000> : vector<4x16xf32>
    %47 = vector.multi_reduction <maximumf>, %46, %cst_19 [2] : vector<4x16x16xf32> to vector<4x16xf32>
    %48 = vector.shape_cast %47 : vector<4x16xf32> to vector<4x16x1xf32>
    %49 = vector.broadcast %48 : vector<4x16x1xf32> to vector<4x16x16xf32>
    %50 = arith.subf %46, %49 : vector<4x16x16xf32>
    %51 = math.exp %50 : vector<4x16x16xf32>
    %cst_20 = arith.constant dense<0.000000e+00> : vector<4x16xf32>
    %52 = vector.multi_reduction <add>, %51, %cst_20 [2] : vector<4x16x16xf32> to vector<4x16xf32>
    %53 = vector.shape_cast %52 : vector<4x16xf32> to vector<4x16x1xf32>
    %54 = tpu.reciprocal %53 {approx = true} : vector<4x16x1xf32> -> vector<4x16x1xf32>
    %55 = vector.broadcast %54 : vector<4x16x1xf32> to vector<4x16x16xf32>
    %56 = arith.mulf %51, %55 : vector<4x16x16xf32>
    %57 = arith.truncf %56 : vector<4x16x16xf32> to vector<4x16x16xbf16>
    "tpu.trace_start"() <{level = 10 : i32, message = "wnm,wmd->wnd"}> : () -> ()
    %cst_21 = arith.constant dense<0.000000e+00> : vector<4x16x8xf32>
    %58 = tpu.matmul %57, %38, %cst_21 {dimension_numbers = #tpu.dot_dimension_numbers<[2], [1], [1], [2], [0, 0, 0, 1, 1, 2], [0], [0]>} : vector<4x16x16xbf16>, vector<4x16x8xbf16>, vector<4x16x8xf32> -> vector<4x16x8xf32>
    "tpu.trace_stop"() : () -> ()
    %59 = vector.shape_cast %58 : vector<4x16x8xf32> to vector<64x8xf32>
    %60 = arith.truncf %59 : vector<64x8xf32> to vector<64x8xbf16>
    %c0_22 = arith.constant 0 : index
    %c0_23 = arith.constant 0 : index
    %61 = vector.load %arg10[%c0_22, %c0_23] : memref<64x32xbf16, #tpu.memory_space<vmem>>, vector<64x8xbf16>
    tpu.vector_store %arg10[%c0_22, %c0_23], %60 {strides = array<i32>} : memref<64x32xbf16, #tpu.memory_space<vmem>>, vector<64x8xbf16>,
    %62 = vector.extract_strided_slice %29 {offsets = [0, 8], sizes = [64, 8], strides = [1, 1]} : vector<64x96xf32> to vector<64x8xf32>
    %63 = vector.shape_cast %62 : vector<64x8xf32> to vector<4x16x8xf32>
    %64 = arith.truncf %63 : vector<4x16x8xf32> to vector<4x16x8xbf16>
    %65 = vector.extract_strided_slice %29 {offsets = [0, 40], sizes = [64, 8], strides = [1, 1]} : vector<64x96xf32> to vector<64x8xf32>
    %66 = vector.shape_cast %65 : vector<64x8xf32> to vector<4x16x8xf32>
    %67 = arith.truncf %66 : vector<4x16x8xf32> to vector<4x16x8xbf16>
    %68 = vector.extract_strided_slice %29 {offsets = [0, 72], sizes = [64, 8], strides = [1, 1]} : vector<64x96xf32> to vector<64x8xf32>
    %69 = vector.shape_cast %68 : vector<64x8xf32> to vector<4x16x8xf32>
    %70 = arith.truncf %69 : vector<4x16x8xf32> to vector<4x16x8xbf16>
    "tpu.trace_start"() <{level = 10 : i32, message = "wnd,wmd->wnm"}> : () -> ()
    %cst_24 = arith.constant dense<0.000000e+00> : vector<4x16x16xf32>
    %71 = tpu.matmul %64, %67, %cst_24 {dimension_numbers = #tpu.dot_dimension_numbers<[2], [2], [1], [1], [0, 0, 0, 1, 1, 1], [0], [0]>} : vector<4x16x8xbf16>, vector<4x16x8xbf16>, vector<4x16x16xf32> -> vector<4x16x16xf32>
    "tpu.trace_stop"() : () -> ()
    %72 = vector.shape_cast %71 : vector<4x16x16xf32> to vector<4x1x16x16xf32>
    %c1 = arith.constant 1 : index
    %c0_25 = arith.constant 0 : index
    %c0_26 = arith.constant 0 : index
    %c0_27 = arith.constant 0 : index
    %73 = vector.load %arg6[%c1, %c0_25, %c0_26, %c0_27] : memref<4x1x16x16xf32, #tpu.memory_space<vmem>>, vector<1x1x16x16xf32>
    %74 = vector.shape_cast %73 : vector<1x1x16x16xf32> to vector<1x16x16xf32>
    %75 = vector.shape_cast %74 : vector<1x16x16xf32> to vector<1x1x16x16xf32>
    %76 = vector.broadcast %75 : vector<1x1x16x16xf32> to vector<4x1x16x16xf32>
    %77 = arith.addf %72, %76 : vector<4x1x16x16xf32>
    %78 = vector.shape_cast %77 : vector<4x1x16x16xf32> to vector<4x16x16xf32>
    %cst_28 = arith.constant dense<0xFF800000> : vector<4x16xf32>
    %79 = vector.multi_reduction <maximumf>, %78, %cst_28 [2] : vector<4x16x16xf32> to vector<4x16xf32>
    %80 = vector.shape_cast %79 : vector<4x16xf32> to vector<4x16x1xf32>
    %81 = vector.broadcast %80 : vector<4x16x1xf32> to vector<4x16x16xf32>
    %82 = arith.subf %78, %81 : vector<4x16x16xf32>
    %83 = math.exp %82 : vector<4x16x16xf32>
    %cst_29 = arith.constant dense<0.000000e+00> : vector<4x16xf32>
    %84 = vector.multi_reduction <add>, %83, %cst_29 [2] : vector<4x16x16xf32> to vector<4x16xf32>
    %85 = vector.shape_cast %84 : vector<4x16xf32> to vector<4x16x1xf32>
    %86 = tpu.reciprocal %85 {approx = true} : vector<4x16x1xf32> -> vector<4x16x1xf32>
    %87 = vector.broadcast %86 : vector<4x16x1xf32> to vector<4x16x16xf32>
    %88 = arith.mulf %83, %87 : vector<4x16x16xf32>
    %89 = arith.truncf %88 : vector<4x16x16xf32> to vector<4x16x16xbf16>
    "tpu.trace_start"() <{level = 10 : i32, message = "wnm,wmd->wnd"}> : () -> ()
    %cst_30 = arith.constant dense<0.000000e+00> : vector<4x16x8xf32>
    %90 = tpu.matmul %89, %70, %cst_30 {dimension_numbers = #tpu.dot_dimension_numbers<[2], [1], [1], [2], [0, 0, 0, 1, 1, 2], [0], [0]>} : vector<4x16x16xbf16>, vector<4x16x8xbf16>, vector<4x16x8xf32> -> vector<4x16x8xf32>
    "tpu.trace_stop"() : () -> ()
    %91 = vector.shape_cast %90 : vector<4x16x8xf32> to vector<64x8xf32>
    %92 = arith.truncf %91 : vector<64x8xf32> to vector<64x8xbf16>
    %c0_31 = arith.constant 0 : index
    %c8 = arith.constant 8 : index
    %93 = vector.load %arg10[%c0_31, %c8] : memref<64x32xbf16, #tpu.memory_space<vmem>>, vector<64x8xbf16>
    tpu.vector_store %arg10[%c0_31, %c8], %92 {strides = array<i32>} : memref<64x32xbf16, #tpu.memory_space<vmem>>, vector<64x8xbf16>,
    %94 = vector.extract_strided_slice %29 {offsets = [0, 16], sizes = [64, 8], strides = [1, 1]} : vector<64x96xf32> to vector<64x8xf32>
    %95 = vector.shape_cast %94 : vector<64x8xf32> to vector<4x16x8xf32>
    %96 = arith.truncf %95 : vector<4x16x8xf32> to vector<4x16x8xbf16>
    %97 = vector.extract_strided_slice %29 {offsets = [0, 48], sizes = [64, 8], strides = [1, 1]} : vector<64x96xf32> to vector<64x8xf32>
    %98 = vector.shape_cast %97 : vector<64x8xf32> to vector<4x16x8xf32>
    %99 = arith.truncf %98 : vector<4x16x8xf32> to vector<4x16x8xbf16>
    %100 = vector.extract_strided_slice %29 {offsets = [0, 80], sizes = [64, 8], strides = [1, 1]} : vector<64x96xf32> to vector<64x8xf32>
    %101 = vector.shape_cast %100 : vector<64x8xf32> to vector<4x16x8xf32>
    %102 = arith.truncf %101 : vector<4x16x8xf32> to vector<4x16x8xbf16>
    "tpu.trace_start"() <{level = 10 : i32, message = "wnd,wmd->wnm"}> : () -> ()
    %cst_32 = arith.constant dense<0.000000e+00> : vector<4x16x16xf32>
    %103 = tpu.matmul %96, %99, %cst_32 {dimension_numbers = #tpu.dot_dimension_numbers<[2], [2], [1], [1], [0, 0, 0, 1, 1, 1], [0], [0]>} : vector<4x16x8xbf16>, vector<4x16x8xbf16>, vector<4x16x16xf32> -> vector<4x16x16xf32>
    "tpu.trace_stop"() : () -> ()
    %104 = vector.shape_cast %103 : vector<4x16x16xf32> to vector<4x1x16x16xf32>
    %c2 = arith.constant 2 : index
    %c0_33 = arith.constant 0 : index
    %c0_34 = arith.constant 0 : index
    %c0_35 = arith.constant 0 : index
    %105 = vector.load %arg6[%c2, %c0_33, %c0_34, %c0_35] : memref<4x1x16x16xf32, #tpu.memory_space<vmem>>, vector<1x1x16x16xf32>
    %106 = vector.shape_cast %105 : vector<1x1x16x16xf32> to vector<1x16x16xf32>
    %107 = vector.shape_cast %106 : vector<1x16x16xf32> to vector<1x1x16x16xf32>
    %108 = vector.broadcast %107 : vector<1x1x16x16xf32> to vector<4x1x16x16xf32>
    %109 = arith.addf %104, %108 : vector<4x1x16x16xf32>
    %110 = vector.shape_cast %109 : vector<4x1x16x16xf32> to vector<4x16x16xf32>
    %cst_36 = arith.constant dense<0xFF800000> : vector<4x16xf32>
    %111 = vector.multi_reduction <maximumf>, %110, %cst_36 [2] : vector<4x16x16xf32> to vector<4x16xf32>
    %112 = vector.shape_cast %111 : vector<4x16xf32> to vector<4x16x1xf32>
    %113 = vector.broadcast %112 : vector<4x16x1xf32> to vector<4x16x16xf32>
    %114 = arith.subf %110, %113 : vector<4x16x16xf32>
    %115 = math.exp %114 : vector<4x16x16xf32>
    %cst_37 = arith.constant dense<0.000000e+00> : vector<4x16xf32>
    %116 = vector.multi_reduction <add>, %115, %cst_37 [2] : vector<4x16x16xf32> to vector<4x16xf32>
    %117 = vector.shape_cast %116 : vector<4x16xf32> to vector<4x16x1xf32>
    %118 = tpu.reciprocal %117 {approx = true} : vector<4x16x1xf32> -> vector<4x16x1xf32>
    %119 = vector.broadcast %118 : vector<4x16x1xf32> to vector<4x16x16xf32>
    %120 = arith.mulf %115, %119 : vector<4x16x16xf32>
    %121 = arith.truncf %120 : vector<4x16x16xf32> to vector<4x16x16xbf16>
    "tpu.trace_start"() <{level = 10 : i32, message = "wnm,wmd->wnd"}> : () -> ()
    %cst_38 = arith.constant dense<0.000000e+00> : vector<4x16x8xf32>
    %122 = tpu.matmul %121, %102, %cst_38 {dimension_numbers = #tpu.dot_dimension_numbers<[2], [1], [1], [2], [0, 0, 0, 1, 1, 2], [0], [0]>} : vector<4x16x16xbf16>, vector<4x16x8xbf16>, vector<4x16x8xf32> -> vector<4x16x8xf32>
    "tpu.trace_stop"() : () -> ()
    %123 = vector.shape_cast %122 : vector<4x16x8xf32> to vector<64x8xf32>
    %124 = arith.truncf %123 : vector<64x8xf32> to vector<64x8xbf16>
    %c0_39 = arith.constant 0 : index
    %c16 = arith.constant 16 : index
    %125 = vector.load %arg10[%c0_39, %c16] : memref<64x32xbf16, #tpu.memory_space<vmem>>, vector<64x8xbf16>
    tpu.vector_store %arg10[%c0_39, %c16], %124 {strides = array<i32>} : memref<64x32xbf16, #tpu.memory_space<vmem>>, vector<64x8xbf16>,
    %126 = vector.extract_strided_slice %29 {offsets = [0, 24], sizes = [64, 8], strides = [1, 1]} : vector<64x96xf32> to vector<64x8xf32>
    %127 = vector.shape_cast %126 : vector<64x8xf32> to vector<4x16x8xf32>
    %128 = arith.truncf %127 : vector<4x16x8xf32> to vector<4x16x8xbf16>
    %129 = vector.extract_strided_slice %29 {offsets = [0, 56], sizes = [64, 8], strides = [1, 1]} : vector<64x96xf32> to vector<64x8xf32>
    %130 = vector.shape_cast %129 : vector<64x8xf32> to vector<4x16x8xf32>
    %131 = arith.truncf %130 : vector<4x16x8xf32> to vector<4x16x8xbf16>
    %132 = vector.extract_strided_slice %29 {offsets = [0, 88], sizes = [64, 8], strides = [1, 1]} : vector<64x96xf32> to vector<64x8xf32>
    %133 = vector.shape_cast %132 : vector<64x8xf32> to vector<4x16x8xf32>
    %134 = arith.truncf %133 : vector<4x16x8xf32> to vector<4x16x8xbf16>
    "tpu.trace_start"() <{level = 10 : i32, message = "wnd,wmd->wnm"}> : () -> ()
    %cst_40 = arith.constant dense<0.000000e+00> : vector<4x16x16xf32>
    %135 = tpu.matmul %128, %131, %cst_40 {dimension_numbers = #tpu.dot_dimension_numbers<[2], [2], [1], [1], [0, 0, 0, 1, 1, 1], [0], [0]>} : vector<4x16x8xbf16>, vector<4x16x8xbf16>, vector<4x16x16xf32> -> vector<4x16x16xf32>
    "tpu.trace_stop"() : () -> ()
    %136 = vector.shape_cast %135 : vector<4x16x16xf32> to vector<4x1x16x16xf32>
    %c3 = arith.constant 3 : index
    %c0_41 = arith.constant 0 : index
    %c0_42 = arith.constant 0 : index
    %c0_43 = arith.constant 0 : index
    %137 = vector.load %arg6[%c3, %c0_41, %c0_42, %c0_43] : memref<4x1x16x16xf32, #tpu.memory_space<vmem>>, vector<1x1x16x16xf32>
    %138 = vector.shape_cast %137 : vector<1x1x16x16xf32> to vector<1x16x16xf32>
    %139 = vector.shape_cast %138 : vector<1x16x16xf32> to vector<1x1x16x16xf32>
    %140 = vector.broadcast %139 : vector<1x1x16x16xf32> to vector<4x1x16x16xf32>
    %141 = arith.addf %136, %140 : vector<4x1x16x16xf32>
    %142 = vector.shape_cast %141 : vector<4x1x16x16xf32> to vector<4x16x16xf32>
    %cst_44 = arith.constant dense<0xFF800000> : vector<4x16xf32>
    %143 = vector.multi_reduction <maximumf>, %142, %cst_44 [2] : vector<4x16x16xf32> to vector<4x16xf32>
    %144 = vector.shape_cast %143 : vector<4x16xf32> to vector<4x16x1xf32>
    %145 = vector.broadcast %144 : vector<4x16x1xf32> to vector<4x16x16xf32>
    %146 = arith.subf %142, %145 : vector<4x16x16xf32>
    %147 = math.exp %146 : vector<4x16x16xf32>
    %cst_45 = arith.constant dense<0.000000e+00> : vector<4x16xf32>
    %148 = vector.multi_reduction <add>, %147, %cst_45 [2] : vector<4x16x16xf32> to vector<4x16xf32>
    %149 = vector.shape_cast %148 : vector<4x16xf32> to vector<4x16x1xf32>
    %150 = tpu.reciprocal %149 {approx = true} : vector<4x16x1xf32> -> vector<4x16x1xf32>
    %151 = vector.broadcast %150 : vector<4x16x1xf32> to vector<4x16x16xf32>
    %152 = arith.mulf %147, %151 : vector<4x16x16xf32>
    %153 = arith.truncf %152 : vector<4x16x16xf32> to vector<4x16x16xbf16>
    "tpu.trace_start"() <{level = 10 : i32, message = "wnm,wmd->wnd"}> : () -> ()
    %cst_46 = arith.constant dense<0.000000e+00> : vector<4x16x8xf32>
    %154 = tpu.matmul %153, %134, %cst_46 {dimension_numbers = #tpu.dot_dimension_numbers<[2], [1], [1], [2], [0, 0, 0, 1, 1, 2], [0], [0]>} : vector<4x16x16xbf16>, vector<4x16x8xbf16>, vector<4x16x8xf32> -> vector<4x16x8xf32>
    "tpu.trace_stop"() : () -> ()
    %155 = vector.shape_cast %154 : vector<4x16x8xf32> to vector<64x8xf32>
    %156 = arith.truncf %155 : vector<64x8xf32> to vector<64x8xbf16>
    %c0_47 = arith.constant 0 : index
    %c24 = arith.constant 24 : index
    %157 = vector.load %arg10[%c0_47, %c24] : memref<64x32xbf16, #tpu.memory_space<vmem>>, vector<64x8xbf16>
    tpu.vector_store %arg10[%c0_47, %c24], %156 {strides = array<i32>} : memref<64x32xbf16, #tpu.memory_space<vmem>>, vector<64x8xbf16>,
    %c0_48 = arith.constant 0 : index
    %c0_49 = arith.constant 0 : index
    %158 = vector.load %arg10[%c0_48, %c0_49] : memref<64x32xbf16, #tpu.memory_space<vmem>>, vector<64x32xbf16>
    %c0_50 = arith.constant 0 : index
    %c0_51 = arith.constant 0 : index
    %159 = vector.load %arg7[%c0_50, %c0_51] : memref<32x32xbf16, #tpu.memory_space<vmem>>, vector<32x32xbf16>
    %cst_52 = arith.constant dense<0.000000e+00> : vector<64x32xf32>
    %160 = tpu.matmul %158, %159, %cst_52 {dimension_numbers = #tpu.dot_dimension_numbers<[1], [0], [0], [1], [0, 0, 1, 1], [], []>} : vector<64x32xbf16>, vector<32x32xbf16>, vector<64x32xf32> -> vector<64x32xf32>
    %c0_53 = arith.constant 0 : index
    %c0_54 = arith.constant 0 : index
    %161 = vector.load %arg8[%c0_53, %c0_54] : memref<1x32xf32, #tpu.memory_space<vmem>>, vector<1x32xf32>
    %162 = vector.broadcast %161 : vector<1x32xf32> to vector<64x32xf32>
    %163 = arith.addf %160, %162 : vector<64x32xf32>
    %164 = arith.truncf %163 : vector<64x32xf32> to vector<64x32xbf16>
    %c0_55 = arith.constant 0 : index
    %c0_56 = arith.constant 0 : index
    %165 = vector.load %arg9[%c0_55, %c0_56] : memref<64x32xbf16, #tpu.memory_space<vmem>>, vector<64x32xbf16>
    tpu.vector_store %arg9[%c0_55, %c0_56], %164 {strides = array<i32>} : memref<64x32xbf16, #tpu.memory_space<vmem>>, vector<64x32xbf16>,
    return
  }
  func.func @transform_0(%arg0: i32) -> (i32, i32) {
    %c0_i32 = arith.constant 0 : i32
    %c0_i32_0 = arith.constant 0 : i32
    return %arg0, %c0_i32 : i32, i32
  }
  func.func @transform_1(%arg0: i32) -> (i32, i32) {
    %c0_i32 = arith.constant 0 : i32
    %c0_i32_0 = arith.constant 0 : i32
    %c0_i32_1 = arith.constant 0 : i32
    return %c0_i32, %c0_i32_0 : i32, i32
  }
  func.func @transform_2(%arg0: i32) -> (i32, i32) {
    %c0_i32 = arith.constant 0 : i32
    %c0_i32_0 = arith.constant 0 : i32
    %c0_i32_1 = arith.constant 0 : i32
    return %c0_i32, %c0_i32_0 : i32, i32
  }
  func.func @transform_3(%arg0: i32) -> (i32, i32) {
    %c0_i32 = arith.constant 0 : i32
    %c0_i32_0 = arith.constant 0 : i32
    %c0_i32_1 = arith.constant 0 : i32
    return %c0_i32, %c0_i32_0 : i32, i32
  }
  func.func @transform_4(%arg0: i32) -> (i32, i32) {
    %c0_i32 = arith.constant 0 : i32
    %c0_i32_0 = arith.constant 0 : i32
    %c0_i32_1 = arith.constant 0 : i32
    return %c0_i32, %c0_i32_0 : i32, i32
  }
  func.func @transform_5(%arg0: i32) -> (i32, i32, i32, i32) {
    %c0_i32 = arith.constant 0 : i32
    %c0_i32_0 = arith.constant 0 : i32
    %c0_i32_1 = arith.constant 0 : i32
    %c0_i32_2 = arith.constant 0 : i32
    %c0_i32_3 = arith.constant 0 : i32
    return %c0_i32, %c0_i32_0, %c0_i32_1, %c0_i32_2 : i32, i32, i32, i32
  }
  func.func @transform_6(%arg0: i32) -> (i32, i32) {
    %c0_i32 = arith.constant 0 : i32
    %c0_i32_0 = arith.constant 0 : i32
    %c0_i32_1 = arith.constant 0 : i32
    return %c0_i32, %c0_i32_0 : i32, i32
  }
  func.func @transform_7(%arg0: i32) -> (i32, i32) {
    %c0_i32 = arith.constant 0 : i32
    %c0_i32_0 = arith.constant 0 : i32
    %c0_i32_1 = arith.constant 0 : i32
    return %c0_i32, %c0_i32_0 : i32, i32
  }
  func.func @transform_8(%arg0: i32) -> (i32, i32) {
    %c0_i32 = arith.constant 0 : i32
    %c0_i32_0 = arith.constant 0 : i32
    return %arg0, %c0_i32 : i32, i32
  }
}

module attributes {stable_mosaic.version = 11 : i64} {
  func.func @_ln_mlp_kernel(%arg0: i32, %arg1: memref<64x32xbf16, #tpu.memory_space<vmem>>, %arg2: memref<1x32xf32, #tpu.memory_space<vmem>>, %arg3: memref<1x32xf32, #tpu.memory_space<vmem>>, %arg4: memref<32x128xbf16, #tpu.memory_space<vmem>>, %arg5: memref<1x128xf32, #tpu.memory_space<vmem>>, %arg6: memref<128x32xbf16, #tpu.memory_space<vmem>>, %arg7: memref<1x32xf32, #tpu.memory_space<vmem>>, %arg8: memref<64x32xf32, #tpu.memory_space<vmem>>) attributes {dimension_semantics = [#tpu.dimension_semantics<parallel>], iteration_bounds = array<i64: 2>, scalar_prefetch = 0 : i64, scratch_operands = 0 : i64, tpu.core_type = #tpu.core_type<tc>, window_params = [{transform_indices = @transform_0, window_bounds = array<i64: 64, 32>}, {pipeline_mode = #tpu.pipeline_mode<synchronous>, transform_indices = @transform_1, window_bounds = array<i64: 1, 32>}, {pipeline_mode = #tpu.pipeline_mode<synchronous>, transform_indices = @transform_2, window_bounds = array<i64: 1, 32>}, {pipeline_mode = #tpu.pipeline_mode<synchronous>, transform_indices = @transform_3, window_bounds = array<i64: 32, 128>}, {pipeline_mode = #tpu.pipeline_mode<synchronous>, transform_indices = @transform_4, window_bounds = array<i64: 1, 128>}, {pipeline_mode = #tpu.pipeline_mode<synchronous>, transform_indices = @transform_5, window_bounds = array<i64: 128, 32>}, {pipeline_mode = #tpu.pipeline_mode<synchronous>, transform_indices = @transform_6, window_bounds = array<i64: 1, 32>}, {transform_indices = @transform_7, window_bounds = array<i64: 64, 32>}]} {
    %c0 = arith.constant 0 : index
    %c0_0 = arith.constant 0 : index
    %0 = vector.load %arg1[%c0, %c0_0] : memref<64x32xbf16, #tpu.memory_space<vmem>>, vector<64x32xbf16>
    %1 = arith.extf %0 : vector<64x32xbf16> to vector<64x32xf32>
    %cst = arith.constant dense<0.000000e+00> : vector<64xf32>
    %2 = vector.multi_reduction <add>, %1, %cst [1] : vector<64x32xf32> to vector<64xf32>
    %3 = vector.shape_cast %2 : vector<64xf32> to vector<64x1xf32>
    %cst_1 = arith.constant 3.200000e+01 : f32
    %4 = vector.broadcast %cst_1 : f32 to vector<64x1xf32>
    %5 = arith.divf %3, %4 : vector<64x1xf32>
    %6 = vector.broadcast %5 : vector<64x1xf32> to vector<64x32xf32>
    %7 = arith.subf %1, %6 : vector<64x32xf32>
    %8 = arith.mulf %7, %7 : vector<64x32xf32>
    %cst_2 = arith.constant dense<0.000000e+00> : vector<64xf32>
    %9 = vector.multi_reduction <add>, %8, %cst_2 [1] : vector<64x32xf32> to vector<64xf32>
    %10 = vector.shape_cast %9 : vector<64xf32> to vector<64x1xf32>
    %cst_3 = arith.constant 3.200000e+01 : f32
    %11 = vector.broadcast %cst_3 : f32 to vector<64x1xf32>
    %12 = arith.divf %10, %11 : vector<64x1xf32>
    %cst_4 = arith.constant 9.99999974E-6 : f32
    %13 = vector.broadcast %cst_4 : f32 to vector<64x1xf32>
    %14 = arith.addf %12, %13 : vector<64x1xf32>
    %15 = math.rsqrt %14 : vector<64x1xf32>
    %16 = vector.broadcast %15 : vector<64x1xf32> to vector<64x32xf32>
    %17 = arith.mulf %7, %16 : vector<64x32xf32>
    %c0_5 = arith.constant 0 : index
    %c0_6 = arith.constant 0 : index
    %18 = vector.load %arg2[%c0_5, %c0_6] : memref<1x32xf32, #tpu.memory_space<vmem>>, vector<1x32xf32>
    %19 = vector.broadcast %18 : vector<1x32xf32> to vector<64x32xf32>
    %20 = arith.mulf %17, %19 : vector<64x32xf32>
    %c0_7 = arith.constant 0 : index
    %c0_8 = arith.constant 0 : index
    %21 = vector.load %arg3[%c0_7, %c0_8] : memref<1x32xf32, #tpu.memory_space<vmem>>, vector<1x32xf32>
    %22 = vector.broadcast %21 : vector<1x32xf32> to vector<64x32xf32>
    %23 = arith.addf %20, %22 : vector<64x32xf32>
    %24 = arith.truncf %23 : vector<64x32xf32> to vector<64x32xbf16>
    %c0_9 = arith.constant 0 : index
    %c0_10 = arith.constant 0 : index
    %25 = vector.load %arg4[%c0_9, %c0_10] : memref<32x128xbf16, #tpu.memory_space<vmem>>, vector<32x128xbf16>
    %cst_11 = arith.constant dense<0.000000e+00> : vector<64x128xf32>
    %26 = tpu.matmul %24, %25, %cst_11 {dimension_numbers = #tpu.dot_dimension_numbers<[1], [0], [0], [1], [0, 0, 1, 1], [], []>} : vector<64x32xbf16>, vector<32x128xbf16>, vector<64x128xf32> -> vector<64x128xf32>
    %c0_12 = arith.constant 0 : index
    %c0_13 = arith.constant 0 : index
    %27 = vector.load %arg5[%c0_12, %c0_13] : memref<1x128xf32, #tpu.memory_space<vmem>>, vector<1x128xf32>
    %28 = vector.broadcast %27 : vector<1x128xf32> to vector<64x128xf32>
    %29 = arith.addf %26, %28 : vector<64x128xf32>
    %cst_14 = arith.constant 0.000000e+00 : f32
    %30 = vector.broadcast %cst_14 : f32 to vector<64x128xf32>
    %31 = arith.maximumf %29, %30 : vector<64x128xf32>
    %32 = arith.truncf %31 : vector<64x128xf32> to vector<64x128xbf16>
    %c0_15 = arith.constant 0 : index
    %c0_16 = arith.constant 0 : index
    %33 = vector.load %arg6[%c0_15, %c0_16] : memref<128x32xbf16, #tpu.memory_space<vmem>>, vector<128x32xbf16>
    %cst_17 = arith.constant dense<0.000000e+00> : vector<64x32xf32>
    %34 = tpu.matmul %32, %33, %cst_17 {dimension_numbers = #tpu.dot_dimension_numbers<[1], [0], [0], [1], [0, 0, 1, 1], [], []>} : vector<64x128xbf16>, vector<128x32xbf16>, vector<64x32xf32> -> vector<64x32xf32>
    %c0_18 = arith.constant 0 : index
    %c0_19 = arith.constant 0 : index
    %35 = vector.load %arg7[%c0_18, %c0_19] : memref<1x32xf32, #tpu.memory_space<vmem>>, vector<1x32xf32>
    %36 = vector.broadcast %35 : vector<1x32xf32> to vector<64x32xf32>
    %37 = arith.addf %34, %36 : vector<64x32xf32>
    %38 = arith.addf %1, %37 : vector<64x32xf32>
    %c0_20 = arith.constant 0 : index
    %c0_21 = arith.constant 0 : index
    %39 = vector.load %arg8[%c0_20, %c0_21] : memref<64x32xf32, #tpu.memory_space<vmem>>, vector<64x32xf32>
    tpu.vector_store %arg8[%c0_20, %c0_21], %38 {strides = array<i32>} : memref<64x32xf32, #tpu.memory_space<vmem>>, vector<64x32xf32>,
    return
  }
  func.func @transform_0(%arg0: i32) -> (i32, i32) {
    %c0_i32 = arith.constant 0 : i32
    %c0_i32_0 = arith.constant 0 : i32
    return %arg0, %c0_i32 : i32, i32
  }
  func.func @transform_1(%arg0: i32) -> (i32, i32) {
    %c0_i32 = arith.constant 0 : i32
    %c0_i32_0 = arith.constant 0 : i32
    %c0_i32_1 = arith.constant 0 : i32
    return %c0_i32, %c0_i32_0 : i32, i32
  }
  func.func @transform_2(%arg0: i32) -> (i32, i32) {
    %c0_i32 = arith.constant 0 : i32
    %c0_i32_0 = arith.constant 0 : i32
    %c0_i32_1 = arith.constant 0 : i32
    return %c0_i32, %c0_i32_0 : i32, i32
  }
  func.func @transform_3(%arg0: i32) -> (i32, i32) {
    %c0_i32 = arith.constant 0 : i32
    %c0_i32_0 = arith.constant 0 : i32
    %c0_i32_1 = arith.constant 0 : i32
    return %c0_i32, %c0_i32_0 : i32, i32
  }
  func.func @transform_4(%arg0: i32) -> (i32, i32) {
    %c0_i32 = arith.constant 0 : i32
    %c0_i32_0 = arith.constant 0 : i32
    %c0_i32_1 = arith.constant 0 : i32
    return %c0_i32, %c0_i32_0 : i32, i32
  }
  func.func @transform_5(%arg0: i32) -> (i32, i32) {
    %c0_i32 = arith.constant 0 : i32
    %c0_i32_0 = arith.constant 0 : i32
    %c0_i32_1 = arith.constant 0 : i32
    return %c0_i32, %c0_i32_0 : i32, i32
  }
  func.func @transform_6(%arg0: i32) -> (i32, i32) {
    %c0_i32 = arith.constant 0 : i32
    %c0_i32_0 = arith.constant 0 : i32
    %c0_i32_1 = arith.constant 0 : i32
    return %c0_i32, %c0_i32_0 : i32, i32
  }
  func.func @transform_7(%arg0: i32) -> (i32, i32) {
    %c0_i32 = arith.constant 0 : i32
    %c0_i32_0 = arith.constant 0 : i32
    return %arg0, %c0_i32 : i32, i32
  }
}

module attributes {stable_mosaic.version = 11 : i64} {
  func.func @_wmsa_kernel(%arg0: i32, %arg1: memref<64x32xbf16, #tpu.memory_space<vmem>>, %arg2: memref<1x32xf32, #tpu.memory_space<vmem>>, %arg3: memref<1x32xf32, #tpu.memory_space<vmem>>, %arg4: memref<32x96xbf16, #tpu.memory_space<vmem>>, %arg5: memref<1x96xf32, #tpu.memory_space<vmem>>, %arg6: memref<4x4x16x16xf32, #tpu.memory_space<vmem>>, %arg7: memref<32x32xbf16, #tpu.memory_space<vmem>>, %arg8: memref<1x32xf32, #tpu.memory_space<vmem>>, %arg9: memref<64x32xbf16, #tpu.memory_space<vmem>>, %arg10: memref<64x32xbf16, #tpu.memory_space<vmem>>) attributes {dimension_semantics = [#tpu.dimension_semantics<parallel>], iteration_bounds = array<i64: 2>, scalar_prefetch = 0 : i64, scratch_operands = 1 : i64, tpu.core_type = #tpu.core_type<tc>, window_params = [{transform_indices = @transform_0, window_bounds = array<i64: 64, 32>}, {pipeline_mode = #tpu.pipeline_mode<synchronous>, transform_indices = @transform_1, window_bounds = array<i64: 1, 32>}, {pipeline_mode = #tpu.pipeline_mode<synchronous>, transform_indices = @transform_2, window_bounds = array<i64: 1, 32>}, {pipeline_mode = #tpu.pipeline_mode<synchronous>, transform_indices = @transform_3, window_bounds = array<i64: 32, 96>}, {pipeline_mode = #tpu.pipeline_mode<synchronous>, transform_indices = @transform_4, window_bounds = array<i64: 1, 96>}, {pipeline_mode = #tpu.pipeline_mode<synchronous>, transform_indices = @transform_5, window_bounds = array<i64: 4, 4, 16, 16>}, {pipeline_mode = #tpu.pipeline_mode<synchronous>, transform_indices = @transform_6, window_bounds = array<i64: 32, 32>}, {pipeline_mode = #tpu.pipeline_mode<synchronous>, transform_indices = @transform_7, window_bounds = array<i64: 1, 32>}, {transform_indices = @transform_8, window_bounds = array<i64: 64, 32>}]} {
    %c0 = arith.constant 0 : index
    %c0_0 = arith.constant 0 : index
    %0 = vector.load %arg1[%c0, %c0_0] : memref<64x32xbf16, #tpu.memory_space<vmem>>, vector<64x32xbf16>
    %1 = arith.extf %0 : vector<64x32xbf16> to vector<64x32xf32>
    %cst = arith.constant dense<0.000000e+00> : vector<64xf32>
    %2 = vector.multi_reduction <add>, %1, %cst [1] : vector<64x32xf32> to vector<64xf32>
    %3 = vector.shape_cast %2 : vector<64xf32> to vector<64x1xf32>
    %cst_1 = arith.constant 3.200000e+01 : f32
    %4 = vector.broadcast %cst_1 : f32 to vector<64x1xf32>
    %5 = arith.divf %3, %4 : vector<64x1xf32>
    %6 = vector.broadcast %5 : vector<64x1xf32> to vector<64x32xf32>
    %7 = arith.subf %1, %6 : vector<64x32xf32>
    %8 = arith.mulf %7, %7 : vector<64x32xf32>
    %cst_2 = arith.constant dense<0.000000e+00> : vector<64xf32>
    %9 = vector.multi_reduction <add>, %8, %cst_2 [1] : vector<64x32xf32> to vector<64xf32>
    %10 = vector.shape_cast %9 : vector<64xf32> to vector<64x1xf32>
    %cst_3 = arith.constant 3.200000e+01 : f32
    %11 = vector.broadcast %cst_3 : f32 to vector<64x1xf32>
    %12 = arith.divf %10, %11 : vector<64x1xf32>
    %cst_4 = arith.constant 9.99999974E-6 : f32
    %13 = vector.broadcast %cst_4 : f32 to vector<64x1xf32>
    %14 = arith.addf %12, %13 : vector<64x1xf32>
    %15 = math.rsqrt %14 : vector<64x1xf32>
    %16 = vector.broadcast %15 : vector<64x1xf32> to vector<64x32xf32>
    %17 = arith.mulf %7, %16 : vector<64x32xf32>
    %c0_5 = arith.constant 0 : index
    %c0_6 = arith.constant 0 : index
    %18 = vector.load %arg2[%c0_5, %c0_6] : memref<1x32xf32, #tpu.memory_space<vmem>>, vector<1x32xf32>
    %19 = vector.broadcast %18 : vector<1x32xf32> to vector<64x32xf32>
    %20 = arith.mulf %17, %19 : vector<64x32xf32>
    %c0_7 = arith.constant 0 : index
    %c0_8 = arith.constant 0 : index
    %21 = vector.load %arg3[%c0_7, %c0_8] : memref<1x32xf32, #tpu.memory_space<vmem>>, vector<1x32xf32>
    %22 = vector.broadcast %21 : vector<1x32xf32> to vector<64x32xf32>
    %23 = arith.addf %20, %22 : vector<64x32xf32>
    %24 = arith.truncf %23 : vector<64x32xf32> to vector<64x32xbf16>
    %c0_9 = arith.constant 0 : index
    %c0_10 = arith.constant 0 : index
    %25 = vector.load %arg4[%c0_9, %c0_10] : memref<32x96xbf16, #tpu.memory_space<vmem>>, vector<32x96xbf16>
    %cst_11 = arith.constant dense<0.000000e+00> : vector<64x96xf32>
    %26 = tpu.matmul %24, %25, %cst_11 {dimension_numbers = #tpu.dot_dimension_numbers<[1], [0], [0], [1], [0, 0, 1, 1], [], []>} : vector<64x32xbf16>, vector<32x96xbf16>, vector<64x96xf32> -> vector<64x96xf32>
    %c0_12 = arith.constant 0 : index
    %c0_13 = arith.constant 0 : index
    %27 = vector.load %arg5[%c0_12, %c0_13] : memref<1x96xf32, #tpu.memory_space<vmem>>, vector<1x96xf32>
    %28 = vector.broadcast %27 : vector<1x96xf32> to vector<64x96xf32>
    %29 = arith.addf %26, %28 : vector<64x96xf32>
    %30 = vector.extract_strided_slice %29 {offsets = [0, 0], sizes = [64, 8], strides = [1, 1]} : vector<64x96xf32> to vector<64x8xf32>
    %31 = vector.shape_cast %30 : vector<64x8xf32> to vector<4x16x8xf32>
    %32 = arith.truncf %31 : vector<4x16x8xf32> to vector<4x16x8xbf16>
    %33 = vector.extract_strided_slice %29 {offsets = [0, 32], sizes = [64, 8], strides = [1, 1]} : vector<64x96xf32> to vector<64x8xf32>
    %34 = vector.shape_cast %33 : vector<64x8xf32> to vector<4x16x8xf32>
    %35 = arith.truncf %34 : vector<4x16x8xf32> to vector<4x16x8xbf16>
    %36 = vector.extract_strided_slice %29 {offsets = [0, 64], sizes = [64, 8], strides = [1, 1]} : vector<64x96xf32> to vector<64x8xf32>
    %37 = vector.shape_cast %36 : vector<64x8xf32> to vector<4x16x8xf32>
    %38 = arith.truncf %37 : vector<4x16x8xf32> to vector<4x16x8xbf16>
    "tpu.trace_start"() <{level = 10 : i32, message = "wnd,wmd->wnm"}> : () -> ()
    %cst_14 = arith.constant dense<0.000000e+00> : vector<4x16x16xf32>
    %39 = tpu.matmul %32, %35, %cst_14 {dimension_numbers = #tpu.dot_dimension_numbers<[2], [2], [1], [1], [0, 0, 0, 1, 1, 1], [0], [0]>} : vector<4x16x8xbf16>, vector<4x16x8xbf16>, vector<4x16x16xf32> -> vector<4x16x16xf32>
    "tpu.trace_stop"() : () -> ()
    %40 = vector.shape_cast %39 : vector<4x16x16xf32> to vector<1x4x16x16xf32>
    %c0_15 = arith.constant 0 : index
    %c0_16 = arith.constant 0 : index
    %c0_17 = arith.constant 0 : index
    %c0_18 = arith.constant 0 : index
    %41 = vector.load %arg6[%c0_15, %c0_16, %c0_17, %c0_18] : memref<4x4x16x16xf32, #tpu.memory_space<vmem>>, vector<1x4x16x16xf32>
    %42 = vector.shape_cast %41 : vector<1x4x16x16xf32> to vector<4x16x16xf32>
    %43 = vector.shape_cast %42 : vector<4x16x16xf32> to vector<1x4x16x16xf32>
    %44 = arith.addf %40, %43 : vector<1x4x16x16xf32>
    %45 = vector.shape_cast %44 : vector<1x4x16x16xf32> to vector<4x16x16xf32>
    %cst_19 = arith.constant dense<0xFF800000> : vector<4x16xf32>
    %46 = vector.multi_reduction <maximumf>, %45, %cst_19 [2] : vector<4x16x16xf32> to vector<4x16xf32>
    %47 = vector.shape_cast %46 : vector<4x16xf32> to vector<4x16x1xf32>
    %48 = vector.broadcast %47 : vector<4x16x1xf32> to vector<4x16x16xf32>
    %49 = arith.subf %45, %48 : vector<4x16x16xf32>
    %50 = math.exp %49 : vector<4x16x16xf32>
    %cst_20 = arith.constant dense<0.000000e+00> : vector<4x16xf32>
    %51 = vector.multi_reduction <add>, %50, %cst_20 [2] : vector<4x16x16xf32> to vector<4x16xf32>
    %52 = vector.shape_cast %51 : vector<4x16xf32> to vector<4x16x1xf32>
    %53 = tpu.reciprocal %52 {approx = true} : vector<4x16x1xf32> -> vector<4x16x1xf32>
    %54 = vector.broadcast %53 : vector<4x16x1xf32> to vector<4x16x16xf32>
    %55 = arith.mulf %50, %54 : vector<4x16x16xf32>
    %56 = arith.truncf %55 : vector<4x16x16xf32> to vector<4x16x16xbf16>
    "tpu.trace_start"() <{level = 10 : i32, message = "wnm,wmd->wnd"}> : () -> ()
    %cst_21 = arith.constant dense<0.000000e+00> : vector<4x16x8xf32>
    %57 = tpu.matmul %56, %38, %cst_21 {dimension_numbers = #tpu.dot_dimension_numbers<[2], [1], [1], [2], [0, 0, 0, 1, 1, 2], [0], [0]>} : vector<4x16x16xbf16>, vector<4x16x8xbf16>, vector<4x16x8xf32> -> vector<4x16x8xf32>
    "tpu.trace_stop"() : () -> ()
    %58 = vector.shape_cast %57 : vector<4x16x8xf32> to vector<64x8xf32>
    %59 = arith.truncf %58 : vector<64x8xf32> to vector<64x8xbf16>
    %c0_22 = arith.constant 0 : index
    %c0_23 = arith.constant 0 : index
    %60 = vector.load %arg10[%c0_22, %c0_23] : memref<64x32xbf16, #tpu.memory_space<vmem>>, vector<64x8xbf16>
    tpu.vector_store %arg10[%c0_22, %c0_23], %59 {strides = array<i32>} : memref<64x32xbf16, #tpu.memory_space<vmem>>, vector<64x8xbf16>,
    %61 = vector.extract_strided_slice %29 {offsets = [0, 8], sizes = [64, 8], strides = [1, 1]} : vector<64x96xf32> to vector<64x8xf32>
    %62 = vector.shape_cast %61 : vector<64x8xf32> to vector<4x16x8xf32>
    %63 = arith.truncf %62 : vector<4x16x8xf32> to vector<4x16x8xbf16>
    %64 = vector.extract_strided_slice %29 {offsets = [0, 40], sizes = [64, 8], strides = [1, 1]} : vector<64x96xf32> to vector<64x8xf32>
    %65 = vector.shape_cast %64 : vector<64x8xf32> to vector<4x16x8xf32>
    %66 = arith.truncf %65 : vector<4x16x8xf32> to vector<4x16x8xbf16>
    %67 = vector.extract_strided_slice %29 {offsets = [0, 72], sizes = [64, 8], strides = [1, 1]} : vector<64x96xf32> to vector<64x8xf32>
    %68 = vector.shape_cast %67 : vector<64x8xf32> to vector<4x16x8xf32>
    %69 = arith.truncf %68 : vector<4x16x8xf32> to vector<4x16x8xbf16>
    "tpu.trace_start"() <{level = 10 : i32, message = "wnd,wmd->wnm"}> : () -> ()
    %cst_24 = arith.constant dense<0.000000e+00> : vector<4x16x16xf32>
    %70 = tpu.matmul %63, %66, %cst_24 {dimension_numbers = #tpu.dot_dimension_numbers<[2], [2], [1], [1], [0, 0, 0, 1, 1, 1], [0], [0]>} : vector<4x16x8xbf16>, vector<4x16x8xbf16>, vector<4x16x16xf32> -> vector<4x16x16xf32>
    "tpu.trace_stop"() : () -> ()
    %71 = vector.shape_cast %70 : vector<4x16x16xf32> to vector<1x4x16x16xf32>
    %c1 = arith.constant 1 : index
    %c0_25 = arith.constant 0 : index
    %c0_26 = arith.constant 0 : index
    %c0_27 = arith.constant 0 : index
    %72 = vector.load %arg6[%c1, %c0_25, %c0_26, %c0_27] : memref<4x4x16x16xf32, #tpu.memory_space<vmem>>, vector<1x4x16x16xf32>
    %73 = vector.shape_cast %72 : vector<1x4x16x16xf32> to vector<4x16x16xf32>
    %74 = vector.shape_cast %73 : vector<4x16x16xf32> to vector<1x4x16x16xf32>
    %75 = arith.addf %71, %74 : vector<1x4x16x16xf32>
    %76 = vector.shape_cast %75 : vector<1x4x16x16xf32> to vector<4x16x16xf32>
    %cst_28 = arith.constant dense<0xFF800000> : vector<4x16xf32>
    %77 = vector.multi_reduction <maximumf>, %76, %cst_28 [2] : vector<4x16x16xf32> to vector<4x16xf32>
    %78 = vector.shape_cast %77 : vector<4x16xf32> to vector<4x16x1xf32>
    %79 = vector.broadcast %78 : vector<4x16x1xf32> to vector<4x16x16xf32>
    %80 = arith.subf %76, %79 : vector<4x16x16xf32>
    %81 = math.exp %80 : vector<4x16x16xf32>
    %cst_29 = arith.constant dense<0.000000e+00> : vector<4x16xf32>
    %82 = vector.multi_reduction <add>, %81, %cst_29 [2] : vector<4x16x16xf32> to vector<4x16xf32>
    %83 = vector.shape_cast %82 : vector<4x16xf32> to vector<4x16x1xf32>
    %84 = tpu.reciprocal %83 {approx = true} : vector<4x16x1xf32> -> vector<4x16x1xf32>
    %85 = vector.broadcast %84 : vector<4x16x1xf32> to vector<4x16x16xf32>
    %86 = arith.mulf %81, %85 : vector<4x16x16xf32>
    %87 = arith.truncf %86 : vector<4x16x16xf32> to vector<4x16x16xbf16>
    "tpu.trace_start"() <{level = 10 : i32, message = "wnm,wmd->wnd"}> : () -> ()
    %cst_30 = arith.constant dense<0.000000e+00> : vector<4x16x8xf32>
    %88 = tpu.matmul %87, %69, %cst_30 {dimension_numbers = #tpu.dot_dimension_numbers<[2], [1], [1], [2], [0, 0, 0, 1, 1, 2], [0], [0]>} : vector<4x16x16xbf16>, vector<4x16x8xbf16>, vector<4x16x8xf32> -> vector<4x16x8xf32>
    "tpu.trace_stop"() : () -> ()
    %89 = vector.shape_cast %88 : vector<4x16x8xf32> to vector<64x8xf32>
    %90 = arith.truncf %89 : vector<64x8xf32> to vector<64x8xbf16>
    %c0_31 = arith.constant 0 : index
    %c8 = arith.constant 8 : index
    %91 = vector.load %arg10[%c0_31, %c8] : memref<64x32xbf16, #tpu.memory_space<vmem>>, vector<64x8xbf16>
    tpu.vector_store %arg10[%c0_31, %c8], %90 {strides = array<i32>} : memref<64x32xbf16, #tpu.memory_space<vmem>>, vector<64x8xbf16>,
    %92 = vector.extract_strided_slice %29 {offsets = [0, 16], sizes = [64, 8], strides = [1, 1]} : vector<64x96xf32> to vector<64x8xf32>
    %93 = vector.shape_cast %92 : vector<64x8xf32> to vector<4x16x8xf32>
    %94 = arith.truncf %93 : vector<4x16x8xf32> to vector<4x16x8xbf16>
    %95 = vector.extract_strided_slice %29 {offsets = [0, 48], sizes = [64, 8], strides = [1, 1]} : vector<64x96xf32> to vector<64x8xf32>
    %96 = vector.shape_cast %95 : vector<64x8xf32> to vector<4x16x8xf32>
    %97 = arith.truncf %96 : vector<4x16x8xf32> to vector<4x16x8xbf16>
    %98 = vector.extract_strided_slice %29 {offsets = [0, 80], sizes = [64, 8], strides = [1, 1]} : vector<64x96xf32> to vector<64x8xf32>
    %99 = vector.shape_cast %98 : vector<64x8xf32> to vector<4x16x8xf32>
    %100 = arith.truncf %99 : vector<4x16x8xf32> to vector<4x16x8xbf16>
    "tpu.trace_start"() <{level = 10 : i32, message = "wnd,wmd->wnm"}> : () -> ()
    %cst_32 = arith.constant dense<0.000000e+00> : vector<4x16x16xf32>
    %101 = tpu.matmul %94, %97, %cst_32 {dimension_numbers = #tpu.dot_dimension_numbers<[2], [2], [1], [1], [0, 0, 0, 1, 1, 1], [0], [0]>} : vector<4x16x8xbf16>, vector<4x16x8xbf16>, vector<4x16x16xf32> -> vector<4x16x16xf32>
    "tpu.trace_stop"() : () -> ()
    %102 = vector.shape_cast %101 : vector<4x16x16xf32> to vector<1x4x16x16xf32>
    %c2 = arith.constant 2 : index
    %c0_33 = arith.constant 0 : index
    %c0_34 = arith.constant 0 : index
    %c0_35 = arith.constant 0 : index
    %103 = vector.load %arg6[%c2, %c0_33, %c0_34, %c0_35] : memref<4x4x16x16xf32, #tpu.memory_space<vmem>>, vector<1x4x16x16xf32>
    %104 = vector.shape_cast %103 : vector<1x4x16x16xf32> to vector<4x16x16xf32>
    %105 = vector.shape_cast %104 : vector<4x16x16xf32> to vector<1x4x16x16xf32>
    %106 = arith.addf %102, %105 : vector<1x4x16x16xf32>
    %107 = vector.shape_cast %106 : vector<1x4x16x16xf32> to vector<4x16x16xf32>
    %cst_36 = arith.constant dense<0xFF800000> : vector<4x16xf32>
    %108 = vector.multi_reduction <maximumf>, %107, %cst_36 [2] : vector<4x16x16xf32> to vector<4x16xf32>
    %109 = vector.shape_cast %108 : vector<4x16xf32> to vector<4x16x1xf32>
    %110 = vector.broadcast %109 : vector<4x16x1xf32> to vector<4x16x16xf32>
    %111 = arith.subf %107, %110 : vector<4x16x16xf32>
    %112 = math.exp %111 : vector<4x16x16xf32>
    %cst_37 = arith.constant dense<0.000000e+00> : vector<4x16xf32>
    %113 = vector.multi_reduction <add>, %112, %cst_37 [2] : vector<4x16x16xf32> to vector<4x16xf32>
    %114 = vector.shape_cast %113 : vector<4x16xf32> to vector<4x16x1xf32>
    %115 = tpu.reciprocal %114 {approx = true} : vector<4x16x1xf32> -> vector<4x16x1xf32>
    %116 = vector.broadcast %115 : vector<4x16x1xf32> to vector<4x16x16xf32>
    %117 = arith.mulf %112, %116 : vector<4x16x16xf32>
    %118 = arith.truncf %117 : vector<4x16x16xf32> to vector<4x16x16xbf16>
    "tpu.trace_start"() <{level = 10 : i32, message = "wnm,wmd->wnd"}> : () -> ()
    %cst_38 = arith.constant dense<0.000000e+00> : vector<4x16x8xf32>
    %119 = tpu.matmul %118, %100, %cst_38 {dimension_numbers = #tpu.dot_dimension_numbers<[2], [1], [1], [2], [0, 0, 0, 1, 1, 2], [0], [0]>} : vector<4x16x16xbf16>, vector<4x16x8xbf16>, vector<4x16x8xf32> -> vector<4x16x8xf32>
    "tpu.trace_stop"() : () -> ()
    %120 = vector.shape_cast %119 : vector<4x16x8xf32> to vector<64x8xf32>
    %121 = arith.truncf %120 : vector<64x8xf32> to vector<64x8xbf16>
    %c0_39 = arith.constant 0 : index
    %c16 = arith.constant 16 : index
    %122 = vector.load %arg10[%c0_39, %c16] : memref<64x32xbf16, #tpu.memory_space<vmem>>, vector<64x8xbf16>
    tpu.vector_store %arg10[%c0_39, %c16], %121 {strides = array<i32>} : memref<64x32xbf16, #tpu.memory_space<vmem>>, vector<64x8xbf16>,
    %123 = vector.extract_strided_slice %29 {offsets = [0, 24], sizes = [64, 8], strides = [1, 1]} : vector<64x96xf32> to vector<64x8xf32>
    %124 = vector.shape_cast %123 : vector<64x8xf32> to vector<4x16x8xf32>
    %125 = arith.truncf %124 : vector<4x16x8xf32> to vector<4x16x8xbf16>
    %126 = vector.extract_strided_slice %29 {offsets = [0, 56], sizes = [64, 8], strides = [1, 1]} : vector<64x96xf32> to vector<64x8xf32>
    %127 = vector.shape_cast %126 : vector<64x8xf32> to vector<4x16x8xf32>
    %128 = arith.truncf %127 : vector<4x16x8xf32> to vector<4x16x8xbf16>
    %129 = vector.extract_strided_slice %29 {offsets = [0, 88], sizes = [64, 8], strides = [1, 1]} : vector<64x96xf32> to vector<64x8xf32>
    %130 = vector.shape_cast %129 : vector<64x8xf32> to vector<4x16x8xf32>
    %131 = arith.truncf %130 : vector<4x16x8xf32> to vector<4x16x8xbf16>
    "tpu.trace_start"() <{level = 10 : i32, message = "wnd,wmd->wnm"}> : () -> ()
    %cst_40 = arith.constant dense<0.000000e+00> : vector<4x16x16xf32>
    %132 = tpu.matmul %125, %128, %cst_40 {dimension_numbers = #tpu.dot_dimension_numbers<[2], [2], [1], [1], [0, 0, 0, 1, 1, 1], [0], [0]>} : vector<4x16x8xbf16>, vector<4x16x8xbf16>, vector<4x16x16xf32> -> vector<4x16x16xf32>
    "tpu.trace_stop"() : () -> ()
    %133 = vector.shape_cast %132 : vector<4x16x16xf32> to vector<1x4x16x16xf32>
    %c3 = arith.constant 3 : index
    %c0_41 = arith.constant 0 : index
    %c0_42 = arith.constant 0 : index
    %c0_43 = arith.constant 0 : index
    %134 = vector.load %arg6[%c3, %c0_41, %c0_42, %c0_43] : memref<4x4x16x16xf32, #tpu.memory_space<vmem>>, vector<1x4x16x16xf32>
    %135 = vector.shape_cast %134 : vector<1x4x16x16xf32> to vector<4x16x16xf32>
    %136 = vector.shape_cast %135 : vector<4x16x16xf32> to vector<1x4x16x16xf32>
    %137 = arith.addf %133, %136 : vector<1x4x16x16xf32>
    %138 = vector.shape_cast %137 : vector<1x4x16x16xf32> to vector<4x16x16xf32>
    %cst_44 = arith.constant dense<0xFF800000> : vector<4x16xf32>
    %139 = vector.multi_reduction <maximumf>, %138, %cst_44 [2] : vector<4x16x16xf32> to vector<4x16xf32>
    %140 = vector.shape_cast %139 : vector<4x16xf32> to vector<4x16x1xf32>
    %141 = vector.broadcast %140 : vector<4x16x1xf32> to vector<4x16x16xf32>
    %142 = arith.subf %138, %141 : vector<4x16x16xf32>
    %143 = math.exp %142 : vector<4x16x16xf32>
    %cst_45 = arith.constant dense<0.000000e+00> : vector<4x16xf32>
    %144 = vector.multi_reduction <add>, %143, %cst_45 [2] : vector<4x16x16xf32> to vector<4x16xf32>
    %145 = vector.shape_cast %144 : vector<4x16xf32> to vector<4x16x1xf32>
    %146 = tpu.reciprocal %145 {approx = true} : vector<4x16x1xf32> -> vector<4x16x1xf32>
    %147 = vector.broadcast %146 : vector<4x16x1xf32> to vector<4x16x16xf32>
    %148 = arith.mulf %143, %147 : vector<4x16x16xf32>
    %149 = arith.truncf %148 : vector<4x16x16xf32> to vector<4x16x16xbf16>
    "tpu.trace_start"() <{level = 10 : i32, message = "wnm,wmd->wnd"}> : () -> ()
    %cst_46 = arith.constant dense<0.000000e+00> : vector<4x16x8xf32>
    %150 = tpu.matmul %149, %131, %cst_46 {dimension_numbers = #tpu.dot_dimension_numbers<[2], [1], [1], [2], [0, 0, 0, 1, 1, 2], [0], [0]>} : vector<4x16x16xbf16>, vector<4x16x8xbf16>, vector<4x16x8xf32> -> vector<4x16x8xf32>
    "tpu.trace_stop"() : () -> ()
    %151 = vector.shape_cast %150 : vector<4x16x8xf32> to vector<64x8xf32>
    %152 = arith.truncf %151 : vector<64x8xf32> to vector<64x8xbf16>
    %c0_47 = arith.constant 0 : index
    %c24 = arith.constant 24 : index
    %153 = vector.load %arg10[%c0_47, %c24] : memref<64x32xbf16, #tpu.memory_space<vmem>>, vector<64x8xbf16>
    tpu.vector_store %arg10[%c0_47, %c24], %152 {strides = array<i32>} : memref<64x32xbf16, #tpu.memory_space<vmem>>, vector<64x8xbf16>,
    %c0_48 = arith.constant 0 : index
    %c0_49 = arith.constant 0 : index
    %154 = vector.load %arg10[%c0_48, %c0_49] : memref<64x32xbf16, #tpu.memory_space<vmem>>, vector<64x32xbf16>
    %c0_50 = arith.constant 0 : index
    %c0_51 = arith.constant 0 : index
    %155 = vector.load %arg7[%c0_50, %c0_51] : memref<32x32xbf16, #tpu.memory_space<vmem>>, vector<32x32xbf16>
    %cst_52 = arith.constant dense<0.000000e+00> : vector<64x32xf32>
    %156 = tpu.matmul %154, %155, %cst_52 {dimension_numbers = #tpu.dot_dimension_numbers<[1], [0], [0], [1], [0, 0, 1, 1], [], []>} : vector<64x32xbf16>, vector<32x32xbf16>, vector<64x32xf32> -> vector<64x32xf32>
    %c0_53 = arith.constant 0 : index
    %c0_54 = arith.constant 0 : index
    %157 = vector.load %arg8[%c0_53, %c0_54] : memref<1x32xf32, #tpu.memory_space<vmem>>, vector<1x32xf32>
    %158 = vector.broadcast %157 : vector<1x32xf32> to vector<64x32xf32>
    %159 = arith.addf %156, %158 : vector<64x32xf32>
    %160 = arith.truncf %159 : vector<64x32xf32> to vector<64x32xbf16>
    %c0_55 = arith.constant 0 : index
    %c0_56 = arith.constant 0 : index
    %161 = vector.load %arg9[%c0_55, %c0_56] : memref<64x32xbf16, #tpu.memory_space<vmem>>, vector<64x32xbf16>
    tpu.vector_store %arg9[%c0_55, %c0_56], %160 {strides = array<i32>} : memref<64x32xbf16, #tpu.memory_space<vmem>>, vector<64x32xbf16>,
    return
  }
  func.func @transform_0(%arg0: i32) -> (i32, i32) {
    %c0_i32 = arith.constant 0 : i32
    %c0_i32_0 = arith.constant 0 : i32
    return %arg0, %c0_i32 : i32, i32
  }
  func.func @transform_1(%arg0: i32) -> (i32, i32) {
    %c0_i32 = arith.constant 0 : i32
    %c0_i32_0 = arith.constant 0 : i32
    %c0_i32_1 = arith.constant 0 : i32
    return %c0_i32, %c0_i32_0 : i32, i32
  }
  func.func @transform_2(%arg0: i32) -> (i32, i32) {
    %c0_i32 = arith.constant 0 : i32
    %c0_i32_0 = arith.constant 0 : i32
    %c0_i32_1 = arith.constant 0 : i32
    return %c0_i32, %c0_i32_0 : i32, i32
  }
  func.func @transform_3(%arg0: i32) -> (i32, i32) {
    %c0_i32 = arith.constant 0 : i32
    %c0_i32_0 = arith.constant 0 : i32
    %c0_i32_1 = arith.constant 0 : i32
    return %c0_i32, %c0_i32_0 : i32, i32
  }
  func.func @transform_4(%arg0: i32) -> (i32, i32) {
    %c0_i32 = arith.constant 0 : i32
    %c0_i32_0 = arith.constant 0 : i32
    %c0_i32_1 = arith.constant 0 : i32
    return %c0_i32, %c0_i32_0 : i32, i32
  }
  func.func @transform_5(%arg0: i32) -> (i32, i32, i32, i32) {
    %c0_i32 = arith.constant 0 : i32
    %c0_i32_0 = arith.constant 0 : i32
    %c0_i32_1 = arith.constant 0 : i32
    %c0_i32_2 = arith.constant 0 : i32
    %c0_i32_3 = arith.constant 0 : i32
    return %c0_i32, %c0_i32_0, %c0_i32_1, %c0_i32_2 : i32, i32, i32, i32
  }
  func.func @transform_6(%arg0: i32) -> (i32, i32) {
    %c0_i32 = arith.constant 0 : i32
    %c0_i32_0 = arith.constant 0 : i32
    %c0_i32_1 = arith.constant 0 : i32
    return %c0_i32, %c0_i32_0 : i32, i32
  }
  func.func @transform_7(%arg0: i32) -> (i32, i32) {
    %c0_i32 = arith.constant 0 : i32
    %c0_i32_0 = arith.constant 0 : i32
    %c0_i32_1 = arith.constant 0 : i32
    return %c0_i32, %c0_i32_0 : i32, i32
  }
  func.func @transform_8(%arg0: i32) -> (i32, i32) {
    %c0_i32 = arith.constant 0 : i32
    %c0_i32_0 = arith.constant 0 : i32
    return %arg0, %c0_i32 : i32, i32
  }
}

</mosaic_0001>

<llo_original>
// kernel: basic_layer_forward.5
$region0: #{basic_layer_forward.5}
  #allocation0 [shape = 'u32[]', space=smem, size = 0x4, offset = 0x4, fixed_abs, tag = 'smem constant byte address 0x4 - core index']
  #allocation1 [shape = 'u32[144,128]{1,0:T(1,128)}', space=vmem, size = 0x12000, scoped, tag = 'internal scratch']
  %s0 = inlined_call_operand.vmem [shape: bf16[128,32], index: 0, kind: input, shape index: {}]
  %s1 = inlined_call_operand.vmem [shape: f32[1,32], index: 1, kind: input, shape index: {}]
  %s2 = inlined_call_operand.vmem [shape: f32[1,32], index: 2, kind: input, shape index: {}]
  %s3 = inlined_call_operand.vmem [shape: bf16[32,128], index: 3, kind: input, shape index: {}]
  %s4 = inlined_call_operand.vmem [shape: f32[1,128], index: 4, kind: input, shape index: {}]
  %s5 = inlined_call_operand.vmem [shape: bf16[128,32], index: 5, kind: input, shape index: {}]
  %s6 = inlined_call_operand.vmem [shape: f32[1,32], index: 6, kind: input, shape index: {}]
  %s7 = inlined_call_operand.vmem [shape: f32[128,32], index: 7, kind: output, shape index: {}]
  %s8 = sld [smem:[#allocation0]]
  $region61: #{basic_layer_forward.5} parent=0
    _
  %s10 = ssub.s32 1, %s8
  %s11 = scalar_select 0, %s10, %s8
  loop: start=0, step=1, limit=4
  $region2: #{basic_layer_forward.5} parent=0 // loop_pre_header
    _
  $region3: #{basic_layer_forward.5} parent=0 // loop_header
    %s13 = sphi 0, %s17
    %p14 = scmp.ge.s32.totalorder %s13, 4
    %s23 = sphi 0, %s25
    %s26 = sphi 0, %s23
    %s27 = sphi 0, %s26
    %s43 = sphi 0, %s27
    %s47 = sphi 0, %s47
    %s49 = sphi 0, %s47
    %s50 = sphi 0, %s49
    %s64 = sphi 0, %s50
    %s68 = sphi 0, %s68
    %s70 = sphi 0, %s68
    %s71 = sphi 0, %s70
    %s85 = sphi 0, %s71
    %s89 = sphi 0, %s89
    %s91 = sphi 0, %s89
    %s92 = sphi 0, %s91
    %s106 = sphi 0, %s92
    %s110 = sphi 0, %s110
    %s112 = sphi 0, %s110
    %s113 = sphi 0, %s112
    %s127 = sphi 0, %s113
    %s131 = sphi 0, %s131
    %s133 = sphi 0, %s131
    %s134 = sphi 0, %s133
    %s148 = sphi 0, %s134
    %s152 = sphi 0, %s152
    %s154 = sphi 0, %s152
    %s155 = sphi 0, %s154
    %s169 = sphi 0, %s155
    %s175 = sphi 0, %s177
    %s178 = sphi 0, %s175
    %s179 = sphi 0, %s178
    %s195 = sphi 0, %s179
  $region4: #{basic_layer_forward.5} parent=0 // loop_header_branch
    %16 = sbr.rel (%p14) target = $region8
  $region5: #{basic_layer_forward.5} parent=0 // loop_body
    %s18 = ssub.s32 %s13, 1
    %s19 = ssub.s32 %s13, 2
    %s20 = sadd.s32 %s13, 1
    %s21 = ssub.s32 %s13, %s20
    %p22 = scmp.eq.s32.totalorder %s21, 0
    %s24 = sadd.s32 %s23, 1
    %s25 = scalar_select %p22, %s23, %s24
    %p28 = pneg %p22
    %p29 = scmp.eq.s32.totalorder %s13, 1
    %p30 = por %p28, %p29
    %p31 = scmp.ne.s32.totalorder %s23, %s26
    %p32 = scmp.eq.s32.totalorder %s13, 0
    %p33 = por %p31, %p32
    %p34 = scmp.ne.s32.totalorder %s23, %s26
    %p35 = scmp.eq.s32.totalorder %s18, 1
    %p36 = por %p34, %p35
    %p37 = scmp.ne.s32.totalorder %s26, %s27
    %p38 = scmp.eq.s32.totalorder %s18, 0
    %p39 = por %p37, %p38
    %p40 = scmp.ne.s32.totalorder %s26, %s27
    %p41 = scmp.eq.s32.totalorder %s19, 1
    %p42 = por %p40, %p41
    %p44 = scmp.ne.s32.totalorder %s27, %s43
    %p45 = scmp.eq.s32.totalorder %s19, 0
    %p46 = por %p44, %p45
    %s48 = sadd.s32 %s47, 1
    %p51 = scmp.eq.s32.totalorder %s13, 1
    %p52 = scmp.ne.s32.totalorder %s47, %s49
    %p53 = scmp.eq.s32.totalorder %s13, 0
    %p54 = por %p52, %p53
    %p55 = scmp.ne.s32.totalorder %s47, %s49
    %p56 = scmp.eq.s32.totalorder %s18, 1
    %p57 = por %p55, %p56
    %p58 = scmp.ne.s32.totalorder %s49, %s50
    %p59 = scmp.eq.s32.totalorder %s18, 0
    %p60 = por %p58, %p59
    %p61 = scmp.ne.s32.totalorder %s49, %s50
    %p62 = scmp.eq.s32.totalorder %s19, 1
    %p63 = por %p61, %p62
    %p65 = scmp.ne.s32.totalorder %s50, %s64
    %p66 = scmp.eq.s32.totalorder %s19, 0
    %p67 = por %p65, %p66
    %s69 = sadd.s32 %s68, 1
    %p72 = scmp.eq.s32.totalorder %s13, 1
    %p73 = scmp.ne.s32.totalorder %s68, %s70
    %p74 = scmp.eq.s32.totalorder %s13, 0
    %p75 = por %p73, %p74
    %p76 = scmp.ne.s32.totalorder %s68, %s70
    %p77 = scmp.eq.s32.totalorder %s18, 1
    %p78 = por %p76, %p77
    %p79 = scmp.ne.s32.totalorder %s70, %s71
    %p80 = scmp.eq.s32.totalorder %s18, 0
    %p81 = por %p79, %p80
    %p82 = scmp.ne.s32.totalorder %s70, %s71
    %p83 = scmp.eq.s32.totalorder %s19, 1
    %p84 = por %p82, %p83
    %p86 = scmp.ne.s32.totalorder %s71, %s85
    %p87 = scmp.eq.s32.totalorder %s19, 0
    %p88 = por %p86, %p87
    %s90 = sadd.s32 %s89, 1
    %p93 = scmp.eq.s32.totalorder %s13, 1
    %p94 = scmp.ne.s32.totalorder %s89, %s91
    %p95 = scmp.eq.s32.totalorder %s13, 0
    %p96 = por %p94, %p95
    %p97 = scmp.ne.s32.totalorder %s89, %s91
    %p98 = scmp.eq.s32.totalorder %s18, 1
    %p99 = por %p97, %p98
    %p100 = scmp.ne.s32.totalorder %s91, %s92
    %p101 = scmp.eq.s32.totalorder %s18, 0
    %p102 = por %p100, %p101
    %p103 = scmp.ne.s32.totalorder %s91, %s92
    %p104 = scmp.eq.s32.totalorder %s19, 1
    %p105 = por %p103, %p104
    %p107 = scmp.ne.s32.totalorder %s92, %s106
    %p108 = scmp.eq.s32.totalorder %s19, 0
    %p109 = por %p107, %p108
    %s111 = sadd.s32 %s110, 1
    %p114 = scmp.eq.s32.totalorder %s13, 1
    %p115 = scmp.ne.s32.totalorder %s110, %s112
    %p116 = scmp.eq.s32.totalorder %s13, 0
    %p117 = por %p115, %p116
    %p118 = scmp.ne.s32.totalorder %s110, %s112
    %p119 = scmp.eq.s32.totalorder %s18, 1
    %p120 = por %p118, %p119
    %p121 = scmp.ne.s32.totalorder %s112, %s113
    %p122 = scmp.eq.s32.totalorder %s18, 0
    %p123 = por %p121, %p122
    %p124 = scmp.ne.s32.totalorder %s112, %s113
    %p125 = scmp.eq.s32.totalorder %s19, 1
    %p126 = por %p124, %p125
    %p128 = scmp.ne.s32.totalorder %s113, %s127
    %p129 = scmp.eq.s32.totalorder %s19, 0
    %p130 = por %p128, %p129
    %s132 = sadd.s32 %s131, 1
    %p135 = scmp.eq.s32.totalorder %s13, 1
    %p136 = scmp.ne.s32.totalorder %s131, %s133
    %p137 = scmp.eq.s32.totalorder %s13, 0
    %p138 = por %p136, %p137
    %p139 = scmp.ne.s32.totalorder %s131, %s133
    %p140 = scmp.eq.s32.totalorder %s18, 1
    %p141 = por %p139, %p140
    %p142 = scmp.ne.s32.totalorder %s133, %s134
    %p143 = scmp.eq.s32.totalorder %s18, 0
    %p144 = por %p142, %p143
    %p145 = scmp.ne.s32.totalorder %s133, %s134
    %p146 = scmp.eq.s32.totalorder %s19, 1
    %p147 = por %p145, %p146
    %p149 = scmp.ne.s32.totalorder %s134, %s148
    %p150 = scmp.eq.s32.totalorder %s19, 0
    %p151 = por %p149, %p150
    %s153 = sadd.s32 %s152, 1
    %p156 = scmp.eq.s32.totalorder %s13, 1
    %p157 = scmp.ne.s32.totalorder %s152, %s154
    %p158 = scmp.eq.s32.totalorder %s13, 0
    %p159 = por %p157, %p158
    %p160 = scmp.ne.s32.totalorder %s152, %s154
    %p161 = scmp.eq.s32.totalorder %s18, 1
    %p162 = por %p160, %p161
    %p163 = scmp.ne.s32.totalorder %s154, %s155
    %p164 = scmp.eq.s32.totalorder %s18, 0
    %p165 = por %p163, %p164
    %p166 = scmp.ne.s32.totalorder %s154, %s155
    %p167 = scmp.eq.s32.totalorder %s19, 1
    %p168 = por %p166, %p167
    %p170 = scmp.ne.s32.totalorder %s155, %s169
    %p171 = scmp.eq.s32.totalorder %s19, 0
    %p172 = por %p170, %p171
    %s173 = ssub.s32 %s13, %s20
    %p174 = scmp.eq.s32.totalorder %s173, 0
    %s176 = sadd.s32 %s175, 1
    %s177 = scalar_select %p174, %s175, %s176
    %p180 = pneg %p174
    %p181 = scmp.eq.s32.totalorder %s13, 1
    %p182 = por %p180, %p181
    %p183 = scmp.ne.s32.totalorder %s175, %s178
    %p184 = scmp.eq.s32.totalorder %s13, 0
    %p185 = por %p183, %p184
    %p186 = scmp.ne.s32.totalorder %s175, %s178
    %p187 = scmp.eq.s32.totalorder %s18, 1
    %p188 = por %p186, %p187
    %p189 = scmp.ne.s32.totalorder %s178, %s179
    %p190 = scmp.eq.s32.totalorder %s18, 0
    %p191 = por %p189, %p190
    %p192 = scmp.ne.s32.totalorder %s178, %s179
    %p193 = scmp.eq.s32.totalorder %s19, 1
    %p194 = por %p192, %p193
    %p196 = scmp.ne.s32.totalorder %s179, %s195
    %p197 = scmp.eq.s32.totalorder %s19, 0
    %p198 = por %p196, %p197
    %p199 = scmp.le.s32.totalorder 1, %s13
    %p200 = scmp.lt.s32.totalorder %s13, 3
    %p201 = pnand %p199, %p200
    %p202 = pneg %p201
    // Predicated region
    $region9: #{basic_layer_forward.5} parent=5 // pred_check
      _
    $region10: #{basic_layer_forward.5} parent=5 // pred_check_branch
      %204 = sbr.rel (%p201) target = $region12
    $region11: #{basic_layer_forward.5} parent=5 // pred_region
      %s205 = ssub.s32 %s13, 1
      // Predicated region
      $region13: #{basic_layer_forward.5} parent=11 // pred_check
        %p206 = pneg %p60
      $region14: #{basic_layer_forward.5} parent=11 // pred_check_branch
        %208 = sbr.rel (%p206) target = $region16
      $region15: #{basic_layer_forward.5} parent=11 // pred_region
        _
      $region16: #{basic_layer_forward.5} parent=11 // pred_fallthru
        _
      // Predicated region
      $region17: #{basic_layer_forward.5} parent=11 // pred_check
        %p209 = pneg %p81
      $region18: #{basic_layer_forward.5} parent=11 // pred_check_branch
        %211 = sbr.rel (%p209) target = $region20
      $region19: #{basic_layer_forward.5} parent=11 // pred_region
        _
      $region20: #{basic_layer_forward.5} parent=11 // pred_fallthru
        _
      // Predicated region
      $region21: #{basic_layer_forward.5} parent=11 // pred_check
        %p212 = pneg %p102
      $region22: #{basic_layer_forward.5} parent=11 // pred_check_branch
        %214 = sbr.rel (%p212) target = $region24
      $region23: #{basic_layer_forward.5} parent=11 // pred_region
        _
      $region24: #{basic_layer_forward.5} parent=11 // pred_fallthru
        _
      // Predicated region
      $region25: #{basic_layer_forward.5} parent=11 // pred_check
        %p215 = pneg %p123
      $region26: #{basic_layer_forward.5} parent=11 // pred_check_branch
        %217 = sbr.rel (%p215) target = $region28
      $region27: #{basic_layer_forward.5} parent=11 // pred_region
        _
      $region28: #{basic_layer_forward.5} parent=11 // pred_fallthru
        _
      // Predicated region
      $region29: #{basic_layer_forward.5} parent=11 // pred_check
        %p218 = pneg %p144
      $region30: #{basic_layer_forward.5} parent=11 // pred_check_branch
        %220 = sbr.rel (%p218) target = $region32
      $region31: #{basic_layer_forward.5} parent=11 // pred_region
        _
      $region32: #{basic_layer_forward.5} parent=11 // pred_fallthru
        _
      // Predicated region
      $region33: #{basic_layer_forward.5} parent=11 // pred_check
        %p221 = pneg %p165
      $region34: #{basic_layer_forward.5} parent=11 // pred_check_branch
        %223 = sbr.rel (%p221) target = $region36
      $region35: #{basic_layer_forward.5} parent=11 // pred_region
        _
      $region36: #{basic_layer_forward.5} parent=11 // pred_fallthru
        _
    $region12: #{basic_layer_forward.5} parent=5 // pred_fallthru
      _
    %p224 = scmp.lt.s32.totalorder %s13, 2
    // Predicated region
    $region37: #{basic_layer_forward.5} parent=5 // pred_check
      %p225 = pneg %p224
    $region38: #{basic_layer_forward.5} parent=5 // pred_check_branch
      %227 = sbr.rel (%p225) target = $region40
    $region39: #{basic_layer_forward.5} parent=5 // pred_region
      // Predicated region
      $region41: #{basic_layer_forward.5} parent=39 // pred_check
        %p228 = pneg %p33
      $region42: #{basic_layer_forward.5} parent=39 // pred_check_branch
        %230 = sbr.rel (%p228) target = $region44
      $region43: #{basic_layer_forward.5} parent=39 // pred_region
        %s231 = smul.u32 8, %s13
        %p232 = scmp.lt.s32.totalorder %s231, 15
        %s233 = scalar_select %p232, %s231, 15
        %s234 = smul.addr %s233, 4
        %s235 = scalar_lea.vmem %s0, %s234
        %s236 = smul.u32 8, %s13
      $region44: #{basic_layer_forward.5} parent=39 // pred_fallthru
        _
    $region40: #{basic_layer_forward.5} parent=5 // pred_fallthru
      _
    %p237 = scmp.le.s32.totalorder 1, %s13
    %p238 = scmp.lt.s32.totalorder %s13, 3
    %p239 = pnand %p237, %p238
    %p240 = pneg %p239
    // Predicated region
    $region45: #{basic_layer_forward.5} parent=5 // pred_check
      _
    $region46: #{basic_layer_forward.5} parent=5 // pred_check_branch
      %242 = sbr.rel (%p239) target = $region48
    $region47: #{basic_layer_forward.5} parent=5 // pred_region
      %s243 = ssub.s32 %s13, 1
      %s244 = smul.u32 8, %s18
      %p245 = scmp.lt.s32.totalorder %s244, 15
      %s246 = scalar_select %p245, %s244, 15
      %s247 = smul.addr %s246, 4
      %s248 = scalar_lea.vmem %s0, %s247
      %p249 = pneg %p39
      %p250 = pneg %p36
      %p251 = pneg %p60
      %p252 = pneg %p57
      %p253 = pneg %p81
      %p254 = pneg %p78
      %p255 = pneg %p102
      %p256 = pneg %p99
      %p257 = pneg %p123
      %p258 = pneg %p120
      %p259 = pneg %p144
      %p260 = pneg %p141
      %p261 = pneg %p165
      %p262 = pneg %p162
      %p263 = pneg %p191
      %p264 = pneg %p188
      %s265 = smul.u32 8, %s18
      %p266 = scmp.lt.s32.totalorder %s265, 15
      %s267 = scalar_select %p266, %s265, 15
      %s268 = smul.addr %s267, 8
      %s269 = scalar_lea.vmem %s7, %s268
      %s270 = smul.u32 8, %s18
      %p271 = scmp.lt.s32.totalorder %s270, 15
      %s272 = scalar_select %p271, %s270, 15
      %s273 = smul.addr %s272, 4
      %s274 = scalar_lea.vmem %s0, %s273
      %s275 = smul.u32 8, %s18
      %s276 = smul.u32 8, %s18
      %p277 = scmp.lt.s32.totalorder %s276, 15
      %s278 = scalar_select %p277, %s276, 15
      %s279 = smul.addr %s278, 8
      %s280 = scalar_lea.vmem %s7, %s279
      %s281 = smul.u32 8, %s18
      %v283 = vld [vmem:[%s274] sm:$0xf]
      %v284 = vld [vmem:[%s274 + $0x4] sm:$0xf]
      %v285 = vld [vmem:[%s274 + $0x8] sm:$0xf]
      %v286 = vld [vmem:[%s274 + $0xc] sm:$0xf]
      %v287 = vld [vmem:[%s274 + $0x10] sm:$0xf]
      %v288 = vld [vmem:[%s274 + $0x14] sm:$0xf]
      %v289 = vld [vmem:[%s274 + $0x18] sm:$0xf]
      %v290 = vld [vmem:[%s274 + $0x1c] sm:$0xf]
      %v291 = vunpack.c.l.bf16 %v283
      %v292 = vunpack.c.l.bf16 %v284
      %v293 = vunpack.c.l.bf16 %v285
      %v294 = vunpack.c.l.bf16 %v286
      %v295 = vunpack.c.l.bf16 %v287
      %v296 = vunpack.c.l.bf16 %v288
      %v297 = vunpack.c.l.bf16 %v289
      %v298 = vunpack.c.l.bf16 %v290
      %vm299 = vcmask 261120
      %v300 = vsel %vm299, %v291, 0.0
      %301 = vadd.xlane.f32.xlu0 %v300
      %v302 = vpop.xlane.xlu0 %301
      %v303 = vsel %vm299, %v292, 0.0
      %304 = vadd.xlane.f32.xlu0 %v303
      %v305 = vpop.xlane.xlu0 %304
      %v306 = vsel %vm299, %v293, 0.0
      %307 = vadd.xlane.f32.xlu0 %v306
      %v308 = vpop.xlane.xlu0 %307
      %v309 = vsel %vm299, %v294, 0.0
      %310 = vadd.xlane.f32.xlu0 %v309
      %v311 = vpop.xlane.xlu0 %310
      %v312 = vsel %vm299, %v295, 0.0
      %313 = vadd.xlane.f32.xlu0 %v312
      %v314 = vpop.xlane.xlu0 %313
      %v315 = vsel %vm299, %v296, 0.0
      %316 = vadd.xlane.f32.xlu0 %v315
      %v317 = vpop.xlane.xlu0 %316
      %v318 = vsel %vm299, %v297, 0.0
      %319 = vadd.xlane.f32.xlu0 %v318
      %v320 = vpop.xlane.xlu0 %319
      %v321 = vsel %vm299, %v298, 0.0
      %322 = vadd.xlane.f32.xlu0 %v321
      %v323 = vpop.xlane.xlu0 %322
      %v324 = vrcp.pop 32.0
      %v325 = vmul.f32 %v302, %v324
      %v326 = vmul.f32 %v305, %v324
      %v327 = vmul.f32 %v308, %v324
      %v328 = vmul.f32 %v311, %v324
      %v329 = vmul.f32 %v314, %v324
      %v330 = vmul.f32 %v317, %v324
      %v331 = vmul.f32 %v320, %v324
      %v332 = vmul.f32 %v323, %v324
      %v333 = vsub.f32 %v291, %v325
      %v334 = vsub.f32 %v292, %v326
      %v335 = vsub.f32 %v293, %v327
      %v336 = vsub.f32 %v294, %v328
      %v337 = vsub.f32 %v295, %v329
      %v338 = vsub.f32 %v296, %v330
      %v339 = vsub.f32 %v297, %v331
      %v340 = vsub.f32 %v298, %v332
      %v341 = vmul.f32 %v333, %v333
      %v342 = vmul.f32 %v334, %v334
      %v343 = vmul.f32 %v335, %v335
      %v344 = vmul.f32 %v336, %v336
      %v345 = vmul.f32 %v337, %v337
      %v346 = vmul.f32 %v338, %v338
      %v347 = vmul.f32 %v339, %v339
      %v348 = vmul.f32 %v340, %v340
      %v349 = vsel %vm299, %v341, 0.0
      %350 = vadd.xlane.f32.xlu0 %v349
      %v351 = vpop.xlane.xlu0 %350
      %v352 = vsel %vm299, %v342, 0.0
      %353 = vadd.xlane.f32.xlu0 %v352
      %v354 = vpop.xlane.xlu0 %353
      %v355 = vsel %vm299, %v343, 0.0
      %356 = vadd.xlane.f32.xlu0 %v355
      %v357 = vpop.xlane.xlu0 %356
      %v358 = vsel %vm299, %v344, 0.0
      %359 = vadd.xlane.f32.xlu0 %v358
      %v360 = vpop.xlane.xlu0 %359
      %v361 = vsel %vm299, %v345, 0.0
      %362 = vadd.xlane.f32.xlu0 %v361
      %v363 = vpop.xlane.xlu0 %362
      %v364 = vsel %vm299, %v346, 0.0
      %365 = vadd.xlane.f32.xlu0 %v364
      %v366 = vpop.xlane.xlu0 %365
      %v367 = vsel %vm299, %v347, 0.0
      %368 = vadd.xlane.f32.xlu0 %v367
      %v369 = vpop.xlane.xlu0 %368
      %v370 = vsel %vm299, %v348, 0.0
      %371 = vadd.xlane.f32.xlu0 %v370
      %v372 = vpop.xlane.xlu0 %371
      %v373 = vmul.f32 %v351, %v324
      %v374 = vmul.f32 %v354, %v324
      %v375 = vmul.f32 %v357, %v324
      %v376 = vmul.f32 %v360, %v324
      %v377 = vmul.f32 %v363, %v324
      %v378 = vmul.f32 %v366, %v324
      %v379 = vmul.f32 %v369, %v324
      %v380 = vmul.f32 %v372, %v324
      %v381 = vadd.f32 %v373, 1e-05
      %v382 = vadd.f32 %v374, 1e-05
      %v383 = vadd.f32 %v375, 1e-05
      %v384 = vadd.f32 %v376, 1e-05
      %v385 = vadd.f32 %v377, 1e-05
      %v386 = vadd.f32 %v378, 1e-05
      %v387 = vadd.f32 %v379, 1e-05
      %v388 = vadd.f32 %v380, 1e-05
      %v389 = vrsqrt.pop %v381
      %v390 = vrsqrt.pop %v382
      %v391 = vrsqrt.pop %v383
      %v392 = vrsqrt.pop %v384
      %v393 = vrsqrt.pop %v385
      %v394 = vrsqrt.pop %v386
      %v395 = vrsqrt.pop %v387
      %v396 = vrsqrt.pop %v388
      %v397 = vmul.f32 %v333, %v389
      %v398 = vmul.f32 %v334, %v390
      %v399 = vmul.f32 %v335, %v391
      %v400 = vmul.f32 %v336, %v392
      %v401 = vmul.f32 %v337, %v393
      %v402 = vmul.f32 %v338, %v394
      %v403 = vmul.f32 %v339, %v395
      %v404 = vmul.f32 %v340, %v396
      %v405 = vld [vmem:[%s1] sm:$0x1]
      %v407 = vlaneseq
      %v408 = vshrl.u32 %v407, 7
      %v409 = vsub.s32 0, %v408
      %v410 = vrot.slane %v405, %v409
      %v412 = vmul.f32 %v397, %v410
      %v413 = vmul.f32 %v398, %v410
      %v414 = vmul.f32 %v399, %v410
      %v415 = vmul.f32 %v400, %v410
      %v416 = vmul.f32 %v401, %v410
      %v417 = vmul.f32 %v402, %v410
      %v418 = vmul.f32 %v403, %v410
      %v419 = vmul.f32 %v404, %v410
      %v420 = vld [vmem:[%s2] sm:$0x1]
      %v422 = vlaneseq
      %v423 = vshrl.u32 %v422, 7
      %v424 = vsub.s32 0, %v423
      %v425 = vrot.slane %v420, %v424
      %v427 = vadd.f32 %v412, %v425
      %v428 = vadd.f32 %v413, %v425
      %v429 = vadd.f32 %v414, %v425
      %v430 = vadd.f32 %v415, %v425
      %v431 = vadd.f32 %v416, %v425
      %v432 = vadd.f32 %v417, %v425
      %v433 = vadd.f32 %v418, %v425
      %v434 = vadd.f32 %v419, %v425
      %v435 = vpack.c.bf16 %v428, %v427
      %v436 = vpack.c.bf16 %v430, %v429
      %v437 = vpack.c.bf16 %v432, %v431
      %v438 = vpack.c.bf16 %v434, %v433
      %v439 = vld [vmem:[%s3] sm:$0xf]
      %v440 = vld [vmem:[%s3 + $0x4] sm:$0xf]
      %v441 = vld [vmem:[%s3 + $0x8] sm:$0xf]
      %v442 = vld [vmem:[%s3 + $0xc] sm:$0xf]
      %v443 = vld [vmem:[%s4] sm:$0x1]
      %v445 = vlaneseq
      %v446 = vshrl.u32 %v445, 7
      %v447 = vsub.s32 0, %v446
      %v448 = vrot.slane %v443, %v447
      %v454 = vunpack.c.l.b16 %v439
      %v455 = vunpack.c.l.b16 %v440
      %v456 = vunpack.c.l.b16 %v441
      %v457 = vunpack.c.l.b16 %v442
      %v458 = vpack.c.b16 %v455, %v454
      %v459 = vpack.c.b16 %v457, %v456
      %v463 = vsel %vm299, %v435, 0
      %v466 = vsel %vm299, %v436, 0
      %v469 = vsel %vm299, %v437, 0
      %v472 = vsel %vm299, %v438, 0
      %474 = vmatprep.subr.bf16.mxu0 0
      %475 = vmatpush1.bf16.msra.mxu0 %v458
      %476 = vmatprep.subr.bf16.mxu0 0
      %477 = vmatpush1.bf16.msra.mxu0 %v459
      %478 = vmatprep.subr.bf16.mxu0 0
      %479 = vmatpush1.bf16.msra.mxu0 0
      %480 = vmatprep.subr.bf16.mxu0 0
      %481 = vmatpush1.bf16.msra.mxu0 0
      %482 = vmatprep.subr.bf16.mxu0 0
      %483 = vmatpush1.bf16.msra.mxu0 0
      %484 = vmatprep.subr.bf16.mxu0 0
      %485 = vmatpush1.bf16.msra.mxu0 0
      %486 = vmatprep.subr.bf16.mxu0 0
      %487 = vmatpush1.bf16.msra.mxu0 0
      %488 = vmatprep.subr.bf16.mxu0 0
      %489 = vmatpush1.bf16.msra.mxu0 0
      %490 = vmatprep.subr.bf16.mxu0 0
      %491 = vmatpush1.bf16.msra.mxu0 0
      %492 = vmatprep.subr.bf16.mxu0 0
      %493 = vmatpush1.bf16.msra.mxu0 0
      %494 = vmatprep.subr.bf16.mxu0 0
      %495 = vmatpush1.bf16.msra.mxu0 0
      %496 = vmatprep.subr.bf16.mxu0 0
      %497 = vmatpush1.bf16.msra.mxu0 0
      %498 = vmatprep.subr.bf16.mxu0 0
      %499 = vmatpush1.bf16.msra.mxu0 0
      %500 = vmatprep.subr.bf16.mxu0 0
      %501 = vmatpush1.bf16.msra.mxu0 0
      %502 = vmatprep.subr.bf16.mxu0 0
      %503 = vmatpush1.bf16.msra.mxu0 0
      %504 = vmatprep.subr.bf16.mxu0 0
      %505 = vmatpush1.bf16.msra.mxu0 0
      %506 = vmatprep.mubr.bf16.mxu0 0
      %507 = vmatmul.mubr.bf16.gmra.mrb[0].mxu0 %v463
      %v508 = vpop.f32.mrb[0].mxu0
      %v509 = vadd.f32 %v448, %v508
      %v510 = vpop.f32.mrb[0].mxu0
      %v511 = vpop.f32.mrb[0].mxu0
      %v512 = vadd.f32 %v448, %v511
      %v513 = vpop.f32.mrb[0].mxu0
      %514 = vmatprep.mubr.bf16.mxu0 0
      %515 = vmatmul.mubr.bf16.gmra.mrb[0].mxu0 %v466
      %v516 = vpop.f32.mrb[0].mxu0
      %v517 = vadd.f32 %v448, %v516
      %v518 = vpop.f32.mrb[0].mxu0
      %v519 = vpop.f32.mrb[0].mxu0
      %v520 = vadd.f32 %v448, %v519
      %v521 = vpop.f32.mrb[0].mxu0
      %522 = vmatprep.mubr.bf16.mxu0 0
      %523 = vmatmul.mubr.bf16.gmra.mrb[0].mxu0 %v469
      %v524 = vpop.f32.mrb[0].mxu0
      %v525 = vadd.f32 %v448, %v524
      %v526 = vpop.f32.mrb[0].mxu0
      %v527 = vpop.f32.mrb[0].mxu0
      %v528 = vadd.f32 %v448, %v527
      %v529 = vpop.f32.mrb[0].mxu0
      %530 = vmatprep.mubr.bf16.mxu0 0
      %531 = vmatmul.mubr.bf16.gmra.mrb[0].mxu0 %v472
      %v532 = vpop.f32.mrb[0].mxu0
      %v533 = vadd.f32 %v448, %v532
      %v534 = vpop.f32.mrb[0].mxu0
      %v535 = vpop.f32.mrb[0].mxu0
      %v536 = vadd.f32 %v448, %v535
      %v537 = vpop.f32.mrb[0].mxu0
      %538 = vdwg.mxu0
      %v539 = vmax.f32 %v509, 0.0
      %v540 = vmax.f32 %v512, 0.0
      %v541 = vmax.f32 %v517, 0.0
      %v542 = vmax.f32 %v520, 0.0
      %v543 = vmax.f32 %v525, 0.0
      %v544 = vmax.f32 %v528, 0.0
      %v545 = vmax.f32 %v533, 0.0
      %v546 = vmax.f32 %v536, 0.0
      %v547 = vpack.c.bf16 %v540, %v539
      %v548 = vpack.c.bf16 %v542, %v541
      %v549 = vpack.c.bf16 %v544, %v543
      %v550 = vpack.c.bf16 %v546, %v545
      %v551 = vld [vmem:[%s5] sm:$0xf]
      %v552 = vld [vmem:[%s5 + $0x4] sm:$0xf]
      %v553 = vld [vmem:[%s5 + $0x8] sm:$0xf]
      %v554 = vld [vmem:[%s5 + $0xc] sm:$0xf]
      %v555 = vld [vmem:[%s5 + $0x10] sm:$0xf]
      %v556 = vld [vmem:[%s5 + $0x14] sm:$0xf]
      %v557 = vld [vmem:[%s5 + $0x18] sm:$0xf]
      %v558 = vld [vmem:[%s5 + $0x1c] sm:$0xf]
      %v559 = vld [vmem:[%s5 + $0x20] sm:$0xf]
      %v560 = vld [vmem:[%s5 + $0x24] sm:$0xf]
      %v561 = vld [vmem:[%s5 + $0x28] sm:$0xf]
      %v562 = vld [vmem:[%s5 + $0x2c] sm:$0xf]
      %v563 = vld [vmem:[%s5 + $0x30] sm:$0xf]
      %v564 = vld [vmem:[%s5 + $0x34] sm:$0xf]
      %v565 = vld [vmem:[%s5 + $0x38] sm:$0xf]
      %v566 = vld [vmem:[%s5 + $0x3c] sm:$0xf]
      %v567 = vld [vmem:[%s6] sm:$0x1]
      %v569 = vlaneseq
      %v570 = vshrl.u32 %v569, 7
      %v571 = vsub.s32 0, %v570
      %v572 = vrot.slane %v567, %v571
      %v590 = vunpack.c.l.b16 %v551
      %v591 = vunpack.c.l.b16 %v552
      %v592 = vunpack.c.l.b16 %v553
      %v593 = vunpack.c.l.b16 %v554
      %v594 = vunpack.c.l.b16 %v555
      %v595 = vunpack.c.l.b16 %v556
      %v596 = vunpack.c.l.b16 %v557
      %v597 = vunpack.c.l.b16 %v558
      %v598 = vunpack.c.l.b16 %v559
      %v599 = vunpack.c.l.b16 %v560
      %v600 = vunpack.c.l.b16 %v561
      %v601 = vunpack.c.l.b16 %v562
      %v602 = vunpack.c.l.b16 %v563
      %v603 = vunpack.c.l.b16 %v564
      %v604 = vunpack.c.l.b16 %v565
      %v605 = vunpack.c.l.b16 %v566
      %v606 = vpack.c.b16 %v591, %v590
      %v607 = vpack.c.b16 %v593, %v592
      %v608 = vpack.c.b16 %v595, %v594
      %v609 = vpack.c.b16 %v597, %v596
      %v610 = vpack.c.b16 %v599, %v598
      %v611 = vpack.c.b16 %v601, %v600
      %v612 = vpack.c.b16 %v603, %v602
      %v613 = vpack.c.b16 %v605, %v604
      %622 = vmatprep.subr.bf16.mxu0 0
      %623 = vmatpush1.bf16.msra.mxu0 %v606
      %624 = vmatprep.subr.bf16.mxu0 0
      %625 = vmatpush1.bf16.msra.mxu0 %v607
      %626 = vmatprep.subr.bf16.mxu0 0
      %627 = vmatpush1.bf16.msra.mxu0 %v608
      %628 = vmatprep.subr.bf16.mxu0 0
      %629 = vmatpush1.bf16.msra.mxu0 %v609
      %630 = vmatprep.subr.bf16.mxu0 0
      %631 = vmatpush1.bf16.msra.mxu0 %v610
      %632 = vmatprep.subr.bf16.mxu0 0
      %633 = vmatpush1.bf16.msra.mxu0 %v611
      %634 = vmatprep.subr.bf16.mxu0 0
      %635 = vmatpush1.bf16.msra.mxu0 %v612
      %636 = vmatprep.subr.bf16.mxu0 0
      %637 = vmatpush1.bf16.msra.mxu0 %v613
      %638 = vmatprep.subr.bf16.mxu0 0
      %639 = vmatpush1.bf16.msra.mxu0 0
      %640 = vmatprep.subr.bf16.mxu0 0
      %641 = vmatpush1.bf16.msra.mxu0 0
      %642 = vmatprep.subr.bf16.mxu0 0
      %643 = vmatpush1.bf16.msra.mxu0 0
      %644 = vmatprep.subr.bf16.mxu0 0
      %645 = vmatpush1.bf16.msra.mxu0 0
      %646 = vmatprep.subr.bf16.mxu0 0
      %647 = vmatpush1.bf16.msra.mxu0 0
      %648 = vmatprep.subr.bf16.mxu0 0
      %649 = vmatpush1.bf16.msra.mxu0 0
      %650 = vmatprep.subr.bf16.mxu0 0
      %651 = vmatpush1.bf16.msra.mxu0 0
      %652 = vmatprep.subr.bf16.mxu0 0
      %653 = vmatpush1.bf16.msra.mxu0 0
      %654 = vmatprep.mubr.bf16.mxu0 0
      %655 = vmatmul.mubr.bf16.gmra.mrb[0].mxu0 %v547
      %v656 = vpop.f32.mrb[0].mxu0
      %v657 = vadd.f32 %v572, %v656
      %v658 = vpop.f32.mrb[0].mxu0
      %v659 = vpop.f32.mrb[0].mxu0
      %v660 = vadd.f32 %v572, %v659
      %v661 = vpop.f32.mrb[0].mxu0
      %662 = vmatprep.mubr.bf16.mxu0 0
      %663 = vmatmul.mubr.bf16.gmra.mrb[0].mxu0 %v548
      %v664 = vpop.f32.mrb[0].mxu0
      %v665 = vadd.f32 %v572, %v664
      %v666 = vpop.f32.mrb[0].mxu0
      %v667 = vpop.f32.mrb[0].mxu0
      %v668 = vadd.f32 %v572, %v667
      %v669 = vpop.f32.mrb[0].mxu0
      %670 = vmatprep.mubr.bf16.mxu0 0
      %671 = vmatmul.mubr.bf16.gmra.mrb[0].mxu0 %v549
      %v672 = vpop.f32.mrb[0].mxu0
      %v673 = vadd.f32 %v572, %v672
      %v674 = vpop.f32.mrb[0].mxu0
      %v675 = vpop.f32.mrb[0].mxu0
      %v676 = vadd.f32 %v572, %v675
      %v677 = vpop.f32.mrb[0].mxu0
      %678 = vmatprep.mubr.bf16.mxu0 0
      %679 = vmatmul.mubr.bf16.gmra.mrb[0].mxu0 %v550
      %v680 = vpop.f32.mrb[0].mxu0
      %v681 = vadd.f32 %v572, %v680
      %v682 = vpop.f32.mrb[0].mxu0
      %v683 = vpop.f32.mrb[0].mxu0
      %v684 = vadd.f32 %v572, %v683
      %v685 = vpop.f32.mrb[0].mxu0
      %686 = vdwg.mxu0
      %v687 = vadd.f32 %v291, %v657
      %v688 = vadd.f32 %v292, %v660
      %v689 = vadd.f32 %v293, %v665
      %v690 = vadd.f32 %v294, %v668
      %v691 = vadd.f32 %v295, %v673
      %v692 = vadd.f32 %v296, %v676
      %v693 = vadd.f32 %v297, %v681
      %v694 = vadd.f32 %v298, %v684
      %695 = vst.msk [vmem:[%s280] sm:$0xff] %vm299, %v687
      %696 = vst.msk [vmem:[%s280 + $0x8] sm:$0xff] %vm299, %v688
      %697 = vst.msk [vmem:[%s280 + $0x10] sm:$0xff] %vm299, %v689
      %698 = vst.msk [vmem:[%s280 + $0x18] sm:$0xff] %vm299, %v690
      %699 = vst.msk [vmem:[%s280 + $0x20] sm:$0xff] %vm299, %v691
      %700 = vst.msk [vmem:[%s280 + $0x28] sm:$0xff] %vm299, %v692
      %701 = vst.msk [vmem:[%s280 + $0x30] sm:$0xff] %vm299, %v693
      %702 = vst.msk [vmem:[%s280 + $0x38] sm:$0xff] %vm299, %v694
      %s703 = smul.u32 8, %s18
      %p704 = scmp.lt.s32.totalorder %s703, 15
      %s705 = scalar_select %p704, %s703, 15
      %s706 = smul.addr %s705, 8
      %s707 = scalar_lea.vmem %s7, %s706
      // Predicated region
      $region49: #{basic_layer_forward.5} parent=47 // pred_check
        %p708 = pneg %p188
      $region50: #{basic_layer_forward.5} parent=47 // pred_check_branch
        %710 = sbr.rel (%p708) target = $region52
      $region51: #{basic_layer_forward.5} parent=47 // pred_region
        %s711 = smul.u32 8, %s18
      $region52: #{basic_layer_forward.5} parent=47 // pred_fallthru
        _
    $region48: #{basic_layer_forward.5} parent=5 // pred_fallthru
      _
    %p712 = scmp.le.s32.totalorder 2, %s13
    // Predicated region
    $region53: #{basic_layer_forward.5} parent=5 // pred_check
      %p713 = pneg %p712
    $region54: #{basic_layer_forward.5} parent=5 // pred_check_branch
      %715 = sbr.rel (%p713) target = $region56
    $region55: #{basic_layer_forward.5} parent=5 // pred_region
      %s716 = ssub.s32 %s13, 2
      // Predicated region
      $region57: #{basic_layer_forward.5} parent=55 // pred_check
        %p717 = pneg %p194
      $region58: #{basic_layer_forward.5} parent=55 // pred_check_branch
        %719 = sbr.rel (%p717) target = $region60
      $region59: #{basic_layer_forward.5} parent=55 // pred_region
        %s720 = smul.u32 8, %s19
        %p721 = scmp.lt.s32.totalorder %s720, 15
        %s722 = scalar_select %p721, %s720, 15
        %s723 = smul.addr %s722, 8
        %s724 = scalar_lea.vmem %s7, %s723
      $region60: #{basic_layer_forward.5} parent=55 // pred_fallthru
        _
    $region56: #{basic_layer_forward.5} parent=5 // pred_fallthru
      _
  $region6: #{basic_layer_forward.5} parent=0 // loop_footer
    %s17 = sadd.s32 1, %s13
  $region7: #{basic_layer_forward.5} parent=0 // loop_footer_branch
    %12 = sbr.rel target = $region3
  $region8: #{basic_layer_forward.5} parent=0 // loop_exit
    _

// kernel: basic_layer_forward.4
$region0: #{basic_layer_forward.4}
  #allocation0 [shape = 'u32[]', space=smem, size = 0x4, offset = 0x4, fixed_abs, tag = 'smem constant byte address 0x4 - core index']
  #allocation1 [shape = 'u32[144,128]{1,0:T(1,128)}', space=vmem, size = 0x12000, scoped, tag = 'internal scratch']
  #allocation2 [shape = 'bf16[64,32]{1,0:T(16,128)(2,1)}', space=vmem, size = 0x4000, scoped, tag = 'scratch operand']
  %s0 = inlined_call_operand.vmem [shape: bf16[128,32], index: 0, kind: input, shape index: {}]
  %s1 = inlined_call_operand.vmem [shape: f32[1,32], index: 1, kind: input, shape index: {}]
  %s2 = inlined_call_operand.vmem [shape: f32[1,32], index: 2, kind: input, shape index: {}]
  %s3 = inlined_call_operand.vmem [shape: bf16[32,96], index: 3, kind: input, shape index: {}]
  %s4 = inlined_call_operand.vmem [shape: f32[1,96], index: 4, kind: input, shape index: {}]
  %s5 = inlined_call_operand.vmem [shape: f32[4,1,16,16], index: 5, kind: input, shape index: {}]
  %s6 = inlined_call_operand.vmem [shape: bf16[32,32], index: 6, kind: input, shape index: {}]
  %s7 = inlined_call_operand.vmem [shape: f32[1,32], index: 7, kind: input, shape index: {}]
  %s8 = inlined_call_operand.vmem [shape: bf16[128,32], index: 8, kind: output, shape index: {}]
  %s9 = sld [smem:[#allocation0]]
  $region65: #{basic_layer_forward.4} parent=0
    _
  %s11 = ssub.s32 1, %s9
  %s12 = scalar_select 0, %s11, %s9
  loop: start=0, step=1, limit=4
  $region2: #{basic_layer_forward.4} parent=0 // loop_pre_header
    _
  $region3: #{basic_layer_forward.4} parent=0 // loop_header
    %s14 = sphi 0, %s18
    %p15 = scmp.ge.s32.totalorder %s14, 4
    %s24 = sphi 0, %s26
    %s27 = sphi 0, %s24
    %s28 = sphi 0, %s27
    %s44 = sphi 0, %s28
    %s48 = sphi 0, %s48
    %s50 = sphi 0, %s48
    %s51 = sphi 0, %s50
    %s65 = sphi 0, %s51
    %s69 = sphi 0, %s69
    %s71 = sphi 0, %s69
    %s72 = sphi 0, %s71
    %s86 = sphi 0, %s72
    %s90 = sphi 0, %s90
    %s92 = sphi 0, %s90
    %s93 = sphi 0, %s92
    %s107 = sphi 0, %s93
    %s111 = sphi 0, %s111
    %s113 = sphi 0, %s111
    %s114 = sphi 0, %s113
    %s128 = sphi 0, %s114
    %s132 = sphi 0, %s132
    %s134 = sphi 0, %s132
    %s135 = sphi 0, %s134
    %s149 = sphi 0, %s135
    %s153 = sphi 0, %s153
    %s155 = sphi 0, %s153
    %s156 = sphi 0, %s155
    %s170 = sphi 0, %s156
    %s174 = sphi 0, %s174
    %s176 = sphi 0, %s174
    %s177 = sphi 0, %s176
    %s191 = sphi 0, %s177
    %s197 = sphi 0, %s199
    %s200 = sphi 0, %s197
    %s201 = sphi 0, %s200
    %s217 = sphi 0, %s201
  $region4: #{basic_layer_forward.4} parent=0 // loop_header_branch
    %17 = sbr.rel (%p15) target = $region8
  $region5: #{basic_layer_forward.4} parent=0 // loop_body
    %s19 = ssub.s32 %s14, 1
    %s20 = ssub.s32 %s14, 2
    %s21 = sadd.s32 %s14, 1
    %s22 = ssub.s32 %s14, %s21
    %p23 = scmp.eq.s32.totalorder %s22, 0
    %s25 = sadd.s32 %s24, 1
    %s26 = scalar_select %p23, %s24, %s25
    %p29 = pneg %p23
    %p30 = scmp.eq.s32.totalorder %s14, 1
    %p31 = por %p29, %p30
    %p32 = scmp.ne.s32.totalorder %s24, %s27
    %p33 = scmp.eq.s32.totalorder %s14, 0
    %p34 = por %p32, %p33
    %p35 = scmp.ne.s32.totalorder %s24, %s27
    %p36 = scmp.eq.s32.totalorder %s19, 1
    %p37 = por %p35, %p36
    %p38 = scmp.ne.s32.totalorder %s27, %s28
    %p39 = scmp.eq.s32.totalorder %s19, 0
    %p40 = por %p38, %p39
    %p41 = scmp.ne.s32.totalorder %s27, %s28
    %p42 = scmp.eq.s32.totalorder %s20, 1
    %p43 = por %p41, %p42
    %p45 = scmp.ne.s32.totalorder %s28, %s44
    %p46 = scmp.eq.s32.totalorder %s20, 0
    %p47 = por %p45, %p46
    %s49 = sadd.s32 %s48, 1
    %p52 = scmp.eq.s32.totalorder %s14, 1
    %p53 = scmp.ne.s32.totalorder %s48, %s50
    %p54 = scmp.eq.s32.totalorder %s14, 0
    %p55 = por %p53, %p54
    %p56 = scmp.ne.s32.totalorder %s48, %s50
    %p57 = scmp.eq.s32.totalorder %s19, 1
    %p58 = por %p56, %p57
    %p59 = scmp.ne.s32.totalorder %s50, %s51
    %p60 = scmp.eq.s32.totalorder %s19, 0
    %p61 = por %p59, %p60
    %p62 = scmp.ne.s32.totalorder %s50, %s51
    %p63 = scmp.eq.s32.totalorder %s20, 1
    %p64 = por %p62, %p63
    %p66 = scmp.ne.s32.totalorder %s51, %s65
    %p67 = scmp.eq.s32.totalorder %s20, 0
    %p68 = por %p66, %p67
    %s70 = sadd.s32 %s69, 1
    %p73 = scmp.eq.s32.totalorder %s14, 1
    %p74 = scmp.ne.s32.totalorder %s69, %s71
    %p75 = scmp.eq.s32.totalorder %s14, 0
    %p76 = por %p74, %p75
    %p77 = scmp.ne.s32.totalorder %s69, %s71
    %p78 = scmp.eq.s32.totalorder %s19, 1
    %p79 = por %p77, %p78
    %p80 = scmp.ne.s32.totalorder %s71, %s72
    %p81 = scmp.eq.s32.totalorder %s19, 0
    %p82 = por %p80, %p81
    %p83 = scmp.ne.s32.totalorder %s71, %s72
    %p84 = scmp.eq.s32.totalorder %s20, 1
    %p85 = por %p83, %p84
    %p87 = scmp.ne.s32.totalorder %s72, %s86
    %p88 = scmp.eq.s32.totalorder %s20, 0
    %p89 = por %p87, %p88
    %s91 = sadd.s32 %s90, 1
    %p94 = scmp.eq.s32.totalorder %s14, 1
    %p95 = scmp.ne.s32.totalorder %s90, %s92
    %p96 = scmp.eq.s32.totalorder %s14, 0
    %p97 = por %p95, %p96
    %p98 = scmp.ne.s32.totalorder %s90, %s92
    %p99 = scmp.eq.s32.totalorder %s19, 1
    %p100 = por %p98, %p99
    %p101 = scmp.ne.s32.totalorder %s92, %s93
    %p102 = scmp.eq.s32.totalorder %s19, 0
    %p103 = por %p101, %p102
    %p104 = scmp.ne.s32.totalorder %s92, %s93
    %p105 = scmp.eq.s32.totalorder %s20, 1
    %p106 = por %p104, %p105
    %p108 = scmp.ne.s32.totalorder %s93, %s107
    %p109 = scmp.eq.s32.totalorder %s20, 0
    %p110 = por %p108, %p109
    %s112 = sadd.s32 %s111, 1
    %p115 = scmp.eq.s32.totalorder %s14, 1
    %p116 = scmp.ne.s32.totalorder %s111, %s113
    %p117 = scmp.eq.s32.totalorder %s14, 0
    %p118 = por %p116, %p117
    %p119 = scmp.ne.s32.totalorder %s111, %s113
    %p120 = scmp.eq.s32.totalorder %s19, 1
    %p121 = por %p119, %p120
    %p122 = scmp.ne.s32.totalorder %s113, %s114
    %p123 = scmp.eq.s32.totalorder %s19, 0
    %p124 = por %p122, %p123
    %p125 = scmp.ne.s32.totalorder %s113, %s114
    %p126 = scmp.eq.s32.totalorder %s20, 1
    %p127 = por %p125, %p126
    %p129 = scmp.ne.s32.totalorder %s114, %s128
    %p130 = scmp.eq.s32.totalorder %s20, 0
    %p131 = por %p129, %p130
    %s133 = sadd.s32 %s132, 1
    %p136 = scmp.eq.s32.totalorder %s14, 1
    %p137 = scmp.ne.s32.totalorder %s132, %s134
    %p138 = scmp.eq.s32.totalorder %s14, 0
    %p139 = por %p137, %p138
    %p140 = scmp.ne.s32.totalorder %s132, %s134
    %p141 = scmp.eq.s32.totalorder %s19, 1
    %p142 = por %p140, %p141
    %p143 = scmp.ne.s32.totalorder %s134, %s135
    %p144 = scmp.eq.s32.totalorder %s19, 0
    %p145 = por %p143, %p144
    %p146 = scmp.ne.s32.totalorder %s134, %s135
    %p147 = scmp.eq.s32.totalorder %s20, 1
    %p148 = por %p146, %p147
    %p150 = scmp.ne.s32.totalorder %s135, %s149
    %p151 = scmp.eq.s32.totalorder %s20, 0
    %p152 = por %p150, %p151
    %s154 = sadd.s32 %s153, 1
    %p157 = scmp.eq.s32.totalorder %s14, 1
    %p158 = scmp.ne.s32.totalorder %s153, %s155
    %p159 = scmp.eq.s32.totalorder %s14, 0
    %p160 = por %p158, %p159
    %p161 = scmp.ne.s32.totalorder %s153, %s155
    %p162 = scmp.eq.s32.totalorder %s19, 1
    %p163 = por %p161, %p162
    %p164 = scmp.ne.s32.totalorder %s155, %s156
    %p165 = scmp.eq.s32.totalorder %s19, 0
    %p166 = por %p164, %p165
    %p167 = scmp.ne.s32.totalorder %s155, %s156
    %p168 = scmp.eq.s32.totalorder %s20, 1
    %p169 = por %p167, %p168
    %p171 = scmp.ne.s32.totalorder %s156, %s170
    %p172 = scmp.eq.s32.totalorder %s20, 0
    %p173 = por %p171, %p172
    %s175 = sadd.s32 %s174, 1
    %p178 = scmp.eq.s32.totalorder %s14, 1
    %p179 = scmp.ne.s32.totalorder %s174, %s176
    %p180 = scmp.eq.s32.totalorder %s14, 0
    %p181 = por %p179, %p180
    %p182 = scmp.ne.s32.totalorder %s174, %s176
    %p183 = scmp.eq.s32.totalorder %s19, 1
    %p184 = por %p182, %p183
    %p185 = scmp.ne.s32.totalorder %s176, %s177
    %p186 = scmp.eq.s32.totalorder %s19, 0
    %p187 = por %p185, %p186
    %p188 = scmp.ne.s32.totalorder %s176, %s177
    %p189 = scmp.eq.s32.totalorder %s20, 1
    %p190 = por %p188, %p189
    %p192 = scmp.ne.s32.totalorder %s177, %s191
    %p193 = scmp.eq.s32.totalorder %s20, 0
    %p194 = por %p192, %p193
    %s195 = ssub.s32 %s14, %s21
    %p196 = scmp.eq.s32.totalorder %s195, 0
    %s198 = sadd.s32 %s197, 1
    %s199 = scalar_select %p196, %s197, %s198
    %p202 = pneg %p196
    %p203 = scmp.eq.s32.totalorder %s14, 1
    %p204 = por %p202, %p203
    %p205 = scmp.ne.s32.totalorder %s197, %s200
    %p206 = scmp.eq.s32.totalorder %s14, 0
    %p207 = por %p205, %p206
    %p208 = scmp.ne.s32.totalorder %s197, %s200
    %p209 = scmp.eq.s32.totalorder %s19, 1
    %p210 = por %p208, %p209
    %p211 = scmp.ne.s32.totalorder %s200, %s201
    %p212 = scmp.eq.s32.totalorder %s19, 0
    %p213 = por %p211, %p212
    %p214 = scmp.ne.s32.totalorder %s200, %s201
    %p215 = scmp.eq.s32.totalorder %s20, 1
    %p216 = por %p214, %p215
    %p218 = scmp.ne.s32.totalorder %s201, %s217
    %p219 = scmp.eq.s32.totalorder %s20, 0
    %p220 = por %p218, %p219
    %p221 = scmp.le.s32.totalorder 1, %s14
    %p222 = scmp.lt.s32.totalorder %s14, 3
    %p223 = pnand %p221, %p222
    %p224 = pneg %p223
    // Predicated region
    $region9: #{basic_layer_forward.4} parent=5 // pred_check
      _
    $region10: #{basic_layer_forward.4} parent=5 // pred_check_branch
      %226 = sbr.rel (%p223) target = $region12
    $region11: #{basic_layer_forward.4} parent=5 // pred_region
      %s227 = ssub.s32 %s14, 1
      // Predicated region
      $region13: #{basic_layer_forward.4} parent=11 // pred_check
        %p228 = pneg %p61
      $region14: #{basic_layer_forward.4} parent=11 // pred_check_branch
        %230 = sbr.rel (%p228) target = $region16
      $region15: #{basic_layer_forward.4} parent=11 // pred_region
        _
      $region16: #{basic_layer_forward.4} parent=11 // pred_fallthru
        _
      // Predicated region
      $region17: #{basic_layer_forward.4} parent=11 // pred_check
        %p231 = pneg %p82
      $region18: #{basic_layer_forward.4} parent=11 // pred_check_branch
        %233 = sbr.rel (%p231) target = $region20
      $region19: #{basic_layer_forward.4} parent=11 // pred_region
        _
      $region20: #{basic_layer_forward.4} parent=11 // pred_fallthru
        _
      // Predicated region
      $region21: #{basic_layer_forward.4} parent=11 // pred_check
        %p234 = pneg %p103
      $region22: #{basic_layer_forward.4} parent=11 // pred_check_branch
        %236 = sbr.rel (%p234) target = $region24
      $region23: #{basic_layer_forward.4} parent=11 // pred_region
        _
      $region24: #{basic_layer_forward.4} parent=11 // pred_fallthru
        _
      // Predicated region
      $region25: #{basic_layer_forward.4} parent=11 // pred_check
        %p237 = pneg %p124
      $region26: #{basic_layer_forward.4} parent=11 // pred_check_branch
        %239 = sbr.rel (%p237) target = $region28
      $region27: #{basic_layer_forward.4} parent=11 // pred_region
        _
      $region28: #{basic_layer_forward.4} parent=11 // pred_fallthru
        _
      // Predicated region
      $region29: #{basic_layer_forward.4} parent=11 // pred_check
        %p240 = pneg %p145
      $region30: #{basic_layer_forward.4} parent=11 // pred_check_branch
        %242 = sbr.rel (%p240) target = $region32
      $region31: #{basic_layer_forward.4} parent=11 // pred_region
        _
      $region32: #{basic_layer_forward.4} parent=11 // pred_fallthru
        _
      // Predicated region
      $region33: #{basic_layer_forward.4} parent=11 // pred_check
        %p243 = pneg %p166
      $region34: #{basic_layer_forward.4} parent=11 // pred_check_branch
        %245 = sbr.rel (%p243) target = $region36
      $region35: #{basic_layer_forward.4} parent=11 // pred_region
        _
      $region36: #{basic_layer_forward.4} parent=11 // pred_fallthru
        _
      // Predicated region
      $region37: #{basic_layer_forward.4} parent=11 // pred_check
        %p246 = pneg %p187
      $region38: #{basic_layer_forward.4} parent=11 // pred_check_branch
        %248 = sbr.rel (%p246) target = $region40
      $region39: #{basic_layer_forward.4} parent=11 // pred_region
        _
      $region40: #{basic_layer_forward.4} parent=11 // pred_fallthru
        _
    $region12: #{basic_layer_forward.4} parent=5 // pred_fallthru
      _
    %p249 = scmp.lt.s32.totalorder %s14, 2
    // Predicated region
    $region41: #{basic_layer_forward.4} parent=5 // pred_check
      %p250 = pneg %p249
    $region42: #{basic_layer_forward.4} parent=5 // pred_check_branch
      %252 = sbr.rel (%p250) target = $region44
    $region43: #{basic_layer_forward.4} parent=5 // pred_region
      // Predicated region
      $region45: #{basic_layer_forward.4} parent=43 // pred_check
        %p253 = pneg %p34
      $region46: #{basic_layer_forward.4} parent=43 // pred_check_branch
        %255 = sbr.rel (%p253) target = $region48
      $region47: #{basic_layer_forward.4} parent=43 // pred_region
        %s256 = smul.u32 8, %s14
        %p257 = scmp.lt.s32.totalorder %s256, 15
        %s258 = scalar_select %p257, %s256, 15
        %s259 = smul.addr %s258, 4
        %s260 = scalar_lea.vmem %s0, %s259
        %s261 = smul.u32 8, %s14
      $region48: #{basic_layer_forward.4} parent=43 // pred_fallthru
        _
    $region44: #{basic_layer_forward.4} parent=5 // pred_fallthru
      _
    %p262 = scmp.le.s32.totalorder 1, %s14
    %p263 = scmp.lt.s32.totalorder %s14, 3
    %p264 = pnand %p262, %p263
    %p265 = pneg %p264
    // Predicated region
    $region49: #{basic_layer_forward.4} parent=5 // pred_check
      _
    $region50: #{basic_layer_forward.4} parent=5 // pred_check_branch
      %267 = sbr.rel (%p264) target = $region52
    $region51: #{basic_layer_forward.4} parent=5 // pred_region
      %s268 = ssub.s32 %s14, 1
      %s269 = smul.u32 8, %s19
      %p270 = scmp.lt.s32.totalorder %s269, 15
      %s271 = scalar_select %p270, %s269, 15
      %s272 = smul.addr %s271, 4
      %s273 = scalar_lea.vmem %s0, %s272
      %p274 = pneg %p40
      %p275 = pneg %p37
      %p276 = pneg %p61
      %p277 = pneg %p58
      %p278 = pneg %p82
      %p279 = pneg %p79
      %p280 = pneg %p103
      %p281 = pneg %p100
      %p282 = pneg %p124
      %p283 = pneg %p121
      %p284 = pneg %p145
      %p285 = pneg %p142
      %p286 = pneg %p166
      %p287 = pneg %p163
      %p288 = pneg %p187
      %p289 = pneg %p184
      %p290 = pneg %p213
      %p291 = pneg %p210
      %s292 = smul.u32 8, %s19
      %p293 = scmp.lt.s32.totalorder %s292, 15
      %s294 = scalar_select %p293, %s292, 15
      %s295 = smul.addr %s294, 4
      %s296 = scalar_lea.vmem %s8, %s295
      %s297 = smul.u32 8, %s19
      %p298 = scmp.lt.s32.totalorder %s297, 15
      %s299 = scalar_select %p298, %s297, 15
      %s300 = smul.addr %s299, 4
      %s301 = scalar_lea.vmem %s0, %s300
      %s302 = smul.u32 8, %s19
      %s303 = smul.u32 8, %s19
      %p304 = scmp.lt.s32.totalorder %s303, 15
      %s305 = scalar_select %p304, %s303, 15
      %s306 = smul.addr %s305, 4
      %s307 = scalar_lea.vmem %s8, %s306
      %s308 = smul.u32 8, %s19
      %v310 = vld [vmem:[%s301] sm:$0xf]
      %v311 = vld [vmem:[%s301 + $0x4] sm:$0xf]
      %v312 = vld [vmem:[%s301 + $0x8] sm:$0xf]
      %v313 = vld [vmem:[%s301 + $0xc] sm:$0xf]
      %v314 = vld [vmem:[%s301 + $0x10] sm:$0xf]
      %v315 = vld [vmem:[%s301 + $0x14] sm:$0xf]
      %v316 = vld [vmem:[%s301 + $0x18] sm:$0xf]
      %v317 = vld [vmem:[%s301 + $0x1c] sm:$0xf]
      %v318 = vunpack.c.l.bf16 %v310
      %v319 = vunpack.c.l.bf16 %v311
      %v320 = vunpack.c.l.bf16 %v312
      %v321 = vunpack.c.l.bf16 %v313
      %v322 = vunpack.c.l.bf16 %v314
      %v323 = vunpack.c.l.bf16 %v315
      %v324 = vunpack.c.l.bf16 %v316
      %v325 = vunpack.c.l.bf16 %v317
      %vm326 = vcmask 261120
      %v327 = vsel %vm326, %v318, 0.0
      %328 = vadd.xlane.f32.xlu0 %v327
      %v329 = vpop.xlane.xlu0 %328
      %v330 = vsel %vm326, %v319, 0.0
      %331 = vadd.xlane.f32.xlu0 %v330
      %v332 = vpop.xlane.xlu0 %331
      %v333 = vsel %vm326, %v320, 0.0
      %334 = vadd.xlane.f32.xlu0 %v333
      %v335 = vpop.xlane.xlu0 %334
      %v336 = vsel %vm326, %v321, 0.0
      %337 = vadd.xlane.f32.xlu0 %v336
      %v338 = vpop.xlane.xlu0 %337
      %v339 = vsel %vm326, %v322, 0.0
      %340 = vadd.xlane.f32.xlu0 %v339
      %v341 = vpop.xlane.xlu0 %340
      %v342 = vsel %vm326, %v323, 0.0
      %343 = vadd.xlane.f32.xlu0 %v342
      %v344 = vpop.xlane.xlu0 %343
      %v345 = vsel %vm326, %v324, 0.0
      %346 = vadd.xlane.f32.xlu0 %v345
      %v347 = vpop.xlane.xlu0 %346
      %v348 = vsel %vm326, %v325, 0.0
      %349 = vadd.xlane.f32.xlu0 %v348
      %v350 = vpop.xlane.xlu0 %349
      %v351 = vrcp.pop 32.0
      %v352 = vmul.f32 %v329, %v351
      %v353 = vmul.f32 %v332, %v351
      %v354 = vmul.f32 %v335, %v351
      %v355 = vmul.f32 %v338, %v351
      %v356 = vmul.f32 %v341, %v351
      %v357 = vmul.f32 %v344, %v351
      %v358 = vmul.f32 %v347, %v351
      %v359 = vmul.f32 %v350, %v351
      %v360 = vsub.f32 %v318, %v352
      %v361 = vsub.f32 %v319, %v353
      %v362 = vsub.f32 %v320, %v354
      %v363 = vsub.f32 %v321, %v355
      %v364 = vsub.f32 %v322, %v356
      %v365 = vsub.f32 %v323, %v357
      %v366 = vsub.f32 %v324, %v358
      %v367 = vsub.f32 %v325, %v359
      %v368 = vmul.f32 %v360, %v360
      %v369 = vmul.f32 %v361, %v361
      %v370 = vmul.f32 %v362, %v362
      %v371 = vmul.f32 %v363, %v363
      %v372 = vmul.f32 %v364, %v364
      %v373 = vmul.f32 %v365, %v365
      %v374 = vmul.f32 %v366, %v366
      %v375 = vmul.f32 %v367, %v367
      %v376 = vsel %vm326, %v368, 0.0
      %377 = vadd.xlane.f32.xlu0 %v376
      %v378 = vpop.xlane.xlu0 %377
      %v379 = vsel %vm326, %v369, 0.0
      %380 = vadd.xlane.f32.xlu0 %v379
      %v381 = vpop.xlane.xlu0 %380
      %v382 = vsel %vm326, %v370, 0.0
      %383 = vadd.xlane.f32.xlu0 %v382
      %v384 = vpop.xlane.xlu0 %383
      %v385 = vsel %vm326, %v371, 0.0
      %386 = vadd.xlane.f32.xlu0 %v385
      %v387 = vpop.xlane.xlu0 %386
      %v388 = vsel %vm326, %v372, 0.0
      %389 = vadd.xlane.f32.xlu0 %v388
      %v390 = vpop.xlane.xlu0 %389
      %v391 = vsel %vm326, %v373, 0.0
      %392 = vadd.xlane.f32.xlu0 %v391
      %v393 = vpop.xlane.xlu0 %392
      %v394 = vsel %vm326, %v374, 0.0
      %395 = vadd.xlane.f32.xlu0 %v394
      %v396 = vpop.xlane.xlu0 %395
      %v397 = vsel %vm326, %v375, 0.0
      %398 = vadd.xlane.f32.xlu0 %v397
      %v399 = vpop.xlane.xlu0 %398
      %v400 = vmul.f32 %v378, %v351
      %v401 = vmul.f32 %v381, %v351
      %v402 = vmul.f32 %v384, %v351
      %v403 = vmul.f32 %v387, %v351
      %v404 = vmul.f32 %v390, %v351
      %v405 = vmul.f32 %v393, %v351
      %v406 = vmul.f32 %v396, %v351
      %v407 = vmul.f32 %v399, %v351
      %v408 = vadd.f32 %v400, 1e-05
      %v409 = vadd.f32 %v401, 1e-05
      %v410 = vadd.f32 %v402, 1e-05
      %v411 = vadd.f32 %v403, 1e-05
      %v412 = vadd.f32 %v404, 1e-05
      %v413 = vadd.f32 %v405, 1e-05
      %v414 = vadd.f32 %v406, 1e-05
      %v415 = vadd.f32 %v407, 1e-05
      %v416 = vrsqrt.pop %v408
      %v417 = vrsqrt.pop %v409
      %v418 = vrsqrt.pop %v410
      %v419 = vrsqrt.pop %v411
      %v420 = vrsqrt.pop %v412
      %v421 = vrsqrt.pop %v413
      %v422 = vrsqrt.pop %v414
      %v423 = vrsqrt.pop %v415
      %v424 = vmul.f32 %v360, %v416
      %v425 = vmul.f32 %v361, %v417
      %v426 = vmul.f32 %v362, %v418
      %v427 = vmul.f32 %v363, %v419
      %v428 = vmul.f32 %v364, %v420
      %v429 = vmul.f32 %v365, %v421
      %v430 = vmul.f32 %v366, %v422
      %v431 = vmul.f32 %v367, %v423
      %v432 = vld [vmem:[%s1] sm:$0x1]
      %v434 = vlaneseq
      %v435 = vshrl.u32 %v434, 7
      %v436 = vsub.s32 0, %v435
      %v437 = vrot.slane %v432, %v436
      %v439 = vmul.f32 %v424, %v437
      %v440 = vmul.f32 %v425, %v437
      %v441 = vmul.f32 %v426, %v437
      %v442 = vmul.f32 %v427, %v437
      %v443 = vmul.f32 %v428, %v437
      %v444 = vmul.f32 %v429, %v437
      %v445 = vmul.f32 %v430, %v437
      %v446 = vmul.f32 %v431, %v437
      %v447 = vld [vmem:[%s2] sm:$0x1]
      %v449 = vlaneseq
      %v450 = vshrl.u32 %v449, 7
      %v451 = vsub.s32 0, %v450
      %v452 = vrot.slane %v447, %v451
      %v454 = vadd.f32 %v439, %v452
      %v455 = vadd.f32 %v440, %v452
      %v456 = vadd.f32 %v441, %v452
      %v457 = vadd.f32 %v442, %v452
      %v458 = vadd.f32 %v443, %v452
      %v459 = vadd.f32 %v444, %v452
      %v460 = vadd.f32 %v445, %v452
      %v461 = vadd.f32 %v446, %v452
      %v462 = vpack.c.bf16 %v455, %v454
      %v463 = vpack.c.bf16 %v457, %v456
      %v464 = vpack.c.bf16 %v459, %v458
      %v465 = vpack.c.bf16 %v461, %v460
      %v466 = vld [vmem:[%s3] sm:$0xf]
      %v467 = vld [vmem:[%s3 + $0x4] sm:$0xf]
      %v468 = vld [vmem:[%s3 + $0x8] sm:$0xf]
      %v469 = vld [vmem:[%s3 + $0xc] sm:$0xf]
      %v470 = vld [vmem:[%s4] sm:$0x1]
      %v472 = vlaneseq
      %v473 = vshrl.u32 %v472, 7
      %v474 = vsub.s32 0, %v473
      %v475 = vrot.slane %v470, %v474
      %v481 = vunpack.c.l.b16 %v466
      %v482 = vunpack.c.l.b16 %v467
      %v483 = vunpack.c.l.b16 %v468
      %v484 = vunpack.c.l.b16 %v469
      %v485 = vpack.c.b16 %v482, %v481
      %v486 = vpack.c.b16 %v484, %v483
      %v490 = vsel %vm326, %v462, 0
      %v493 = vsel %vm326, %v463, 0
      %v496 = vsel %vm326, %v464, 0
      %v499 = vsel %vm326, %v465, 0
      %501 = vmatprep.subr.bf16.mxu0 0
      %502 = vmatpush1.bf16.msra.mxu0 %v485
      %503 = vmatprep.subr.bf16.mxu0 0
      %504 = vmatpush1.bf16.msra.mxu0 %v486
      %505 = vmatprep.subr.bf16.mxu0 0
      %506 = vmatpush1.bf16.msra.mxu0 0
      %507 = vmatprep.subr.bf16.mxu0 0
      %508 = vmatpush1.bf16.msra.mxu0 0
      %509 = vmatprep.subr.bf16.mxu0 0
      %510 = vmatpush1.bf16.msra.mxu0 0
      %511 = vmatprep.subr.bf16.mxu0 0
      %512 = vmatpush1.bf16.msra.mxu0 0
      %513 = vmatprep.subr.bf16.mxu0 0
      %514 = vmatpush1.bf16.msra.mxu0 0
      %515 = vmatprep.subr.bf16.mxu0 0
      %516 = vmatpush1.bf16.msra.mxu0 0
      %517 = vmatprep.subr.bf16.mxu0 0
      %518 = vmatpush1.bf16.msra.mxu0 0
      %519 = vmatprep.subr.bf16.mxu0 0
      %520 = vmatpush1.bf16.msra.mxu0 0
      %521 = vmatprep.subr.bf16.mxu0 0
      %522 = vmatpush1.bf16.msra.mxu0 0
      %523 = vmatprep.subr.bf16.mxu0 0
      %524 = vmatpush1.bf16.msra.mxu0 0
      %525 = vmatprep.subr.bf16.mxu0 0
      %526 = vmatpush1.bf16.msra.mxu0 0
      %527 = vmatprep.subr.bf16.mxu0 0
      %528 = vmatpush1.bf16.msra.mxu0 0
      %529 = vmatprep.subr.bf16.mxu0 0
      %530 = vmatpush1.bf16.msra.mxu0 0
      %531 = vmatprep.subr.bf16.mxu0 0
      %532 = vmatpush1.bf16.msra.mxu0 0
      %533 = vmatprep.mubr.bf16.mxu0 0
      %534 = vmatmul.mubr.bf16.gmra.mrb[0].mxu0 %v490
      %v535 = vpop.f32.mrb[0].mxu0
      %v536 = vadd.f32 %v475, %v535
      %v537 = vpop.f32.mrb[0].mxu0
      %v538 = vpop.f32.mrb[0].mxu0
      %v539 = vadd.f32 %v475, %v538
      %v540 = vpop.f32.mrb[0].mxu0
      %541 = vmatprep.mubr.bf16.mxu0 0
      %542 = vmatmul.mubr.bf16.gmra.mrb[0].mxu0 %v493
      %v543 = vpop.f32.mrb[0].mxu0
      %v544 = vadd.f32 %v475, %v543
      %v545 = vpop.f32.mrb[0].mxu0
      %v546 = vpop.f32.mrb[0].mxu0
      %v547 = vadd.f32 %v475, %v546
      %v548 = vpop.f32.mrb[0].mxu0
      %549 = vmatprep.mubr.bf16.mxu0 0
      %550 = vmatmul.mubr.bf16.gmra.mrb[0].mxu0 %v496
      %v551 = vpop.f32.mrb[0].mxu0
      %v552 = vadd.f32 %v475, %v551
      %v553 = vpop.f32.mrb[0].mxu0
      %v554 = vpop.f32.mrb[0].mxu0
      %v555 = vadd.f32 %v475, %v554
      %v556 = vpop.f32.mrb[0].mxu0
      %557 = vmatprep.mubr.bf16.mxu0 0
      %558 = vmatmul.mubr.bf16.gmra.mrb[0].mxu0 %v499
      %v559 = vpop.f32.mrb[0].mxu0
      %v560 = vadd.f32 %v475, %v559
      %v561 = vpop.f32.mrb[0].mxu0
      %v562 = vpop.f32.mrb[0].mxu0
      %v563 = vadd.f32 %v475, %v562
      %v564 = vpop.f32.mrb[0].mxu0
      %565 = vdwg.mxu0
      %v566 = vpack.c.bf16 %v539, %v536
      %v567 = vpack.c.bf16 %v547, %v544
      %v568 = vpack.c.bf16 %v555, %v552
      %v569 = vpack.c.bf16 %v563, %v560
      %571 = vrot.lane.b32.xlu0 %v566, 96
      %v572 = vpop.permute.xlu0 %571
      %vm573 = vcmask 64512
      %v575 = vsel %vm573, %v566, 0
      %v578 = vsel %vm573, %v572, 0
      %580 = vmatprep.subr.bf16.mxu0 0
      %581 = vmatpush1.bf16.xpose.msra.mxu0 %v578
      %582 = vmatprep.subr.bf16.mxu0 0
      %583 = vmatpush1.bf16.xpose.msra.mxu0 0
      %584 = vmatprep.subr.bf16.mxu0 0
      %585 = vmatpush1.bf16.xpose.msra.mxu0 0
      %586 = vmatprep.subr.bf16.mxu0 0
      %587 = vmatpush1.bf16.xpose.msra.mxu0 0
      %588 = vmatprep.subr.bf16.mxu0 0
      %589 = vmatpush1.bf16.xpose.msra.mxu0 0
      %590 = vmatprep.subr.bf16.mxu0 0
      %591 = vmatpush1.bf16.xpose.msra.mxu0 0
      %592 = vmatprep.subr.bf16.mxu0 0
      %593 = vmatpush1.bf16.xpose.msra.mxu0 0
      %594 = vmatprep.subr.bf16.mxu0 0
      %595 = vmatpush1.bf16.xpose.msra.mxu0 0
      %596 = vmatprep.subr.bf16.mxu0 0
      %597 = vmatpush1.bf16.xpose.msra.mxu0 0
      %598 = vmatprep.subr.bf16.mxu0 0
      %599 = vmatpush1.bf16.xpose.msra.mxu0 0
      %600 = vmatprep.subr.bf16.mxu0 0
      %601 = vmatpush1.bf16.xpose.msra.mxu0 0
      %602 = vmatprep.subr.bf16.mxu0 0
      %603 = vmatpush1.bf16.xpose.msra.mxu0 0
      %604 = vmatprep.subr.bf16.mxu0 0
      %605 = vmatpush1.bf16.xpose.msra.mxu0 0
      %606 = vmatprep.subr.bf16.mxu0 0
      %607 = vmatpush1.bf16.xpose.msra.mxu0 0
      %608 = vmatprep.subr.bf16.mxu0 0
      %609 = vmatpush1.bf16.xpose.msra.mxu0 0
      %610 = vmatprep.subr.bf16.mxu0 0
      %611 = vmatpush1.bf16.xpose.msra.mxu0 0
      %612 = vmatprep.mubr.bf16.mxu0 0
      %613 = vmatmul.mubr.bf16.gmra.mrb[0].mxu0 %v575
      %v614 = vpop.f32.mrb[0].mxu0
      %v615 = vadd.f32 0.0, %v614
      %v616 = vpop.f32.mrb[0].mxu0
      %v617 = vpop.f32.mrb[0].mxu0
      %v618 = vadd.f32 0.0, %v617
      %v619 = vpop.f32.mrb[0].mxu0
      %620 = vdwg.mxu0
      %622 = vrot.lane.b32.xlu0 %v567, 96
      %v623 = vpop.permute.xlu0 %622
      %v625 = vsel %vm573, %v567, 0
      %v628 = vsel %vm573, %v623, 0
      %630 = vmatprep.subr.bf16.mxu0 0
      %631 = vmatpush1.bf16.xpose.msra.mxu0 %v628
      %632 = vmatprep.subr.bf16.mxu0 0
      %633 = vmatpush1.bf16.xpose.msra.mxu0 0
      %634 = vmatprep.subr.bf16.mxu0 0
      %635 = vmatpush1.bf16.xpose.msra.mxu0 0
      %636 = vmatprep.subr.bf16.mxu0 0
      %637 = vmatpush1.bf16.xpose.msra.mxu0 0
      %638 = vmatprep.subr.bf16.mxu0 0
      %639 = vmatpush1.bf16.xpose.msra.mxu0 0
      %640 = vmatprep.subr.bf16.mxu0 0
      %641 = vmatpush1.bf16.xpose.msra.mxu0 0
      %642 = vmatprep.subr.bf16.mxu0 0
      %643 = vmatpush1.bf16.xpose.msra.mxu0 0
      %644 = vmatprep.subr.bf16.mxu0 0
      %645 = vmatpush1.bf16.xpose.msra.mxu0 0
      %646 = vmatprep.subr.bf16.mxu0 0
      %647 = vmatpush1.bf16.xpose.msra.mxu0 0
      %648 = vmatprep.subr.bf16.mxu0 0
      %649 = vmatpush1.bf16.xpose.msra.mxu0 0
      %650 = vmatprep.subr.bf16.mxu0 0
      %651 = vmatpush1.bf16.xpose.msra.mxu0 0
      %652 = vmatprep.subr.bf16.mxu0 0
      %653 = vmatpush1.bf16.xpose.msra.mxu0 0
      %654 = vmatprep.subr.bf16.mxu0 0
      %655 = vmatpush1.bf16.xpose.msra.mxu0 0
      %656 = vmatprep.subr.bf16.mxu0 0
      %657 = vmatpush1.bf16.xpose.msra.mxu0 0
      %658 = vmatprep.subr.bf16.mxu0 0
      %659 = vmatpush1.bf16.xpose.msra.mxu0 0
      %660 = vmatprep.subr.bf16.mxu0 0
      %661 = vmatpush1.bf16.xpose.msra.mxu0 0
      %662 = vmatprep.mubr.bf16.mxu0 0
      %663 = vmatmul.mubr.bf16.gmra.mrb[0].mxu0 %v625
      %v664 = vpop.f32.mrb[0].mxu0
      %v665 = vadd.f32 0.0, %v664
      %v666 = vpop.f32.mrb[0].mxu0
      %v667 = vpop.f32.mrb[0].mxu0
      %v668 = vadd.f32 0.0, %v667
      %v669 = vpop.f32.mrb[0].mxu0
      %670 = vdwg.mxu0
      %672 = vrot.lane.b32.xlu0 %v568, 96
      %v673 = vpop.permute.xlu0 %672
      %v675 = vsel %vm573, %v568, 0
      %v678 = vsel %vm573, %v673, 0
      %680 = vmatprep.subr.bf16.mxu0 0
      %681 = vmatpush1.bf16.xpose.msra.mxu0 %v678
      %682 = vmatprep.subr.bf16.mxu0 0
      %683 = vmatpush1.bf16.xpose.msra.mxu0 0
      %684 = vmatprep.subr.bf16.mxu0 0
      %685 = vmatpush1.bf16.xpose.msra.mxu0 0
      %686 = vmatprep.subr.bf16.mxu0 0
      %687 = vmatpush1.bf16.xpose.msra.mxu0 0
      %688 = vmatprep.subr.bf16.mxu0 0
      %689 = vmatpush1.bf16.xpose.msra.mxu0 0
      %690 = vmatprep.subr.bf16.mxu0 0
      %691 = vmatpush1.bf16.xpose.msra.mxu0 0
      %692 = vmatprep.subr.bf16.mxu0 0
      %693 = vmatpush1.bf16.xpose.msra.mxu0 0
      %694 = vmatprep.subr.bf16.mxu0 0
      %695 = vmatpush1.bf16.xpose.msra.mxu0 0
      %696 = vmatprep.subr.bf16.mxu0 0
      %697 = vmatpush1.bf16.xpose.msra.mxu0 0
      %698 = vmatprep.subr.bf16.mxu0 0
      %699 = vmatpush1.bf16.xpose.msra.mxu0 0
      %700 = vmatprep.subr.bf16.mxu0 0
      %701 = vmatpush1.bf16.xpose.msra.mxu0 0
      %702 = vmatprep.subr.bf16.mxu0 0
      %703 = vmatpush1.bf16.xpose.msra.mxu0 0
      %704 = vmatprep.subr.bf16.mxu0 0
      %705 = vmatpush1.bf16.xpose.msra.mxu0 0
      %706 = vmatprep.subr.bf16.mxu0 0
      %707 = vmatpush1.bf16.xpose.msra.mxu0 0
      %708 = vmatprep.subr.bf16.mxu0 0
      %709 = vmatpush1.bf16.xpose.msra.mxu0 0
      %710 = vmatprep.subr.bf16.mxu0 0
      %711 = vmatpush1.bf16.xpose.msra.mxu0 0
      %712 = vmatprep.mubr.bf16.mxu0 0
      %713 = vmatmul.mubr.bf16.gmra.mrb[0].mxu0 %v675
      %v714 = vpop.f32.mrb[0].mxu0
      %v715 = vadd.f32 0.0, %v714
      %v716 = vpop.f32.mrb[0].mxu0
      %v717 = vpop.f32.mrb[0].mxu0
      %v718 = vadd.f32 0.0, %v717
      %v719 = vpop.f32.mrb[0].mxu0
      %720 = vdwg.mxu0
      %722 = vrot.lane.b32.xlu0 %v569, 96
      %v723 = vpop.permute.xlu0 %722
      %v725 = vsel %vm573, %v569, 0
      %v728 = vsel %vm573, %v723, 0
      %730 = vmatprep.subr.bf16.mxu0 0
      %731 = vmatpush1.bf16.xpose.msra.mxu0 %v728
      %732 = vmatprep.subr.bf16.mxu0 0
      %733 = vmatpush1.bf16.xpose.msra.mxu0 0
      %734 = vmatprep.subr.bf16.mxu0 0
      %735 = vmatpush1.bf16.xpose.msra.mxu0 0
      %736 = vmatprep.subr.bf16.mxu0 0
      %737 = vmatpush1.bf16.xpose.msra.mxu0 0
      %738 = vmatprep.subr.bf16.mxu0 0
      %739 = vmatpush1.bf16.xpose.msra.mxu0 0
      %740 = vmatprep.subr.bf16.mxu0 0
      %741 = vmatpush1.bf16.xpose.msra.mxu0 0
      %742 = vmatprep.subr.bf16.mxu0 0
      %743 = vmatpush1.bf16.xpose.msra.mxu0 0
      %744 = vmatprep.subr.bf16.mxu0 0
      %745 = vmatpush1.bf16.xpose.msra.mxu0 0
      %746 = vmatprep.subr.bf16.mxu0 0
      %747 = vmatpush1.bf16.xpose.msra.mxu0 0
      %748 = vmatprep.subr.bf16.mxu0 0
      %749 = vmatpush1.bf16.xpose.msra.mxu0 0
      %750 = vmatprep.subr.bf16.mxu0 0
      %751 = vmatpush1.bf16.xpose.msra.mxu0 0
      %752 = vmatprep.subr.bf16.mxu0 0
      %753 = vmatpush1.bf16.xpose.msra.mxu0 0
      %754 = vmatprep.subr.bf16.mxu0 0
      %755 = vmatpush1.bf16.xpose.msra.mxu0 0
      %756 = vmatprep.subr.bf16.mxu0 0
      %757 = vmatpush1.bf16.xpose.msra.mxu0 0
      %758 = vmatprep.subr.bf16.mxu0 0
      %759 = vmatpush1.bf16.xpose.msra.mxu0 0
      %760 = vmatprep.subr.bf16.mxu0 0
      %761 = vmatpush1.bf16.xpose.msra.mxu0 0
      %762 = vmatprep.mubr.bf16.mxu0 0
      %763 = vmatmul.mubr.bf16.gmra.mrb[0].mxu0 %v725
      %v764 = vpop.f32.mrb[0].mxu0
      %v765 = vadd.f32 0.0, %v764
      %v766 = vpop.f32.mrb[0].mxu0
      %v767 = vpop.f32.mrb[0].mxu0
      %v768 = vadd.f32 0.0, %v767
      %v769 = vpop.f32.mrb[0].mxu0
      %770 = vdwg.mxu0
      %v771 = vld [vmem:[%s5] sm:$0xff]
      %v772 = vld [vmem:[%s5 + $0x8] sm:$0xff]
      %v773 = vadd.f32 %v615, %v771
      %v774 = vadd.f32 %v618, %v772
      %v775 = vadd.f32 %v665, %v771
      %v776 = vadd.f32 %v668, %v772
      %v777 = vadd.f32 %v715, %v771
      %v778 = vadd.f32 %v718, %v772
      %v779 = vadd.f32 %v765, %v771
      %v780 = vadd.f32 %v768, %v772
      %vm781 = vcmask 130048
      %v782 = vsel %vm781, %v773, -inf
      %783 = vmax.xlane.f32.xlu0 %v782
      %v784 = vpop.xlane.xlu0 %783
      %v785 = vsel %vm781, %v774, -inf
      %786 = vmax.xlane.f32.xlu0 %v785
      %v787 = vpop.xlane.xlu0 %786
      %v788 = vsel %vm781, %v775, -inf
      %789 = vmax.xlane.f32.xlu0 %v788
      %v790 = vpop.xlane.xlu0 %789
      %v791 = vsel %vm781, %v776, -inf
      %792 = vmax.xlane.f32.xlu0 %v791
      %v793 = vpop.xlane.xlu0 %792
      %v794 = vsel %vm781, %v777, -inf
      %795 = vmax.xlane.f32.xlu0 %v794
      %v796 = vpop.xlane.xlu0 %795
      %v797 = vsel %vm781, %v778, -inf
      %798 = vmax.xlane.f32.xlu0 %v797
      %v799 = vpop.xlane.xlu0 %798
      %v800 = vsel %vm781, %v779, -inf
      %801 = vmax.xlane.f32.xlu0 %v800
      %v802 = vpop.xlane.xlu0 %801
      %v803 = vsel %vm781, %v780, -inf
      %804 = vmax.xlane.f32.xlu0 %v803
      %v805 = vpop.xlane.xlu0 %804
      %v806 = vsub.f32 %v773, %v784
      %v807 = vsub.f32 %v774, %v787
      %v808 = vsub.f32 %v775, %v790
      %v809 = vsub.f32 %v776, %v793
      %v810 = vsub.f32 %v777, %v796
      %v811 = vsub.f32 %v778, %v799
      %v812 = vsub.f32 %v779, %v802
      %v813 = vsub.f32 %v780, %v805
      %v814 = vmul.f32 %v806, 1.442695
      %v815 = vpow.pop %v814
      %v816 = vmul.f32 %v807, 1.442695
      %v817 = vpow.pop %v816
      %v818 = vmul.f32 %v808, 1.442695
      %v819 = vpow.pop %v818
      %v820 = vmul.f32 %v809, 1.442695
      %v821 = vpow.pop %v820
      %v822 = vmul.f32 %v810, 1.442695
      %v823 = vpow.pop %v822
      %v824 = vmul.f32 %v811, 1.442695
      %v825 = vpow.pop %v824
      %v826 = vmul.f32 %v812, 1.442695
      %v827 = vpow.pop %v826
      %v828 = vmul.f32 %v813, 1.442695
      %v829 = vpow.pop %v828
      %v830 = vsel %vm781, %v815, 0.0
      %831 = vadd.xlane.f32.xlu0 %v830
      %v832 = vpop.xlane.xlu0 %831
      %v833 = vsel %vm781, %v817, 0.0
      %834 = vadd.xlane.f32.xlu0 %v833
      %v835 = vpop.xlane.xlu0 %834
      %v836 = vsel %vm781, %v819, 0.0
      %837 = vadd.xlane.f32.xlu0 %v836
      %v838 = vpop.xlane.xlu0 %837
      %v839 = vsel %vm781, %v821, 0.0
      %840 = vadd.xlane.f32.xlu0 %v839
      %v841 = vpop.xlane.xlu0 %840
      %v842 = vsel %vm781, %v823, 0.0
      %843 = vadd.xlane.f32.xlu0 %v842
      %v844 = vpop.xlane.xlu0 %843
      %v845 = vsel %vm781, %v825, 0.0
      %846 = vadd.xlane.f32.xlu0 %v845
      %v847 = vpop.xlane.xlu0 %846
      %v848 = vsel %vm781, %v827, 0.0
      %849 = vadd.xlane.f32.xlu0 %v848
      %v850 = vpop.xlane.xlu0 %849
      %v851 = vsel %vm781, %v829, 0.0
      %852 = vadd.xlane.f32.xlu0 %v851
      %v853 = vpop.xlane.xlu0 %852
      %v854 = vrcp.pop %v832
      %v855 = vrcp.pop %v835
      %v856 = vrcp.pop %v838
      %v857 = vrcp.pop %v841
      %v858 = vrcp.pop %v844
      %v859 = vrcp.pop %v847
      %v860 = vrcp.pop %v850
      %v861 = vrcp.pop %v853
      %v862 = vmul.f32 %v815, %v854
      %v863 = vmul.f32 %v817, %v855
      %v864 = vmul.f32 %v819, %v856
      %v865 = vmul.f32 %v821, %v857
      %v866 = vmul.f32 %v823, %v858
      %v867 = vmul.f32 %v825, %v859
      %v868 = vmul.f32 %v827, %v860
      %v869 = vmul.f32 %v829, %v861
      %v870 = vpack.c.bf16 %v863, %v862
      %v871 = vpack.c.bf16 %v865, %v864
      %v872 = vpack.c.bf16 %v867, %v866
      %v873 = vpack.c.bf16 %v869, %v868
      %874 = vrot.lane.b32.xlu0 %v566, 64
      %v875 = vpop.permute.xlu0 %874
      %v878 = vsel %vm781, %v870, 0
      %880 = vmatprep.subr.bf16.mxu0 0
      %881 = vmatpush1.bf16.msra.mxu0 %v875
      %882 = vmatprep.subr.bf16.mxu0 0
      %883 = vmatpush1.bf16.msra.mxu0 0
      %884 = vmatprep.subr.bf16.mxu0 0
      %885 = vmatpush1.bf16.msra.mxu0 0
      %886 = vmatprep.subr.bf16.mxu0 0
      %887 = vmatpush1.bf16.msra.mxu0 0
      %888 = vmatprep.subr.bf16.mxu0 0
      %889 = vmatpush1.bf16.msra.mxu0 0
      %890 = vmatprep.subr.bf16.mxu0 0
      %891 = vmatpush1.bf16.msra.mxu0 0
      %892 = vmatprep.subr.bf16.mxu0 0
      %893 = vmatpush1.bf16.msra.mxu0 0
      %894 = vmatprep.subr.bf16.mxu0 0
      %895 = vmatpush1.bf16.msra.mxu0 0
      %896 = vmatprep.subr.bf16.mxu0 0
      %897 = vmatpush1.bf16.msra.mxu0 0
      %898 = vmatprep.subr.bf16.mxu0 0
      %899 = vmatpush1.bf16.msra.mxu0 0
      %900 = vmatprep.subr.bf16.mxu0 0
      %901 = vmatpush1.bf16.msra.mxu0 0
      %902 = vmatprep.subr.bf16.mxu0 0
      %903 = vmatpush1.bf16.msra.mxu0 0
      %904 = vmatprep.subr.bf16.mxu0 0
      %905 = vmatpush1.bf16.msra.mxu0 0
      %906 = vmatprep.subr.bf16.mxu0 0
      %907 = vmatpush1.bf16.msra.mxu0 0
      %908 = vmatprep.subr.bf16.mxu0 0
      %909 = vmatpush1.bf16.msra.mxu0 0
      %910 = vmatprep.subr.bf16.mxu0 0
      %911 = vmatpush1.bf16.msra.mxu0 0
      %912 = vmatprep.mubr.bf16.mxu0 0
      %913 = vmatmul.mubr.bf16.gmra.mrb[0].mxu0 %v878
      %v914 = vpop.f32.mrb[0].mxu0
      %v915 = vadd.f32 0.0, %v914
      %v916 = vpop.f32.mrb[0].mxu0
      %v917 = vpop.f32.mrb[0].mxu0
      %v918 = vadd.f32 0.0, %v917
      %v919 = vpop.f32.mrb[0].mxu0
      %920 = vdwg.mxu0
      %921 = vrot.lane.b32.xlu0 %v567, 64
      %v922 = vpop.permute.xlu0 %921
      %v925 = vsel %vm781, %v871, 0
      %927 = vmatprep.subr.bf16.mxu0 0
      %928 = vmatpush1.bf16.msra.mxu0 %v922
      %929 = vmatprep.subr.bf16.mxu0 0
      %930 = vmatpush1.bf16.msra.mxu0 0
      %931 = vmatprep.subr.bf16.mxu0 0
      %932 = vmatpush1.bf16.msra.mxu0 0
      %933 = vmatprep.subr.bf16.mxu0 0
      %934 = vmatpush1.bf16.msra.mxu0 0
      %935 = vmatprep.subr.bf16.mxu0 0
      %936 = vmatpush1.bf16.msra.mxu0 0
      %937 = vmatprep.subr.bf16.mxu0 0
      %938 = vmatpush1.bf16.msra.mxu0 0
      %939 = vmatprep.subr.bf16.mxu0 0
      %940 = vmatpush1.bf16.msra.mxu0 0
      %941 = vmatprep.subr.bf16.mxu0 0
      %942 = vmatpush1.bf16.msra.mxu0 0
      %943 = vmatprep.subr.bf16.mxu0 0
      %944 = vmatpush1.bf16.msra.mxu0 0
      %945 = vmatprep.subr.bf16.mxu0 0
      %946 = vmatpush1.bf16.msra.mxu0 0
      %947 = vmatprep.subr.bf16.mxu0 0
      %948 = vmatpush1.bf16.msra.mxu0 0
      %949 = vmatprep.subr.bf16.mxu0 0
      %950 = vmatpush1.bf16.msra.mxu0 0
      %951 = vmatprep.subr.bf16.mxu0 0
      %952 = vmatpush1.bf16.msra.mxu0 0
      %953 = vmatprep.subr.bf16.mxu0 0
      %954 = vmatpush1.bf16.msra.mxu0 0
      %955 = vmatprep.subr.bf16.mxu0 0
      %956 = vmatpush1.bf16.msra.mxu0 0
      %957 = vmatprep.subr.bf16.mxu0 0
      %958 = vmatpush1.bf16.msra.mxu0 0
      %959 = vmatprep.mubr.bf16.mxu0 0
      %960 = vmatmul.mubr.bf16.gmra.mrb[0].mxu0 %v925
      %v961 = vpop.f32.mrb[0].mxu0
      %v962 = vadd.f32 0.0, %v961
      %v963 = vpop.f32.mrb[0].mxu0
      %v964 = vpop.f32.mrb[0].mxu0
      %v965 = vadd.f32 0.0, %v964
      %v966 = vpop.f32.mrb[0].mxu0
      %967 = vdwg.mxu0
      %968 = vrot.lane.b32.xlu0 %v568, 64
      %v969 = vpop.permute.xlu0 %968
      %v972 = vsel %vm781, %v872, 0
      %974 = vmatprep.subr.bf16.mxu0 0
      %975 = vmatpush1.bf16.msra.mxu0 %v969
      %976 = vmatprep.subr.bf16.mxu0 0
      %977 = vmatpush1.bf16.msra.mxu0 0
      %978 = vmatprep.subr.bf16.mxu0 0
      %979 = vmatpush1.bf16.msra.mxu0 0
      %980 = vmatprep.subr.bf16.mxu0 0
      %981 = vmatpush1.bf16.msra.mxu0 0
      %982 = vmatprep.subr.bf16.mxu0 0
      %983 = vmatpush1.bf16.msra.mxu0 0
      %984 = vmatprep.subr.bf16.mxu0 0
      %985 = vmatpush1.bf16.msra.mxu0 0
      %986 = vmatprep.subr.bf16.mxu0 0
      %987 = vmatpush1.bf16.msra.mxu0 0
      %988 = vmatprep.subr.bf16.mxu0 0
      %989 = vmatpush1.bf16.msra.mxu0 0
      %990 = vmatprep.subr.bf16.mxu0 0
      %991 = vmatpush1.bf16.msra.mxu0 0
      %992 = vmatprep.subr.bf16.mxu0 0
      %993 = vmatpush1.bf16.msra.mxu0 0
      %994 = vmatprep.subr.bf16.mxu0 0
      %995 = vmatpush1.bf16.msra.mxu0 0
      %996 = vmatprep.subr.bf16.mxu0 0
      %997 = vmatpush1.bf16.msra.mxu0 0
      %998 = vmatprep.subr.bf16.mxu0 0
      %999 = vmatpush1.bf16.msra.mxu0 0
      %1000 = vmatprep.subr.bf16.mxu0 0
      %1001 = vmatpush1.bf16.msra.mxu0 0
      %1002 = vmatprep.subr.bf16.mxu0 0
      %1003 = vmatpush1.bf16.msra.mxu0 0
      %1004 = vmatprep.subr.bf16.mxu0 0
      %1005 = vmatpush1.bf16.msra.mxu0 0
      %1006 = vmatprep.mubr.bf16.mxu0 0
      %1007 = vmatmul.mubr.bf16.gmra.mrb[0].mxu0 %v972
      %v1008 = vpop.f32.mrb[0].mxu0
      %v1009 = vadd.f32 0.0, %v1008
      %v1010 = vpop.f32.mrb[0].mxu0
      %v1011 = vpop.f32.mrb[0].mxu0
      %v1012 = vadd.f32 0.0, %v1011
      %v1013 = vpop.f32.mrb[0].mxu0
      %1014 = vdwg.mxu0
      %1015 = vrot.lane.b32.xlu0 %v569, 64
      %v1016 = vpop.permute.xlu0 %1015
      %v1019 = vsel %vm781, %v873, 0
      %1021 = vmatprep.subr.bf16.mxu0 0
      %1022 = vmatpush1.bf16.msra.mxu0 %v1016
      %1023 = vmatprep.subr.bf16.mxu0 0
      %1024 = vmatpush1.bf16.msra.mxu0 0
      %1025 = vmatprep.subr.bf16.mxu0 0
      %1026 = vmatpush1.bf16.msra.mxu0 0
      %1027 = vmatprep.subr.bf16.mxu0 0
      %1028 = vmatpush1.bf16.msra.mxu0 0
      %1029 = vmatprep.subr.bf16.mxu0 0
      %1030 = vmatpush1.bf16.msra.mxu0 0
      %1031 = vmatprep.subr.bf16.mxu0 0
      %1032 = vmatpush1.bf16.msra.mxu0 0
      %1033 = vmatprep.subr.bf16.mxu0 0
      %1034 = vmatpush1.bf16.msra.mxu0 0
      %1035 = vmatprep.subr.bf16.mxu0 0
      %1036 = vmatpush1.bf16.msra.mxu0 0
      %1037 = vmatprep.subr.bf16.mxu0 0
      %1038 = vmatpush1.bf16.msra.mxu0 0
      %1039 = vmatprep.subr.bf16.mxu0 0
      %1040 = vmatpush1.bf16.msra.mxu0 0
      %1041 = vmatprep.subr.bf16.mxu0 0
      %1042 = vmatpush1.bf16.msra.mxu0 0
      %1043 = vmatprep.subr.bf16.mxu0 0
      %1044 = vmatpush1.bf16.msra.mxu0 0
      %1045 = vmatprep.subr.bf16.mxu0 0
      %1046 = vmatpush1.bf16.msra.mxu0 0
      %1047 = vmatprep.subr.bf16.mxu0 0
      %1048 = vmatpush1.bf16.msra.mxu0 0
      %1049 = vmatprep.subr.bf16.mxu0 0
      %1050 = vmatpush1.bf16.msra.mxu0 0
      %1051 = vmatprep.subr.bf16.mxu0 0
      %1052 = vmatpush1.bf16.msra.mxu0 0
      %1053 = vmatprep.mubr.bf16.mxu0 0
      %1054 = vmatmul.mubr.bf16.gmra.mrb[0].mxu0 %v1019
      %v1055 = vpop.f32.mrb[0].mxu0
      %v1056 = vadd.f32 0.0, %v1055
      %v1057 = vpop.f32.mrb[0].mxu0
      %v1058 = vpop.f32.mrb[0].mxu0
      %v1059 = vadd.f32 0.0, %v1058
      %v1060 = vpop.f32.mrb[0].mxu0
      %1061 = vdwg.mxu0
      %v1062 = vpack.c.bf16 %v918, %v915
      %v1063 = vpack.c.bf16 %v965, %v962
      %v1064 = vpack.c.bf16 %v1012, %v1009
      %v1065 = vpack.c.bf16 %v1059, %v1056
      %1066 = vst.msk [vmem:[#allocation2] sm:$0xff] %vm573, %v1062
      %1067 = vst.msk [vmem:[#allocation2 + $0x8] sm:$0xff] %vm573, %v1063
      %1068 = vst.msk [vmem:[#allocation2 + $0x10] sm:$0xff] %vm573, %v1064
      %1069 = vst.msk [vmem:[#allocation2 + $0x18] sm:$0xff] %vm573, %v1065
      %1070 = vrot.lane.b32.xlu0 %v566, 120
      %v1071 = vpop.permute.xlu0 %1070
      %1072 = vrot.lane.b32.xlu0 %v566, 88
      %v1073 = vpop.permute.xlu0 %1072
      %v1075 = vsel %vm573, %v1071, 0
      %v1078 = vsel %vm573, %v1073, 0
      %1080 = vmatprep.subr.bf16.mxu0 0
      %1081 = vmatpush1.bf16.xpose.msra.mxu0 %v1078
      %1082 = vmatprep.subr.bf16.mxu0 0
      %1083 = vmatpush1.bf16.xpose.msra.mxu0 0
      %1084 = vmatprep.subr.bf16.mxu0 0
      %1085 = vmatpush1.bf16.xpose.msra.mxu0 0
      %1086 = vmatprep.subr.bf16.mxu0 0
      %1087 = vmatpush1.bf16.xpose.msra.mxu0 0
      %1088 = vmatprep.subr.bf16.mxu0 0
      %1089 = vmatpush1.bf16.xpose.msra.mxu0 0
      %1090 = vmatprep.subr.bf16.mxu0 0
      %1091 = vmatpush1.bf16.xpose.msra.mxu0 0
      %1092 = vmatprep.subr.bf16.mxu0 0
      %1093 = vmatpush1.bf16.xpose.msra.mxu0 0
      %1094 = vmatprep.subr.bf16.mxu0 0
      %1095 = vmatpush1.bf16.xpose.msra.mxu0 0
      %1096 = vmatprep.subr.bf16.mxu0 0
      %1097 = vmatpush1.bf16.xpose.msra.mxu0 0
      %1098 = vmatprep.subr.bf16.mxu0 0
      %1099 = vmatpush1.bf16.xpose.msra.mxu0 0
      %1100 = vmatprep.subr.bf16.mxu0 0
      %1101 = vmatpush1.bf16.xpose.msra.mxu0 0
      %1102 = vmatprep.subr.bf16.mxu0 0
      %1103 = vmatpush1.bf16.xpose.msra.mxu0 0
      %1104 = vmatprep.subr.bf16.mxu0 0
      %1105 = vmatpush1.bf16.xpose.msra.mxu0 0
      %1106 = vmatprep.subr.bf16.mxu0 0
      %1107 = vmatpush1.bf16.xpose.msra.mxu0 0
      %1108 = vmatprep.subr.bf16.mxu0 0
      %1109 = vmatpush1.bf16.xpose.msra.mxu0 0
      %1110 = vmatprep.subr.bf16.mxu0 0
      %1111 = vmatpush1.bf16.xpose.msra.mxu0 0
      %1112 = vmatprep.mubr.bf16.mxu0 0
      %1113 = vmatmul.mubr.bf16.gmra.mrb[0].mxu0 %v1075
      %v1114 = vpop.f32.mrb[0].mxu0
      %v1115 = vadd.f32 0.0, %v1114
      %v1116 = vpop.f32.mrb[0].mxu0
      %v1117 = vpop.f32.mrb[0].mxu0
      %v1118 = vadd.f32 0.0, %v1117
      %v1119 = vpop.f32.mrb[0].mxu0
      %1120 = vdwg.mxu0
      %1121 = vrot.lane.b32.xlu0 %v567, 120
      %v1122 = vpop.permute.xlu0 %1121
      %1123 = vrot.lane.b32.xlu0 %v567, 88
      %v1124 = vpop.permute.xlu0 %1123
      %v1126 = vsel %vm573, %v1122, 0
      %v1129 = vsel %vm573, %v1124, 0
      %1131 = vmatprep.subr.bf16.mxu0 0
      %1132 = vmatpush1.bf16.xpose.msra.mxu0 %v1129
      %1133 = vmatprep.subr.bf16.mxu0 0
      %1134 = vmatpush1.bf16.xpose.msra.mxu0 0
      %1135 = vmatprep.subr.bf16.mxu0 0
      %1136 = vmatpush1.bf16.xpose.msra.mxu0 0
      %1137 = vmatprep.subr.bf16.mxu0 0
      %1138 = vmatpush1.bf16.xpose.msra.mxu0 0
      %1139 = vmatprep.subr.bf16.mxu0 0
      %1140 = vmatpush1.bf16.xpose.msra.mxu0 0
      %1141 = vmatprep.subr.bf16.mxu0 0
      %1142 = vmatpush1.bf16.xpose.msra.mxu0 0
      %1143 = vmatprep.subr.bf16.mxu0 0
      %1144 = vmatpush1.bf16.xpose.msra.mxu0 0
      %1145 = vmatprep.subr.bf16.mxu0 0
      %1146 = vmatpush1.bf16.xpose.msra.mxu0 0
      %1147 = vmatprep.subr.bf16.mxu0 0
      %1148 = vmatpush1.bf16.xpose.msra.mxu0 0
      %1149 = vmatprep.subr.bf16.mxu0 0
      %1150 = vmatpush1.bf16.xpose.msra.mxu0 0
      %1151 = vmatprep.subr.bf16.mxu0 0
      %1152 = vmatpush1.bf16.xpose.msra.mxu0 0
      %1153 = vmatprep.subr.bf16.mxu0 0
      %1154 = vmatpush1.bf16.xpose.msra.mxu0 0
      %1155 = vmatprep.subr.bf16.mxu0 0
      %1156 = vmatpush1.bf16.xpose.msra.mxu0 0
      %1157 = vmatprep.subr.bf16.mxu0 0
      %1158 = vmatpush1.bf16.xpose.msra.mxu0 0
      %1159 = vmatprep.subr.bf16.mxu0 0
      %1160 = vmatpush1.bf16.xpose.msra.mxu0 0
      %1161 = vmatprep.subr.bf16.mxu0 0
      %1162 = vmatpush1.bf16.xpose.msra.mxu0 0
      %1163 = vmatprep.mubr.bf16.mxu0 0
      %1164 = vmatmul.mubr.bf16.gmra.mrb[0].mxu0 %v1126
      %v1165 = vpop.f32.mrb[0].mxu0
      %v1166 = vadd.f32 0.0, %v1165
      %v1167 = vpop.f32.mrb[0].mxu0
      %v1168 = vpop.f32.mrb[0].mxu0
      %v1169 = vadd.f32 0.0, %v1168
      %v1170 = vpop.f32.mrb[0].mxu0
      %1171 = vdwg.mxu0
      %1172 = vrot.lane.b32.xlu0 %v568, 120
      %v1173 = vpop.permute.xlu0 %1172
      %1174 = vrot.lane.b32.xlu0 %v568, 88
      %v1175 = vpop.permute.xlu0 %1174
      %v1177 = vsel %vm573, %v1173, 0
      %v1180 = vsel %vm573, %v1175, 0
      %1182 = vmatprep.subr.bf16.mxu0 0
      %1183 = vmatpush1.bf16.xpose.msra.mxu0 %v1180
      %1184 = vmatprep.subr.bf16.mxu0 0
      %1185 = vmatpush1.bf16.xpose.msra.mxu0 0
      %1186 = vmatprep.subr.bf16.mxu0 0
      %1187 = vmatpush1.bf16.xpose.msra.mxu0 0
      %1188 = vmatprep.subr.bf16.mxu0 0
      %1189 = vmatpush1.bf16.xpose.msra.mxu0 0
      %1190 = vmatprep.subr.bf16.mxu0 0
      %1191 = vmatpush1.bf16.xpose.msra.mxu0 0
      %1192 = vmatprep.subr.bf16.mxu0 0
      %1193 = vmatpush1.bf16.xpose.msra.mxu0 0
      %1194 = vmatprep.subr.bf16.mxu0 0
      %1195 = vmatpush1.bf16.xpose.msra.mxu0 0
      %1196 = vmatprep.subr.bf16.mxu0 0
      %1197 = vmatpush1.bf16.xpose.msra.mxu0 0
      %1198 = vmatprep.subr.bf16.mxu0 0
      %1199 = vmatpush1.bf16.xpose.msra.mxu0 0
      %1200 = vmatprep.subr.bf16.mxu0 0
      %1201 = vmatpush1.bf16.xpose.msra.mxu0 0
      %1202 = vmatprep.subr.bf16.mxu0 0
      %1203 = vmatpush1.bf16.xpose.msra.mxu0 0
      %1204 = vmatprep.subr.bf16.mxu0 0
      %1205 = vmatpush1.bf16.xpose.msra.mxu0 0
      %1206 = vmatprep.subr.bf16.mxu0 0
      %1207 = vmatpush1.bf16.xpose.msra.mxu0 0
      %1208 = vmatprep.subr.bf16.mxu0 0
      %1209 = vmatpush1.bf16.xpose.msra.mxu0 0
      %1210 = vmatprep.subr.bf16.mxu0 0
      %1211 = vmatpush1.bf16.xpose.msra.mxu0 0
      %1212 = vmatprep.subr.bf16.mxu0 0
      %1213 = vmatpush1.bf16.xpose.msra.mxu0 0
      %1214 = vmatprep.mubr.bf16.mxu0 0
      %1215 = vmatmul.mubr.bf16.gmra.mrb[0].mxu0 %v1177
      %v1216 = vpop.f32.mrb[0].mxu0
      %v1217 = vadd.f32 0.0, %v1216
      %v1218 = vpop.f32.mrb[0].mxu0
      %v1219 = vpop.f32.mrb[0].mxu0
      %v1220 = vadd.f32 0.0, %v1219
      %v1221 = vpop.f32.mrb[0].mxu0
      %1222 = vdwg.mxu0
      %1223 = vrot.lane.b32.xlu0 %v569, 120
      %v1224 = vpop.permute.xlu0 %1223
      %1225 = vrot.lane.b32.xlu0 %v569, 88
      %v1226 = vpop.permute.xlu0 %1225
      %v1228 = vsel %vm573, %v1224, 0
      %v1231 = vsel %vm573, %v1226, 0
      %1233 = vmatprep.subr.bf16.mxu0 0
      %1234 = vmatpush1.bf16.xpose.msra.mxu0 %v1231
      %1235 = vmatprep.subr.bf16.mxu0 0
      %1236 = vmatpush1.bf16.xpose.msra.mxu0 0
      %1237 = vmatprep.subr.bf16.mxu0 0
      %1238 = vmatpush1.bf16.xpose.msra.mxu0 0
      %1239 = vmatprep.subr.bf16.mxu0 0
      %1240 = vmatpush1.bf16.xpose.msra.mxu0 0
      %1241 = vmatprep.subr.bf16.mxu0 0
      %1242 = vmatpush1.bf16.xpose.msra.mxu0 0
      %1243 = vmatprep.subr.bf16.mxu0 0
      %1244 = vmatpush1.bf16.xpose.msra.mxu0 0
      %1245 = vmatprep.subr.bf16.mxu0 0
      %1246 = vmatpush1.bf16.xpose.msra.mxu0 0
      %1247 = vmatprep.subr.bf16.mxu0 0
      %1248 = vmatpush1.bf16.xpose.msra.mxu0 0
      %1249 = vmatprep.subr.bf16.mxu0 0
      %1250 = vmatpush1.bf16.xpose.msra.mxu0 0
      %1251 = vmatprep.subr.bf16.mxu0 0
      %1252 = vmatpush1.bf16.xpose.msra.mxu0 0
      %1253 = vmatprep.subr.bf16.mxu0 0
      %1254 = vmatpush1.bf16.xpose.msra.mxu0 0
      %1255 = vmatprep.subr.bf16.mxu0 0
      %1256 = vmatpush1.bf16.xpose.msra.mxu0 0
      %1257 = vmatprep.subr.bf16.mxu0 0
      %1258 = vmatpush1.bf16.xpose.msra.mxu0 0
      %1259 = vmatprep.subr.bf16.mxu0 0
      %1260 = vmatpush1.bf16.xpose.msra.mxu0 0
      %1261 = vmatprep.subr.bf16.mxu0 0
      %1262 = vmatpush1.bf16.xpose.msra.mxu0 0
      %1263 = vmatprep.subr.bf16.mxu0 0
      %1264 = vmatpush1.bf16.xpose.msra.mxu0 0
      %1265 = vmatprep.mubr.bf16.mxu0 0
      %1266 = vmatmul.mubr.bf16.gmra.mrb[0].mxu0 %v1228
      %v1267 = vpop.f32.mrb[0].mxu0
      %v1268 = vadd.f32 0.0, %v1267
      %v1269 = vpop.f32.mrb[0].mxu0
      %v1270 = vpop.f32.mrb[0].mxu0
      %v1271 = vadd.f32 0.0, %v1270
      %v1272 = vpop.f32.mrb[0].mxu0
      %1273 = vdwg.mxu0
      %s1274 = scalar_lea.vmem %s5, 16
      %v1275 = vld [vmem:[%s1274] sm:$0xff]
      %v1276 = vld [vmem:[%s1274 + $0x8] sm:$0xff]
      %v1277 = vadd.f32 %v1115, %v1275
      %v1278 = vadd.f32 %v1118, %v1276
      %v1279 = vadd.f32 %v1166, %v1275
      %v1280 = vadd.f32 %v1169, %v1276
      %v1281 = vadd.f32 %v1217, %v1275
      %v1282 = vadd.f32 %v1220, %v1276
      %v1283 = vadd.f32 %v1268, %v1275
      %v1284 = vadd.f32 %v1271, %v1276
      %v1285 = vsel %vm781, %v1277, -inf
      %1286 = vmax.xlane.f32.xlu0 %v1285
      %v1287 = vpop.xlane.xlu0 %1286
      %v1288 = vsel %vm781, %v1278, -inf
      %1289 = vmax.xlane.f32.xlu0 %v1288
      %v1290 = vpop.xlane.xlu0 %1289
      %v1291 = vsel %vm781, %v1279, -inf
      %1292 = vmax.xlane.f32.xlu0 %v1291
      %v1293 = vpop.xlane.xlu0 %1292
      %v1294 = vsel %vm781, %v1280, -inf
      %1295 = vmax.xlane.f32.xlu0 %v1294
      %v1296 = vpop.xlane.xlu0 %1295
      %v1297 = vsel %vm781, %v1281, -inf
      %1298 = vmax.xlane.f32.xlu0 %v1297
      %v1299 = vpop.xlane.xlu0 %1298
      %v1300 = vsel %vm781, %v1282, -inf
      %1301 = vmax.xlane.f32.xlu0 %v1300
      %v1302 = vpop.xlane.xlu0 %1301
      %v1303 = vsel %vm781, %v1283, -inf
      %1304 = vmax.xlane.f32.xlu0 %v1303
      %v1305 = vpop.xlane.xlu0 %1304
      %v1306 = vsel %vm781, %v1284, -inf
      %1307 = vmax.xlane.f32.xlu0 %v1306
      %v1308 = vpop.xlane.xlu0 %1307
      %v1309 = vsub.f32 %v1277, %v1287
      %v1310 = vsub.f32 %v1278, %v1290
      %v1311 = vsub.f32 %v1279, %v1293
      %v1312 = vsub.f32 %v1280, %v1296
      %v1313 = vsub.f32 %v1281, %v1299
      %v1314 = vsub.f32 %v1282, %v1302
      %v1315 = vsub.f32 %v1283, %v1305
      %v1316 = vsub.f32 %v1284, %v1308
      %v1317 = vmul.f32 %v1309, 1.442695
      %v1318 = vpow.pop %v1317
      %v1319 = vmul.f32 %v1310, 1.442695
      %v1320 = vpow.pop %v1319
      %v1321 = vmul.f32 %v1311, 1.442695
      %v1322 = vpow.pop %v1321
      %v1323 = vmul.f32 %v1312, 1.442695
      %v1324 = vpow.pop %v1323
      %v1325 = vmul.f32 %v1313, 1.442695
      %v1326 = vpow.pop %v1325
      %v1327 = vmul.f32 %v1314, 1.442695
      %v1328 = vpow.pop %v1327
      %v1329 = vmul.f32 %v1315, 1.442695
      %v1330 = vpow.pop %v1329
      %v1331 = vmul.f32 %v1316, 1.442695
      %v1332 = vpow.pop %v1331
      %v1333 = vsel %vm781, %v1318, 0.0
      %1334 = vadd.xlane.f32.xlu0 %v1333
      %v1335 = vpop.xlane.xlu0 %1334
      %v1336 = vsel %vm781, %v1320, 0.0
      %1337 = vadd.xlane.f32.xlu0 %v1336
      %v1338 = vpop.xlane.xlu0 %1337
      %v1339 = vsel %vm781, %v1322, 0.0
      %1340 = vadd.xlane.f32.xlu0 %v1339
      %v1341 = vpop.xlane.xlu0 %1340
      %v1342 = vsel %vm781, %v1324, 0.0
      %1343 = vadd.xlane.f32.xlu0 %v1342
      %v1344 = vpop.xlane.xlu0 %1343
      %v1345 = vsel %vm781, %v1326, 0.0
      %1346 = vadd.xlane.f32.xlu0 %v1345
      %v1347 = vpop.xlane.xlu0 %1346
      %v1348 = vsel %vm781, %v1328, 0.0
      %1349 = vadd.xlane.f32.xlu0 %v1348
      %v1350 = vpop.xlane.xlu0 %1349
      %v1351 = vsel %vm781, %v1330, 0.0
      %1352 = vadd.xlane.f32.xlu0 %v1351
      %v1353 = vpop.xlane.xlu0 %1352
      %v1354 = vsel %vm781, %v1332, 0.0
      %1355 = vadd.xlane.f32.xlu0 %v1354
      %v1356 = vpop.xlane.xlu0 %1355
      %v1357 = vrcp.pop %v1335
      %v1358 = vrcp.pop %v1338
      %v1359 = vrcp.pop %v1341
      %v1360 = vrcp.pop %v1344
      %v1361 = vrcp.pop %v1347
      %v1362 = vrcp.pop %v1350
      %v1363 = vrcp.pop %v1353
      %v1364 = vrcp.pop %v1356
      %v1365 = vmul.f32 %v1318, %v1357
      %v1366 = vmul.f32 %v1320, %v1358
      %v1367 = vmul.f32 %v1322, %v1359
      %v1368 = vmul.f32 %v1324, %v1360
      %v1369 = vmul.f32 %v1326, %v1361
      %v1370 = vmul.f32 %v1328, %v1362
      %v1371 = vmul.f32 %v1330, %v1363
      %v1372 = vmul.f32 %v1332, %v1364
      %v1373 = vpack.c.bf16 %v1366, %v1365
      %v1374 = vpack.c.bf16 %v1368, %v1367
      %v1375 = vpack.c.bf16 %v1370, %v1369
      %v1376 = vpack.c.bf16 %v1372, %v1371
      %1377 = vrot.lane.b32.xlu0 %v566, 56
      %v1378 = vpop.permute.xlu0 %1377
      %v1381 = vsel %vm781, %v1373, 0
      %1383 = vmatprep.subr.bf16.mxu0 0
      %1384 = vmatpush1.bf16.msra.mxu0 %v1378
      %1385 = vmatprep.subr.bf16.mxu0 0
      %1386 = vmatpush1.bf16.msra.mxu0 0
      %1387 = vmatprep.subr.bf16.mxu0 0
      %1388 = vmatpush1.bf16.msra.mxu0 0
      %1389 = vmatprep.subr.bf16.mxu0 0
      %1390 = vmatpush1.bf16.msra.mxu0 0
      %1391 = vmatprep.subr.bf16.mxu0 0
      %1392 = vmatpush1.bf16.msra.mxu0 0
      %1393 = vmatprep.subr.bf16.mxu0 0
      %1394 = vmatpush1.bf16.msra.mxu0 0
      %1395 = vmatprep.subr.bf16.mxu0 0
      %1396 = vmatpush1.bf16.msra.mxu0 0
      %1397 = vmatprep.subr.bf16.mxu0 0
      %1398 = vmatpush1.bf16.msra.mxu0 0
      %1399 = vmatprep.subr.bf16.mxu0 0
      %1400 = vmatpush1.bf16.msra.mxu0 0
      %1401 = vmatprep.subr.bf16.mxu0 0
      %1402 = vmatpush1.bf16.msra.mxu0 0
      %1403 = vmatprep.subr.bf16.mxu0 0
      %1404 = vmatpush1.bf16.msra.mxu0 0
      %1405 = vmatprep.subr.bf16.mxu0 0
      %1406 = vmatpush1.bf16.msra.mxu0 0
      %1407 = vmatprep.subr.bf16.mxu0 0
      %1408 = vmatpush1.bf16.msra.mxu0 0
      %1409 = vmatprep.subr.bf16.mxu0 0
      %1410 = vmatpush1.bf16.msra.mxu0 0
      %1411 = vmatprep.subr.bf16.mxu0 0
      %1412 = vmatpush1.bf16.msra.mxu0 0
      %1413 = vmatprep.subr.bf16.mxu0 0
      %1414 = vmatpush1.bf16.msra.mxu0 0
      %1415 = vmatprep.mubr.bf16.mxu0 0
      %1416 = vmatmul.mubr.bf16.gmra.mrb[0].mxu0 %v1381
      %v1417 = vpop.f32.mrb[0].mxu0
      %v1418 = vadd.f32 0.0, %v1417
      %v1419 = vpop.f32.mrb[0].mxu0
      %v1420 = vpop.f32.mrb[0].mxu0
      %v1421 = vadd.f32 0.0, %v1420
      %v1422 = vpop.f32.mrb[0].mxu0
      %1423 = vdwg.mxu0
      %1424 = vrot.lane.b32.xlu0 %v567, 56
      %v1425 = vpop.permute.xlu0 %1424
      %v1428 = vsel %vm781, %v1374, 0
      %1430 = vmatprep.subr.bf16.mxu0 0
      %1431 = vmatpush1.bf16.msra.mxu0 %v1425
      %1432 = vmatprep.subr.bf16.mxu0 0
      %1433 = vmatpush1.bf16.msra.mxu0 0
      %1434 = vmatprep.subr.bf16.mxu0 0
      %1435 = vmatpush1.bf16.msra.mxu0 0
      %1436 = vmatprep.subr.bf16.mxu0 0
      %1437 = vmatpush1.bf16.msra.mxu0 0
      %1438 = vmatprep.subr.bf16.mxu0 0
      %1439 = vmatpush1.bf16.msra.mxu0 0
      %1440 = vmatprep.subr.bf16.mxu0 0
      %1441 = vmatpush1.bf16.msra.mxu0 0
      %1442 = vmatprep.subr.bf16.mxu0 0
      %1443 = vmatpush1.bf16.msra.mxu0 0
      %1444 = vmatprep.subr.bf16.mxu0 0
      %1445 = vmatpush1.bf16.msra.mxu0 0
      %1446 = vmatprep.subr.bf16.mxu0 0
      %1447 = vmatpush1.bf16.msra.mxu0 0
      %1448 = vmatprep.subr.bf16.mxu0 0
      %1449 = vmatpush1.bf16.msra.mxu0 0
      %1450 = vmatprep.subr.bf16.mxu0 0
      %1451 = vmatpush1.bf16.msra.mxu0 0
      %1452 = vmatprep.subr.bf16.mxu0 0
      %1453 = vmatpush1.bf16.msra.mxu0 0
      %1454 = vmatprep.subr.bf16.mxu0 0
      %1455 = vmatpush1.bf16.msra.mxu0 0
      %1456 = vmatprep.subr.bf16.mxu0 0
      %1457 = vmatpush1.bf16.msra.mxu0 0
      %1458 = vmatprep.subr.bf16.mxu0 0
      %1459 = vmatpush1.bf16.msra.mxu0 0
      %1460 = vmatprep.subr.bf16.mxu0 0
      %1461 = vmatpush1.bf16.msra.mxu0 0
      %1462 = vmatprep.mubr.bf16.mxu0 0
      %1463 = vmatmul.mubr.bf16.gmra.mrb[0].mxu0 %v1428
      %v1464 = vpop.f32.mrb[0].mxu0
      %v1465 = vadd.f32 0.0, %v1464
      %v1466 = vpop.f32.mrb[0].mxu0
      %v1467 = vpop.f32.mrb[0].mxu0
      %v1468 = vadd.f32 0.0, %v1467
      %v1469 = vpop.f32.mrb[0].mxu0
      %1470 = vdwg.mxu0
      %1471 = vrot.lane.b32.xlu0 %v568, 56
      %v1472 = vpop.permute.xlu0 %1471
      %v1475 = vsel %vm781, %v1375, 0
      %1477 = vmatprep.subr.bf16.mxu0 0
      %1478 = vmatpush1.bf16.msra.mxu0 %v1472
      %1479 = vmatprep.subr.bf16.mxu0 0
      %1480 = vmatpush1.bf16.msra.mxu0 0
      %1481 = vmatprep.subr.bf16.mxu0 0
      %1482 = vmatpush1.bf16.msra.mxu0 0
      %1483 = vmatprep.subr.bf16.mxu0 0
      %1484 = vmatpush1.bf16.msra.mxu0 0
      %1485 = vmatprep.subr.bf16.mxu0 0
      %1486 = vmatpush1.bf16.msra.mxu0 0
      %1487 = vmatprep.subr.bf16.mxu0 0
      %1488 = vmatpush1.bf16.msra.mxu0 0
      %1489 = vmatprep.subr.bf16.mxu0 0
      %1490 = vmatpush1.bf16.msra.mxu0 0
      %1491 = vmatprep.subr.bf16.mxu0 0
      %1492 = vmatpush1.bf16.msra.mxu0 0
      %1493 = vmatprep.subr.bf16.mxu0 0
      %1494 = vmatpush1.bf16.msra.mxu0 0
      %1495 = vmatprep.subr.bf16.mxu0 0
      %1496 = vmatpush1.bf16.msra.mxu0 0
      %1497 = vmatprep.subr.bf16.mxu0 0
      %1498 = vmatpush1.bf16.msra.mxu0 0
      %1499 = vmatprep.subr.bf16.mxu0 0
      %1500 = vmatpush1.bf16.msra.mxu0 0
      %1501 = vmatprep.subr.bf16.mxu0 0
      %1502 = vmatpush1.bf16.msra.mxu0 0
      %1503 = vmatprep.subr.bf16.mxu0 0
      %1504 = vmatpush1.bf16.msra.mxu0 0
      %1505 = vmatprep.subr.bf16.mxu0 0
      %1506 = vmatpush1.bf16.msra.mxu0 0
      %1507 = vmatprep.subr.bf16.mxu0 0
      %1508 = vmatpush1.bf16.msra.mxu0 0
      %1509 = vmatprep.mubr.bf16.mxu0 0
      %1510 = vmatmul.mubr.bf16.gmra.mrb[0].mxu0 %v1475
      %v1511 = vpop.f32.mrb[0].mxu0
      %v1512 = vadd.f32 0.0, %v1511
      %v1513 = vpop.f32.mrb[0].mxu0
      %v1514 = vpop.f32.mrb[0].mxu0
      %v1515 = vadd.f32 0.0, %v1514
      %v1516 = vpop.f32.mrb[0].mxu0
      %1517 = vdwg.mxu0
      %1518 = vrot.lane.b32.xlu0 %v569, 56
      %v1519 = vpop.permute.xlu0 %1518
      %v1522 = vsel %vm781, %v1376, 0
      %1524 = vmatprep.subr.bf16.mxu0 0
      %1525 = vmatpush1.bf16.msra.mxu0 %v1519
      %1526 = vmatprep.subr.bf16.mxu0 0
      %1527 = vmatpush1.bf16.msra.mxu0 0
      %1528 = vmatprep.subr.bf16.mxu0 0
      %1529 = vmatpush1.bf16.msra.mxu0 0
      %1530 = vmatprep.subr.bf16.mxu0 0
      %1531 = vmatpush1.bf16.msra.mxu0 0
      %1532 = vmatprep.subr.bf16.mxu0 0
      %1533 = vmatpush1.bf16.msra.mxu0 0
      %1534 = vmatprep.subr.bf16.mxu0 0
      %1535 = vmatpush1.bf16.msra.mxu0 0
      %1536 = vmatprep.subr.bf16.mxu0 0
      %1537 = vmatpush1.bf16.msra.mxu0 0
      %1538 = vmatprep.subr.bf16.mxu0 0
      %1539 = vmatpush1.bf16.msra.mxu0 0
      %1540 = vmatprep.subr.bf16.mxu0 0
      %1541 = vmatpush1.bf16.msra.mxu0 0
      %1542 = vmatprep.subr.bf16.mxu0 0
      %1543 = vmatpush1.bf16.msra.mxu0 0
      %1544 = vmatprep.subr.bf16.mxu0 0
      %1545 = vmatpush1.bf16.msra.mxu0 0
      %1546 = vmatprep.subr.bf16.mxu0 0
      %1547 = vmatpush1.bf16.msra.mxu0 0
      %1548 = vmatprep.subr.bf16.mxu0 0
      %1549 = vmatpush1.bf16.msra.mxu0 0
      %1550 = vmatprep.subr.bf16.mxu0 0
      %1551 = vmatpush1.bf16.msra.mxu0 0
      %1552 = vmatprep.subr.bf16.mxu0 0
      %1553 = vmatpush1.bf16.msra.mxu0 0
      %1554 = vmatprep.subr.bf16.mxu0 0
      %1555 = vmatpush1.bf16.msra.mxu0 0
      %1556 = vmatprep.mubr.bf16.mxu0 0
      %1557 = vmatmul.mubr.bf16.gmra.mrb[0].mxu0 %v1522
      %v1558 = vpop.f32.mrb[0].mxu0
      %v1559 = vadd.f32 0.0, %v1558
      %v1560 = vpop.f32.mrb[0].mxu0
      %v1561 = vpop.f32.mrb[0].mxu0
      %v1562 = vadd.f32 0.0, %v1561
      %v1563 = vpop.f32.mrb[0].mxu0
      %1564 = vdwg.mxu0
      %v1565 = vpack.c.bf16 %v1421, %v1418
      %v1566 = vpack.c.bf16 %v1468, %v1465
      %v1567 = vpack.c.bf16 %v1515, %v1512
      %v1568 = vpack.c.bf16 %v1562, %v1559
      %1573 = vrot.lane.b32.xlu0 %v1565, 8
      %v1574 = vpop.permute.xlu0 %1573
      %1575 = vrot.lane.b32.xlu0 %v1566, 8
      %v1576 = vpop.permute.xlu0 %1575
      %1577 = vrot.lane.b32.xlu0 %v1567, 8
      %v1578 = vpop.permute.xlu0 %1577
      %1579 = vrot.lane.b32.xlu0 %v1568, 8
      %v1580 = vpop.permute.xlu0 %1579
      %vm1585 = vcmask 130112
      %1586 = vst.msk [vmem:[#allocation2] sm:$0xff] %vm1585, %v1574
      %1587 = vst.msk [vmem:[#allocation2 + $0x8] sm:$0xff] %vm1585, %v1576
      %1588 = vst.msk [vmem:[#allocation2 + $0x10] sm:$0xff] %vm1585, %v1578
      %1589 = vst.msk [vmem:[#allocation2 + $0x18] sm:$0xff] %vm1585, %v1580
      %1590 = vrot.lane.b32.xlu0 %v566, 112
      %v1591 = vpop.permute.xlu0 %1590
      %1592 = vrot.lane.b32.xlu0 %v566, 80
      %v1593 = vpop.permute.xlu0 %1592
      %v1595 = vsel %vm573, %v1591, 0
      %v1598 = vsel %vm573, %v1593, 0
      %1600 = vmatprep.subr.bf16.mxu0 0
      %1601 = vmatpush1.bf16.xpose.msra.mxu0 %v1598
      %1602 = vmatprep.subr.bf16.mxu0 0
      %1603 = vmatpush1.bf16.xpose.msra.mxu0 0
      %1604 = vmatprep.subr.bf16.mxu0 0
      %1605 = vmatpush1.bf16.xpose.msra.mxu0 0
      %1606 = vmatprep.subr.bf16.mxu0 0
      %1607 = vmatpush1.bf16.xpose.msra.mxu0 0
      %1608 = vmatprep.subr.bf16.mxu0 0
      %1609 = vmatpush1.bf16.xpose.msra.mxu0 0
      %1610 = vmatprep.subr.bf16.mxu0 0
      %1611 = vmatpush1.bf16.xpose.msra.mxu0 0
      %1612 = vmatprep.subr.bf16.mxu0 0
      %1613 = vmatpush1.bf16.xpose.msra.mxu0 0
      %1614 = vmatprep.subr.bf16.mxu0 0
      %1615 = vmatpush1.bf16.xpose.msra.mxu0 0
      %1616 = vmatprep.subr.bf16.mxu0 0
      %1617 = vmatpush1.bf16.xpose.msra.mxu0 0
      %1618 = vmatprep.subr.bf16.mxu0 0
      %1619 = vmatpush1.bf16.xpose.msra.mxu0 0
      %1620 = vmatprep.subr.bf16.mxu0 0
      %1621 = vmatpush1.bf16.xpose.msra.mxu0 0
      %1622 = vmatprep.subr.bf16.mxu0 0
      %1623 = vmatpush1.bf16.xpose.msra.mxu0 0
      %1624 = vmatprep.subr.bf16.mxu0 0
      %1625 = vmatpush1.bf16.xpose.msra.mxu0 0
      %1626 = vmatprep.subr.bf16.mxu0 0
      %1627 = vmatpush1.bf16.xpose.msra.mxu0 0
      %1628 = vmatprep.subr.bf16.mxu0 0
      %1629 = vmatpush1.bf16.xpose.msra.mxu0 0
      %1630 = vmatprep.subr.bf16.mxu0 0
      %1631 = vmatpush1.bf16.xpose.msra.mxu0 0
      %1632 = vmatprep.mubr.bf16.mxu0 0
      %1633 = vmatmul.mubr.bf16.gmra.mrb[0].mxu0 %v1595
      %v1634 = vpop.f32.mrb[0].mxu0
      %v1635 = vadd.f32 0.0, %v1634
      %v1636 = vpop.f32.mrb[0].mxu0
      %v1637 = vpop.f32.mrb[0].mxu0
      %v1638 = vadd.f32 0.0, %v1637
      %v1639 = vpop.f32.mrb[0].mxu0
      %1640 = vdwg.mxu0
      %1641 = vrot.lane.b32.xlu0 %v567, 112
      %v1642 = vpop.permute.xlu0 %1641
      %1643 = vrot.lane.b32.xlu0 %v567, 80
      %v1644 = vpop.permute.xlu0 %1643
      %v1646 = vsel %vm573, %v1642, 0
      %v1649 = vsel %vm573, %v1644, 0
      %1651 = vmatprep.subr.bf16.mxu0 0
      %1652 = vmatpush1.bf16.xpose.msra.mxu0 %v1649
      %1653 = vmatprep.subr.bf16.mxu0 0
      %1654 = vmatpush1.bf16.xpose.msra.mxu0 0
      %1655 = vmatprep.subr.bf16.mxu0 0
      %1656 = vmatpush1.bf16.xpose.msra.mxu0 0
      %1657 = vmatprep.subr.bf16.mxu0 0
      %1658 = vmatpush1.bf16.xpose.msra.mxu0 0
      %1659 = vmatprep.subr.bf16.mxu0 0
      %1660 = vmatpush1.bf16.xpose.msra.mxu0 0
      %1661 = vmatprep.subr.bf16.mxu0 0
      %1662 = vmatpush1.bf16.xpose.msra.mxu0 0
      %1663 = vmatprep.subr.bf16.mxu0 0
      %1664 = vmatpush1.bf16.xpose.msra.mxu0 0
      %1665 = vmatprep.subr.bf16.mxu0 0
      %1666 = vmatpush1.bf16.xpose.msra.mxu0 0
      %1667 = vmatprep.subr.bf16.mxu0 0
      %1668 = vmatpush1.bf16.xpose.msra.mxu0 0
      %1669 = vmatprep.subr.bf16.mxu0 0
      %1670 = vmatpush1.bf16.xpose.msra.mxu0 0
      %1671 = vmatprep.subr.bf16.mxu0 0
      %1672 = vmatpush1.bf16.xpose.msra.mxu0 0
      %1673 = vmatprep.subr.bf16.mxu0 0
      %1674 = vmatpush1.bf16.xpose.msra.mxu0 0
      %1675 = vmatprep.subr.bf16.mxu0 0
      %1676 = vmatpush1.bf16.xpose.msra.mxu0 0
      %1677 = vmatprep.subr.bf16.mxu0 0
      %1678 = vmatpush1.bf16.xpose.msra.mxu0 0
      %1679 = vmatprep.subr.bf16.mxu0 0
      %1680 = vmatpush1.bf16.xpose.msra.mxu0 0
      %1681 = vmatprep.subr.bf16.mxu0 0
      %1682 = vmatpush1.bf16.xpose.msra.mxu0 0
      %1683 = vmatprep.mubr.bf16.mxu0 0
      %1684 = vmatmul.mubr.bf16.gmra.mrb[0].mxu0 %v1646
      %v1685 = vpop.f32.mrb[0].mxu0
      %v1686 = vadd.f32 0.0, %v1685
      %v1687 = vpop.f32.mrb[0].mxu0
      %v1688 = vpop.f32.mrb[0].mxu0
      %v1689 = vadd.f32 0.0, %v1688
      %v1690 = vpop.f32.mrb[0].mxu0
      %1691 = vdwg.mxu0
      %1692 = vrot.lane.b32.xlu0 %v568, 112
      %v1693 = vpop.permute.xlu0 %1692
      %1694 = vrot.lane.b32.xlu0 %v568, 80
      %v1695 = vpop.permute.xlu0 %1694
      %v1697 = vsel %vm573, %v1693, 0
      %v1700 = vsel %vm573, %v1695, 0
      %1702 = vmatprep.subr.bf16.mxu0 0
      %1703 = vmatpush1.bf16.xpose.msra.mxu0 %v1700
      %1704 = vmatprep.subr.bf16.mxu0 0
      %1705 = vmatpush1.bf16.xpose.msra.mxu0 0
      %1706 = vmatprep.subr.bf16.mxu0 0
      %1707 = vmatpush1.bf16.xpose.msra.mxu0 0
      %1708 = vmatprep.subr.bf16.mxu0 0
      %1709 = vmatpush1.bf16.xpose.msra.mxu0 0
      %1710 = vmatprep.subr.bf16.mxu0 0
      %1711 = vmatpush1.bf16.xpose.msra.mxu0 0
      %1712 = vmatprep.subr.bf16.mxu0 0
      %1713 = vmatpush1.bf16.xpose.msra.mxu0 0
      %1714 = vmatprep.subr.bf16.mxu0 0
      %1715 = vmatpush1.bf16.xpose.msra.mxu0 0
      %1716 = vmatprep.subr.bf16.mxu0 0
      %1717 = vmatpush1.bf16.xpose.msra.mxu0 0
      %1718 = vmatprep.subr.bf16.mxu0 0
      %1719 = vmatpush1.bf16.xpose.msra.mxu0 0
      %1720 = vmatprep.subr.bf16.mxu0 0
      %1721 = vmatpush1.bf16.xpose.msra.mxu0 0
      %1722 = vmatprep.subr.bf16.mxu0 0
      %1723 = vmatpush1.bf16.xpose.msra.mxu0 0
      %1724 = vmatprep.subr.bf16.mxu0 0
      %1725 = vmatpush1.bf16.xpose.msra.mxu0 0
      %1726 = vmatprep.subr.bf16.mxu0 0
      %1727 = vmatpush1.bf16.xpose.msra.mxu0 0
      %1728 = vmatprep.subr.bf16.mxu0 0
      %1729 = vmatpush1.bf16.xpose.msra.mxu0 0
      %1730 = vmatprep.subr.bf16.mxu0 0
      %1731 = vmatpush1.bf16.xpose.msra.mxu0 0
      %1732 = vmatprep.subr.bf16.mxu0 0
      %1733 = vmatpush1.bf16.xpose.msra.mxu0 0
      %1734 = vmatprep.mubr.bf16.mxu0 0
      %1735 = vmatmul.mubr.bf16.gmra.mrb[0].mxu0 %v1697
      %v1736 = vpop.f32.mrb[0].mxu0
      %v1737 = vadd.f32 0.0, %v1736
      %v1738 = vpop.f32.mrb[0].mxu0
      %v1739 = vpop.f32.mrb[0].mxu0
      %v1740 = vadd.f32 0.0, %v1739
      %v1741 = vpop.f32.mrb[0].mxu0
      %1742 = vdwg.mxu0
      %1743 = vrot.lane.b32.xlu0 %v569, 112
      %v1744 = vpop.permute.xlu0 %1743
      %1745 = vrot.lane.b32.xlu0 %v569, 80
      %v1746 = vpop.permute.xlu0 %1745
      %v1748 = vsel %vm573, %v1744, 0
      %v1751 = vsel %vm573, %v1746, 0
      %1753 = vmatprep.subr.bf16.mxu0 0
      %1754 = vmatpush1.bf16.xpose.msra.mxu0 %v1751
      %1755 = vmatprep.subr.bf16.mxu0 0
      %1756 = vmatpush1.bf16.xpose.msra.mxu0 0
      %1757 = vmatprep.subr.bf16.mxu0 0
      %1758 = vmatpush1.bf16.xpose.msra.mxu0 0
      %1759 = vmatprep.subr.bf16.mxu0 0
      %1760 = vmatpush1.bf16.xpose.msra.mxu0 0
      %1761 = vmatprep.subr.bf16.mxu0 0
      %1762 = vmatpush1.bf16.xpose.msra.mxu0 0
      %1763 = vmatprep.subr.bf16.mxu0 0
      %1764 = vmatpush1.bf16.xpose.msra.mxu0 0
      %1765 = vmatprep.subr.bf16.mxu0 0
      %1766 = vmatpush1.bf16.xpose.msra.mxu0 0
      %1767 = vmatprep.subr.bf16.mxu0 0
      %1768 = vmatpush1.bf16.xpose.msra.mxu0 0
      %1769 = vmatprep.subr.bf16.mxu0 0
      %1770 = vmatpush1.bf16.xpose.msra.mxu0 0
      %1771 = vmatprep.subr.bf16.mxu0 0
      %1772 = vmatpush1.bf16.xpose.msra.mxu0 0
      %1773 = vmatprep.subr.bf16.mxu0 0
      %1774 = vmatpush1.bf16.xpose.msra.mxu0 0
      %1775 = vmatprep.subr.bf16.mxu0 0
      %1776 = vmatpush1.bf16.xpose.msra.mxu0 0
      %1777 = vmatprep.subr.bf16.mxu0 0
      %1778 = vmatpush1.bf16.xpose.msra.mxu0 0
      %1779 = vmatprep.subr.bf16.mxu0 0
      %1780 = vmatpush1.bf16.xpose.msra.mxu0 0
      %1781 = vmatprep.subr.bf16.mxu0 0
      %1782 = vmatpush1.bf16.xpose.msra.mxu0 0
      %1783 = vmatprep.subr.bf16.mxu0 0
      %1784 = vmatpush1.bf16.xpose.msra.mxu0 0
      %1785 = vmatprep.mubr.bf16.mxu0 0
      %1786 = vmatmul.mubr.bf16.gmra.mrb[0].mxu0 %v1748
      %v1787 = vpop.f32.mrb[0].mxu0
      %v1788 = vadd.f32 0.0, %v1787
      %v1789 = vpop.f32.mrb[0].mxu0
      %v1790 = vpop.f32.mrb[0].mxu0
      %v1791 = vadd.f32 0.0, %v1790
      %v1792 = vpop.f32.mrb[0].mxu0
      %1793 = vdwg.mxu0
      %s1794 = scalar_lea.vmem %s5, 32
      %v1795 = vld [vmem:[%s1794] sm:$0xff]
      %v1796 = vld [vmem:[%s1794 + $0x8] sm:$0xff]
      %v1797 = vadd.f32 %v1635, %v1795
      %v1798 = vadd.f32 %v1638, %v1796
      %v1799 = vadd.f32 %v1686, %v1795
      %v1800 = vadd.f32 %v1689, %v1796
      %v1801 = vadd.f32 %v1737, %v1795
      %v1802 = vadd.f32 %v1740, %v1796
      %v1803 = vadd.f32 %v1788, %v1795
      %v1804 = vadd.f32 %v1791, %v1796
      %v1805 = vsel %vm781, %v1797, -inf
      %1806 = vmax.xlane.f32.xlu0 %v1805
      %v1807 = vpop.xlane.xlu0 %1806
      %v1808 = vsel %vm781, %v1798, -inf
      %1809 = vmax.xlane.f32.xlu0 %v1808
      %v1810 = vpop.xlane.xlu0 %1809
      %v1811 = vsel %vm781, %v1799, -inf
      %1812 = vmax.xlane.f32.xlu0 %v1811
      %v1813 = vpop.xlane.xlu0 %1812
      %v1814 = vsel %vm781, %v1800, -inf
      %1815 = vmax.xlane.f32.xlu0 %v1814
      %v1816 = vpop.xlane.xlu0 %1815
      %v1817 = vsel %vm781, %v1801, -inf
      %1818 = vmax.xlane.f32.xlu0 %v1817
      %v1819 = vpop.xlane.xlu0 %1818
      %v1820 = vsel %vm781, %v1802, -inf
      %1821 = vmax.xlane.f32.xlu0 %v1820
      %v1822 = vpop.xlane.xlu0 %1821
      %v1823 = vsel %vm781, %v1803, -inf
      %1824 = vmax.xlane.f32.xlu0 %v1823
      %v1825 = vpop.xlane.xlu0 %1824
      %v1826 = vsel %vm781, %v1804, -inf
      %1827 = vmax.xlane.f32.xlu0 %v1826
      %v1828 = vpop.xlane.xlu0 %1827
      %v1829 = vsub.f32 %v1797, %v1807
      %v1830 = vsub.f32 %v1798, %v1810
      %v1831 = vsub.f32 %v1799, %v1813
      %v1832 = vsub.f32 %v1800, %v1816
      %v1833 = vsub.f32 %v1801, %v1819
      %v1834 = vsub.f32 %v1802, %v1822
      %v1835 = vsub.f32 %v1803, %v1825
      %v1836 = vsub.f32 %v1804, %v1828
      %v1837 = vmul.f32 %v1829, 1.442695
      %v1838 = vpow.pop %v1837
      %v1839 = vmul.f32 %v1830, 1.442695
      %v1840 = vpow.pop %v1839
      %v1841 = vmul.f32 %v1831, 1.442695
      %v1842 = vpow.pop %v1841
      %v1843 = vmul.f32 %v1832, 1.442695
      %v1844 = vpow.pop %v1843
      %v1845 = vmul.f32 %v1833, 1.442695
      %v1846 = vpow.pop %v1845
      %v1847 = vmul.f32 %v1834, 1.442695
      %v1848 = vpow.pop %v1847
      %v1849 = vmul.f32 %v1835, 1.442695
      %v1850 = vpow.pop %v1849
      %v1851 = vmul.f32 %v1836, 1.442695
      %v1852 = vpow.pop %v1851
      %v1853 = vsel %vm781, %v1838, 0.0
      %1854 = vadd.xlane.f32.xlu0 %v1853
      %v1855 = vpop.xlane.xlu0 %1854
      %v1856 = vsel %vm781, %v1840, 0.0
      %1857 = vadd.xlane.f32.xlu0 %v1856
      %v1858 = vpop.xlane.xlu0 %1857
      %v1859 = vsel %vm781, %v1842, 0.0
      %1860 = vadd.xlane.f32.xlu0 %v1859
      %v1861 = vpop.xlane.xlu0 %1860
      %v1862 = vsel %vm781, %v1844, 0.0
      %1863 = vadd.xlane.f32.xlu0 %v1862
      %v1864 = vpop.xlane.xlu0 %1863
      %v1865 = vsel %vm781, %v1846, 0.0
      %1866 = vadd.xlane.f32.xlu0 %v1865
      %v1867 = vpop.xlane.xlu0 %1866
      %v1868 = vsel %vm781, %v1848, 0.0
      %1869 = vadd.xlane.f32.xlu0 %v1868
      %v1870 = vpop.xlane.xlu0 %1869
      %v1871 = vsel %vm781, %v1850, 0.0
      %1872 = vadd.xlane.f32.xlu0 %v1871
      %v1873 = vpop.xlane.xlu0 %1872
      %v1874 = vsel %vm781, %v1852, 0.0
      %1875 = vadd.xlane.f32.xlu0 %v1874
      %v1876 = vpop.xlane.xlu0 %1875
      %v1877 = vrcp.pop %v1855
      %v1878 = vrcp.pop %v1858
      %v1879 = vrcp.pop %v1861
      %v1880 = vrcp.pop %v1864
      %v1881 = vrcp.pop %v1867
      %v1882 = vrcp.pop %v1870
      %v1883 = vrcp.pop %v1873
      %v1884 = vrcp.pop %v1876
      %v1885 = vmul.f32 %v1838, %v1877
      %v1886 = vmul.f32 %v1840, %v1878
      %v1887 = vmul.f32 %v1842, %v1879
      %v1888 = vmul.f32 %v1844, %v1880
      %v1889 = vmul.f32 %v1846, %v1881
      %v1890 = vmul.f32 %v1848, %v1882
      %v1891 = vmul.f32 %v1850, %v1883
      %v1892 = vmul.f32 %v1852, %v1884
      %v1893 = vpack.c.bf16 %v1886, %v1885
      %v1894 = vpack.c.bf16 %v1888, %v1887
      %v1895 = vpack.c.bf16 %v1890, %v1889
      %v1896 = vpack.c.bf16 %v1892, %v1891
      %1897 = vrot.lane.b32.xlu0 %v566, 48
      %v1898 = vpop.permute.xlu0 %1897
      %v1901 = vsel %vm781, %v1893, 0
      %1903 = vmatprep.subr.bf16.mxu0 0
      %1904 = vmatpush1.bf16.msra.mxu0 %v1898
      %1905 = vmatprep.subr.bf16.mxu0 0
      %1906 = vmatpush1.bf16.msra.mxu0 0
      %1907 = vmatprep.subr.bf16.mxu0 0
      %1908 = vmatpush1.bf16.msra.mxu0 0
      %1909 = vmatprep.subr.bf16.mxu0 0
      %1910 = vmatpush1.bf16.msra.mxu0 0
      %1911 = vmatprep.subr.bf16.mxu0 0
      %1912 = vmatpush1.bf16.msra.mxu0 0
      %1913 = vmatprep.subr.bf16.mxu0 0
      %1914 = vmatpush1.bf16.msra.mxu0 0
      %1915 = vmatprep.subr.bf16.mxu0 0
      %1916 = vmatpush1.bf16.msra.mxu0 0
      %1917 = vmatprep.subr.bf16.mxu0 0
      %1918 = vmatpush1.bf16.msra.mxu0 0
      %1919 = vmatprep.subr.bf16.mxu0 0
      %1920 = vmatpush1.bf16.msra.mxu0 0
      %1921 = vmatprep.subr.bf16.mxu0 0
      %1922 = vmatpush1.bf16.msra.mxu0 0
      %1923 = vmatprep.subr.bf16.mxu0 0
      %1924 = vmatpush1.bf16.msra.mxu0 0
      %1925 = vmatprep.subr.bf16.mxu0 0
      %1926 = vmatpush1.bf16.msra.mxu0 0
      %1927 = vmatprep.subr.bf16.mxu0 0
      %1928 = vmatpush1.bf16.msra.mxu0 0
      %1929 = vmatprep.subr.bf16.mxu0 0
      %1930 = vmatpush1.bf16.msra.mxu0 0
      %1931 = vmatprep.subr.bf16.mxu0 0
      %1932 = vmatpush1.bf16.msra.mxu0 0
      %1933 = vmatprep.subr.bf16.mxu0 0
      %1934 = vmatpush1.bf16.msra.mxu0 0
      %1935 = vmatprep.mubr.bf16.mxu0 0
      %1936 = vmatmul.mubr.bf16.gmra.mrb[0].mxu0 %v1901
      %v1937 = vpop.f32.mrb[0].mxu0
      %v1938 = vadd.f32 0.0, %v1937
      %v1939 = vpop.f32.mrb[0].mxu0
      %v1940 = vpop.f32.mrb[0].mxu0
      %v1941 = vadd.f32 0.0, %v1940
      %v1942 = vpop.f32.mrb[0].mxu0
      %1943 = vdwg.mxu0
      %1944 = vrot.lane.b32.xlu0 %v567, 48
      %v1945 = vpop.permute.xlu0 %1944
      %v1948 = vsel %vm781, %v1894, 0
      %1950 = vmatprep.subr.bf16.mxu0 0
      %1951 = vmatpush1.bf16.msra.mxu0 %v1945
      %1952 = vmatprep.subr.bf16.mxu0 0
      %1953 = vmatpush1.bf16.msra.mxu0 0
      %1954 = vmatprep.subr.bf16.mxu0 0
      %1955 = vmatpush1.bf16.msra.mxu0 0
      %1956 = vmatprep.subr.bf16.mxu0 0
      %1957 = vmatpush1.bf16.msra.mxu0 0
      %1958 = vmatprep.subr.bf16.mxu0 0
      %1959 = vmatpush1.bf16.msra.mxu0 0
      %1960 = vmatprep.subr.bf16.mxu0 0
      %1961 = vmatpush1.bf16.msra.mxu0 0
      %1962 = vmatprep.subr.bf16.mxu0 0
      %1963 = vmatpush1.bf16.msra.mxu0 0
      %1964 = vmatprep.subr.bf16.mxu0 0
      %1965 = vmatpush1.bf16.msra.mxu0 0
      %1966 = vmatprep.subr.bf16.mxu0 0
      %1967 = vmatpush1.bf16.msra.mxu0 0
      %1968 = vmatprep.subr.bf16.mxu0 0
      %1969 = vmatpush1.bf16.msra.mxu0 0
      %1970 = vmatprep.subr.bf16.mxu0 0
      %1971 = vmatpush1.bf16.msra.mxu0 0
      %1972 = vmatprep.subr.bf16.mxu0 0
      %1973 = vmatpush1.bf16.msra.mxu0 0
      %1974 = vmatprep.subr.bf16.mxu0 0
      %1975 = vmatpush1.bf16.msra.mxu0 0
      %1976 = vmatprep.subr.bf16.mxu0 0
      %1977 = vmatpush1.bf16.msra.mxu0 0
      %1978 = vmatprep.subr.bf16.mxu0 0
      %1979 = vmatpush1.bf16.msra.mxu0 0
      %1980 = vmatprep.subr.bf16.mxu0 0
      %1981 = vmatpush1.bf16.msra.mxu0 0
      %1982 = vmatprep.mubr.bf16.mxu0 0
      %1983 = vmatmul.mubr.bf16.gmra.mrb[0].mxu0 %v1948
      %v1984 = vpop.f32.mrb[0].mxu0
      %v1985 = vadd.f32 0.0, %v1984
      %v1986 = vpop.f32.mrb[0].mxu0
      %v1987 = vpop.f32.mrb[0].mxu0
      %v1988 = vadd.f32 0.0, %v1987
      %v1989 = vpop.f32.mrb[0].mxu0
      %1990 = vdwg.mxu0
      %1991 = vrot.lane.b32.xlu0 %v568, 48
      %v1992 = vpop.permute.xlu0 %1991
      %v1995 = vsel %vm781, %v1895, 0
      %1997 = vmatprep.subr.bf16.mxu0 0
      %1998 = vmatpush1.bf16.msra.mxu0 %v1992
      %1999 = vmatprep.subr.bf16.mxu0 0
      %2000 = vmatpush1.bf16.msra.mxu0 0
      %2001 = vmatprep.subr.bf16.mxu0 0
      %2002 = vmatpush1.bf16.msra.mxu0 0
      %2003 = vmatprep.subr.bf16.mxu0 0
      %2004 = vmatpush1.bf16.msra.mxu0 0
      %2005 = vmatprep.subr.bf16.mxu0 0
      %2006 = vmatpush1.bf16.msra.mxu0 0
      %2007 = vmatprep.subr.bf16.mxu0 0
      %2008 = vmatpush1.bf16.msra.mxu0 0
      %2009 = vmatprep.subr.bf16.mxu0 0
      %2010 = vmatpush1.bf16.msra.mxu0 0
      %2011 = vmatprep.subr.bf16.mxu0 0
      %2012 = vmatpush1.bf16.msra.mxu0 0
      %2013 = vmatprep.subr.bf16.mxu0 0
      %2014 = vmatpush1.bf16.msra.mxu0 0
      %2015 = vmatprep.subr.bf16.mxu0 0
      %2016 = vmatpush1.bf16.msra.mxu0 0
      %2017 = vmatprep.subr.bf16.mxu0 0
      %2018 = vmatpush1.bf16.msra.mxu0 0
      %2019 = vmatprep.subr.bf16.mxu0 0
      %2020 = vmatpush1.bf16.msra.mxu0 0
      %2021 = vmatprep.subr.bf16.mxu0 0
      %2022 = vmatpush1.bf16.msra.mxu0 0
      %2023 = vmatprep.subr.bf16.mxu0 0
      %2024 = vmatpush1.bf16.msra.mxu0 0
      %2025 = vmatprep.subr.bf16.mxu0 0
      %2026 = vmatpush1.bf16.msra.mxu0 0
      %2027 = vmatprep.subr.bf16.mxu0 0
      %2028 = vmatpush1.bf16.msra.mxu0 0
      %2029 = vmatprep.mubr.bf16.mxu0 0
      %2030 = vmatmul.mubr.bf16.gmra.mrb[0].mxu0 %v1995
      %v2031 = vpop.f32.mrb[0].mxu0
      %v2032 = vadd.f32 0.0, %v2031
      %v2033 = vpop.f32.mrb[0].mxu0
      %v2034 = vpop.f32.mrb[0].mxu0
      %v2035 = vadd.f32 0.0, %v2034
      %v2036 = vpop.f32.mrb[0].mxu0
      %2037 = vdwg.mxu0
      %2038 = vrot.lane.b32.xlu0 %v569, 48
      %v2039 = vpop.permute.xlu0 %2038
      %v2042 = vsel %vm781, %v1896, 0
      %2044 = vmatprep.subr.bf16.mxu0 0
      %2045 = vmatpush1.bf16.msra.mxu0 %v2039
      %2046 = vmatprep.subr.bf16.mxu0 0
      %2047 = vmatpush1.bf16.msra.mxu0 0
      %2048 = vmatprep.subr.bf16.mxu0 0
      %2049 = vmatpush1.bf16.msra.mxu0 0
      %2050 = vmatprep.subr.bf16.mxu0 0
      %2051 = vmatpush1.bf16.msra.mxu0 0
      %2052 = vmatprep.subr.bf16.mxu0 0
      %2053 = vmatpush1.bf16.msra.mxu0 0
      %2054 = vmatprep.subr.bf16.mxu0 0
      %2055 = vmatpush1.bf16.msra.mxu0 0
      %2056 = vmatprep.subr.bf16.mxu0 0
      %2057 = vmatpush1.bf16.msra.mxu0 0
      %2058 = vmatprep.subr.bf16.mxu0 0
      %2059 = vmatpush1.bf16.msra.mxu0 0
      %2060 = vmatprep.subr.bf16.mxu0 0
      %2061 = vmatpush1.bf16.msra.mxu0 0
      %2062 = vmatprep.subr.bf16.mxu0 0
      %2063 = vmatpush1.bf16.msra.mxu0 0
      %2064 = vmatprep.subr.bf16.mxu0 0
      %2065 = vmatpush1.bf16.msra.mxu0 0
      %2066 = vmatprep.subr.bf16.mxu0 0
      %2067 = vmatpush1.bf16.msra.mxu0 0
      %2068 = vmatprep.subr.bf16.mxu0 0
      %2069 = vmatpush1.bf16.msra.mxu0 0
      %2070 = vmatprep.subr.bf16.mxu0 0
      %2071 = vmatpush1.bf16.msra.mxu0 0
      %2072 = vmatprep.subr.bf16.mxu0 0
      %2073 = vmatpush1.bf16.msra.mxu0 0
      %2074 = vmatprep.subr.bf16.mxu0 0
      %2075 = vmatpush1.bf16.msra.mxu0 0
      %2076 = vmatprep.mubr.bf16.mxu0 0
      %2077 = vmatmul.mubr.bf16.gmra.mrb[0].mxu0 %v2042
      %v2078 = vpop.f32.mrb[0].mxu0
      %v2079 = vadd.f32 0.0, %v2078
      %v2080 = vpop.f32.mrb[0].mxu0
      %v2081 = vpop.f32.mrb[0].mxu0
      %v2082 = vadd.f32 0.0, %v2081
      %v2083 = vpop.f32.mrb[0].mxu0
      %2084 = vdwg.mxu0
      %v2085 = vpack.c.bf16 %v1941, %v1938
      %v2086 = vpack.c.bf16 %v1988, %v1985
      %v2087 = vpack.c.bf16 %v2035, %v2032
      %v2088 = vpack.c.bf16 %v2082, %v2079
      %2093 = vrot.lane.b32.xlu0 %v2085, 16
      %v2094 = vpop.permute.xlu0 %2093
      %2095 = vrot.lane.b32.xlu0 %v2086, 16
      %v2096 = vpop.permute.xlu0 %2095
      %2097 = vrot.lane.b32.xlu0 %v2087, 16
      %v2098 = vpop.permute.xlu0 %2097
      %2099 = vrot.lane.b32.xlu0 %v2088, 16
      %v2100 = vpop.permute.xlu0 %2099
      %vm2105 = vcmask 195712
      %2106 = vst.msk [vmem:[#allocation2] sm:$0xff] %vm2105, %v2094
      %2107 = vst.msk [vmem:[#allocation2 + $0x8] sm:$0xff] %vm2105, %v2096
      %2108 = vst.msk [vmem:[#allocation2 + $0x10] sm:$0xff] %vm2105, %v2098
      %2109 = vst.msk [vmem:[#allocation2 + $0x18] sm:$0xff] %vm2105, %v2100
      %2110 = vrot.lane.b32.xlu0 %v566, 104
      %v2111 = vpop.permute.xlu0 %2110
      %2112 = vrot.lane.b32.xlu0 %v566, 72
      %v2113 = vpop.permute.xlu0 %2112
      %v2115 = vsel %vm573, %v2111, 0
      %v2118 = vsel %vm573, %v2113, 0
      %2120 = vmatprep.subr.bf16.mxu0 0
      %2121 = vmatpush1.bf16.xpose.msra.mxu0 %v2118
      %2122 = vmatprep.subr.bf16.mxu0 0
      %2123 = vmatpush1.bf16.xpose.msra.mxu0 0
      %2124 = vmatprep.subr.bf16.mxu0 0
      %2125 = vmatpush1.bf16.xpose.msra.mxu0 0
      %2126 = vmatprep.subr.bf16.mxu0 0
      %2127 = vmatpush1.bf16.xpose.msra.mxu0 0
      %2128 = vmatprep.subr.bf16.mxu0 0
      %2129 = vmatpush1.bf16.xpose.msra.mxu0 0
      %2130 = vmatprep.subr.bf16.mxu0 0
      %2131 = vmatpush1.bf16.xpose.msra.mxu0 0
      %2132 = vmatprep.subr.bf16.mxu0 0
      %2133 = vmatpush1.bf16.xpose.msra.mxu0 0
      %2134 = vmatprep.subr.bf16.mxu0 0
      %2135 = vmatpush1.bf16.xpose.msra.mxu0 0
      %2136 = vmatprep.subr.bf16.mxu0 0
      %2137 = vmatpush1.bf16.xpose.msra.mxu0 0
      %2138 = vmatprep.subr.bf16.mxu0 0
      %2139 = vmatpush1.bf16.xpose.msra.mxu0 0
      %2140 = vmatprep.subr.bf16.mxu0 0
      %2141 = vmatpush1.bf16.xpose.msra.mxu0 0
      %2142 = vmatprep.subr.bf16.mxu0 0
      %2143 = vmatpush1.bf16.xpose.msra.mxu0 0
      %2144 = vmatprep.subr.bf16.mxu0 0
      %2145 = vmatpush1.bf16.xpose.msra.mxu0 0
      %2146 = vmatprep.subr.bf16.mxu0 0
      %2147 = vmatpush1.bf16.xpose.msra.mxu0 0
      %2148 = vmatprep.subr.bf16.mxu0 0
      %2149 = vmatpush1.bf16.xpose.msra.mxu0 0
      %2150 = vmatprep.subr.bf16.mxu0 0
      %2151 = vmatpush1.bf16.xpose.msra.mxu0 0
      %2152 = vmatprep.mubr.bf16.mxu0 0
      %2153 = vmatmul.mubr.bf16.gmra.mrb[0].mxu0 %v2115
      %v2154 = vpop.f32.mrb[0].mxu0
      %v2155 = vadd.f32 0.0, %v2154
      %v2156 = vpop.f32.mrb[0].mxu0
      %v2157 = vpop.f32.mrb[0].mxu0
      %v2158 = vadd.f32 0.0, %v2157
      %v2159 = vpop.f32.mrb[0].mxu0
      %2160 = vdwg.mxu0
      %2161 = vrot.lane.b32.xlu0 %v567, 104
      %v2162 = vpop.permute.xlu0 %2161
      %2163 = vrot.lane.b32.xlu0 %v567, 72
      %v2164 = vpop.permute.xlu0 %2163
      %v2166 = vsel %vm573, %v2162, 0
      %v2169 = vsel %vm573, %v2164, 0
      %2171 = vmatprep.subr.bf16.mxu0 0
      %2172 = vmatpush1.bf16.xpose.msra.mxu0 %v2169
      %2173 = vmatprep.subr.bf16.mxu0 0
      %2174 = vmatpush1.bf16.xpose.msra.mxu0 0
      %2175 = vmatprep.subr.bf16.mxu0 0
      %2176 = vmatpush1.bf16.xpose.msra.mxu0 0
      %2177 = vmatprep.subr.bf16.mxu0 0
      %2178 = vmatpush1.bf16.xpose.msra.mxu0 0
      %2179 = vmatprep.subr.bf16.mxu0 0
      %2180 = vmatpush1.bf16.xpose.msra.mxu0 0
      %2181 = vmatprep.subr.bf16.mxu0 0
      %2182 = vmatpush1.bf16.xpose.msra.mxu0 0
      %2183 = vmatprep.subr.bf16.mxu0 0
      %2184 = vmatpush1.bf16.xpose.msra.mxu0 0
      %2185 = vmatprep.subr.bf16.mxu0 0
      %2186 = vmatpush1.bf16.xpose.msra.mxu0 0
      %2187 = vmatprep.subr.bf16.mxu0 0
      %2188 = vmatpush1.bf16.xpose.msra.mxu0 0
      %2189 = vmatprep.subr.bf16.mxu0 0
      %2190 = vmatpush1.bf16.xpose.msra.mxu0 0
      %2191 = vmatprep.subr.bf16.mxu0 0
      %2192 = vmatpush1.bf16.xpose.msra.mxu0 0
      %2193 = vmatprep.subr.bf16.mxu0 0
      %2194 = vmatpush1.bf16.xpose.msra.mxu0 0
      %2195 = vmatprep.subr.bf16.mxu0 0
      %2196 = vmatpush1.bf16.xpose.msra.mxu0 0
      %2197 = vmatprep.subr.bf16.mxu0 0
      %2198 = vmatpush1.bf16.xpose.msra.mxu0 0
      %2199 = vmatprep.subr.bf16.mxu0 0
      %2200 = vmatpush1.bf16.xpose.msra.mxu0 0
      %2201 = vmatprep.subr.bf16.mxu0 0
      %2202 = vmatpush1.bf16.xpose.msra.mxu0 0
      %2203 = vmatprep.mubr.bf16.mxu0 0
      %2204 = vmatmul.mubr.bf16.gmra.mrb[0].mxu0 %v2166
      %v2205 = vpop.f32.mrb[0].mxu0
      %v2206 = vadd.f32 0.0, %v2205
      %v2207 = vpop.f32.mrb[0].mxu0
      %v2208 = vpop.f32.mrb[0].mxu0
      %v2209 = vadd.f32 0.0, %v2208
      %v2210 = vpop.f32.mrb[0].mxu0
      %2211 = vdwg.mxu0
      %2212 = vrot.lane.b32.xlu0 %v568, 104
      %v2213 = vpop.permute.xlu0 %2212
      %2214 = vrot.lane.b32.xlu0 %v568, 72
      %v2215 = vpop.permute.xlu0 %2214
      %v2217 = vsel %vm573, %v2213, 0
      %v2220 = vsel %vm573, %v2215, 0
      %2222 = vmatprep.subr.bf16.mxu0 0
      %2223 = vmatpush1.bf16.xpose.msra.mxu0 %v2220
      %2224 = vmatprep.subr.bf16.mxu0 0
      %2225 = vmatpush1.bf16.xpose.msra.mxu0 0
      %2226 = vmatprep.subr.bf16.mxu0 0
      %2227 = vmatpush1.bf16.xpose.msra.mxu0 0
      %2228 = vmatprep.subr.bf16.mxu0 0
      %2229 = vmatpush1.bf16.xpose.msra.mxu0 0
      %2230 = vmatprep.subr.bf16.mxu0 0
      %2231 = vmatpush1.bf16.xpose.msra.mxu0 0
      %2232 = vmatprep.subr.bf16.mxu0 0
      %2233 = vmatpush1.bf16.xpose.msra.mxu0 0
      %2234 = vmatprep.subr.bf16.mxu0 0
      %2235 = vmatpush1.bf16.xpose.msra.mxu0 0
      %2236 = vmatprep.subr.bf16.mxu0 0
      %2237 = vmatpush1.bf16.xpose.msra.mxu0 0
      %2238 = vmatprep.subr.bf16.mxu0 0
      %2239 = vmatpush1.bf16.xpose.msra.mxu0 0
      %2240 = vmatprep.subr.bf16.mxu0 0
      %2241 = vmatpush1.bf16.xpose.msra.mxu0 0
      %2242 = vmatprep.subr.bf16.mxu0 0
      %2243 = vmatpush1.bf16.xpose.msra.mxu0 0
      %2244 = vmatprep.subr.bf16.mxu0 0
      %2245 = vmatpush1.bf16.xpose.msra.mxu0 0
      %2246 = vmatprep.subr.bf16.mxu0 0
      %2247 = vmatpush1.bf16.xpose.msra.mxu0 0
      %2248 = vmatprep.subr.bf16.mxu0 0
      %2249 = vmatpush1.bf16.xpose.msra.mxu0 0
      %2250 = vmatprep.subr.bf16.mxu0 0
      %2251 = vmatpush1.bf16.xpose.msra.mxu0 0
      %2252 = vmatprep.subr.bf16.mxu0 0
      %2253 = vmatpush1.bf16.xpose.msra.mxu0 0
      %2254 = vmatprep.mubr.bf16.mxu0 0
      %2255 = vmatmul.mubr.bf16.gmra.mrb[0].mxu0 %v2217
      %v2256 = vpop.f32.mrb[0].mxu0
      %v2257 = vadd.f32 0.0, %v2256
      %v2258 = vpop.f32.mrb[0].mxu0
      %v2259 = vpop.f32.mrb[0].mxu0
      %v2260 = vadd.f32 0.0, %v2259
      %v2261 = vpop.f32.mrb[0].mxu0
      %2262 = vdwg.mxu0
      %2263 = vrot.lane.b32.xlu0 %v569, 104
      %v2264 = vpop.permute.xlu0 %2263
      %2265 = vrot.lane.b32.xlu0 %v569, 72
      %v2266 = vpop.permute.xlu0 %2265
      %v2268 = vsel %vm573, %v2264, 0
      %v2271 = vsel %vm573, %v2266, 0
      %2273 = vmatprep.subr.bf16.mxu0 0
      %2274 = vmatpush1.bf16.xpose.msra.mxu0 %v2271
      %2275 = vmatprep.subr.bf16.mxu0 0
      %2276 = vmatpush1.bf16.xpose.msra.mxu0 0
      %2277 = vmatprep.subr.bf16.mxu0 0
      %2278 = vmatpush1.bf16.xpose.msra.mxu0 0
      %2279 = vmatprep.subr.bf16.mxu0 0
      %2280 = vmatpush1.bf16.xpose.msra.mxu0 0
      %2281 = vmatprep.subr.bf16.mxu0 0
      %2282 = vmatpush1.bf16.xpose.msra.mxu0 0
      %2283 = vmatprep.subr.bf16.mxu0 0
      %2284 = vmatpush1.bf16.xpose.msra.mxu0 0
      %2285 = vmatprep.subr.bf16.mxu0 0
      %2286 = vmatpush1.bf16.xpose.msra.mxu0 0
      %2287 = vmatprep.subr.bf16.mxu0 0
      %2288 = vmatpush1.bf16.xpose.msra.mxu0 0
      %2289 = vmatprep.subr.bf16.mxu0 0
      %2290 = vmatpush1.bf16.xpose.msra.mxu0 0
      %2291 = vmatprep.subr.bf16.mxu0 0
      %2292 = vmatpush1.bf16.xpose.msra.mxu0 0
      %2293 = vmatprep.subr.bf16.mxu0 0
      %2294 = vmatpush1.bf16.xpose.msra.mxu0 0
      %2295 = vmatprep.subr.bf16.mxu0 0
      %2296 = vmatpush1.bf16.xpose.msra.mxu0 0
      %2297 = vmatprep.subr.bf16.mxu0 0
      %2298 = vmatpush1.bf16.xpose.msra.mxu0 0
      %2299 = vmatprep.subr.bf16.mxu0 0
      %2300 = vmatpush1.bf16.xpose.msra.mxu0 0
      %2301 = vmatprep.subr.bf16.mxu0 0
      %2302 = vmatpush1.bf16.xpose.msra.mxu0 0
      %2303 = vmatprep.subr.bf16.mxu0 0
      %2304 = vmatpush1.bf16.xpose.msra.mxu0 0
      %2305 = vmatprep.mubr.bf16.mxu0 0
      %2306 = vmatmul.mubr.bf16.gmra.mrb[0].mxu0 %v2268
      %v2307 = vpop.f32.mrb[0].mxu0
      %v2308 = vadd.f32 0.0, %v2307
      %v2309 = vpop.f32.mrb[0].mxu0
      %v2310 = vpop.f32.mrb[0].mxu0
      %v2311 = vadd.f32 0.0, %v2310
      %v2312 = vpop.f32.mrb[0].mxu0
      %2313 = vdwg.mxu0
      %s2314 = scalar_lea.vmem %s5, 48
      %v2315 = vld [vmem:[%s2314] sm:$0xff]
      %v2316 = vld [vmem:[%s2314 + $0x8] sm:$0xff]
      %v2317 = vadd.f32 %v2155, %v2315
      %v2318 = vadd.f32 %v2158, %v2316
      %v2319 = vadd.f32 %v2206, %v2315
      %v2320 = vadd.f32 %v2209, %v2316
      %v2321 = vadd.f32 %v2257, %v2315
      %v2322 = vadd.f32 %v2260, %v2316
      %v2323 = vadd.f32 %v2308, %v2315
      %v2324 = vadd.f32 %v2311, %v2316
      %v2325 = vsel %vm781, %v2317, -inf
      %2326 = vmax.xlane.f32.xlu0 %v2325
      %v2327 = vpop.xlane.xlu0 %2326
      %v2328 = vsel %vm781, %v2318, -inf
      %2329 = vmax.xlane.f32.xlu0 %v2328
      %v2330 = vpop.xlane.xlu0 %2329
      %v2331 = vsel %vm781, %v2319, -inf
      %2332 = vmax.xlane.f32.xlu0 %v2331
      %v2333 = vpop.xlane.xlu0 %2332
      %v2334 = vsel %vm781, %v2320, -inf
      %2335 = vmax.xlane.f32.xlu0 %v2334
      %v2336 = vpop.xlane.xlu0 %2335
      %v2337 = vsel %vm781, %v2321, -inf
      %2338 = vmax.xlane.f32.xlu0 %v2337
      %v2339 = vpop.xlane.xlu0 %2338
      %v2340 = vsel %vm781, %v2322, -inf
      %2341 = vmax.xlane.f32.xlu0 %v2340
      %v2342 = vpop.xlane.xlu0 %2341
      %v2343 = vsel %vm781, %v2323, -inf
      %2344 = vmax.xlane.f32.xlu0 %v2343
      %v2345 = vpop.xlane.xlu0 %2344
      %v2346 = vsel %vm781, %v2324, -inf
      %2347 = vmax.xlane.f32.xlu0 %v2346
      %v2348 = vpop.xlane.xlu0 %2347
      %v2349 = vsub.f32 %v2317, %v2327
      %v2350 = vsub.f32 %v2318, %v2330
      %v2351 = vsub.f32 %v2319, %v2333
      %v2352 = vsub.f32 %v2320, %v2336
      %v2353 = vsub.f32 %v2321, %v2339
      %v2354 = vsub.f32 %v2322, %v2342
      %v2355 = vsub.f32 %v2323, %v2345
      %v2356 = vsub.f32 %v2324, %v2348
      %v2357 = vmul.f32 %v2349, 1.442695
      %v2358 = vpow.pop %v2357
      %v2359 = vmul.f32 %v2350, 1.442695
      %v2360 = vpow.pop %v2359
      %v2361 = vmul.f32 %v2351, 1.442695
      %v2362 = vpow.pop %v2361
      %v2363 = vmul.f32 %v2352, 1.442695
      %v2364 = vpow.pop %v2363
      %v2365 = vmul.f32 %v2353, 1.442695
      %v2366 = vpow.pop %v2365
      %v2367 = vmul.f32 %v2354, 1.442695
      %v2368 = vpow.pop %v2367
      %v2369 = vmul.f32 %v2355, 1.442695
      %v2370 = vpow.pop %v2369
      %v2371 = vmul.f32 %v2356, 1.442695
      %v2372 = vpow.pop %v2371
      %v2373 = vsel %vm781, %v2358, 0.0
      %2374 = vadd.xlane.f32.xlu0 %v2373
      %v2375 = vpop.xlane.xlu0 %2374
      %v2376 = vsel %vm781, %v2360, 0.0
      %2377 = vadd.xlane.f32.xlu0 %v2376
      %v2378 = vpop.xlane.xlu0 %2377
      %v2379 = vsel %vm781, %v2362, 0.0
      %2380 = vadd.xlane.f32.xlu0 %v2379
      %v2381 = vpop.xlane.xlu0 %2380
      %v2382 = vsel %vm781, %v2364, 0.0
      %2383 = vadd.xlane.f32.xlu0 %v2382
      %v2384 = vpop.xlane.xlu0 %2383
      %v2385 = vsel %vm781, %v2366, 0.0
      %2386 = vadd.xlane.f32.xlu0 %v2385
      %v2387 = vpop.xlane.xlu0 %2386
      %v2388 = vsel %vm781, %v2368, 0.0
      %2389 = vadd.xlane.f32.xlu0 %v2388
      %v2390 = vpop.xlane.xlu0 %2389
      %v2391 = vsel %vm781, %v2370, 0.0
      %2392 = vadd.xlane.f32.xlu0 %v2391
      %v2393 = vpop.xlane.xlu0 %2392
      %v2394 = vsel %vm781, %v2372, 0.0
      %2395 = vadd.xlane.f32.xlu0 %v2394
      %v2396 = vpop.xlane.xlu0 %2395
      %v2397 = vrcp.pop %v2375
      %v2398 = vrcp.pop %v2378
      %v2399 = vrcp.pop %v2381
      %v2400 = vrcp.pop %v2384
      %v2401 = vrcp.pop %v2387
      %v2402 = vrcp.pop %v2390
      %v2403 = vrcp.pop %v2393
      %v2404 = vrcp.pop %v2396
      %v2405 = vmul.f32 %v2358, %v2397
      %v2406 = vmul.f32 %v2360, %v2398
      %v2407 = vmul.f32 %v2362, %v2399
      %v2408 = vmul.f32 %v2364, %v2400
      %v2409 = vmul.f32 %v2366, %v2401
      %v2410 = vmul.f32 %v2368, %v2402
      %v2411 = vmul.f32 %v2370, %v2403
      %v2412 = vmul.f32 %v2372, %v2404
      %v2413 = vpack.c.bf16 %v2406, %v2405
      %v2414 = vpack.c.bf16 %v2408, %v2407
      %v2415 = vpack.c.bf16 %v2410, %v2409
      %v2416 = vpack.c.bf16 %v2412, %v2411
      %2417 = vrot.lane.b32.xlu0 %v566, 40
      %v2418 = vpop.permute.xlu0 %2417
      %v2421 = vsel %vm781, %v2413, 0
      %2423 = vmatprep.subr.bf16.mxu0 0
      %2424 = vmatpush1.bf16.msra.mxu0 %v2418
      %2425 = vmatprep.subr.bf16.mxu0 0
      %2426 = vmatpush1.bf16.msra.mxu0 0
      %2427 = vmatprep.subr.bf16.mxu0 0
      %2428 = vmatpush1.bf16.msra.mxu0 0
      %2429 = vmatprep.subr.bf16.mxu0 0
      %2430 = vmatpush1.bf16.msra.mxu0 0
      %2431 = vmatprep.subr.bf16.mxu0 0
      %2432 = vmatpush1.bf16.msra.mxu0 0
      %2433 = vmatprep.subr.bf16.mxu0 0
      %2434 = vmatpush1.bf16.msra.mxu0 0
      %2435 = vmatprep.subr.bf16.mxu0 0
      %2436 = vmatpush1.bf16.msra.mxu0 0
      %2437 = vmatprep.subr.bf16.mxu0 0
      %2438 = vmatpush1.bf16.msra.mxu0 0
      %2439 = vmatprep.subr.bf16.mxu0 0
      %2440 = vmatpush1.bf16.msra.mxu0 0
      %2441 = vmatprep.subr.bf16.mxu0 0
      %2442 = vmatpush1.bf16.msra.mxu0 0
      %2443 = vmatprep.subr.bf16.mxu0 0
      %2444 = vmatpush1.bf16.msra.mxu0 0
      %2445 = vmatprep.subr.bf16.mxu0 0
      %2446 = vmatpush1.bf16.msra.mxu0 0
      %2447 = vmatprep.subr.bf16.mxu0 0
      %2448 = vmatpush1.bf16.msra.mxu0 0
      %2449 = vmatprep.subr.bf16.mxu0 0
      %2450 = vmatpush1.bf16.msra.mxu0 0
      %2451 = vmatprep.subr.bf16.mxu0 0
      %2452 = vmatpush1.bf16.msra.mxu0 0
      %2453 = vmatprep.subr.bf16.mxu0 0
      %2454 = vmatpush1.bf16.msra.mxu0 0
      %2455 = vmatprep.mubr.bf16.mxu0 0
      %2456 = vmatmul.mubr.bf16.gmra.mrb[0].mxu0 %v2421
      %v2457 = vpop.f32.mrb[0].mxu0
      %v2458 = vadd.f32 0.0, %v2457
      %v2459 = vpop.f32.mrb[0].mxu0
      %v2460 = vpop.f32.mrb[0].mxu0
      %v2461 = vadd.f32 0.0, %v2460
      %v2462 = vpop.f32.mrb[0].mxu0
      %2463 = vdwg.mxu0
      %2464 = vrot.lane.b32.xlu0 %v567, 40
      %v2465 = vpop.permute.xlu0 %2464
      %v2468 = vsel %vm781, %v2414, 0
      %2470 = vmatprep.subr.bf16.mxu0 0
      %2471 = vmatpush1.bf16.msra.mxu0 %v2465
      %2472 = vmatprep.subr.bf16.mxu0 0
      %2473 = vmatpush1.bf16.msra.mxu0 0
      %2474 = vmatprep.subr.bf16.mxu0 0
      %2475 = vmatpush1.bf16.msra.mxu0 0
      %2476 = vmatprep.subr.bf16.mxu0 0
      %2477 = vmatpush1.bf16.msra.mxu0 0
      %2478 = vmatprep.subr.bf16.mxu0 0
      %2479 = vmatpush1.bf16.msra.mxu0 0
      %2480 = vmatprep.subr.bf16.mxu0 0
      %2481 = vmatpush1.bf16.msra.mxu0 0
      %2482 = vmatprep.subr.bf16.mxu0 0
      %2483 = vmatpush1.bf16.msra.mxu0 0
      %2484 = vmatprep.subr.bf16.mxu0 0
      %2485 = vmatpush1.bf16.msra.mxu0 0
      %2486 = vmatprep.subr.bf16.mxu0 0
      %2487 = vmatpush1.bf16.msra.mxu0 0
      %2488 = vmatprep.subr.bf16.mxu0 0
      %2489 = vmatpush1.bf16.msra.mxu0 0
      %2490 = vmatprep.subr.bf16.mxu0 0
      %2491 = vmatpush1.bf16.msra.mxu0 0
      %2492 = vmatprep.subr.bf16.mxu0 0
      %2493 = vmatpush1.bf16.msra.mxu0 0
      %2494 = vmatprep.subr.bf16.mxu0 0
      %2495 = vmatpush1.bf16.msra.mxu0 0
      %2496 = vmatprep.subr.bf16.mxu0 0
      %2497 = vmatpush1.bf16.msra.mxu0 0
      %2498 = vmatprep.subr.bf16.mxu0 0
      %2499 = vmatpush1.bf16.msra.mxu0 0
      %2500 = vmatprep.subr.bf16.mxu0 0
      %2501 = vmatpush1.bf16.msra.mxu0 0
      %2502 = vmatprep.mubr.bf16.mxu0 0
      %2503 = vmatmul.mubr.bf16.gmra.mrb[0].mxu0 %v2468
      %v2504 = vpop.f32.mrb[0].mxu0
      %v2505 = vadd.f32 0.0, %v2504
      %v2506 = vpop.f32.mrb[0].mxu0
      %v2507 = vpop.f32.mrb[0].mxu0
      %v2508 = vadd.f32 0.0, %v2507
      %v2509 = vpop.f32.mrb[0].mxu0
      %2510 = vdwg.mxu0
      %2511 = vrot.lane.b32.xlu0 %v568, 40
      %v2512 = vpop.permute.xlu0 %2511
      %v2515 = vsel %vm781, %v2415, 0
      %2517 = vmatprep.subr.bf16.mxu0 0
      %2518 = vmatpush1.bf16.msra.mxu0 %v2512
      %2519 = vmatprep.subr.bf16.mxu0 0
      %2520 = vmatpush1.bf16.msra.mxu0 0
      %2521 = vmatprep.subr.bf16.mxu0 0
      %2522 = vmatpush1.bf16.msra.mxu0 0
      %2523 = vmatprep.subr.bf16.mxu0 0
      %2524 = vmatpush1.bf16.msra.mxu0 0
      %2525 = vmatprep.subr.bf16.mxu0 0
      %2526 = vmatpush1.bf16.msra.mxu0 0
      %2527 = vmatprep.subr.bf16.mxu0 0
      %2528 = vmatpush1.bf16.msra.mxu0 0
      %2529 = vmatprep.subr.bf16.mxu0 0
      %2530 = vmatpush1.bf16.msra.mxu0 0
      %2531 = vmatprep.subr.bf16.mxu0 0
      %2532 = vmatpush1.bf16.msra.mxu0 0
      %2533 = vmatprep.subr.bf16.mxu0 0
      %2534 = vmatpush1.bf16.msra.mxu0 0
      %2535 = vmatprep.subr.bf16.mxu0 0
      %2536 = vmatpush1.bf16.msra.mxu0 0
      %2537 = vmatprep.subr.bf16.mxu0 0
      %2538 = vmatpush1.bf16.msra.mxu0 0
      %2539 = vmatprep.subr.bf16.mxu0 0
      %2540 = vmatpush1.bf16.msra.mxu0 0
      %2541 = vmatprep.subr.bf16.mxu0 0
      %2542 = vmatpush1.bf16.msra.mxu0 0
      %2543 = vmatprep.subr.bf16.mxu0 0
      %2544 = vmatpush1.bf16.msra.mxu0 0
      %2545 = vmatprep.subr.bf16.mxu0 0
      %2546 = vmatpush1.bf16.msra.mxu0 0
      %2547 = vmatprep.subr.bf16.mxu0 0
      %2548 = vmatpush1.bf16.msra.mxu0 0
      %2549 = vmatprep.mubr.bf16.mxu0 0
      %2550 = vmatmul.mubr.bf16.gmra.mrb[0].mxu0 %v2515
      %v2551 = vpop.f32.mrb[0].mxu0
      %v2552 = vadd.f32 0.0, %v2551
      %v2553 = vpop.f32.mrb[0].mxu0
      %v2554 = vpop.f32.mrb[0].mxu0
      %v2555 = vadd.f32 0.0, %v2554
      %v2556 = vpop.f32.mrb[0].mxu0
      %2557 = vdwg.mxu0
      %2558 = vrot.lane.b32.xlu0 %v569, 40
      %v2559 = vpop.permute.xlu0 %2558
      %v2562 = vsel %vm781, %v2416, 0
      %2564 = vmatprep.subr.bf16.mxu0 0
      %2565 = vmatpush1.bf16.msra.mxu0 %v2559
      %2566 = vmatprep.subr.bf16.mxu0 0
      %2567 = vmatpush1.bf16.msra.mxu0 0
      %2568 = vmatprep.subr.bf16.mxu0 0
      %2569 = vmatpush1.bf16.msra.mxu0 0
      %2570 = vmatprep.subr.bf16.mxu0 0
      %2571 = vmatpush1.bf16.msra.mxu0 0
      %2572 = vmatprep.subr.bf16.mxu0 0
      %2573 = vmatpush1.bf16.msra.mxu0 0
      %2574 = vmatprep.subr.bf16.mxu0 0
      %2575 = vmatpush1.bf16.msra.mxu0 0
      %2576 = vmatprep.subr.bf16.mxu0 0
      %2577 = vmatpush1.bf16.msra.mxu0 0
      %2578 = vmatprep.subr.bf16.mxu0 0
      %2579 = vmatpush1.bf16.msra.mxu0 0
      %2580 = vmatprep.subr.bf16.mxu0 0
      %2581 = vmatpush1.bf16.msra.mxu0 0
      %2582 = vmatprep.subr.bf16.mxu0 0
      %2583 = vmatpush1.bf16.msra.mxu0 0
      %2584 = vmatprep.subr.bf16.mxu0 0
      %2585 = vmatpush1.bf16.msra.mxu0 0
      %2586 = vmatprep.subr.bf16.mxu0 0
      %2587 = vmatpush1.bf16.msra.mxu0 0
      %2588 = vmatprep.subr.bf16.mxu0 0
      %2589 = vmatpush1.bf16.msra.mxu0 0
      %2590 = vmatprep.subr.bf16.mxu0 0
      %2591 = vmatpush1.bf16.msra.mxu0 0
      %2592 = vmatprep.subr.bf16.mxu0 0
      %2593 = vmatpush1.bf16.msra.mxu0 0
      %2594 = vmatprep.subr.bf16.mxu0 0
      %2595 = vmatpush1.bf16.msra.mxu0 0
      %2596 = vmatprep.mubr.bf16.mxu0 0
      %2597 = vmatmul.mubr.bf16.gmra.mrb[0].mxu0 %v2562
      %v2598 = vpop.f32.mrb[0].mxu0
      %v2599 = vadd.f32 0.0, %v2598
      %v2600 = vpop.f32.mrb[0].mxu0
      %v2601 = vpop.f32.mrb[0].mxu0
      %v2602 = vadd.f32 0.0, %v2601
      %v2603 = vpop.f32.mrb[0].mxu0
      %2604 = vdwg.mxu0
      %v2605 = vpack.c.bf16 %v2461, %v2458
      %v2606 = vpack.c.bf16 %v2508, %v2505
      %v2607 = vpack.c.bf16 %v2555, %v2552
      %v2608 = vpack.c.bf16 %v2602, %v2599
      %2613 = vrot.lane.b32.xlu0 %v2605, 24
      %v2614 = vpop.permute.xlu0 %2613
      %2615 = vrot.lane.b32.xlu0 %v2606, 24
      %v2616 = vpop.permute.xlu0 %2615
      %2617 = vrot.lane.b32.xlu0 %v2607, 24
      %v2618 = vpop.permute.xlu0 %2617
      %2619 = vrot.lane.b32.xlu0 %v2608, 24
      %v2620 = vpop.permute.xlu0 %2619
      %vm2625 = vcmask 261312
      %2626 = vst.msk [vmem:[#allocation2] sm:$0xff] %vm2625, %v2614
      %2627 = vst.msk [vmem:[#allocation2 + $0x8] sm:$0xff] %vm2625, %v2616
      %2628 = vst.msk [vmem:[#allocation2 + $0x10] sm:$0xff] %vm2625, %v2618
      %2629 = vst.msk [vmem:[#allocation2 + $0x18] sm:$0xff] %vm2625, %v2620
      %v2630 = vld [vmem:[#allocation2] sm:$0xff]
      %v2631 = vld [vmem:[#allocation2 + $0x8] sm:$0xff]
      %v2632 = vld [vmem:[#allocation2 + $0x10] sm:$0xff]
      %v2633 = vld [vmem:[#allocation2 + $0x18] sm:$0xff]
      %v2634 = vld [vmem:[%s6] sm:$0xf]
      %v2635 = vld [vmem:[%s6 + $0x4] sm:$0xf]
      %v2636 = vld [vmem:[%s6 + $0x8] sm:$0xf]
      %v2637 = vld [vmem:[%s6 + $0xc] sm:$0xf]
      %v2638 = vld [vmem:[%s7] sm:$0x1]
      %v2640 = vlaneseq
      %v2641 = vshrl.u32 %v2640, 7
      %v2642 = vsub.s32 0, %v2641
      %v2643 = vrot.slane %v2638, %v2642
      %v2649 = vunpack.c.l.b16 %v2634
      %v2650 = vunpack.c.l.b16 %v2635
      %v2651 = vunpack.c.l.b16 %v2636
      %v2652 = vunpack.c.l.b16 %v2637
      %v2653 = vpack.c.b16 %v2650, %v2649
      %v2654 = vpack.c.b16 %v2652, %v2651
      %v2658 = vsel %vm326, %v2630, 0
      %v2661 = vsel %vm326, %v2631, 0
      %v2664 = vsel %vm326, %v2632, 0
      %v2667 = vsel %vm326, %v2633, 0
      %2669 = vmatprep.subr.bf16.mxu0 0
      %2670 = vmatpush1.bf16.msra.mxu0 %v2653
      %2671 = vmatprep.subr.bf16.mxu0 0
      %2672 = vmatpush1.bf16.msra.mxu0 %v2654
      %2673 = vmatprep.subr.bf16.mxu0 0
      %2674 = vmatpush1.bf16.msra.mxu0 0
      %2675 = vmatprep.subr.bf16.mxu0 0
      %2676 = vmatpush1.bf16.msra.mxu0 0
      %2677 = vmatprep.subr.bf16.mxu0 0
      %2678 = vmatpush1.bf16.msra.mxu0 0
      %2679 = vmatprep.subr.bf16.mxu0 0
      %2680 = vmatpush1.bf16.msra.mxu0 0
      %2681 = vmatprep.subr.bf16.mxu0 0
      %2682 = vmatpush1.bf16.msra.mxu0 0
      %2683 = vmatprep.subr.bf16.mxu0 0
      %2684 = vmatpush1.bf16.msra.mxu0 0
      %2685 = vmatprep.subr.bf16.mxu0 0
      %2686 = vmatpush1.bf16.msra.mxu0 0
      %2687 = vmatprep.subr.bf16.mxu0 0
      %2688 = vmatpush1.bf16.msra.mxu0 0
      %2689 = vmatprep.subr.bf16.mxu0 0
      %2690 = vmatpush1.bf16.msra.mxu0 0
      %2691 = vmatprep.subr.bf16.mxu0 0
      %2692 = vmatpush1.bf16.msra.mxu0 0
      %2693 = vmatprep.subr.bf16.mxu0 0
      %2694 = vmatpush1.bf16.msra.mxu0 0
      %2695 = vmatprep.subr.bf16.mxu0 0
      %2696 = vmatpush1.bf16.msra.mxu0 0
      %2697 = vmatprep.subr.bf16.mxu0 0
      %2698 = vmatpush1.bf16.msra.mxu0 0
      %2699 = vmatprep.subr.bf16.mxu0 0
      %2700 = vmatpush1.bf16.msra.mxu0 0
      %2701 = vmatprep.mubr.bf16.mxu0 0
      %2702 = vmatmul.mubr.bf16.gmra.mrb[0].mxu0 %v2658
      %v2703 = vpop.f32.mrb[0].mxu0
      %v2704 = vadd.f32 %v2643, %v2703
      %v2705 = vpop.f32.mrb[0].mxu0
      %v2706 = vpop.f32.mrb[0].mxu0
      %v2707 = vadd.f32 %v2643, %v2706
      %v2708 = vpop.f32.mrb[0].mxu0
      %2709 = vmatprep.mubr.bf16.mxu0 0
      %2710 = vmatmul.mubr.bf16.gmra.mrb[0].mxu0 %v2661
      %v2711 = vpop.f32.mrb[0].mxu0
      %v2712 = vadd.f32 %v2643, %v2711
      %v2713 = vpop.f32.mrb[0].mxu0
      %v2714 = vpop.f32.mrb[0].mxu0
      %v2715 = vadd.f32 %v2643, %v2714
      %v2716 = vpop.f32.mrb[0].mxu0
      %2717 = vmatprep.mubr.bf16.mxu0 0
      %2718 = vmatmul.mubr.bf16.gmra.mrb[0].mxu0 %v2664
      %v2719 = vpop.f32.mrb[0].mxu0
      %v2720 = vadd.f32 %v2643, %v2719
      %v2721 = vpop.f32.mrb[0].mxu0
      %v2722 = vpop.f32.mrb[0].mxu0
      %v2723 = vadd.f32 %v2643, %v2722
      %v2724 = vpop.f32.mrb[0].mxu0
      %2725 = vmatprep.mubr.bf16.mxu0 0
      %2726 = vmatmul.mubr.bf16.gmra.mrb[0].mxu0 %v2667
      %v2727 = vpop.f32.mrb[0].mxu0
      %v2728 = vadd.f32 %v2643, %v2727
      %v2729 = vpop.f32.mrb[0].mxu0
      %v2730 = vpop.f32.mrb[0].mxu0
      %v2731 = vadd.f32 %v2643, %v2730
      %v2732 = vpop.f32.mrb[0].mxu0
      %2733 = vdwg.mxu0
      %v2734 = vpack.c.bf16 %v2707, %v2704
      %v2735 = vpack.c.bf16 %v2715, %v2712
      %v2736 = vpack.c.bf16 %v2723, %v2720
      %v2737 = vpack.c.bf16 %v2731, %v2728
      %v2742 = vunpack.c.l.b16 %v2734
      %v2743 = vunpack.c.h.b16 %v2734
      %v2744 = vunpack.c.l.b16 %v2735
      %v2745 = vunpack.c.h.b16 %v2735
      %v2746 = vunpack.c.l.b16 %v2736
      %v2747 = vunpack.c.h.b16 %v2736
      %v2748 = vunpack.c.l.b16 %v2737
      %v2749 = vunpack.c.h.b16 %v2737
      %v2750 = vpack.c.b16 %v2742, %v2742
      %v2751 = vpack.c.b16 %v2743, %v2743
      %v2752 = vpack.c.b16 %v2744, %v2744
      %v2753 = vpack.c.b16 %v2745, %v2745
      %v2754 = vpack.c.b16 %v2746, %v2746
      %v2755 = vpack.c.b16 %v2747, %v2747
      %v2756 = vpack.c.b16 %v2748, %v2748
      %v2757 = vpack.c.b16 %v2749, %v2749
      %vm2766 = vcmask 257024
      %2767 = vst.msk [vmem:[%s307] sm:$0xf] %vm2766, %v2750
      %2768 = vst.msk [vmem:[%s307 + $0x4] sm:$0xf] %vm2766, %v2751
      %2769 = vst.msk [vmem:[%s307 + $0x8] sm:$0xf] %vm2766, %v2752
      %2770 = vst.msk [vmem:[%s307 + $0xc] sm:$0xf] %vm2766, %v2753
      %2771 = vst.msk [vmem:[%s307 + $0x10] sm:$0xf] %vm2766, %v2754
      %2772 = vst.msk [vmem:[%s307 + $0x14] sm:$0xf] %vm2766, %v2755
      %2773 = vst.msk [vmem:[%s307 + $0x18] sm:$0xf] %vm2766, %v2756
      %2774 = vst.msk [vmem:[%s307 + $0x1c] sm:$0xf] %vm2766, %v2757
      %s2775 = smul.u32 8, %s19
      %p2776 = scmp.lt.s32.totalorder %s2775, 15
      %s2777 = scalar_select %p2776, %s2775, 15
      %s2778 = smul.addr %s2777, 4
      %s2779 = scalar_lea.vmem %s8, %s2778
      // Predicated region
      $region53: #{basic_layer_forward.4} parent=51 // pred_check
        %p2780 = pneg %p210
      $region54: #{basic_layer_forward.4} parent=51 // pred_check_branch
        %2782 = sbr.rel (%p2780) target = $region56
      $region55: #{basic_layer_forward.4} parent=51 // pred_region
        %s2783 = smul.u32 8, %s19
      $region56: #{basic_layer_forward.4} parent=51 // pred_fallthru
        _
    $region52: #{basic_layer_forward.4} parent=5 // pred_fallthru
      _
    %p2784 = scmp.le.s32.totalorder 2, %s14
    // Predicated region
    $region57: #{basic_layer_forward.4} parent=5 // pred_check
      %p2785 = pneg %p2784
    $region58: #{basic_layer_forward.4} parent=5 // pred_check_branch
      %2787 = sbr.rel (%p2785) target = $region60
    $region59: #{basic_layer_forward.4} parent=5 // pred_region
      %s2788 = ssub.s32 %s14, 2
      // Predicated region
      $region61: #{basic_layer_forward.4} parent=59 // pred_check
        %p2789 = pneg %p216
      $region62: #{basic_layer_forward.4} parent=59 // pred_check_branch
        %2791 = sbr.rel (%p2789) target = $region64
      $region63: #{basic_layer_forward.4} parent=59 // pred_region
        %s2792 = smul.u32 8, %s20
        %p2793 = scmp.lt.s32.totalorder %s2792, 15
        %s2794 = scalar_select %p2793, %s2792, 15
        %s2795 = smul.addr %s2794, 4
        %s2796 = scalar_lea.vmem %s8, %s2795
      $region64: #{basic_layer_forward.4} parent=59 // pred_fallthru
        _
    $region60: #{basic_layer_forward.4} parent=5 // pred_fallthru
      _
  $region6: #{basic_layer_forward.4} parent=0 // loop_footer
    %s18 = sadd.s32 1, %s14
  $region7: #{basic_layer_forward.4} parent=0 // loop_footer_branch
    %13 = sbr.rel target = $region3
  $region8: #{basic_layer_forward.4} parent=0 // loop_exit
    _

// kernel: basic_layer_forward.6
$region0: #{basic_layer_forward.6}
  #allocation0 [shape = 'u32[]', space=smem, size = 0x4, offset = 0x4, fixed_abs, tag = 'smem constant byte address 0x4 - core index']
  #allocation1 [shape = 'u32[144,128]{1,0:T(1,128)}', space=vmem, size = 0x12000, scoped, tag = 'internal scratch']
  #allocation2 [shape = 'bf16[64,32]{1,0:T(16,128)(2,1)}', space=vmem, size = 0x4000, scoped, tag = 'scratch operand']
  %s0 = inlined_call_operand.vmem [shape: bf16[128,32], index: 0, kind: input, shape index: {}]
  %s1 = inlined_call_operand.vmem [shape: f32[1,32], index: 1, kind: input, shape index: {}]
  %s2 = inlined_call_operand.vmem [shape: f32[1,32], index: 2, kind: input, shape index: {}]
  %s3 = inlined_call_operand.vmem [shape: bf16[32,96], index: 3, kind: input, shape index: {}]
  %s4 = inlined_call_operand.vmem [shape: f32[1,96], index: 4, kind: input, shape index: {}]
  %s5 = inlined_call_operand.vmem [shape: f32[4,4,16,16], index: 5, kind: input, shape index: {}]
  %s6 = inlined_call_operand.vmem [shape: bf16[32,32], index: 6, kind: input, shape index: {}]
  %s7 = inlined_call_operand.vmem [shape: f32[1,32], index: 7, kind: input, shape index: {}]
  %s8 = inlined_call_operand.vmem [shape: bf16[128,32], index: 8, kind: output, shape index: {}]
  %s9 = sld [smem:[#allocation0]]
  $region65: #{basic_layer_forward.6} parent=0
    _
  %s11 = ssub.s32 1, %s9
  %s12 = scalar_select 0, %s11, %s9
  loop: start=0, step=1, limit=4
  $region2: #{basic_layer_forward.6} parent=0 // loop_pre_header
    _
  $region3: #{basic_layer_forward.6} parent=0 // loop_header
    %s14 = sphi 0, %s18
    %p15 = scmp.ge.s32.totalorder %s14, 4
    %s24 = sphi 0, %s26
    %s27 = sphi 0, %s24
    %s28 = sphi 0, %s27
    %s44 = sphi 0, %s28
    %s48 = sphi 0, %s48
    %s50 = sphi 0, %s48
    %s51 = sphi 0, %s50
    %s65 = sphi 0, %s51
    %s69 = sphi 0, %s69
    %s71 = sphi 0, %s69
    %s72 = sphi 0, %s71
    %s86 = sphi 0, %s72
    %s90 = sphi 0, %s90
    %s92 = sphi 0, %s90
    %s93 = sphi 0, %s92
    %s107 = sphi 0, %s93
    %s111 = sphi 0, %s111
    %s113 = sphi 0, %s111
    %s114 = sphi 0, %s113
    %s128 = sphi 0, %s114
    %s132 = sphi 0, %s132
    %s134 = sphi 0, %s132
    %s135 = sphi 0, %s134
    %s149 = sphi 0, %s135
    %s153 = sphi 0, %s153
    %s155 = sphi 0, %s153
    %s156 = sphi 0, %s155
    %s170 = sphi 0, %s156
    %s174 = sphi 0, %s174
    %s176 = sphi 0, %s174
    %s177 = sphi 0, %s176
    %s191 = sphi 0, %s177
    %s197 = sphi 0, %s199
    %s200 = sphi 0, %s197
    %s201 = sphi 0, %s200
    %s217 = sphi 0, %s201
  $region4: #{basic_layer_forward.6} parent=0 // loop_header_branch
    %17 = sbr.rel (%p15) target = $region8
  $region5: #{basic_layer_forward.6} parent=0 // loop_body
    %s19 = ssub.s32 %s14, 1
    %s20 = ssub.s32 %s14, 2
    %s21 = sadd.s32 %s14, 1
    %s22 = ssub.s32 %s14, %s21
    %p23 = scmp.eq.s32.totalorder %s22, 0
    %s25 = sadd.s32 %s24, 1
    %s26 = scalar_select %p23, %s24, %s25
    %p29 = pneg %p23
    %p30 = scmp.eq.s32.totalorder %s14, 1
    %p31 = por %p29, %p30
    %p32 = scmp.ne.s32.totalorder %s24, %s27
    %p33 = scmp.eq.s32.totalorder %s14, 0
    %p34 = por %p32, %p33
    %p35 = scmp.ne.s32.totalorder %s24, %s27
    %p36 = scmp.eq.s32.totalorder %s19, 1
    %p37 = por %p35, %p36
    %p38 = scmp.ne.s32.totalorder %s27, %s28
    %p39 = scmp.eq.s32.totalorder %s19, 0
    %p40 = por %p38, %p39
    %p41 = scmp.ne.s32.totalorder %s27, %s28
    %p42 = scmp.eq.s32.totalorder %s20, 1
    %p43 = por %p41, %p42
    %p45 = scmp.ne.s32.totalorder %s28, %s44
    %p46 = scmp.eq.s32.totalorder %s20, 0
    %p47 = por %p45, %p46
    %s49 = sadd.s32 %s48, 1
    %p52 = scmp.eq.s32.totalorder %s14, 1
    %p53 = scmp.ne.s32.totalorder %s48, %s50
    %p54 = scmp.eq.s32.totalorder %s14, 0
    %p55 = por %p53, %p54
    %p56 = scmp.ne.s32.totalorder %s48, %s50
    %p57 = scmp.eq.s32.totalorder %s19, 1
    %p58 = por %p56, %p57
    %p59 = scmp.ne.s32.totalorder %s50, %s51
    %p60 = scmp.eq.s32.totalorder %s19, 0
    %p61 = por %p59, %p60
    %p62 = scmp.ne.s32.totalorder %s50, %s51
    %p63 = scmp.eq.s32.totalorder %s20, 1
    %p64 = por %p62, %p63
    %p66 = scmp.ne.s32.totalorder %s51, %s65
    %p67 = scmp.eq.s32.totalorder %s20, 0
    %p68 = por %p66, %p67
    %s70 = sadd.s32 %s69, 1
    %p73 = scmp.eq.s32.totalorder %s14, 1
    %p74 = scmp.ne.s32.totalorder %s69, %s71
    %p75 = scmp.eq.s32.totalorder %s14, 0
    %p76 = por %p74, %p75
    %p77 = scmp.ne.s32.totalorder %s69, %s71
    %p78 = scmp.eq.s32.totalorder %s19, 1
    %p79 = por %p77, %p78
    %p80 = scmp.ne.s32.totalorder %s71, %s72
    %p81 = scmp.eq.s32.totalorder %s19, 0
    %p82 = por %p80, %p81
    %p83 = scmp.ne.s32.totalorder %s71, %s72
    %p84 = scmp.eq.s32.totalorder %s20, 1
    %p85 = por %p83, %p84
    %p87 = scmp.ne.s32.totalorder %s72, %s86
    %p88 = scmp.eq.s32.totalorder %s20, 0
    %p89 = por %p87, %p88
    %s91 = sadd.s32 %s90, 1
    %p94 = scmp.eq.s32.totalorder %s14, 1
    %p95 = scmp.ne.s32.totalorder %s90, %s92
    %p96 = scmp.eq.s32.totalorder %s14, 0
    %p97 = por %p95, %p96
    %p98 = scmp.ne.s32.totalorder %s90, %s92
    %p99 = scmp.eq.s32.totalorder %s19, 1
    %p100 = por %p98, %p99
    %p101 = scmp.ne.s32.totalorder %s92, %s93
    %p102 = scmp.eq.s32.totalorder %s19, 0
    %p103 = por %p101, %p102
    %p104 = scmp.ne.s32.totalorder %s92, %s93
    %p105 = scmp.eq.s32.totalorder %s20, 1
    %p106 = por %p104, %p105
    %p108 = scmp.ne.s32.totalorder %s93, %s107
    %p109 = scmp.eq.s32.totalorder %s20, 0
    %p110 = por %p108, %p109
    %s112 = sadd.s32 %s111, 1
    %p115 = scmp.eq.s32.totalorder %s14, 1
    %p116 = scmp.ne.s32.totalorder %s111, %s113
    %p117 = scmp.eq.s32.totalorder %s14, 0
    %p118 = por %p116, %p117
    %p119 = scmp.ne.s32.totalorder %s111, %s113
    %p120 = scmp.eq.s32.totalorder %s19, 1
    %p121 = por %p119, %p120
    %p122 = scmp.ne.s32.totalorder %s113, %s114
    %p123 = scmp.eq.s32.totalorder %s19, 0
    %p124 = por %p122, %p123
    %p125 = scmp.ne.s32.totalorder %s113, %s114
    %p126 = scmp.eq.s32.totalorder %s20, 1
    %p127 = por %p125, %p126
    %p129 = scmp.ne.s32.totalorder %s114, %s128
    %p130 = scmp.eq.s32.totalorder %s20, 0
    %p131 = por %p129, %p130
    %s133 = sadd.s32 %s132, 1
    %p136 = scmp.eq.s32.totalorder %s14, 1
    %p137 = scmp.ne.s32.totalorder %s132, %s134
    %p138 = scmp.eq.s32.totalorder %s14, 0
    %p139 = por %p137, %p138
    %p140 = scmp.ne.s32.totalorder %s132, %s134
    %p141 = scmp.eq.s32.totalorder %s19, 1
    %p142 = por %p140, %p141
    %p143 = scmp.ne.s32.totalorder %s134, %s135
    %p144 = scmp.eq.s32.totalorder %s19, 0
    %p145 = por %p143, %p144
    %p146 = scmp.ne.s32.totalorder %s134, %s135
    %p147 = scmp.eq.s32.totalorder %s20, 1
    %p148 = por %p146, %p147
    %p150 = scmp.ne.s32.totalorder %s135, %s149
    %p151 = scmp.eq.s32.totalorder %s20, 0
    %p152 = por %p150, %p151
    %s154 = sadd.s32 %s153, 1
    %p157 = scmp.eq.s32.totalorder %s14, 1
    %p158 = scmp.ne.s32.totalorder %s153, %s155
    %p159 = scmp.eq.s32.totalorder %s14, 0
    %p160 = por %p158, %p159
    %p161 = scmp.ne.s32.totalorder %s153, %s155
    %p162 = scmp.eq.s32.totalorder %s19, 1
    %p163 = por %p161, %p162
    %p164 = scmp.ne.s32.totalorder %s155, %s156
    %p165 = scmp.eq.s32.totalorder %s19, 0
    %p166 = por %p164, %p165
    %p167 = scmp.ne.s32.totalorder %s155, %s156
    %p168 = scmp.eq.s32.totalorder %s20, 1
    %p169 = por %p167, %p168
    %p171 = scmp.ne.s32.totalorder %s156, %s170
    %p172 = scmp.eq.s32.totalorder %s20, 0
    %p173 = por %p171, %p172
    %s175 = sadd.s32 %s174, 1
    %p178 = scmp.eq.s32.totalorder %s14, 1
    %p179 = scmp.ne.s32.totalorder %s174, %s176
    %p180 = scmp.eq.s32.totalorder %s14, 0
    %p181 = por %p179, %p180
    %p182 = scmp.ne.s32.totalorder %s174, %s176
    %p183 = scmp.eq.s32.totalorder %s19, 1
    %p184 = por %p182, %p183
    %p185 = scmp.ne.s32.totalorder %s176, %s177
    %p186 = scmp.eq.s32.totalorder %s19, 0
    %p187 = por %p185, %p186
    %p188 = scmp.ne.s32.totalorder %s176, %s177
    %p189 = scmp.eq.s32.totalorder %s20, 1
    %p190 = por %p188, %p189
    %p192 = scmp.ne.s32.totalorder %s177, %s191
    %p193 = scmp.eq.s32.totalorder %s20, 0
    %p194 = por %p192, %p193
    %s195 = ssub.s32 %s14, %s21
    %p196 = scmp.eq.s32.totalorder %s195, 0
    %s198 = sadd.s32 %s197, 1
    %s199 = scalar_select %p196, %s197, %s198
    %p202 = pneg %p196
    %p203 = scmp.eq.s32.totalorder %s14, 1
    %p204 = por %p202, %p203
    %p205 = scmp.ne.s32.totalorder %s197, %s200
    %p206 = scmp.eq.s32.totalorder %s14, 0
    %p207 = por %p205, %p206
    %p208 = scmp.ne.s32.totalorder %s197, %s200
    %p209 = scmp.eq.s32.totalorder %s19, 1
    %p210 = por %p208, %p209
    %p211 = scmp.ne.s32.totalorder %s200, %s201
    %p212 = scmp.eq.s32.totalorder %s19, 0
    %p213 = por %p211, %p212
    %p214 = scmp.ne.s32.totalorder %s200, %s201
    %p215 = scmp.eq.s32.totalorder %s20, 1
    %p216 = por %p214, %p215
    %p218 = scmp.ne.s32.totalorder %s201, %s217
    %p219 = scmp.eq.s32.totalorder %s20, 0
    %p220 = por %p218, %p219
    %p221 = scmp.le.s32.totalorder 1, %s14
    %p222 = scmp.lt.s32.totalorder %s14, 3
    %p223 = pnand %p221, %p222
    %p224 = pneg %p223
    // Predicated region
    $region9: #{basic_layer_forward.6} parent=5 // pred_check
      _
    $region10: #{basic_layer_forward.6} parent=5 // pred_check_branch
      %226 = sbr.rel (%p223) target = $region12
    $region11: #{basic_layer_forward.6} parent=5 // pred_region
      %s227 = ssub.s32 %s14, 1
      // Predicated region
      $region13: #{basic_layer_forward.6} parent=11 // pred_check
        %p228 = pneg %p61
      $region14: #{basic_layer_forward.6} parent=11 // pred_check_branch
        %230 = sbr.rel (%p228) target = $region16
      $region15: #{basic_layer_forward.6} parent=11 // pred_region
        _
      $region16: #{basic_layer_forward.6} parent=11 // pred_fallthru
        _
      // Predicated region
      $region17: #{basic_layer_forward.6} parent=11 // pred_check
        %p231 = pneg %p82
      $region18: #{basic_layer_forward.6} parent=11 // pred_check_branch
        %233 = sbr.rel (%p231) target = $region20
      $region19: #{basic_layer_forward.6} parent=11 // pred_region
        _
      $region20: #{basic_layer_forward.6} parent=11 // pred_fallthru
        _
      // Predicated region
      $region21: #{basic_layer_forward.6} parent=11 // pred_check
        %p234 = pneg %p103
      $region22: #{basic_layer_forward.6} parent=11 // pred_check_branch
        %236 = sbr.rel (%p234) target = $region24
      $region23: #{basic_layer_forward.6} parent=11 // pred_region
        _
      $region24: #{basic_layer_forward.6} parent=11 // pred_fallthru
        _
      // Predicated region
      $region25: #{basic_layer_forward.6} parent=11 // pred_check
        %p237 = pneg %p124
      $region26: #{basic_layer_forward.6} parent=11 // pred_check_branch
        %239 = sbr.rel (%p237) target = $region28
      $region27: #{basic_layer_forward.6} parent=11 // pred_region
        _
      $region28: #{basic_layer_forward.6} parent=11 // pred_fallthru
        _
      // Predicated region
      $region29: #{basic_layer_forward.6} parent=11 // pred_check
        %p240 = pneg %p145
      $region30: #{basic_layer_forward.6} parent=11 // pred_check_branch
        %242 = sbr.rel (%p240) target = $region32
      $region31: #{basic_layer_forward.6} parent=11 // pred_region
        _
      $region32: #{basic_layer_forward.6} parent=11 // pred_fallthru
        _
      // Predicated region
      $region33: #{basic_layer_forward.6} parent=11 // pred_check
        %p243 = pneg %p166
      $region34: #{basic_layer_forward.6} parent=11 // pred_check_branch
        %245 = sbr.rel (%p243) target = $region36
      $region35: #{basic_layer_forward.6} parent=11 // pred_region
        _
      $region36: #{basic_layer_forward.6} parent=11 // pred_fallthru
        _
      // Predicated region
      $region37: #{basic_layer_forward.6} parent=11 // pred_check
        %p246 = pneg %p187
      $region38: #{basic_layer_forward.6} parent=11 // pred_check_branch
        %248 = sbr.rel (%p246) target = $region40
      $region39: #{basic_layer_forward.6} parent=11 // pred_region
        _
      $region40: #{basic_layer_forward.6} parent=11 // pred_fallthru
        _
    $region12: #{basic_layer_forward.6} parent=5 // pred_fallthru
      _
    %p249 = scmp.lt.s32.totalorder %s14, 2
    // Predicated region
    $region41: #{basic_layer_forward.6} parent=5 // pred_check
      %p250 = pneg %p249
    $region42: #{basic_layer_forward.6} parent=5 // pred_check_branch
      %252 = sbr.rel (%p250) target = $region44
    $region43: #{basic_layer_forward.6} parent=5 // pred_region
      // Predicated region
      $region45: #{basic_layer_forward.6} parent=43 // pred_check
        %p253 = pneg %p34
      $region46: #{basic_layer_forward.6} parent=43 // pred_check_branch
        %255 = sbr.rel (%p253) target = $region48
      $region47: #{basic_layer_forward.6} parent=43 // pred_region
        %s256 = smul.u32 8, %s14
        %p257 = scmp.lt.s32.totalorder %s256, 15
        %s258 = scalar_select %p257, %s256, 15
        %s259 = smul.addr %s258, 4
        %s260 = scalar_lea.vmem %s0, %s259
        %s261 = smul.u32 8, %s14
      $region48: #{basic_layer_forward.6} parent=43 // pred_fallthru
        _
    $region44: #{basic_layer_forward.6} parent=5 // pred_fallthru
      _
    %p262 = scmp.le.s32.totalorder 1, %s14
    %p263 = scmp.lt.s32.totalorder %s14, 3
    %p264 = pnand %p262, %p263
    %p265 = pneg %p264
    // Predicated region
    $region49: #{basic_layer_forward.6} parent=5 // pred_check
      _
    $region50: #{basic_layer_forward.6} parent=5 // pred_check_branch
      %267 = sbr.rel (%p264) target = $region52
    $region51: #{basic_layer_forward.6} parent=5 // pred_region
      %s268 = ssub.s32 %s14, 1
      %s269 = smul.u32 8, %s19
      %p270 = scmp.lt.s32.totalorder %s269, 15
      %s271 = scalar_select %p270, %s269, 15
      %s272 = smul.addr %s271, 4
      %s273 = scalar_lea.vmem %s0, %s272
      %p274 = pneg %p40
      %p275 = pneg %p37
      %p276 = pneg %p61
      %p277 = pneg %p58
      %p278 = pneg %p82
      %p279 = pneg %p79
      %p280 = pneg %p103
      %p281 = pneg %p100
      %p282 = pneg %p124
      %p283 = pneg %p121
      %p284 = pneg %p145
      %p285 = pneg %p142
      %p286 = pneg %p166
      %p287 = pneg %p163
      %p288 = pneg %p187
      %p289 = pneg %p184
      %p290 = pneg %p213
      %p291 = pneg %p210
      %s292 = smul.u32 8, %s19
      %p293 = scmp.lt.s32.totalorder %s292, 15
      %s294 = scalar_select %p293, %s292, 15
      %s295 = smul.addr %s294, 4
      %s296 = scalar_lea.vmem %s8, %s295
      %s297 = smul.u32 8, %s19
      %p298 = scmp.lt.s32.totalorder %s297, 15
      %s299 = scalar_select %p298, %s297, 15
      %s300 = smul.addr %s299, 4
      %s301 = scalar_lea.vmem %s0, %s300
      %s302 = smul.u32 8, %s19
      %s303 = smul.u32 8, %s19
      %p304 = scmp.lt.s32.totalorder %s303, 15
      %s305 = scalar_select %p304, %s303, 15
      %s306 = smul.addr %s305, 4
      %s307 = scalar_lea.vmem %s8, %s306
      %s308 = smul.u32 8, %s19
      %v310 = vld [vmem:[%s301] sm:$0xf]
      %v311 = vld [vmem:[%s301 + $0x4] sm:$0xf]
      %v312 = vld [vmem:[%s301 + $0x8] sm:$0xf]
      %v313 = vld [vmem:[%s301 + $0xc] sm:$0xf]
      %v314 = vld [vmem:[%s301 + $0x10] sm:$0xf]
      %v315 = vld [vmem:[%s301 + $0x14] sm:$0xf]
      %v316 = vld [vmem:[%s301 + $0x18] sm:$0xf]
      %v317 = vld [vmem:[%s301 + $0x1c] sm:$0xf]
      %v318 = vunpack.c.l.bf16 %v310
      %v319 = vunpack.c.l.bf16 %v311
      %v320 = vunpack.c.l.bf16 %v312
      %v321 = vunpack.c.l.bf16 %v313
      %v322 = vunpack.c.l.bf16 %v314
      %v323 = vunpack.c.l.bf16 %v315
      %v324 = vunpack.c.l.bf16 %v316
      %v325 = vunpack.c.l.bf16 %v317
      %vm326 = vcmask 261120
      %v327 = vsel %vm326, %v318, 0.0
      %328 = vadd.xlane.f32.xlu0 %v327
      %v329 = vpop.xlane.xlu0 %328
      %v330 = vsel %vm326, %v319, 0.0
      %331 = vadd.xlane.f32.xlu0 %v330
      %v332 = vpop.xlane.xlu0 %331
      %v333 = vsel %vm326, %v320, 0.0
      %334 = vadd.xlane.f32.xlu0 %v333
      %v335 = vpop.xlane.xlu0 %334
      %v336 = vsel %vm326, %v321, 0.0
      %337 = vadd.xlane.f32.xlu0 %v336
      %v338 = vpop.xlane.xlu0 %337
      %v339 = vsel %vm326, %v322, 0.0
      %340 = vadd.xlane.f32.xlu0 %v339
      %v341 = vpop.xlane.xlu0 %340
      %v342 = vsel %vm326, %v323, 0.0
      %343 = vadd.xlane.f32.xlu0 %v342
      %v344 = vpop.xlane.xlu0 %343
      %v345 = vsel %vm326, %v324, 0.0
      %346 = vadd.xlane.f32.xlu0 %v345
      %v347 = vpop.xlane.xlu0 %346
      %v348 = vsel %vm326, %v325, 0.0
      %349 = vadd.xlane.f32.xlu0 %v348
      %v350 = vpop.xlane.xlu0 %349
      %v351 = vrcp.pop 32.0
      %v352 = vmul.f32 %v329, %v351
      %v353 = vmul.f32 %v332, %v351
      %v354 = vmul.f32 %v335, %v351
      %v355 = vmul.f32 %v338, %v351
      %v356 = vmul.f32 %v341, %v351
      %v357 = vmul.f32 %v344, %v351
      %v358 = vmul.f32 %v347, %v351
      %v359 = vmul.f32 %v350, %v351
      %v360 = vsub.f32 %v318, %v352
      %v361 = vsub.f32 %v319, %v353
      %v362 = vsub.f32 %v320, %v354
      %v363 = vsub.f32 %v321, %v355
      %v364 = vsub.f32 %v322, %v356
      %v365 = vsub.f32 %v323, %v357
      %v366 = vsub.f32 %v324, %v358
      %v367 = vsub.f32 %v325, %v359
      %v368 = vmul.f32 %v360, %v360
      %v369 = vmul.f32 %v361, %v361
      %v370 = vmul.f32 %v362, %v362
      %v371 = vmul.f32 %v363, %v363
      %v372 = vmul.f32 %v364, %v364
      %v373 = vmul.f32 %v365, %v365
      %v374 = vmul.f32 %v366, %v366
      %v375 = vmul.f32 %v367, %v367
      %v376 = vsel %vm326, %v368, 0.0
      %377 = vadd.xlane.f32.xlu0 %v376
      %v378 = vpop.xlane.xlu0 %377
      %v379 = vsel %vm326, %v369, 0.0
      %380 = vadd.xlane.f32.xlu0 %v379
      %v381 = vpop.xlane.xlu0 %380
      %v382 = vsel %vm326, %v370, 0.0
      %383 = vadd.xlane.f32.xlu0 %v382
      %v384 = vpop.xlane.xlu0 %383
      %v385 = vsel %vm326, %v371, 0.0
      %386 = vadd.xlane.f32.xlu0 %v385
      %v387 = vpop.xlane.xlu0 %386
      %v388 = vsel %vm326, %v372, 0.0
      %389 = vadd.xlane.f32.xlu0 %v388
      %v390 = vpop.xlane.xlu0 %389
      %v391 = vsel %vm326, %v373, 0.0
      %392 = vadd.xlane.f32.xlu0 %v391
      %v393 = vpop.xlane.xlu0 %392
      %v394 = vsel %vm326, %v374, 0.0
      %395 = vadd.xlane.f32.xlu0 %v394
      %v396 = vpop.xlane.xlu0 %395
      %v397 = vsel %vm326, %v375, 0.0
      %398 = vadd.xlane.f32.xlu0 %v397
      %v399 = vpop.xlane.xlu0 %398
      %v400 = vmul.f32 %v378, %v351
      %v401 = vmul.f32 %v381, %v351
      %v402 = vmul.f32 %v384, %v351
      %v403 = vmul.f32 %v387, %v351
      %v404 = vmul.f32 %v390, %v351
      %v405 = vmul.f32 %v393, %v351
      %v406 = vmul.f32 %v396, %v351
      %v407 = vmul.f32 %v399, %v351
      %v408 = vadd.f32 %v400, 1e-05
      %v409 = vadd.f32 %v401, 1e-05
      %v410 = vadd.f32 %v402, 1e-05
      %v411 = vadd.f32 %v403, 1e-05
      %v412 = vadd.f32 %v404, 1e-05
      %v413 = vadd.f32 %v405, 1e-05
      %v414 = vadd.f32 %v406, 1e-05
      %v415 = vadd.f32 %v407, 1e-05
      %v416 = vrsqrt.pop %v408
      %v417 = vrsqrt.pop %v409
      %v418 = vrsqrt.pop %v410
      %v419 = vrsqrt.pop %v411
      %v420 = vrsqrt.pop %v412
      %v421 = vrsqrt.pop %v413
      %v422 = vrsqrt.pop %v414
      %v423 = vrsqrt.pop %v415
      %v424 = vmul.f32 %v360, %v416
      %v425 = vmul.f32 %v361, %v417
      %v426 = vmul.f32 %v362, %v418
      %v427 = vmul.f32 %v363, %v419
      %v428 = vmul.f32 %v364, %v420
      %v429 = vmul.f32 %v365, %v421
      %v430 = vmul.f32 %v366, %v422
      %v431 = vmul.f32 %v367, %v423
      %v432 = vld [vmem:[%s1] sm:$0x1]
      %v434 = vlaneseq
      %v435 = vshrl.u32 %v434, 7
      %v436 = vsub.s32 0, %v435
      %v437 = vrot.slane %v432, %v436
      %v439 = vmul.f32 %v424, %v437
      %v440 = vmul.f32 %v425, %v437
      %v441 = vmul.f32 %v426, %v437
      %v442 = vmul.f32 %v427, %v437
      %v443 = vmul.f32 %v428, %v437
      %v444 = vmul.f32 %v429, %v437
      %v445 = vmul.f32 %v430, %v437
      %v446 = vmul.f32 %v431, %v437
      %v447 = vld [vmem:[%s2] sm:$0x1]
      %v449 = vlaneseq
      %v450 = vshrl.u32 %v449, 7
      %v451 = vsub.s32 0, %v450
      %v452 = vrot.slane %v447, %v451
      %v454 = vadd.f32 %v439, %v452
      %v455 = vadd.f32 %v440, %v452
      %v456 = vadd.f32 %v441, %v452
      %v457 = vadd.f32 %v442, %v452
      %v458 = vadd.f32 %v443, %v452
      %v459 = vadd.f32 %v444, %v452
      %v460 = vadd.f32 %v445, %v452
      %v461 = vadd.f32 %v446, %v452
      %v462 = vpack.c.bf16 %v455, %v454
      %v463 = vpack.c.bf16 %v457, %v456
      %v464 = vpack.c.bf16 %v459, %v458
      %v465 = vpack.c.bf16 %v461, %v460
      %v466 = vld [vmem:[%s3] sm:$0xf]
      %v467 = vld [vmem:[%s3 + $0x4] sm:$0xf]
      %v468 = vld [vmem:[%s3 + $0x8] sm:$0xf]
      %v469 = vld [vmem:[%s3 + $0xc] sm:$0xf]
      %v470 = vld [vmem:[%s4] sm:$0x1]
      %v472 = vlaneseq
      %v473 = vshrl.u32 %v472, 7
      %v474 = vsub.s32 0, %v473
      %v475 = vrot.slane %v470, %v474
      %v481 = vunpack.c.l.b16 %v466
      %v482 = vunpack.c.l.b16 %v467
      %v483 = vunpack.c.l.b16 %v468
      %v484 = vunpack.c.l.b16 %v469
      %v485 = vpack.c.b16 %v482, %v481
      %v486 = vpack.c.b16 %v484, %v483
      %v490 = vsel %vm326, %v462, 0
      %v493 = vsel %vm326, %v463, 0
      %v496 = vsel %vm326, %v464, 0
      %v499 = vsel %vm326, %v465, 0
      %501 = vmatprep.subr.bf16.mxu0 0
      %502 = vmatpush1.bf16.msra.mxu0 %v485
      %503 = vmatprep.subr.bf16.mxu0 0
      %504 = vmatpush1.bf16.msra.mxu0 %v486
      %505 = vmatprep.subr.bf16.mxu0 0
      %506 = vmatpush1.bf16.msra.mxu0 0
      %507 = vmatprep.subr.bf16.mxu0 0
      %508 = vmatpush1.bf16.msra.mxu0 0
      %509 = vmatprep.subr.bf16.mxu0 0
      %510 = vmatpush1.bf16.msra.mxu0 0
      %511 = vmatprep.subr.bf16.mxu0 0
      %512 = vmatpush1.bf16.msra.mxu0 0
      %513 = vmatprep.subr.bf16.mxu0 0
      %514 = vmatpush1.bf16.msra.mxu0 0
      %515 = vmatprep.subr.bf16.mxu0 0
      %516 = vmatpush1.bf16.msra.mxu0 0
      %517 = vmatprep.subr.bf16.mxu0 0
      %518 = vmatpush1.bf16.msra.mxu0 0
      %519 = vmatprep.subr.bf16.mxu0 0
      %520 = vmatpush1.bf16.msra.mxu0 0
      %521 = vmatprep.subr.bf16.mxu0 0
      %522 = vmatpush1.bf16.msra.mxu0 0
      %523 = vmatprep.subr.bf16.mxu0 0
      %524 = vmatpush1.bf16.msra.mxu0 0
      %525 = vmatprep.subr.bf16.mxu0 0
      %526 = vmatpush1.bf16.msra.mxu0 0
      %527 = vmatprep.subr.bf16.mxu0 0
      %528 = vmatpush1.bf16.msra.mxu0 0
      %529 = vmatprep.subr.bf16.mxu0 0
      %530 = vmatpush1.bf16.msra.mxu0 0
      %531 = vmatprep.subr.bf16.mxu0 0
      %532 = vmatpush1.bf16.msra.mxu0 0
      %533 = vmatprep.mubr.bf16.mxu0 0
      %534 = vmatmul.mubr.bf16.gmra.mrb[0].mxu0 %v490
      %v535 = vpop.f32.mrb[0].mxu0
      %v536 = vadd.f32 %v475, %v535
      %v537 = vpop.f32.mrb[0].mxu0
      %v538 = vpop.f32.mrb[0].mxu0
      %v539 = vadd.f32 %v475, %v538
      %v540 = vpop.f32.mrb[0].mxu0
      %541 = vmatprep.mubr.bf16.mxu0 0
      %542 = vmatmul.mubr.bf16.gmra.mrb[0].mxu0 %v493
      %v543 = vpop.f32.mrb[0].mxu0
      %v544 = vadd.f32 %v475, %v543
      %v545 = vpop.f32.mrb[0].mxu0
      %v546 = vpop.f32.mrb[0].mxu0
      %v547 = vadd.f32 %v475, %v546
      %v548 = vpop.f32.mrb[0].mxu0
      %549 = vmatprep.mubr.bf16.mxu0 0
      %550 = vmatmul.mubr.bf16.gmra.mrb[0].mxu0 %v496
      %v551 = vpop.f32.mrb[0].mxu0
      %v552 = vadd.f32 %v475, %v551
      %v553 = vpop.f32.mrb[0].mxu0
      %v554 = vpop.f32.mrb[0].mxu0
      %v555 = vadd.f32 %v475, %v554
      %v556 = vpop.f32.mrb[0].mxu0
      %557 = vmatprep.mubr.bf16.mxu0 0
      %558 = vmatmul.mubr.bf16.gmra.mrb[0].mxu0 %v499
      %v559 = vpop.f32.mrb[0].mxu0
      %v560 = vadd.f32 %v475, %v559
      %v561 = vpop.f32.mrb[0].mxu0
      %v562 = vpop.f32.mrb[0].mxu0
      %v563 = vadd.f32 %v475, %v562
      %v564 = vpop.f32.mrb[0].mxu0
      %565 = vdwg.mxu0
      %v566 = vpack.c.bf16 %v539, %v536
      %v567 = vpack.c.bf16 %v547, %v544
      %v568 = vpack.c.bf16 %v555, %v552
      %v569 = vpack.c.bf16 %v563, %v560
      %571 = vrot.lane.b32.xlu0 %v566, 96
      %v572 = vpop.permute.xlu0 %571
      %vm573 = vcmask 64512
      %v575 = vsel %vm573, %v566, 0
      %v578 = vsel %vm573, %v572, 0
      %580 = vmatprep.subr.bf16.mxu0 0
      %581 = vmatpush1.bf16.xpose.msra.mxu0 %v578
      %582 = vmatprep.subr.bf16.mxu0 0
      %583 = vmatpush1.bf16.xpose.msra.mxu0 0
      %584 = vmatprep.subr.bf16.mxu0 0
      %585 = vmatpush1.bf16.xpose.msra.mxu0 0
      %586 = vmatprep.subr.bf16.mxu0 0
      %587 = vmatpush1.bf16.xpose.msra.mxu0 0
      %588 = vmatprep.subr.bf16.mxu0 0
      %589 = vmatpush1.bf16.xpose.msra.mxu0 0
      %590 = vmatprep.subr.bf16.mxu0 0
      %591 = vmatpush1.bf16.xpose.msra.mxu0 0
      %592 = vmatprep.subr.bf16.mxu0 0
      %593 = vmatpush1.bf16.xpose.msra.mxu0 0
      %594 = vmatprep.subr.bf16.mxu0 0
      %595 = vmatpush1.bf16.xpose.msra.mxu0 0
      %596 = vmatprep.subr.bf16.mxu0 0
      %597 = vmatpush1.bf16.xpose.msra.mxu0 0
      %598 = vmatprep.subr.bf16.mxu0 0
      %599 = vmatpush1.bf16.xpose.msra.mxu0 0
      %600 = vmatprep.subr.bf16.mxu0 0
      %601 = vmatpush1.bf16.xpose.msra.mxu0 0
      %602 = vmatprep.subr.bf16.mxu0 0
      %603 = vmatpush1.bf16.xpose.msra.mxu0 0
      %604 = vmatprep.subr.bf16.mxu0 0
      %605 = vmatpush1.bf16.xpose.msra.mxu0 0
      %606 = vmatprep.subr.bf16.mxu0 0
      %607 = vmatpush1.bf16.xpose.msra.mxu0 0
      %608 = vmatprep.subr.bf16.mxu0 0
      %609 = vmatpush1.bf16.xpose.msra.mxu0 0
      %610 = vmatprep.subr.bf16.mxu0 0
      %611 = vmatpush1.bf16.xpose.msra.mxu0 0
      %612 = vmatprep.mubr.bf16.mxu0 0
      %613 = vmatmul.mubr.bf16.gmra.mrb[0].mxu0 %v575
      %v614 = vpop.f32.mrb[0].mxu0
      %v615 = vadd.f32 0.0, %v614
      %v616 = vpop.f32.mrb[0].mxu0
      %v617 = vpop.f32.mrb[0].mxu0
      %v618 = vadd.f32 0.0, %v617
      %v619 = vpop.f32.mrb[0].mxu0
      %620 = vdwg.mxu0
      %622 = vrot.lane.b32.xlu0 %v567, 96
      %v623 = vpop.permute.xlu0 %622
      %v625 = vsel %vm573, %v567, 0
      %v628 = vsel %vm573, %v623, 0
      %630 = vmatprep.subr.bf16.mxu0 0
      %631 = vmatpush1.bf16.xpose.msra.mxu0 %v628
      %632 = vmatprep.subr.bf16.mxu0 0
      %633 = vmatpush1.bf16.xpose.msra.mxu0 0
      %634 = vmatprep.subr.bf16.mxu0 0
      %635 = vmatpush1.bf16.xpose.msra.mxu0 0
      %636 = vmatprep.subr.bf16.mxu0 0
      %637 = vmatpush1.bf16.xpose.msra.mxu0 0
      %638 = vmatprep.subr.bf16.mxu0 0
      %639 = vmatpush1.bf16.xpose.msra.mxu0 0
      %640 = vmatprep.subr.bf16.mxu0 0
      %641 = vmatpush1.bf16.xpose.msra.mxu0 0
      %642 = vmatprep.subr.bf16.mxu0 0
      %643 = vmatpush1.bf16.xpose.msra.mxu0 0
      %644 = vmatprep.subr.bf16.mxu0 0
      %645 = vmatpush1.bf16.xpose.msra.mxu0 0
      %646 = vmatprep.subr.bf16.mxu0 0
      %647 = vmatpush1.bf16.xpose.msra.mxu0 0
      %648 = vmatprep.subr.bf16.mxu0 0
      %649 = vmatpush1.bf16.xpose.msra.mxu0 0
      %650 = vmatprep.subr.bf16.mxu0 0
      %651 = vmatpush1.bf16.xpose.msra.mxu0 0
      %652 = vmatprep.subr.bf16.mxu0 0
      %653 = vmatpush1.bf16.xpose.msra.mxu0 0
      %654 = vmatprep.subr.bf16.mxu0 0
      %655 = vmatpush1.bf16.xpose.msra.mxu0 0
      %656 = vmatprep.subr.bf16.mxu0 0
      %657 = vmatpush1.bf16.xpose.msra.mxu0 0
      %658 = vmatprep.subr.bf16.mxu0 0
      %659 = vmatpush1.bf16.xpose.msra.mxu0 0
      %660 = vmatprep.subr.bf16.mxu0 0
      %661 = vmatpush1.bf16.xpose.msra.mxu0 0
      %662 = vmatprep.mubr.bf16.mxu0 0
      %663 = vmatmul.mubr.bf16.gmra.mrb[0].mxu0 %v625
      %v664 = vpop.f32.mrb[0].mxu0
      %v665 = vadd.f32 0.0, %v664
      %v666 = vpop.f32.mrb[0].mxu0
      %v667 = vpop.f32.mrb[0].mxu0
      %v668 = vadd.f32 0.0, %v667
      %v669 = vpop.f32.mrb[0].mxu0
      %670 = vdwg.mxu0
      %672 = vrot.lane.b32.xlu0 %v568, 96
      %v673 = vpop.permute.xlu0 %672
      %v675 = vsel %vm573, %v568, 0
      %v678 = vsel %vm573, %v673, 0
      %680 = vmatprep.subr.bf16.mxu0 0
      %681 = vmatpush1.bf16.xpose.msra.mxu0 %v678
      %682 = vmatprep.subr.bf16.mxu0 0
      %683 = vmatpush1.bf16.xpose.msra.mxu0 0
      %684 = vmatprep.subr.bf16.mxu0 0
      %685 = vmatpush1.bf16.xpose.msra.mxu0 0
      %686 = vmatprep.subr.bf16.mxu0 0
      %687 = vmatpush1.bf16.xpose.msra.mxu0 0
      %688 = vmatprep.subr.bf16.mxu0 0
      %689 = vmatpush1.bf16.xpose.msra.mxu0 0
      %690 = vmatprep.subr.bf16.mxu0 0
      %691 = vmatpush1.bf16.xpose.msra.mxu0 0
      %692 = vmatprep.subr.bf16.mxu0 0
      %693 = vmatpush1.bf16.xpose.msra.mxu0 0
      %694 = vmatprep.subr.bf16.mxu0 0
      %695 = vmatpush1.bf16.xpose.msra.mxu0 0
      %696 = vmatprep.subr.bf16.mxu0 0
      %697 = vmatpush1.bf16.xpose.msra.mxu0 0
      %698 = vmatprep.subr.bf16.mxu0 0
      %699 = vmatpush1.bf16.xpose.msra.mxu0 0
      %700 = vmatprep.subr.bf16.mxu0 0
      %701 = vmatpush1.bf16.xpose.msra.mxu0 0
      %702 = vmatprep.subr.bf16.mxu0 0
      %703 = vmatpush1.bf16.xpose.msra.mxu0 0
      %704 = vmatprep.subr.bf16.mxu0 0
      %705 = vmatpush1.bf16.xpose.msra.mxu0 0
      %706 = vmatprep.subr.bf16.mxu0 0
      %707 = vmatpush1.bf16.xpose.msra.mxu0 0
      %708 = vmatprep.subr.bf16.mxu0 0
      %709 = vmatpush1.bf16.xpose.msra.mxu0 0
      %710 = vmatprep.subr.bf16.mxu0 0
      %711 = vmatpush1.bf16.xpose.msra.mxu0 0
      %712 = vmatprep.mubr.bf16.mxu0 0
      %713 = vmatmul.mubr.bf16.gmra.mrb[0].mxu0 %v675
      %v714 = vpop.f32.mrb[0].mxu0
      %v715 = vadd.f32 0.0, %v714
      %v716 = vpop.f32.mrb[0].mxu0
      %v717 = vpop.f32.mrb[0].mxu0
      %v718 = vadd.f32 0.0, %v717
      %v719 = vpop.f32.mrb[0].mxu0
      %720 = vdwg.mxu0
      %722 = vrot.lane.b32.xlu0 %v569, 96
      %v723 = vpop.permute.xlu0 %722
      %v725 = vsel %vm573, %v569, 0
      %v728 = vsel %vm573, %v723, 0
      %730 = vmatprep.subr.bf16.mxu0 0
      %731 = vmatpush1.bf16.xpose.msra.mxu0 %v728
      %732 = vmatprep.subr.bf16.mxu0 0
      %733 = vmatpush1.bf16.xpose.msra.mxu0 0
      %734 = vmatprep.subr.bf16.mxu0 0
      %735 = vmatpush1.bf16.xpose.msra.mxu0 0
      %736 = vmatprep.subr.bf16.mxu0 0
      %737 = vmatpush1.bf16.xpose.msra.mxu0 0
      %738 = vmatprep.subr.bf16.mxu0 0
      %739 = vmatpush1.bf16.xpose.msra.mxu0 0
      %740 = vmatprep.subr.bf16.mxu0 0
      %741 = vmatpush1.bf16.xpose.msra.mxu0 0
      %742 = vmatprep.subr.bf16.mxu0 0
      %743 = vmatpush1.bf16.xpose.msra.mxu0 0
      %744 = vmatprep.subr.bf16.mxu0 0
      %745 = vmatpush1.bf16.xpose.msra.mxu0 0
      %746 = vmatprep.subr.bf16.mxu0 0
      %747 = vmatpush1.bf16.xpose.msra.mxu0 0
      %748 = vmatprep.subr.bf16.mxu0 0
      %749 = vmatpush1.bf16.xpose.msra.mxu0 0
      %750 = vmatprep.subr.bf16.mxu0 0
      %751 = vmatpush1.bf16.xpose.msra.mxu0 0
      %752 = vmatprep.subr.bf16.mxu0 0
      %753 = vmatpush1.bf16.xpose.msra.mxu0 0
      %754 = vmatprep.subr.bf16.mxu0 0
      %755 = vmatpush1.bf16.xpose.msra.mxu0 0
      %756 = vmatprep.subr.bf16.mxu0 0
      %757 = vmatpush1.bf16.xpose.msra.mxu0 0
      %758 = vmatprep.subr.bf16.mxu0 0
      %759 = vmatpush1.bf16.xpose.msra.mxu0 0
      %760 = vmatprep.subr.bf16.mxu0 0
      %761 = vmatpush1.bf16.xpose.msra.mxu0 0
      %762 = vmatprep.mubr.bf16.mxu0 0
      %763 = vmatmul.mubr.bf16.gmra.mrb[0].mxu0 %v725
      %v764 = vpop.f32.mrb[0].mxu0
      %v765 = vadd.f32 0.0, %v764
      %v766 = vpop.f32.mrb[0].mxu0
      %v767 = vpop.f32.mrb[0].mxu0
      %v768 = vadd.f32 0.0, %v767
      %v769 = vpop.f32.mrb[0].mxu0
      %770 = vdwg.mxu0
      %v771 = vld [vmem:[%s5] sm:$0xff]
      %v772 = vld [vmem:[%s5 + $0x8] sm:$0xff]
      %v773 = vld [vmem:[%s5 + $0x10] sm:$0xff]
      %v774 = vld [vmem:[%s5 + $0x18] sm:$0xff]
      %v775 = vld [vmem:[%s5 + $0x20] sm:$0xff]
      %v776 = vld [vmem:[%s5 + $0x28] sm:$0xff]
      %v777 = vld [vmem:[%s5 + $0x30] sm:$0xff]
      %v778 = vld [vmem:[%s5 + $0x38] sm:$0xff]
      %v779 = vadd.f32 %v615, %v771
      %v780 = vadd.f32 %v618, %v772
      %v781 = vadd.f32 %v665, %v773
      %v782 = vadd.f32 %v668, %v774
      %v783 = vadd.f32 %v715, %v775
      %v784 = vadd.f32 %v718, %v776
      %v785 = vadd.f32 %v765, %v777
      %v786 = vadd.f32 %v768, %v778
      %vm787 = vcmask 130048
      %v788 = vsel %vm787, %v779, -inf
      %789 = vmax.xlane.f32.xlu0 %v788
      %v790 = vpop.xlane.xlu0 %789
      %v791 = vsel %vm787, %v780, -inf
      %792 = vmax.xlane.f32.xlu0 %v791
      %v793 = vpop.xlane.xlu0 %792
      %v794 = vsel %vm787, %v781, -inf
      %795 = vmax.xlane.f32.xlu0 %v794
      %v796 = vpop.xlane.xlu0 %795
      %v797 = vsel %vm787, %v782, -inf
      %798 = vmax.xlane.f32.xlu0 %v797
      %v799 = vpop.xlane.xlu0 %798
      %v800 = vsel %vm787, %v783, -inf
      %801 = vmax.xlane.f32.xlu0 %v800
      %v802 = vpop.xlane.xlu0 %801
      %v803 = vsel %vm787, %v784, -inf
      %804 = vmax.xlane.f32.xlu0 %v803
      %v805 = vpop.xlane.xlu0 %804
      %v806 = vsel %vm787, %v785, -inf
      %807 = vmax.xlane.f32.xlu0 %v806
      %v808 = vpop.xlane.xlu0 %807
      %v809 = vsel %vm787, %v786, -inf
      %810 = vmax.xlane.f32.xlu0 %v809
      %v811 = vpop.xlane.xlu0 %810
      %v812 = vsub.f32 %v779, %v790
      %v813 = vsub.f32 %v780, %v793
      %v814 = vsub.f32 %v781, %v796
      %v815 = vsub.f32 %v782, %v799
      %v816 = vsub.f32 %v783, %v802
      %v817 = vsub.f32 %v784, %v805
      %v818 = vsub.f32 %v785, %v808
      %v819 = vsub.f32 %v786, %v811
      %v820 = vmul.f32 %v812, 1.442695
      %v821 = vpow.pop %v820
      %v822 = vmul.f32 %v813, 1.442695
      %v823 = vpow.pop %v822
      %v824 = vmul.f32 %v814, 1.442695
      %v825 = vpow.pop %v824
      %v826 = vmul.f32 %v815, 1.442695
      %v827 = vpow.pop %v826
      %v828 = vmul.f32 %v816, 1.442695
      %v829 = vpow.pop %v828
      %v830 = vmul.f32 %v817, 1.442695
      %v831 = vpow.pop %v830
      %v832 = vmul.f32 %v818, 1.442695
      %v833 = vpow.pop %v832
      %v834 = vmul.f32 %v819, 1.442695
      %v835 = vpow.pop %v834
      %v836 = vsel %vm787, %v821, 0.0
      %837 = vadd.xlane.f32.xlu0 %v836
      %v838 = vpop.xlane.xlu0 %837
      %v839 = vsel %vm787, %v823, 0.0
      %840 = vadd.xlane.f32.xlu0 %v839
      %v841 = vpop.xlane.xlu0 %840
      %v842 = vsel %vm787, %v825, 0.0
      %843 = vadd.xlane.f32.xlu0 %v842
      %v844 = vpop.xlane.xlu0 %843
      %v845 = vsel %vm787, %v827, 0.0
      %846 = vadd.xlane.f32.xlu0 %v845
      %v847 = vpop.xlane.xlu0 %846
      %v848 = vsel %vm787, %v829, 0.0
      %849 = vadd.xlane.f32.xlu0 %v848
      %v850 = vpop.xlane.xlu0 %849
      %v851 = vsel %vm787, %v831, 0.0
      %852 = vadd.xlane.f32.xlu0 %v851
      %v853 = vpop.xlane.xlu0 %852
      %v854 = vsel %vm787, %v833, 0.0
      %855 = vadd.xlane.f32.xlu0 %v854
      %v856 = vpop.xlane.xlu0 %855
      %v857 = vsel %vm787, %v835, 0.0
      %858 = vadd.xlane.f32.xlu0 %v857
      %v859 = vpop.xlane.xlu0 %858
      %v860 = vrcp.pop %v838
      %v861 = vrcp.pop %v841
      %v862 = vrcp.pop %v844
      %v863 = vrcp.pop %v847
      %v864 = vrcp.pop %v850
      %v865 = vrcp.pop %v853
      %v866 = vrcp.pop %v856
      %v867 = vrcp.pop %v859
      %v868 = vmul.f32 %v821, %v860
      %v869 = vmul.f32 %v823, %v861
      %v870 = vmul.f32 %v825, %v862
      %v871 = vmul.f32 %v827, %v863
      %v872 = vmul.f32 %v829, %v864
      %v873 = vmul.f32 %v831, %v865
      %v874 = vmul.f32 %v833, %v866
      %v875 = vmul.f32 %v835, %v867
      %v876 = vpack.c.bf16 %v869, %v868
      %v877 = vpack.c.bf16 %v871, %v870
      %v878 = vpack.c.bf16 %v873, %v872
      %v879 = vpack.c.bf16 %v875, %v874
      %880 = vrot.lane.b32.xlu0 %v566, 64
      %v881 = vpop.permute.xlu0 %880
      %v884 = vsel %vm787, %v876, 0
      %886 = vmatprep.subr.bf16.mxu0 0
      %887 = vmatpush1.bf16.msra.mxu0 %v881
      %888 = vmatprep.subr.bf16.mxu0 0
      %889 = vmatpush1.bf16.msra.mxu0 0
      %890 = vmatprep.subr.bf16.mxu0 0
      %891 = vmatpush1.bf16.msra.mxu0 0
      %892 = vmatprep.subr.bf16.mxu0 0
      %893 = vmatpush1.bf16.msra.mxu0 0
      %894 = vmatprep.subr.bf16.mxu0 0
      %895 = vmatpush1.bf16.msra.mxu0 0
      %896 = vmatprep.subr.bf16.mxu0 0
      %897 = vmatpush1.bf16.msra.mxu0 0
      %898 = vmatprep.subr.bf16.mxu0 0
      %899 = vmatpush1.bf16.msra.mxu0 0
      %900 = vmatprep.subr.bf16.mxu0 0
      %901 = vmatpush1.bf16.msra.mxu0 0
      %902 = vmatprep.subr.bf16.mxu0 0
      %903 = vmatpush1.bf16.msra.mxu0 0
      %904 = vmatprep.subr.bf16.mxu0 0
      %905 = vmatpush1.bf16.msra.mxu0 0
      %906 = vmatprep.subr.bf16.mxu0 0
      %907 = vmatpush1.bf16.msra.mxu0 0
      %908 = vmatprep.subr.bf16.mxu0 0
      %909 = vmatpush1.bf16.msra.mxu0 0
      %910 = vmatprep.subr.bf16.mxu0 0
      %911 = vmatpush1.bf16.msra.mxu0 0
      %912 = vmatprep.subr.bf16.mxu0 0
      %913 = vmatpush1.bf16.msra.mxu0 0
      %914 = vmatprep.subr.bf16.mxu0 0
      %915 = vmatpush1.bf16.msra.mxu0 0
      %916 = vmatprep.subr.bf16.mxu0 0
      %917 = vmatpush1.bf16.msra.mxu0 0
      %918 = vmatprep.mubr.bf16.mxu0 0
      %919 = vmatmul.mubr.bf16.gmra.mrb[0].mxu0 %v884
      %v920 = vpop.f32.mrb[0].mxu0
      %v921 = vadd.f32 0.0, %v920
      %v922 = vpop.f32.mrb[0].mxu0
      %v923 = vpop.f32.mrb[0].mxu0
      %v924 = vadd.f32 0.0, %v923
      %v925 = vpop.f32.mrb[0].mxu0
      %926 = vdwg.mxu0
      %927 = vrot.lane.b32.xlu0 %v567, 64
      %v928 = vpop.permute.xlu0 %927
      %v931 = vsel %vm787, %v877, 0
      %933 = vmatprep.subr.bf16.mxu0 0
      %934 = vmatpush1.bf16.msra.mxu0 %v928
      %935 = vmatprep.subr.bf16.mxu0 0
      %936 = vmatpush1.bf16.msra.mxu0 0
      %937 = vmatprep.subr.bf16.mxu0 0
      %938 = vmatpush1.bf16.msra.mxu0 0
      %939 = vmatprep.subr.bf16.mxu0 0
      %940 = vmatpush1.bf16.msra.mxu0 0
      %941 = vmatprep.subr.bf16.mxu0 0
      %942 = vmatpush1.bf16.msra.mxu0 0
      %943 = vmatprep.subr.bf16.mxu0 0
      %944 = vmatpush1.bf16.msra.mxu0 0
      %945 = vmatprep.subr.bf16.mxu0 0
      %946 = vmatpush1.bf16.msra.mxu0 0
      %947 = vmatprep.subr.bf16.mxu0 0
      %948 = vmatpush1.bf16.msra.mxu0 0
      %949 = vmatprep.subr.bf16.mxu0 0
      %950 = vmatpush1.bf16.msra.mxu0 0
      %951 = vmatprep.subr.bf16.mxu0 0
      %952 = vmatpush1.bf16.msra.mxu0 0
      %953 = vmatprep.subr.bf16.mxu0 0
      %954 = vmatpush1.bf16.msra.mxu0 0
      %955 = vmatprep.subr.bf16.mxu0 0
      %956 = vmatpush1.bf16.msra.mxu0 0
      %957 = vmatprep.subr.bf16.mxu0 0
      %958 = vmatpush1.bf16.msra.mxu0 0
      %959 = vmatprep.subr.bf16.mxu0 0
      %960 = vmatpush1.bf16.msra.mxu0 0
      %961 = vmatprep.subr.bf16.mxu0 0
      %962 = vmatpush1.bf16.msra.mxu0 0
      %963 = vmatprep.subr.bf16.mxu0 0
      %964 = vmatpush1.bf16.msra.mxu0 0
      %965 = vmatprep.mubr.bf16.mxu0 0
      %966 = vmatmul.mubr.bf16.gmra.mrb[0].mxu0 %v931
      %v967 = vpop.f32.mrb[0].mxu0
      %v968 = vadd.f32 0.0, %v967
      %v969 = vpop.f32.mrb[0].mxu0
      %v970 = vpop.f32.mrb[0].mxu0
      %v971 = vadd.f32 0.0, %v970
      %v972 = vpop.f32.mrb[0].mxu0
      %973 = vdwg.mxu0
      %974 = vrot.lane.b32.xlu0 %v568, 64
      %v975 = vpop.permute.xlu0 %974
      %v978 = vsel %vm787, %v878, 0
      %980 = vmatprep.subr.bf16.mxu0 0
      %981 = vmatpush1.bf16.msra.mxu0 %v975
      %982 = vmatprep.subr.bf16.mxu0 0
      %983 = vmatpush1.bf16.msra.mxu0 0
      %984 = vmatprep.subr.bf16.mxu0 0
      %985 = vmatpush1.bf16.msra.mxu0 0
      %986 = vmatprep.subr.bf16.mxu0 0
      %987 = vmatpush1.bf16.msra.mxu0 0
      %988 = vmatprep.subr.bf16.mxu0 0
      %989 = vmatpush1.bf16.msra.mxu0 0
      %990 = vmatprep.subr.bf16.mxu0 0
      %991 = vmatpush1.bf16.msra.mxu0 0
      %992 = vmatprep.subr.bf16.mxu0 0
      %993 = vmatpush1.bf16.msra.mxu0 0
      %994 = vmatprep.subr.bf16.mxu0 0
      %995 = vmatpush1.bf16.msra.mxu0 0
      %996 = vmatprep.subr.bf16.mxu0 0
      %997 = vmatpush1.bf16.msra.mxu0 0
      %998 = vmatprep.subr.bf16.mxu0 0
      %999 = vmatpush1.bf16.msra.mxu0 0
      %1000 = vmatprep.subr.bf16.mxu0 0
      %1001 = vmatpush1.bf16.msra.mxu0 0
      %1002 = vmatprep.subr.bf16.mxu0 0
      %1003 = vmatpush1.bf16.msra.mxu0 0
      %1004 = vmatprep.subr.bf16.mxu0 0
      %1005 = vmatpush1.bf16.msra.mxu0 0
      %1006 = vmatprep.subr.bf16.mxu0 0
      %1007 = vmatpush1.bf16.msra.mxu0 0
      %1008 = vmatprep.subr.bf16.mxu0 0
      %1009 = vmatpush1.bf16.msra.mxu0 0
      %1010 = vmatprep.subr.bf16.mxu0 0
      %1011 = vmatpush1.bf16.msra.mxu0 0
      %1012 = vmatprep.mubr.bf16.mxu0 0
      %1013 = vmatmul.mubr.bf16.gmra.mrb[0].mxu0 %v978
      %v1014 = vpop.f32.mrb[0].mxu0
      %v1015 = vadd.f32 0.0, %v1014
      %v1016 = vpop.f32.mrb[0].mxu0
      %v1017 = vpop.f32.mrb[0].mxu0
      %v1018 = vadd.f32 0.0, %v1017
      %v1019 = vpop.f32.mrb[0].mxu0
      %1020 = vdwg.mxu0
      %1021 = vrot.lane.b32.xlu0 %v569, 64
      %v1022 = vpop.permute.xlu0 %1021
      %v1025 = vsel %vm787, %v879, 0
      %1027 = vmatprep.subr.bf16.mxu0 0
      %1028 = vmatpush1.bf16.msra.mxu0 %v1022
      %1029 = vmatprep.subr.bf16.mxu0 0
      %1030 = vmatpush1.bf16.msra.mxu0 0
      %1031 = vmatprep.subr.bf16.mxu0 0
      %1032 = vmatpush1.bf16.msra.mxu0 0
      %1033 = vmatprep.subr.bf16.mxu0 0
      %1034 = vmatpush1.bf16.msra.mxu0 0
      %1035 = vmatprep.subr.bf16.mxu0 0
      %1036 = vmatpush1.bf16.msra.mxu0 0
      %1037 = vmatprep.subr.bf16.mxu0 0
      %1038 = vmatpush1.bf16.msra.mxu0 0
      %1039 = vmatprep.subr.bf16.mxu0 0
      %1040 = vmatpush1.bf16.msra.mxu0 0
      %1041 = vmatprep.subr.bf16.mxu0 0
      %1042 = vmatpush1.bf16.msra.mxu0 0
      %1043 = vmatprep.subr.bf16.mxu0 0
      %1044 = vmatpush1.bf16.msra.mxu0 0
      %1045 = vmatprep.subr.bf16.mxu0 0
      %1046 = vmatpush1.bf16.msra.mxu0 0
      %1047 = vmatprep.subr.bf16.mxu0 0
      %1048 = vmatpush1.bf16.msra.mxu0 0
      %1049 = vmatprep.subr.bf16.mxu0 0
      %1050 = vmatpush1.bf16.msra.mxu0 0
      %1051 = vmatprep.subr.bf16.mxu0 0
      %1052 = vmatpush1.bf16.msra.mxu0 0
      %1053 = vmatprep.subr.bf16.mxu0 0
      %1054 = vmatpush1.bf16.msra.mxu0 0
      %1055 = vmatprep.subr.bf16.mxu0 0
      %1056 = vmatpush1.bf16.msra.mxu0 0
      %1057 = vmatprep.subr.bf16.mxu0 0
      %1058 = vmatpush1.bf16.msra.mxu0 0
      %1059 = vmatprep.mubr.bf16.mxu0 0
      %1060 = vmatmul.mubr.bf16.gmra.mrb[0].mxu0 %v1025
      %v1061 = vpop.f32.mrb[0].mxu0
      %v1062 = vadd.f32 0.0, %v1061
      %v1063 = vpop.f32.mrb[0].mxu0
      %v1064 = vpop.f32.mrb[0].mxu0
      %v1065 = vadd.f32 0.0, %v1064
      %v1066 = vpop.f32.mrb[0].mxu0
      %1067 = vdwg.mxu0
      %v1068 = vpack.c.bf16 %v924, %v921
      %v1069 = vpack.c.bf16 %v971, %v968
      %v1070 = vpack.c.bf16 %v1018, %v1015
      %v1071 = vpack.c.bf16 %v1065, %v1062
      %1072 = vst.msk [vmem:[#allocation2] sm:$0xff] %vm573, %v1068
      %1073 = vst.msk [vmem:[#allocation2 + $0x8] sm:$0xff] %vm573, %v1069
      %1074 = vst.msk [vmem:[#allocation2 + $0x10] sm:$0xff] %vm573, %v1070
      %1075 = vst.msk [vmem:[#allocation2 + $0x18] sm:$0xff] %vm573, %v1071
      %1076 = vrot.lane.b32.xlu0 %v566, 120
      %v1077 = vpop.permute.xlu0 %1076
      %1078 = vrot.lane.b32.xlu0 %v566, 88
      %v1079 = vpop.permute.xlu0 %1078
      %v1081 = vsel %vm573, %v1077, 0
      %v1084 = vsel %vm573, %v1079, 0
      %1086 = vmatprep.subr.bf16.mxu0 0
      %1087 = vmatpush1.bf16.xpose.msra.mxu0 %v1084
      %1088 = vmatprep.subr.bf16.mxu0 0
      %1089 = vmatpush1.bf16.xpose.msra.mxu0 0
      %1090 = vmatprep.subr.bf16.mxu0 0
      %1091 = vmatpush1.bf16.xpose.msra.mxu0 0
      %1092 = vmatprep.subr.bf16.mxu0 0
      %1093 = vmatpush1.bf16.xpose.msra.mxu0 0
      %1094 = vmatprep.subr.bf16.mxu0 0
      %1095 = vmatpush1.bf16.xpose.msra.mxu0 0
      %1096 = vmatprep.subr.bf16.mxu0 0
      %1097 = vmatpush1.bf16.xpose.msra.mxu0 0
      %1098 = vmatprep.subr.bf16.mxu0 0
      %1099 = vmatpush1.bf16.xpose.msra.mxu0 0
      %1100 = vmatprep.subr.bf16.mxu0 0
      %1101 = vmatpush1.bf16.xpose.msra.mxu0 0
      %1102 = vmatprep.subr.bf16.mxu0 0
      %1103 = vmatpush1.bf16.xpose.msra.mxu0 0
      %1104 = vmatprep.subr.bf16.mxu0 0
      %1105 = vmatpush1.bf16.xpose.msra.mxu0 0
      %1106 = vmatprep.subr.bf16.mxu0 0
      %1107 = vmatpush1.bf16.xpose.msra.mxu0 0
      %1108 = vmatprep.subr.bf16.mxu0 0
      %1109 = vmatpush1.bf16.xpose.msra.mxu0 0
      %1110 = vmatprep.subr.bf16.mxu0 0
      %1111 = vmatpush1.bf16.xpose.msra.mxu0 0
      %1112 = vmatprep.subr.bf16.mxu0 0
      %1113 = vmatpush1.bf16.xpose.msra.mxu0 0
      %1114 = vmatprep.subr.bf16.mxu0 0
      %1115 = vmatpush1.bf16.xpose.msra.mxu0 0
      %1116 = vmatprep.subr.bf16.mxu0 0
      %1117 = vmatpush1.bf16.xpose.msra.mxu0 0
      %1118 = vmatprep.mubr.bf16.mxu0 0
      %1119 = vmatmul.mubr.bf16.gmra.mrb[0].mxu0 %v1081
      %v1120 = vpop.f32.mrb[0].mxu0
      %v1121 = vadd.f32 0.0, %v1120
      %v1122 = vpop.f32.mrb[0].mxu0
      %v1123 = vpop.f32.mrb[0].mxu0
      %v1124 = vadd.f32 0.0, %v1123
      %v1125 = vpop.f32.mrb[0].mxu0
      %1126 = vdwg.mxu0
      %1127 = vrot.lane.b32.xlu0 %v567, 120
      %v1128 = vpop.permute.xlu0 %1127
      %1129 = vrot.lane.b32.xlu0 %v567, 88
      %v1130 = vpop.permute.xlu0 %1129
      %v1132 = vsel %vm573, %v1128, 0
      %v1135 = vsel %vm573, %v1130, 0
      %1137 = vmatprep.subr.bf16.mxu0 0
      %1138 = vmatpush1.bf16.xpose.msra.mxu0 %v1135
      %1139 = vmatprep.subr.bf16.mxu0 0
      %1140 = vmatpush1.bf16.xpose.msra.mxu0 0
      %1141 = vmatprep.subr.bf16.mxu0 0
      %1142 = vmatpush1.bf16.xpose.msra.mxu0 0
      %1143 = vmatprep.subr.bf16.mxu0 0
      %1144 = vmatpush1.bf16.xpose.msra.mxu0 0
      %1145 = vmatprep.subr.bf16.mxu0 0
      %1146 = vmatpush1.bf16.xpose.msra.mxu0 0
      %1147 = vmatprep.subr.bf16.mxu0 0
      %1148 = vmatpush1.bf16.xpose.msra.mxu0 0
      %1149 = vmatprep.subr.bf16.mxu0 0
      %1150 = vmatpush1.bf16.xpose.msra.mxu0 0
      %1151 = vmatprep.subr.bf16.mxu0 0
      %1152 = vmatpush1.bf16.xpose.msra.mxu0 0
      %1153 = vmatprep.subr.bf16.mxu0 0
      %1154 = vmatpush1.bf16.xpose.msra.mxu0 0
      %1155 = vmatprep.subr.bf16.mxu0 0
      %1156 = vmatpush1.bf16.xpose.msra.mxu0 0
      %1157 = vmatprep.subr.bf16.mxu0 0
      %1158 = vmatpush1.bf16.xpose.msra.mxu0 0
      %1159 = vmatprep.subr.bf16.mxu0 0
      %1160 = vmatpush1.bf16.xpose.msra.mxu0 0
      %1161 = vmatprep.subr.bf16.mxu0 0
      %1162 = vmatpush1.bf16.xpose.msra.mxu0 0
      %1163 = vmatprep.subr.bf16.mxu0 0
      %1164 = vmatpush1.bf16.xpose.msra.mxu0 0
      %1165 = vmatprep.subr.bf16.mxu0 0
      %1166 = vmatpush1.bf16.xpose.msra.mxu0 0
      %1167 = vmatprep.subr.bf16.mxu0 0
      %1168 = vmatpush1.bf16.xpose.msra.mxu0 0
      %1169 = vmatprep.mubr.bf16.mxu0 0
      %1170 = vmatmul.mubr.bf16.gmra.mrb[0].mxu0 %v1132
      %v1171 = vpop.f32.mrb[0].mxu0
      %v1172 = vadd.f32 0.0, %v1171
      %v1173 = vpop.f32.mrb[0].mxu0
      %v1174 = vpop.f32.mrb[0].mxu0
      %v1175 = vadd.f32 0.0, %v1174
      %v1176 = vpop.f32.mrb[0].mxu0
      %1177 = vdwg.mxu0
      %1178 = vrot.lane.b32.xlu0 %v568, 120
      %v1179 = vpop.permute.xlu0 %1178
      %1180 = vrot.lane.b32.xlu0 %v568, 88
      %v1181 = vpop.permute.xlu0 %1180
      %v1183 = vsel %vm573, %v1179, 0
      %v1186 = vsel %vm573, %v1181, 0
      %1188 = vmatprep.subr.bf16.mxu0 0
      %1189 = vmatpush1.bf16.xpose.msra.mxu0 %v1186
      %1190 = vmatprep.subr.bf16.mxu0 0
      %1191 = vmatpush1.bf16.xpose.msra.mxu0 0
      %1192 = vmatprep.subr.bf16.mxu0 0
      %1193 = vmatpush1.bf16.xpose.msra.mxu0 0
      %1194 = vmatprep.subr.bf16.mxu0 0
      %1195 = vmatpush1.bf16.xpose.msra.mxu0 0
      %1196 = vmatprep.subr.bf16.mxu0 0
      %1197 = vmatpush1.bf16.xpose.msra.mxu0 0
      %1198 = vmatprep.subr.bf16.mxu0 0
      %1199 = vmatpush1.bf16.xpose.msra.mxu0 0
      %1200 = vmatprep.subr.bf16.mxu0 0
      %1201 = vmatpush1.bf16.xpose.msra.mxu0 0
      %1202 = vmatprep.subr.bf16.mxu0 0
      %1203 = vmatpush1.bf16.xpose.msra.mxu0 0
      %1204 = vmatprep.subr.bf16.mxu0 0
      %1205 = vmatpush1.bf16.xpose.msra.mxu0 0
      %1206 = vmatprep.subr.bf16.mxu0 0
      %1207 = vmatpush1.bf16.xpose.msra.mxu0 0
      %1208 = vmatprep.subr.bf16.mxu0 0
      %1209 = vmatpush1.bf16.xpose.msra.mxu0 0
      %1210 = vmatprep.subr.bf16.mxu0 0
      %1211 = vmatpush1.bf16.xpose.msra.mxu0 0
      %1212 = vmatprep.subr.bf16.mxu0 0
      %1213 = vmatpush1.bf16.xpose.msra.mxu0 0
      %1214 = vmatprep.subr.bf16.mxu0 0
      %1215 = vmatpush1.bf16.xpose.msra.mxu0 0
      %1216 = vmatprep.subr.bf16.mxu0 0
      %1217 = vmatpush1.bf16.xpose.msra.mxu0 0
      %1218 = vmatprep.subr.bf16.mxu0 0
      %1219 = vmatpush1.bf16.xpose.msra.mxu0 0
      %1220 = vmatprep.mubr.bf16.mxu0 0
      %1221 = vmatmul.mubr.bf16.gmra.mrb[0].mxu0 %v1183
      %v1222 = vpop.f32.mrb[0].mxu0
      %v1223 = vadd.f32 0.0, %v1222
      %v1224 = vpop.f32.mrb[0].mxu0
      %v1225 = vpop.f32.mrb[0].mxu0
      %v1226 = vadd.f32 0.0, %v1225
      %v1227 = vpop.f32.mrb[0].mxu0
      %1228 = vdwg.mxu0
      %1229 = vrot.lane.b32.xlu0 %v569, 120
      %v1230 = vpop.permute.xlu0 %1229
      %1231 = vrot.lane.b32.xlu0 %v569, 88
      %v1232 = vpop.permute.xlu0 %1231
      %v1234 = vsel %vm573, %v1230, 0
      %v1237 = vsel %vm573, %v1232, 0
      %1239 = vmatprep.subr.bf16.mxu0 0
      %1240 = vmatpush1.bf16.xpose.msra.mxu0 %v1237
      %1241 = vmatprep.subr.bf16.mxu0 0
      %1242 = vmatpush1.bf16.xpose.msra.mxu0 0
      %1243 = vmatprep.subr.bf16.mxu0 0
      %1244 = vmatpush1.bf16.xpose.msra.mxu0 0
      %1245 = vmatprep.subr.bf16.mxu0 0
      %1246 = vmatpush1.bf16.xpose.msra.mxu0 0
      %1247 = vmatprep.subr.bf16.mxu0 0
      %1248 = vmatpush1.bf16.xpose.msra.mxu0 0
      %1249 = vmatprep.subr.bf16.mxu0 0
      %1250 = vmatpush1.bf16.xpose.msra.mxu0 0
      %1251 = vmatprep.subr.bf16.mxu0 0
      %1252 = vmatpush1.bf16.xpose.msra.mxu0 0
      %1253 = vmatprep.subr.bf16.mxu0 0
      %1254 = vmatpush1.bf16.xpose.msra.mxu0 0
      %1255 = vmatprep.subr.bf16.mxu0 0
      %1256 = vmatpush1.bf16.xpose.msra.mxu0 0
      %1257 = vmatprep.subr.bf16.mxu0 0
      %1258 = vmatpush1.bf16.xpose.msra.mxu0 0
      %1259 = vmatprep.subr.bf16.mxu0 0
      %1260 = vmatpush1.bf16.xpose.msra.mxu0 0
      %1261 = vmatprep.subr.bf16.mxu0 0
      %1262 = vmatpush1.bf16.xpose.msra.mxu0 0
      %1263 = vmatprep.subr.bf16.mxu0 0
      %1264 = vmatpush1.bf16.xpose.msra.mxu0 0
      %1265 = vmatprep.subr.bf16.mxu0 0
      %1266 = vmatpush1.bf16.xpose.msra.mxu0 0
      %1267 = vmatprep.subr.bf16.mxu0 0
      %1268 = vmatpush1.bf16.xpose.msra.mxu0 0
      %1269 = vmatprep.subr.bf16.mxu0 0
      %1270 = vmatpush1.bf16.xpose.msra.mxu0 0
      %1271 = vmatprep.mubr.bf16.mxu0 0
      %1272 = vmatmul.mubr.bf16.gmra.mrb[0].mxu0 %v1234
      %v1273 = vpop.f32.mrb[0].mxu0
      %v1274 = vadd.f32 0.0, %v1273
      %v1275 = vpop.f32.mrb[0].mxu0
      %v1276 = vpop.f32.mrb[0].mxu0
      %v1277 = vadd.f32 0.0, %v1276
      %v1278 = vpop.f32.mrb[0].mxu0
      %1279 = vdwg.mxu0
      %s1280 = scalar_lea.vmem %s5, 64
      %v1281 = vld [vmem:[%s1280] sm:$0xff]
      %v1282 = vld [vmem:[%s1280 + $0x8] sm:$0xff]
      %v1283 = vld [vmem:[%s1280 + $0x10] sm:$0xff]
      %v1284 = vld [vmem:[%s1280 + $0x18] sm:$0xff]
      %v1285 = vld [vmem:[%s1280 + $0x20] sm:$0xff]
      %v1286 = vld [vmem:[%s1280 + $0x28] sm:$0xff]
      %v1287 = vld [vmem:[%s1280 + $0x30] sm:$0xff]
      %v1288 = vld [vmem:[%s1280 + $0x38] sm:$0xff]
      %v1289 = vadd.f32 %v1121, %v1281
      %v1290 = vadd.f32 %v1124, %v1282
      %v1291 = vadd.f32 %v1172, %v1283
      %v1292 = vadd.f32 %v1175, %v1284
      %v1293 = vadd.f32 %v1223, %v1285
      %v1294 = vadd.f32 %v1226, %v1286
      %v1295 = vadd.f32 %v1274, %v1287
      %v1296 = vadd.f32 %v1277, %v1288
      %v1297 = vsel %vm787, %v1289, -inf
      %1298 = vmax.xlane.f32.xlu0 %v1297
      %v1299 = vpop.xlane.xlu0 %1298
      %v1300 = vsel %vm787, %v1290, -inf
      %1301 = vmax.xlane.f32.xlu0 %v1300
      %v1302 = vpop.xlane.xlu0 %1301
      %v1303 = vsel %vm787, %v1291, -inf
      %1304 = vmax.xlane.f32.xlu0 %v1303
      %v1305 = vpop.xlane.xlu0 %1304
      %v1306 = vsel %vm787, %v1292, -inf
      %1307 = vmax.xlane.f32.xlu0 %v1306
      %v1308 = vpop.xlane.xlu0 %1307
      %v1309 = vsel %vm787, %v1293, -inf
      %1310 = vmax.xlane.f32.xlu0 %v1309
      %v1311 = vpop.xlane.xlu0 %1310
      %v1312 = vsel %vm787, %v1294, -inf
      %1313 = vmax.xlane.f32.xlu0 %v1312
      %v1314 = vpop.xlane.xlu0 %1313
      %v1315 = vsel %vm787, %v1295, -inf
      %1316 = vmax.xlane.f32.xlu0 %v1315
      %v1317 = vpop.xlane.xlu0 %1316
      %v1318 = vsel %vm787, %v1296, -inf
      %1319 = vmax.xlane.f32.xlu0 %v1318
      %v1320 = vpop.xlane.xlu0 %1319
      %v1321 = vsub.f32 %v1289, %v1299
      %v1322 = vsub.f32 %v1290, %v1302
      %v1323 = vsub.f32 %v1291, %v1305
      %v1324 = vsub.f32 %v1292, %v1308
      %v1325 = vsub.f32 %v1293, %v1311
      %v1326 = vsub.f32 %v1294, %v1314
      %v1327 = vsub.f32 %v1295, %v1317
      %v1328 = vsub.f32 %v1296, %v1320
      %v1329 = vmul.f32 %v1321, 1.442695
      %v1330 = vpow.pop %v1329
      %v1331 = vmul.f32 %v1322, 1.442695
      %v1332 = vpow.pop %v1331
      %v1333 = vmul.f32 %v1323, 1.442695
      %v1334 = vpow.pop %v1333
      %v1335 = vmul.f32 %v1324, 1.442695
      %v1336 = vpow.pop %v1335
      %v1337 = vmul.f32 %v1325, 1.442695
      %v1338 = vpow.pop %v1337
      %v1339 = vmul.f32 %v1326, 1.442695
      %v1340 = vpow.pop %v1339
      %v1341 = vmul.f32 %v1327, 1.442695
      %v1342 = vpow.pop %v1341
      %v1343 = vmul.f32 %v1328, 1.442695
      %v1344 = vpow.pop %v1343
      %v1345 = vsel %vm787, %v1330, 0.0
      %1346 = vadd.xlane.f32.xlu0 %v1345
      %v1347 = vpop.xlane.xlu0 %1346
      %v1348 = vsel %vm787, %v1332, 0.0
      %1349 = vadd.xlane.f32.xlu0 %v1348
      %v1350 = vpop.xlane.xlu0 %1349
      %v1351 = vsel %vm787, %v1334, 0.0
      %1352 = vadd.xlane.f32.xlu0 %v1351
      %v1353 = vpop.xlane.xlu0 %1352
      %v1354 = vsel %vm787, %v1336, 0.0
      %1355 = vadd.xlane.f32.xlu0 %v1354
      %v1356 = vpop.xlane.xlu0 %1355
      %v1357 = vsel %vm787, %v1338, 0.0
      %1358 = vadd.xlane.f32.xlu0 %v1357
      %v1359 = vpop.xlane.xlu0 %1358
      %v1360 = vsel %vm787, %v1340, 0.0
      %1361 = vadd.xlane.f32.xlu0 %v1360
      %v1362 = vpop.xlane.xlu0 %1361
      %v1363 = vsel %vm787, %v1342, 0.0
      %1364 = vadd.xlane.f32.xlu0 %v1363
      %v1365 = vpop.xlane.xlu0 %1364
      %v1366 = vsel %vm787, %v1344, 0.0
      %1367 = vadd.xlane.f32.xlu0 %v1366
      %v1368 = vpop.xlane.xlu0 %1367
      %v1369 = vrcp.pop %v1347
      %v1370 = vrcp.pop %v1350
      %v1371 = vrcp.pop %v1353
      %v1372 = vrcp.pop %v1356
      %v1373 = vrcp.pop %v1359
      %v1374 = vrcp.pop %v1362
      %v1375 = vrcp.pop %v1365
      %v1376 = vrcp.pop %v1368
      %v1377 = vmul.f32 %v1330, %v1369
      %v1378 = vmul.f32 %v1332, %v1370
      %v1379 = vmul.f32 %v1334, %v1371
      %v1380 = vmul.f32 %v1336, %v1372
      %v1381 = vmul.f32 %v1338, %v1373
      %v1382 = vmul.f32 %v1340, %v1374
      %v1383 = vmul.f32 %v1342, %v1375
      %v1384 = vmul.f32 %v1344, %v1376
      %v1385 = vpack.c.bf16 %v1378, %v1377
      %v1386 = vpack.c.bf16 %v1380, %v1379
      %v1387 = vpack.c.bf16 %v1382, %v1381
      %v1388 = vpack.c.bf16 %v1384, %v1383
      %1389 = vrot.lane.b32.xlu0 %v566, 56
      %v1390 = vpop.permute.xlu0 %1389
      %v1393 = vsel %vm787, %v1385, 0
      %1395 = vmatprep.subr.bf16.mxu0 0
      %1396 = vmatpush1.bf16.msra.mxu0 %v1390
      %1397 = vmatprep.subr.bf16.mxu0 0
      %1398 = vmatpush1.bf16.msra.mxu0 0
      %1399 = vmatprep.subr.bf16.mxu0 0
      %1400 = vmatpush1.bf16.msra.mxu0 0
      %1401 = vmatprep.subr.bf16.mxu0 0
      %1402 = vmatpush1.bf16.msra.mxu0 0
      %1403 = vmatprep.subr.bf16.mxu0 0
      %1404 = vmatpush1.bf16.msra.mxu0 0
      %1405 = vmatprep.subr.bf16.mxu0 0
      %1406 = vmatpush1.bf16.msra.mxu0 0
      %1407 = vmatprep.subr.bf16.mxu0 0
      %1408 = vmatpush1.bf16.msra.mxu0 0
      %1409 = vmatprep.subr.bf16.mxu0 0
      %1410 = vmatpush1.bf16.msra.mxu0 0
      %1411 = vmatprep.subr.bf16.mxu0 0
      %1412 = vmatpush1.bf16.msra.mxu0 0
      %1413 = vmatprep.subr.bf16.mxu0 0
      %1414 = vmatpush1.bf16.msra.mxu0 0
      %1415 = vmatprep.subr.bf16.mxu0 0
      %1416 = vmatpush1.bf16.msra.mxu0 0
      %1417 = vmatprep.subr.bf16.mxu0 0
      %1418 = vmatpush1.bf16.msra.mxu0 0
      %1419 = vmatprep.subr.bf16.mxu0 0
      %1420 = vmatpush1.bf16.msra.mxu0 0
      %1421 = vmatprep.subr.bf16.mxu0 0
      %1422 = vmatpush1.bf16.msra.mxu0 0
      %1423 = vmatprep.subr.bf16.mxu0 0
      %1424 = vmatpush1.bf16.msra.mxu0 0
      %1425 = vmatprep.subr.bf16.mxu0 0
      %1426 = vmatpush1.bf16.msra.mxu0 0
      %1427 = vmatprep.mubr.bf16.mxu0 0
      %1428 = vmatmul.mubr.bf16.gmra.mrb[0].mxu0 %v1393
      %v1429 = vpop.f32.mrb[0].mxu0
      %v1430 = vadd.f32 0.0, %v1429
      %v1431 = vpop.f32.mrb[0].mxu0
      %v1432 = vpop.f32.mrb[0].mxu0
      %v1433 = vadd.f32 0.0, %v1432
      %v1434 = vpop.f32.mrb[0].mxu0
      %1435 = vdwg.mxu0
      %1436 = vrot.lane.b32.xlu0 %v567, 56
      %v1437 = vpop.permute.xlu0 %1436
      %v1440 = vsel %vm787, %v1386, 0
      %1442 = vmatprep.subr.bf16.mxu0 0
      %1443 = vmatpush1.bf16.msra.mxu0 %v1437
      %1444 = vmatprep.subr.bf16.mxu0 0
      %1445 = vmatpush1.bf16.msra.mxu0 0
      %1446 = vmatprep.subr.bf16.mxu0 0
      %1447 = vmatpush1.bf16.msra.mxu0 0
      %1448 = vmatprep.subr.bf16.mxu0 0
      %1449 = vmatpush1.bf16.msra.mxu0 0
      %1450 = vmatprep.subr.bf16.mxu0 0
      %1451 = vmatpush1.bf16.msra.mxu0 0
      %1452 = vmatprep.subr.bf16.mxu0 0
      %1453 = vmatpush1.bf16.msra.mxu0 0
      %1454 = vmatprep.subr.bf16.mxu0 0
      %1455 = vmatpush1.bf16.msra.mxu0 0
      %1456 = vmatprep.subr.bf16.mxu0 0
      %1457 = vmatpush1.bf16.msra.mxu0 0
      %1458 = vmatprep.subr.bf16.mxu0 0
      %1459 = vmatpush1.bf16.msra.mxu0 0
      %1460 = vmatprep.subr.bf16.mxu0 0
      %1461 = vmatpush1.bf16.msra.mxu0 0
      %1462 = vmatprep.subr.bf16.mxu0 0
      %1463 = vmatpush1.bf16.msra.mxu0 0
      %1464 = vmatprep.subr.bf16.mxu0 0
      %1465 = vmatpush1.bf16.msra.mxu0 0
      %1466 = vmatprep.subr.bf16.mxu0 0
      %1467 = vmatpush1.bf16.msra.mxu0 0
      %1468 = vmatprep.subr.bf16.mxu0 0
      %1469 = vmatpush1.bf16.msra.mxu0 0
      %1470 = vmatprep.subr.bf16.mxu0 0
      %1471 = vmatpush1.bf16.msra.mxu0 0
      %1472 = vmatprep.subr.bf16.mxu0 0
      %1473 = vmatpush1.bf16.msra.mxu0 0
      %1474 = vmatprep.mubr.bf16.mxu0 0
      %1475 = vmatmul.mubr.bf16.gmra.mrb[0].mxu0 %v1440
      %v1476 = vpop.f32.mrb[0].mxu0
      %v1477 = vadd.f32 0.0, %v1476
      %v1478 = vpop.f32.mrb[0].mxu0
      %v1479 = vpop.f32.mrb[0].mxu0
      %v1480 = vadd.f32 0.0, %v1479
      %v1481 = vpop.f32.mrb[0].mxu0
      %1482 = vdwg.mxu0
      %1483 = vrot.lane.b32.xlu0 %v568, 56
      %v1484 = vpop.permute.xlu0 %1483
      %v1487 = vsel %vm787, %v1387, 0
      %1489 = vmatprep.subr.bf16.mxu0 0
      %1490 = vmatpush1.bf16.msra.mxu0 %v1484
      %1491 = vmatprep.subr.bf16.mxu0 0
      %1492 = vmatpush1.bf16.msra.mxu0 0
      %1493 = vmatprep.subr.bf16.mxu0 0
      %1494 = vmatpush1.bf16.msra.mxu0 0
      %1495 = vmatprep.subr.bf16.mxu0 0
      %1496 = vmatpush1.bf16.msra.mxu0 0
      %1497 = vmatprep.subr.bf16.mxu0 0
      %1498 = vmatpush1.bf16.msra.mxu0 0
      %1499 = vmatprep.subr.bf16.mxu0 0
      %1500 = vmatpush1.bf16.msra.mxu0 0
      %1501 = vmatprep.subr.bf16.mxu0 0
      %1502 = vmatpush1.bf16.msra.mxu0 0
      %1503 = vmatprep.subr.bf16.mxu0 0
      %1504 = vmatpush1.bf16.msra.mxu0 0
      %1505 = vmatprep.subr.bf16.mxu0 0
      %1506 = vmatpush1.bf16.msra.mxu0 0
      %1507 = vmatprep.subr.bf16.mxu0 0
      %1508 = vmatpush1.bf16.msra.mxu0 0
      %1509 = vmatprep.subr.bf16.mxu0 0
      %1510 = vmatpush1.bf16.msra.mxu0 0
      %1511 = vmatprep.subr.bf16.mxu0 0
      %1512 = vmatpush1.bf16.msra.mxu0 0
      %1513 = vmatprep.subr.bf16.mxu0 0
      %1514 = vmatpush1.bf16.msra.mxu0 0
      %1515 = vmatprep.subr.bf16.mxu0 0
      %1516 = vmatpush1.bf16.msra.mxu0 0
      %1517 = vmatprep.subr.bf16.mxu0 0
      %1518 = vmatpush1.bf16.msra.mxu0 0
      %1519 = vmatprep.subr.bf16.mxu0 0
      %1520 = vmatpush1.bf16.msra.mxu0 0
      %1521 = vmatprep.mubr.bf16.mxu0 0
      %1522 = vmatmul.mubr.bf16.gmra.mrb[0].mxu0 %v1487
      %v1523 = vpop.f32.mrb[0].mxu0
      %v1524 = vadd.f32 0.0, %v1523
      %v1525 = vpop.f32.mrb[0].mxu0
      %v1526 = vpop.f32.mrb[0].mxu0
      %v1527 = vadd.f32 0.0, %v1526
      %v1528 = vpop.f32.mrb[0].mxu0
      %1529 = vdwg.mxu0
      %1530 = vrot.lane.b32.xlu0 %v569, 56
      %v1531 = vpop.permute.xlu0 %1530
      %v1534 = vsel %vm787, %v1388, 0
      %1536 = vmatprep.subr.bf16.mxu0 0
      %1537 = vmatpush1.bf16.msra.mxu0 %v1531
      %1538 = vmatprep.subr.bf16.mxu0 0
      %1539 = vmatpush1.bf16.msra.mxu0 0
      %1540 = vmatprep.subr.bf16.mxu0 0
      %1541 = vmatpush1.bf16.msra.mxu0 0
      %1542 = vmatprep.subr.bf16.mxu0 0
      %1543 = vmatpush1.bf16.msra.mxu0 0
      %1544 = vmatprep.subr.bf16.mxu0 0
      %1545 = vmatpush1.bf16.msra.mxu0 0
      %1546 = vmatprep.subr.bf16.mxu0 0
      %1547 = vmatpush1.bf16.msra.mxu0 0
      %1548 = vmatprep.subr.bf16.mxu0 0
      %1549 = vmatpush1.bf16.msra.mxu0 0
      %1550 = vmatprep.subr.bf16.mxu0 0
      %1551 = vmatpush1.bf16.msra.mxu0 0
      %1552 = vmatprep.subr.bf16.mxu0 0
      %1553 = vmatpush1.bf16.msra.mxu0 0
      %1554 = vmatprep.subr.bf16.mxu0 0
      %1555 = vmatpush1.bf16.msra.mxu0 0
      %1556 = vmatprep.subr.bf16.mxu0 0
      %1557 = vmatpush1.bf16.msra.mxu0 0
      %1558 = vmatprep.subr.bf16.mxu0 0
      %1559 = vmatpush1.bf16.msra.mxu0 0
      %1560 = vmatprep.subr.bf16.mxu0 0
      %1561 = vmatpush1.bf16.msra.mxu0 0
      %1562 = vmatprep.subr.bf16.mxu0 0
      %1563 = vmatpush1.bf16.msra.mxu0 0
      %1564 = vmatprep.subr.bf16.mxu0 0
      %1565 = vmatpush1.bf16.msra.mxu0 0
      %1566 = vmatprep.subr.bf16.mxu0 0
      %1567 = vmatpush1.bf16.msra.mxu0 0
      %1568 = vmatprep.mubr.bf16.mxu0 0
      %1569 = vmatmul.mubr.bf16.gmra.mrb[0].mxu0 %v1534
      %v1570 = vpop.f32.mrb[0].mxu0
      %v1571 = vadd.f32 0.0, %v1570
      %v1572 = vpop.f32.mrb[0].mxu0
      %v1573 = vpop.f32.mrb[0].mxu0
      %v1574 = vadd.f32 0.0, %v1573
      %v1575 = vpop.f32.mrb[0].mxu0
      %1576 = vdwg.mxu0
      %v1577 = vpack.c.bf16 %v1433, %v1430
      %v1578 = vpack.c.bf16 %v1480, %v1477
      %v1579 = vpack.c.bf16 %v1527, %v1524
      %v1580 = vpack.c.bf16 %v1574, %v1571
      %1585 = vrot.lane.b32.xlu0 %v1577, 8
      %v1586 = vpop.permute.xlu0 %1585
      %1587 = vrot.lane.b32.xlu0 %v1578, 8
      %v1588 = vpop.permute.xlu0 %1587
      %1589 = vrot.lane.b32.xlu0 %v1579, 8
      %v1590 = vpop.permute.xlu0 %1589
      %1591 = vrot.lane.b32.xlu0 %v1580, 8
      %v1592 = vpop.permute.xlu0 %1591
      %vm1597 = vcmask 130112
      %1598 = vst.msk [vmem:[#allocation2] sm:$0xff] %vm1597, %v1586
      %1599 = vst.msk [vmem:[#allocation2 + $0x8] sm:$0xff] %vm1597, %v1588
      %1600 = vst.msk [vmem:[#allocation2 + $0x10] sm:$0xff] %vm1597, %v1590
      %1601 = vst.msk [vmem:[#allocation2 + $0x18] sm:$0xff] %vm1597, %v1592
      %1602 = vrot.lane.b32.xlu0 %v566, 112
      %v1603 = vpop.permute.xlu0 %1602
      %1604 = vrot.lane.b32.xlu0 %v566, 80
      %v1605 = vpop.permute.xlu0 %1604
      %v1607 = vsel %vm573, %v1603, 0
      %v1610 = vsel %vm573, %v1605, 0
      %1612 = vmatprep.subr.bf16.mxu0 0
      %1613 = vmatpush1.bf16.xpose.msra.mxu0 %v1610
      %1614 = vmatprep.subr.bf16.mxu0 0
      %1615 = vmatpush1.bf16.xpose.msra.mxu0 0
      %1616 = vmatprep.subr.bf16.mxu0 0
      %1617 = vmatpush1.bf16.xpose.msra.mxu0 0
      %1618 = vmatprep.subr.bf16.mxu0 0
      %1619 = vmatpush1.bf16.xpose.msra.mxu0 0
      %1620 = vmatprep.subr.bf16.mxu0 0
      %1621 = vmatpush1.bf16.xpose.msra.mxu0 0
      %1622 = vmatprep.subr.bf16.mxu0 0
      %1623 = vmatpush1.bf16.xpose.msra.mxu0 0
      %1624 = vmatprep.subr.bf16.mxu0 0
      %1625 = vmatpush1.bf16.xpose.msra.mxu0 0
      %1626 = vmatprep.subr.bf16.mxu0 0
      %1627 = vmatpush1.bf16.xpose.msra.mxu0 0
      %1628 = vmatprep.subr.bf16.mxu0 0
      %1629 = vmatpush1.bf16.xpose.msra.mxu0 0
      %1630 = vmatprep.subr.bf16.mxu0 0
      %1631 = vmatpush1.bf16.xpose.msra.mxu0 0
      %1632 = vmatprep.subr.bf16.mxu0 0
      %1633 = vmatpush1.bf16.xpose.msra.mxu0 0
      %1634 = vmatprep.subr.bf16.mxu0 0
      %1635 = vmatpush1.bf16.xpose.msra.mxu0 0
      %1636 = vmatprep.subr.bf16.mxu0 0
      %1637 = vmatpush1.bf16.xpose.msra.mxu0 0
      %1638 = vmatprep.subr.bf16.mxu0 0
      %1639 = vmatpush1.bf16.xpose.msra.mxu0 0
      %1640 = vmatprep.subr.bf16.mxu0 0
      %1641 = vmatpush1.bf16.xpose.msra.mxu0 0
      %1642 = vmatprep.subr.bf16.mxu0 0
      %1643 = vmatpush1.bf16.xpose.msra.mxu0 0
      %1644 = vmatprep.mubr.bf16.mxu0 0
      %1645 = vmatmul.mubr.bf16.gmra.mrb[0].mxu0 %v1607
      %v1646 = vpop.f32.mrb[0].mxu0
      %v1647 = vadd.f32 0.0, %v1646
      %v1648 = vpop.f32.mrb[0].mxu0
      %v1649 = vpop.f32.mrb[0].mxu0
      %v1650 = vadd.f32 0.0, %v1649
      %v1651 = vpop.f32.mrb[0].mxu0
      %1652 = vdwg.mxu0
      %1653 = vrot.lane.b32.xlu0 %v567, 112
      %v1654 = vpop.permute.xlu0 %1653
      %1655 = vrot.lane.b32.xlu0 %v567, 80
      %v1656 = vpop.permute.xlu0 %1655
      %v1658 = vsel %vm573, %v1654, 0
      %v1661 = vsel %vm573, %v1656, 0
      %1663 = vmatprep.subr.bf16.mxu0 0
      %1664 = vmatpush1.bf16.xpose.msra.mxu0 %v1661
      %1665 = vmatprep.subr.bf16.mxu0 0
      %1666 = vmatpush1.bf16.xpose.msra.mxu0 0
      %1667 = vmatprep.subr.bf16.mxu0 0
      %1668 = vmatpush1.bf16.xpose.msra.mxu0 0
      %1669 = vmatprep.subr.bf16.mxu0 0
      %1670 = vmatpush1.bf16.xpose.msra.mxu0 0
      %1671 = vmatprep.subr.bf16.mxu0 0
      %1672 = vmatpush1.bf16.xpose.msra.mxu0 0
      %1673 = vmatprep.subr.bf16.mxu0 0
      %1674 = vmatpush1.bf16.xpose.msra.mxu0 0
      %1675 = vmatprep.subr.bf16.mxu0 0
      %1676 = vmatpush1.bf16.xpose.msra.mxu0 0
      %1677 = vmatprep.subr.bf16.mxu0 0
      %1678 = vmatpush1.bf16.xpose.msra.mxu0 0
      %1679 = vmatprep.subr.bf16.mxu0 0
      %1680 = vmatpush1.bf16.xpose.msra.mxu0 0
      %1681 = vmatprep.subr.bf16.mxu0 0
      %1682 = vmatpush1.bf16.xpose.msra.mxu0 0
      %1683 = vmatprep.subr.bf16.mxu0 0
      %1684 = vmatpush1.bf16.xpose.msra.mxu0 0
      %1685 = vmatprep.subr.bf16.mxu0 0
      %1686 = vmatpush1.bf16.xpose.msra.mxu0 0
      %1687 = vmatprep.subr.bf16.mxu0 0
      %1688 = vmatpush1.bf16.xpose.msra.mxu0 0
      %1689 = vmatprep.subr.bf16.mxu0 0
      %1690 = vmatpush1.bf16.xpose.msra.mxu0 0
      %1691 = vmatprep.subr.bf16.mxu0 0
      %1692 = vmatpush1.bf16.xpose.msra.mxu0 0
      %1693 = vmatprep.subr.bf16.mxu0 0
      %1694 = vmatpush1.bf16.xpose.msra.mxu0 0
      %1695 = vmatprep.mubr.bf16.mxu0 0
      %1696 = vmatmul.mubr.bf16.gmra.mrb[0].mxu0 %v1658
      %v1697 = vpop.f32.mrb[0].mxu0
      %v1698 = vadd.f32 0.0, %v1697
      %v1699 = vpop.f32.mrb[0].mxu0
      %v1700 = vpop.f32.mrb[0].mxu0
      %v1701 = vadd.f32 0.0, %v1700
      %v1702 = vpop.f32.mrb[0].mxu0
      %1703 = vdwg.mxu0
      %1704 = vrot.lane.b32.xlu0 %v568, 112
      %v1705 = vpop.permute.xlu0 %1704
      %1706 = vrot.lane.b32.xlu0 %v568, 80
      %v1707 = vpop.permute.xlu0 %1706
      %v1709 = vsel %vm573, %v1705, 0
      %v1712 = vsel %vm573, %v1707, 0
      %1714 = vmatprep.subr.bf16.mxu0 0
      %1715 = vmatpush1.bf16.xpose.msra.mxu0 %v1712
      %1716 = vmatprep.subr.bf16.mxu0 0
      %1717 = vmatpush1.bf16.xpose.msra.mxu0 0
      %1718 = vmatprep.subr.bf16.mxu0 0
      %1719 = vmatpush1.bf16.xpose.msra.mxu0 0
      %1720 = vmatprep.subr.bf16.mxu0 0
      %1721 = vmatpush1.bf16.xpose.msra.mxu0 0
      %1722 = vmatprep.subr.bf16.mxu0 0
      %1723 = vmatpush1.bf16.xpose.msra.mxu0 0
      %1724 = vmatprep.subr.bf16.mxu0 0
      %1725 = vmatpush1.bf16.xpose.msra.mxu0 0
      %1726 = vmatprep.subr.bf16.mxu0 0
      %1727 = vmatpush1.bf16.xpose.msra.mxu0 0
      %1728 = vmatprep.subr.bf16.mxu0 0
      %1729 = vmatpush1.bf16.xpose.msra.mxu0 0
      %1730 = vmatprep.subr.bf16.mxu0 0
      %1731 = vmatpush1.bf16.xpose.msra.mxu0 0
      %1732 = vmatprep.subr.bf16.mxu0 0
      %1733 = vmatpush1.bf16.xpose.msra.mxu0 0
      %1734 = vmatprep.subr.bf16.mxu0 0
      %1735 = vmatpush1.bf16.xpose.msra.mxu0 0
      %1736 = vmatprep.subr.bf16.mxu0 0
      %1737 = vmatpush1.bf16.xpose.msra.mxu0 0
      %1738 = vmatprep.subr.bf16.mxu0 0
      %1739 = vmatpush1.bf16.xpose.msra.mxu0 0
      %1740 = vmatprep.subr.bf16.mxu0 0
      %1741 = vmatpush1.bf16.xpose.msra.mxu0 0
      %1742 = vmatprep.subr.bf16.mxu0 0
      %1743 = vmatpush1.bf16.xpose.msra.mxu0 0
      %1744 = vmatprep.subr.bf16.mxu0 0
      %1745 = vmatpush1.bf16.xpose.msra.mxu0 0
      %1746 = vmatprep.mubr.bf16.mxu0 0
      %1747 = vmatmul.mubr.bf16.gmra.mrb[0].mxu0 %v1709
      %v1748 = vpop.f32.mrb[0].mxu0
      %v1749 = vadd.f32 0.0, %v1748
      %v1750 = vpop.f32.mrb[0].mxu0
      %v1751 = vpop.f32.mrb[0].mxu0
      %v1752 = vadd.f32 0.0, %v1751
      %v1753 = vpop.f32.mrb[0].mxu0
      %1754 = vdwg.mxu0
      %1755 = vrot.lane.b32.xlu0 %v569, 112
      %v1756 = vpop.permute.xlu0 %1755
      %1757 = vrot.lane.b32.xlu0 %v569, 80
      %v1758 = vpop.permute.xlu0 %1757
      %v1760 = vsel %vm573, %v1756, 0
      %v1763 = vsel %vm573, %v1758, 0
      %1765 = vmatprep.subr.bf16.mxu0 0
      %1766 = vmatpush1.bf16.xpose.msra.mxu0 %v1763
      %1767 = vmatprep.subr.bf16.mxu0 0
      %1768 = vmatpush1.bf16.xpose.msra.mxu0 0
      %1769 = vmatprep.subr.bf16.mxu0 0
      %1770 = vmatpush1.bf16.xpose.msra.mxu0 0
      %1771 = vmatprep.subr.bf16.mxu0 0
      %1772 = vmatpush1.bf16.xpose.msra.mxu0 0
      %1773 = vmatprep.subr.bf16.mxu0 0
      %1774 = vmatpush1.bf16.xpose.msra.mxu0 0
      %1775 = vmatprep.subr.bf16.mxu0 0
      %1776 = vmatpush1.bf16.xpose.msra.mxu0 0
      %1777 = vmatprep.subr.bf16.mxu0 0
      %1778 = vmatpush1.bf16.xpose.msra.mxu0 0
      %1779 = vmatprep.subr.bf16.mxu0 0
      %1780 = vmatpush1.bf16.xpose.msra.mxu0 0
      %1781 = vmatprep.subr.bf16.mxu0 0
      %1782 = vmatpush1.bf16.xpose.msra.mxu0 0
      %1783 = vmatprep.subr.bf16.mxu0 0
      %1784 = vmatpush1.bf16.xpose.msra.mxu0 0
      %1785 = vmatprep.subr.bf16.mxu0 0
      %1786 = vmatpush1.bf16.xpose.msra.mxu0 0
      %1787 = vmatprep.subr.bf16.mxu0 0
      %1788 = vmatpush1.bf16.xpose.msra.mxu0 0
      %1789 = vmatprep.subr.bf16.mxu0 0
      %1790 = vmatpush1.bf16.xpose.msra.mxu0 0
      %1791 = vmatprep.subr.bf16.mxu0 0
      %1792 = vmatpush1.bf16.xpose.msra.mxu0 0
      %1793 = vmatprep.subr.bf16.mxu0 0
      %1794 = vmatpush1.bf16.xpose.msra.mxu0 0
      %1795 = vmatprep.subr.bf16.mxu0 0
      %1796 = vmatpush1.bf16.xpose.msra.mxu0 0
      %1797 = vmatprep.mubr.bf16.mxu0 0
      %1798 = vmatmul.mubr.bf16.gmra.mrb[0].mxu0 %v1760
      %v1799 = vpop.f32.mrb[0].mxu0
      %v1800 = vadd.f32 0.0, %v1799
      %v1801 = vpop.f32.mrb[0].mxu0
      %v1802 = vpop.f32.mrb[0].mxu0
      %v1803 = vadd.f32 0.0, %v1802
      %v1804 = vpop.f32.mrb[0].mxu0
      %1805 = vdwg.mxu0
      %s1806 = scalar_lea.vmem %s5, 128
      %v1807 = vld [vmem:[%s1806] sm:$0xff]
      %v1808 = vld [vmem:[%s1806 + $0x8] sm:$0xff]
      %v1809 = vld [vmem:[%s1806 + $0x10] sm:$0xff]
      %v1810 = vld [vmem:[%s1806 + $0x18] sm:$0xff]
      %v1811 = vld [vmem:[%s1806 + $0x20] sm:$0xff]
      %v1812 = vld [vmem:[%s1806 + $0x28] sm:$0xff]
      %v1813 = vld [vmem:[%s1806 + $0x30] sm:$0xff]
      %v1814 = vld [vmem:[%s1806 + $0x38] sm:$0xff]
      %v1815 = vadd.f32 %v1647, %v1807
      %v1816 = vadd.f32 %v1650, %v1808
      %v1817 = vadd.f32 %v1698, %v1809
      %v1818 = vadd.f32 %v1701, %v1810
      %v1819 = vadd.f32 %v1749, %v1811
      %v1820 = vadd.f32 %v1752, %v1812
      %v1821 = vadd.f32 %v1800, %v1813
      %v1822 = vadd.f32 %v1803, %v1814
      %v1823 = vsel %vm787, %v1815, -inf
      %1824 = vmax.xlane.f32.xlu0 %v1823
      %v1825 = vpop.xlane.xlu0 %1824
      %v1826 = vsel %vm787, %v1816, -inf
      %1827 = vmax.xlane.f32.xlu0 %v1826
      %v1828 = vpop.xlane.xlu0 %1827
      %v1829 = vsel %vm787, %v1817, -inf
      %1830 = vmax.xlane.f32.xlu0 %v1829
      %v1831 = vpop.xlane.xlu0 %1830
      %v1832 = vsel %vm787, %v1818, -inf
      %1833 = vmax.xlane.f32.xlu0 %v1832
      %v1834 = vpop.xlane.xlu0 %1833
      %v1835 = vsel %vm787, %v1819, -inf
      %1836 = vmax.xlane.f32.xlu0 %v1835
      %v1837 = vpop.xlane.xlu0 %1836
      %v1838 = vsel %vm787, %v1820, -inf
      %1839 = vmax.xlane.f32.xlu0 %v1838
      %v1840 = vpop.xlane.xlu0 %1839
      %v1841 = vsel %vm787, %v1821, -inf
      %1842 = vmax.xlane.f32.xlu0 %v1841
      %v1843 = vpop.xlane.xlu0 %1842
      %v1844 = vsel %vm787, %v1822, -inf
      %1845 = vmax.xlane.f32.xlu0 %v1844
      %v1846 = vpop.xlane.xlu0 %1845
      %v1847 = vsub.f32 %v1815, %v1825
      %v1848 = vsub.f32 %v1816, %v1828
      %v1849 = vsub.f32 %v1817, %v1831
      %v1850 = vsub.f32 %v1818, %v1834
      %v1851 = vsub.f32 %v1819, %v1837
      %v1852 = vsub.f32 %v1820, %v1840
      %v1853 = vsub.f32 %v1821, %v1843
      %v1854 = vsub.f32 %v1822, %v1846
      %v1855 = vmul.f32 %v1847, 1.442695
      %v1856 = vpow.pop %v1855
      %v1857 = vmul.f32 %v1848, 1.442695
      %v1858 = vpow.pop %v1857
      %v1859 = vmul.f32 %v1849, 1.442695
      %v1860 = vpow.pop %v1859
      %v1861 = vmul.f32 %v1850, 1.442695
      %v1862 = vpow.pop %v1861
      %v1863 = vmul.f32 %v1851, 1.442695
      %v1864 = vpow.pop %v1863
      %v1865 = vmul.f32 %v1852, 1.442695
      %v1866 = vpow.pop %v1865
      %v1867 = vmul.f32 %v1853, 1.442695
      %v1868 = vpow.pop %v1867
      %v1869 = vmul.f32 %v1854, 1.442695
      %v1870 = vpow.pop %v1869
      %v1871 = vsel %vm787, %v1856, 0.0
      %1872 = vadd.xlane.f32.xlu0 %v1871
      %v1873 = vpop.xlane.xlu0 %1872
      %v1874 = vsel %vm787, %v1858, 0.0
      %1875 = vadd.xlane.f32.xlu0 %v1874
      %v1876 = vpop.xlane.xlu0 %1875
      %v1877 = vsel %vm787, %v1860, 0.0
      %1878 = vadd.xlane.f32.xlu0 %v1877
      %v1879 = vpop.xlane.xlu0 %1878
      %v1880 = vsel %vm787, %v1862, 0.0
      %1881 = vadd.xlane.f32.xlu0 %v1880
      %v1882 = vpop.xlane.xlu0 %1881
      %v1883 = vsel %vm787, %v1864, 0.0
      %1884 = vadd.xlane.f32.xlu0 %v1883
      %v1885 = vpop.xlane.xlu0 %1884
      %v1886 = vsel %vm787, %v1866, 0.0
      %1887 = vadd.xlane.f32.xlu0 %v1886
      %v1888 = vpop.xlane.xlu0 %1887
      %v1889 = vsel %vm787, %v1868, 0.0
      %1890 = vadd.xlane.f32.xlu0 %v1889
      %v1891 = vpop.xlane.xlu0 %1890
      %v1892 = vsel %vm787, %v1870, 0.0
      %1893 = vadd.xlane.f32.xlu0 %v1892
      %v1894 = vpop.xlane.xlu0 %1893
      %v1895 = vrcp.pop %v1873
      %v1896 = vrcp.pop %v1876
      %v1897 = vrcp.pop %v1879
      %v1898 = vrcp.pop %v1882
      %v1899 = vrcp.pop %v1885
      %v1900 = vrcp.pop %v1888
      %v1901 = vrcp.pop %v1891
      %v1902 = vrcp.pop %v1894
      %v1903 = vmul.f32 %v1856, %v1895
      %v1904 = vmul.f32 %v1858, %v1896
      %v1905 = vmul.f32 %v1860, %v1897
      %v1906 = vmul.f32 %v1862, %v1898
      %v1907 = vmul.f32 %v1864, %v1899
      %v1908 = vmul.f32 %v1866, %v1900
      %v1909 = vmul.f32 %v1868, %v1901
      %v1910 = vmul.f32 %v1870, %v1902
      %v1911 = vpack.c.bf16 %v1904, %v1903
      %v1912 = vpack.c.bf16 %v1906, %v1905
      %v1913 = vpack.c.bf16 %v1908, %v1907
      %v1914 = vpack.c.bf16 %v1910, %v1909
      %1915 = vrot.lane.b32.xlu0 %v566, 48
      %v1916 = vpop.permute.xlu0 %1915
      %v1919 = vsel %vm787, %v1911, 0
      %1921 = vmatprep.subr.bf16.mxu0 0
      %1922 = vmatpush1.bf16.msra.mxu0 %v1916
      %1923 = vmatprep.subr.bf16.mxu0 0
      %1924 = vmatpush1.bf16.msra.mxu0 0
      %1925 = vmatprep.subr.bf16.mxu0 0
      %1926 = vmatpush1.bf16.msra.mxu0 0
      %1927 = vmatprep.subr.bf16.mxu0 0
      %1928 = vmatpush1.bf16.msra.mxu0 0
      %1929 = vmatprep.subr.bf16.mxu0 0
      %1930 = vmatpush1.bf16.msra.mxu0 0
      %1931 = vmatprep.subr.bf16.mxu0 0
      %1932 = vmatpush1.bf16.msra.mxu0 0
      %1933 = vmatprep.subr.bf16.mxu0 0
      %1934 = vmatpush1.bf16.msra.mxu0 0
      %1935 = vmatprep.subr.bf16.mxu0 0
      %1936 = vmatpush1.bf16.msra.mxu0 0
      %1937 = vmatprep.subr.bf16.mxu0 0
      %1938 = vmatpush1.bf16.msra.mxu0 0
      %1939 = vmatprep.subr.bf16.mxu0 0
      %1940 = vmatpush1.bf16.msra.mxu0 0
      %1941 = vmatprep.subr.bf16.mxu0 0
      %1942 = vmatpush1.bf16.msra.mxu0 0
      %1943 = vmatprep.subr.bf16.mxu0 0
      %1944 = vmatpush1.bf16.msra.mxu0 0
      %1945 = vmatprep.subr.bf16.mxu0 0
      %1946 = vmatpush1.bf16.msra.mxu0 0
      %1947 = vmatprep.subr.bf16.mxu0 0
      %1948 = vmatpush1.bf16.msra.mxu0 0
      %1949 = vmatprep.subr.bf16.mxu0 0
      %1950 = vmatpush1.bf16.msra.mxu0 0
      %1951 = vmatprep.subr.bf16.mxu0 0
      %1952 = vmatpush1.bf16.msra.mxu0 0
      %1953 = vmatprep.mubr.bf16.mxu0 0
      %1954 = vmatmul.mubr.bf16.gmra.mrb[0].mxu0 %v1919
      %v1955 = vpop.f32.mrb[0].mxu0
      %v1956 = vadd.f32 0.0, %v1955
      %v1957 = vpop.f32.mrb[0].mxu0
      %v1958 = vpop.f32.mrb[0].mxu0
      %v1959 = vadd.f32 0.0, %v1958
      %v1960 = vpop.f32.mrb[0].mxu0
      %1961 = vdwg.mxu0
      %1962 = vrot.lane.b32.xlu0 %v567, 48
      %v1963 = vpop.permute.xlu0 %1962
      %v1966 = vsel %vm787, %v1912, 0
      %1968 = vmatprep.subr.bf16.mxu0 0
      %1969 = vmatpush1.bf16.msra.mxu0 %v1963
      %1970 = vmatprep.subr.bf16.mxu0 0
      %1971 = vmatpush1.bf16.msra.mxu0 0
      %1972 = vmatprep.subr.bf16.mxu0 0
      %1973 = vmatpush1.bf16.msra.mxu0 0
      %1974 = vmatprep.subr.bf16.mxu0 0
      %1975 = vmatpush1.bf16.msra.mxu0 0
      %1976 = vmatprep.subr.bf16.mxu0 0
      %1977 = vmatpush1.bf16.msra.mxu0 0
      %1978 = vmatprep.subr.bf16.mxu0 0
      %1979 = vmatpush1.bf16.msra.mxu0 0
      %1980 = vmatprep.subr.bf16.mxu0 0
      %1981 = vmatpush1.bf16.msra.mxu0 0
      %1982 = vmatprep.subr.bf16.mxu0 0
      %1983 = vmatpush1.bf16.msra.mxu0 0
      %1984 = vmatprep.subr.bf16.mxu0 0
      %1985 = vmatpush1.bf16.msra.mxu0 0
      %1986 = vmatprep.subr.bf16.mxu0 0
      %1987 = vmatpush1.bf16.msra.mxu0 0
      %1988 = vmatprep.subr.bf16.mxu0 0
      %1989 = vmatpush1.bf16.msra.mxu0 0
      %1990 = vmatprep.subr.bf16.mxu0 0
      %1991 = vmatpush1.bf16.msra.mxu0 0
      %1992 = vmatprep.subr.bf16.mxu0 0
      %1993 = vmatpush1.bf16.msra.mxu0 0
      %1994 = vmatprep.subr.bf16.mxu0 0
      %1995 = vmatpush1.bf16.msra.mxu0 0
      %1996 = vmatprep.subr.bf16.mxu0 0
      %1997 = vmatpush1.bf16.msra.mxu0 0
      %1998 = vmatprep.subr.bf16.mxu0 0
      %1999 = vmatpush1.bf16.msra.mxu0 0
      %2000 = vmatprep.mubr.bf16.mxu0 0
      %2001 = vmatmul.mubr.bf16.gmra.mrb[0].mxu0 %v1966
      %v2002 = vpop.f32.mrb[0].mxu0
      %v2003 = vadd.f32 0.0, %v2002
      %v2004 = vpop.f32.mrb[0].mxu0
      %v2005 = vpop.f32.mrb[0].mxu0
      %v2006 = vadd.f32 0.0, %v2005
      %v2007 = vpop.f32.mrb[0].mxu0
      %2008 = vdwg.mxu0
      %2009 = vrot.lane.b32.xlu0 %v568, 48
      %v2010 = vpop.permute.xlu0 %2009
      %v2013 = vsel %vm787, %v1913, 0
      %2015 = vmatprep.subr.bf16.mxu0 0
      %2016 = vmatpush1.bf16.msra.mxu0 %v2010
      %2017 = vmatprep.subr.bf16.mxu0 0
      %2018 = vmatpush1.bf16.msra.mxu0 0
      %2019 = vmatprep.subr.bf16.mxu0 0
      %2020 = vmatpush1.bf16.msra.mxu0 0
      %2021 = vmatprep.subr.bf16.mxu0 0
      %2022 = vmatpush1.bf16.msra.mxu0 0
      %2023 = vmatprep.subr.bf16.mxu0 0
      %2024 = vmatpush1.bf16.msra.mxu0 0
      %2025 = vmatprep.subr.bf16.mxu0 0
      %2026 = vmatpush1.bf16.msra.mxu0 0
      %2027 = vmatprep.subr.bf16.mxu0 0
      %2028 = vmatpush1.bf16.msra.mxu0 0
      %2029 = vmatprep.subr.bf16.mxu0 0
      %2030 = vmatpush1.bf16.msra.mxu0 0
      %2031 = vmatprep.subr.bf16.mxu0 0
      %2032 = vmatpush1.bf16.msra.mxu0 0
      %2033 = vmatprep.subr.bf16.mxu0 0
      %2034 = vmatpush1.bf16.msra.mxu0 0
      %2035 = vmatprep.subr.bf16.mxu0 0
      %2036 = vmatpush1.bf16.msra.mxu0 0
      %2037 = vmatprep.subr.bf16.mxu0 0
      %2038 = vmatpush1.bf16.msra.mxu0 0
      %2039 = vmatprep.subr.bf16.mxu0 0
      %2040 = vmatpush1.bf16.msra.mxu0 0
      %2041 = vmatprep.subr.bf16.mxu0 0
      %2042 = vmatpush1.bf16.msra.mxu0 0
      %2043 = vmatprep.subr.bf16.mxu0 0
      %2044 = vmatpush1.bf16.msra.mxu0 0
      %2045 = vmatprep.subr.bf16.mxu0 0
      %2046 = vmatpush1.bf16.msra.mxu0 0
      %2047 = vmatprep.mubr.bf16.mxu0 0
      %2048 = vmatmul.mubr.bf16.gmra.mrb[0].mxu0 %v2013
      %v2049 = vpop.f32.mrb[0].mxu0
      %v2050 = vadd.f32 0.0, %v2049
      %v2051 = vpop.f32.mrb[0].mxu0
      %v2052 = vpop.f32.mrb[0].mxu0
      %v2053 = vadd.f32 0.0, %v2052
      %v2054 = vpop.f32.mrb[0].mxu0
      %2055 = vdwg.mxu0
      %2056 = vrot.lane.b32.xlu0 %v569, 48
      %v2057 = vpop.permute.xlu0 %2056
      %v2060 = vsel %vm787, %v1914, 0
      %2062 = vmatprep.subr.bf16.mxu0 0
      %2063 = vmatpush1.bf16.msra.mxu0 %v2057
      %2064 = vmatprep.subr.bf16.mxu0 0
      %2065 = vmatpush1.bf16.msra.mxu0 0
      %2066 = vmatprep.subr.bf16.mxu0 0
      %2067 = vmatpush1.bf16.msra.mxu0 0
      %2068 = vmatprep.subr.bf16.mxu0 0
      %2069 = vmatpush1.bf16.msra.mxu0 0
      %2070 = vmatprep.subr.bf16.mxu0 0
      %2071 = vmatpush1.bf16.msra.mxu0 0
      %2072 = vmatprep.subr.bf16.mxu0 0
      %2073 = vmatpush1.bf16.msra.mxu0 0
      %2074 = vmatprep.subr.bf16.mxu0 0
      %2075 = vmatpush1.bf16.msra.mxu0 0
      %2076 = vmatprep.subr.bf16.mxu0 0
      %2077 = vmatpush1.bf16.msra.mxu0 0
      %2078 = vmatprep.subr.bf16.mxu0 0
      %2079 = vmatpush1.bf16.msra.mxu0 0
      %2080 = vmatprep.subr.bf16.mxu0 0
      %2081 = vmatpush1.bf16.msra.mxu0 0
      %2082 = vmatprep.subr.bf16.mxu0 0
      %2083 = vmatpush1.bf16.msra.mxu0 0
      %2084 = vmatprep.subr.bf16.mxu0 0
      %2085 = vmatpush1.bf16.msra.mxu0 0
      %2086 = vmatprep.subr.bf16.mxu0 0
      %2087 = vmatpush1.bf16.msra.mxu0 0
      %2088 = vmatprep.subr.bf16.mxu0 0
      %2089 = vmatpush1.bf16.msra.mxu0 0
      %2090 = vmatprep.subr.bf16.mxu0 0
      %2091 = vmatpush1.bf16.msra.mxu0 0
      %2092 = vmatprep.subr.bf16.mxu0 0
      %2093 = vmatpush1.bf16.msra.mxu0 0
      %2094 = vmatprep.mubr.bf16.mxu0 0
      %2095 = vmatmul.mubr.bf16.gmra.mrb[0].mxu0 %v2060
      %v2096 = vpop.f32.mrb[0].mxu0
      %v2097 = vadd.f32 0.0, %v2096
      %v2098 = vpop.f32.mrb[0].mxu0
      %v2099 = vpop.f32.mrb[0].mxu0
      %v2100 = vadd.f32 0.0, %v2099
      %v2101 = vpop.f32.mrb[0].mxu0
      %2102 = vdwg.mxu0
      %v2103 = vpack.c.bf16 %v1959, %v1956
      %v2104 = vpack.c.bf16 %v2006, %v2003
      %v2105 = vpack.c.bf16 %v2053, %v2050
      %v2106 = vpack.c.bf16 %v2100, %v2097
      %2111 = vrot.lane.b32.xlu0 %v2103, 16
      %v2112 = vpop.permute.xlu0 %2111
      %2113 = vrot.lane.b32.xlu0 %v2104, 16
      %v2114 = vpop.permute.xlu0 %2113
      %2115 = vrot.lane.b32.xlu0 %v2105, 16
      %v2116 = vpop.permute.xlu0 %2115
      %2117 = vrot.lane.b32.xlu0 %v2106, 16
      %v2118 = vpop.permute.xlu0 %2117
      %vm2123 = vcmask 195712
      %2124 = vst.msk [vmem:[#allocation2] sm:$0xff] %vm2123, %v2112
      %2125 = vst.msk [vmem:[#allocation2 + $0x8] sm:$0xff] %vm2123, %v2114
      %2126 = vst.msk [vmem:[#allocation2 + $0x10] sm:$0xff] %vm2123, %v2116
      %2127 = vst.msk [vmem:[#allocation2 + $0x18] sm:$0xff] %vm2123, %v2118
      %2128 = vrot.lane.b32.xlu0 %v566, 104
      %v2129 = vpop.permute.xlu0 %2128
      %2130 = vrot.lane.b32.xlu0 %v566, 72
      %v2131 = vpop.permute.xlu0 %2130
      %v2133 = vsel %vm573, %v2129, 0
      %v2136 = vsel %vm573, %v2131, 0
      %2138 = vmatprep.subr.bf16.mxu0 0
      %2139 = vmatpush1.bf16.xpose.msra.mxu0 %v2136
      %2140 = vmatprep.subr.bf16.mxu0 0
      %2141 = vmatpush1.bf16.xpose.msra.mxu0 0
      %2142 = vmatprep.subr.bf16.mxu0 0
      %2143 = vmatpush1.bf16.xpose.msra.mxu0 0
      %2144 = vmatprep.subr.bf16.mxu0 0
      %2145 = vmatpush1.bf16.xpose.msra.mxu0 0
      %2146 = vmatprep.subr.bf16.mxu0 0
      %2147 = vmatpush1.bf16.xpose.msra.mxu0 0
      %2148 = vmatprep.subr.bf16.mxu0 0
      %2149 = vmatpush1.bf16.xpose.msra.mxu0 0
      %2150 = vmatprep.subr.bf16.mxu0 0
      %2151 = vmatpush1.bf16.xpose.msra.mxu0 0
      %2152 = vmatprep.subr.bf16.mxu0 0
      %2153 = vmatpush1.bf16.xpose.msra.mxu0 0
      %2154 = vmatprep.subr.bf16.mxu0 0
      %2155 = vmatpush1.bf16.xpose.msra.mxu0 0
      %2156 = vmatprep.subr.bf16.mxu0 0
      %2157 = vmatpush1.bf16.xpose.msra.mxu0 0
      %2158 = vmatprep.subr.bf16.mxu0 0
      %2159 = vmatpush1.bf16.xpose.msra.mxu0 0
      %2160 = vmatprep.subr.bf16.mxu0 0
      %2161 = vmatpush1.bf16.xpose.msra.mxu0 0
      %2162 = vmatprep.subr.bf16.mxu0 0
      %2163 = vmatpush1.bf16.xpose.msra.mxu0 0
      %2164 = vmatprep.subr.bf16.mxu0 0
      %2165 = vmatpush1.bf16.xpose.msra.mxu0 0
      %2166 = vmatprep.subr.bf16.mxu0 0
      %2167 = vmatpush1.bf16.xpose.msra.mxu0 0
      %2168 = vmatprep.subr.bf16.mxu0 0
      %2169 = vmatpush1.bf16.xpose.msra.mxu0 0
      %2170 = vmatprep.mubr.bf16.mxu0 0
      %2171 = vmatmul.mubr.bf16.gmra.mrb[0].mxu0 %v2133
      %v2172 = vpop.f32.mrb[0].mxu0
      %v2173 = vadd.f32 0.0, %v2172
      %v2174 = vpop.f32.mrb[0].mxu0
      %v2175 = vpop.f32.mrb[0].mxu0
      %v2176 = vadd.f32 0.0, %v2175
      %v2177 = vpop.f32.mrb[0].mxu0
      %2178 = vdwg.mxu0
      %2179 = vrot.lane.b32.xlu0 %v567, 104
      %v2180 = vpop.permute.xlu0 %2179
      %2181 = vrot.lane.b32.xlu0 %v567, 72
      %v2182 = vpop.permute.xlu0 %2181
      %v2184 = vsel %vm573, %v2180, 0
      %v2187 = vsel %vm573, %v2182, 0
      %2189 = vmatprep.subr.bf16.mxu0 0
      %2190 = vmatpush1.bf16.xpose.msra.mxu0 %v2187
      %2191 = vmatprep.subr.bf16.mxu0 0
      %2192 = vmatpush1.bf16.xpose.msra.mxu0 0
      %2193 = vmatprep.subr.bf16.mxu0 0
      %2194 = vmatpush1.bf16.xpose.msra.mxu0 0
      %2195 = vmatprep.subr.bf16.mxu0 0
      %2196 = vmatpush1.bf16.xpose.msra.mxu0 0
      %2197 = vmatprep.subr.bf16.mxu0 0
      %2198 = vmatpush1.bf16.xpose.msra.mxu0 0
      %2199 = vmatprep.subr.bf16.mxu0 0
      %2200 = vmatpush1.bf16.xpose.msra.mxu0 0
      %2201 = vmatprep.subr.bf16.mxu0 0
      %2202 = vmatpush1.bf16.xpose.msra.mxu0 0
      %2203 = vmatprep.subr.bf16.mxu0 0
      %2204 = vmatpush1.bf16.xpose.msra.mxu0 0
      %2205 = vmatprep.subr.bf16.mxu0 0
      %2206 = vmatpush1.bf16.xpose.msra.mxu0 0
      %2207 = vmatprep.subr.bf16.mxu0 0
      %2208 = vmatpush1.bf16.xpose.msra.mxu0 0
      %2209 = vmatprep.subr.bf16.mxu0 0
      %2210 = vmatpush1.bf16.xpose.msra.mxu0 0
      %2211 = vmatprep.subr.bf16.mxu0 0
      %2212 = vmatpush1.bf16.xpose.msra.mxu0 0
      %2213 = vmatprep.subr.bf16.mxu0 0
      %2214 = vmatpush1.bf16.xpose.msra.mxu0 0
      %2215 = vmatprep.subr.bf16.mxu0 0
      %2216 = vmatpush1.bf16.xpose.msra.mxu0 0
      %2217 = vmatprep.subr.bf16.mxu0 0
      %2218 = vmatpush1.bf16.xpose.msra.mxu0 0
      %2219 = vmatprep.subr.bf16.mxu0 0
      %2220 = vmatpush1.bf16.xpose.msra.mxu0 0
      %2221 = vmatprep.mubr.bf16.mxu0 0
      %2222 = vmatmul.mubr.bf16.gmra.mrb[0].mxu0 %v2184
      %v2223 = vpop.f32.mrb[0].mxu0
      %v2224 = vadd.f32 0.0, %v2223
      %v2225 = vpop.f32.mrb[0].mxu0
      %v2226 = vpop.f32.mrb[0].mxu0
      %v2227 = vadd.f32 0.0, %v2226
      %v2228 = vpop.f32.mrb[0].mxu0
      %2229 = vdwg.mxu0
      %2230 = vrot.lane.b32.xlu0 %v568, 104
      %v2231 = vpop.permute.xlu0 %2230
      %2232 = vrot.lane.b32.xlu0 %v568, 72
      %v2233 = vpop.permute.xlu0 %2232
      %v2235 = vsel %vm573, %v2231, 0
      %v2238 = vsel %vm573, %v2233, 0
      %2240 = vmatprep.subr.bf16.mxu0 0
      %2241 = vmatpush1.bf16.xpose.msra.mxu0 %v2238
      %2242 = vmatprep.subr.bf16.mxu0 0
      %2243 = vmatpush1.bf16.xpose.msra.mxu0 0
      %2244 = vmatprep.subr.bf16.mxu0 0
      %2245 = vmatpush1.bf16.xpose.msra.mxu0 0
      %2246 = vmatprep.subr.bf16.mxu0 0
      %2247 = vmatpush1.bf16.xpose.msra.mxu0 0
      %2248 = vmatprep.subr.bf16.mxu0 0
      %2249 = vmatpush1.bf16.xpose.msra.mxu0 0
      %2250 = vmatprep.subr.bf16.mxu0 0
      %2251 = vmatpush1.bf16.xpose.msra.mxu0 0
      %2252 = vmatprep.subr.bf16.mxu0 0
      %2253 = vmatpush1.bf16.xpose.msra.mxu0 0
      %2254 = vmatprep.subr.bf16.mxu0 0
      %2255 = vmatpush1.bf16.xpose.msra.mxu0 0
      %2256 = vmatprep.subr.bf16.mxu0 0
      %2257 = vmatpush1.bf16.xpose.msra.mxu0 0
      %2258 = vmatprep.subr.bf16.mxu0 0
      %2259 = vmatpush1.bf16.xpose.msra.mxu0 0
      %2260 = vmatprep.subr.bf16.mxu0 0
      %2261 = vmatpush1.bf16.xpose.msra.mxu0 0
      %2262 = vmatprep.subr.bf16.mxu0 0
      %2263 = vmatpush1.bf16.xpose.msra.mxu0 0
      %2264 = vmatprep.subr.bf16.mxu0 0
      %2265 = vmatpush1.bf16.xpose.msra.mxu0 0
      %2266 = vmatprep.subr.bf16.mxu0 0
      %2267 = vmatpush1.bf16.xpose.msra.mxu0 0
      %2268 = vmatprep.subr.bf16.mxu0 0
      %2269 = vmatpush1.bf16.xpose.msra.mxu0 0
      %2270 = vmatprep.subr.bf16.mxu0 0
      %2271 = vmatpush1.bf16.xpose.msra.mxu0 0
      %2272 = vmatprep.mubr.bf16.mxu0 0
      %2273 = vmatmul.mubr.bf16.gmra.mrb[0].mxu0 %v2235
      %v2274 = vpop.f32.mrb[0].mxu0
      %v2275 = vadd.f32 0.0, %v2274
      %v2276 = vpop.f32.mrb[0].mxu0
      %v2277 = vpop.f32.mrb[0].mxu0
      %v2278 = vadd.f32 0.0, %v2277
      %v2279 = vpop.f32.mrb[0].mxu0
      %2280 = vdwg.mxu0
      %2281 = vrot.lane.b32.xlu0 %v569, 104
      %v2282 = vpop.permute.xlu0 %2281
      %2283 = vrot.lane.b32.xlu0 %v569, 72
      %v2284 = vpop.permute.xlu0 %2283
      %v2286 = vsel %vm573, %v2282, 0
      %v2289 = vsel %vm573, %v2284, 0
      %2291 = vmatprep.subr.bf16.mxu0 0
      %2292 = vmatpush1.bf16.xpose.msra.mxu0 %v2289
      %2293 = vmatprep.subr.bf16.mxu0 0
      %2294 = vmatpush1.bf16.xpose.msra.mxu0 0
      %2295 = vmatprep.subr.bf16.mxu0 0
      %2296 = vmatpush1.bf16.xpose.msra.mxu0 0
      %2297 = vmatprep.subr.bf16.mxu0 0
      %2298 = vmatpush1.bf16.xpose.msra.mxu0 0
      %2299 = vmatprep.subr.bf16.mxu0 0
      %2300 = vmatpush1.bf16.xpose.msra.mxu0 0
      %2301 = vmatprep.subr.bf16.mxu0 0
      %2302 = vmatpush1.bf16.xpose.msra.mxu0 0
      %2303 = vmatprep.subr.bf16.mxu0 0
      %2304 = vmatpush1.bf16.xpose.msra.mxu0 0
      %2305 = vmatprep.subr.bf16.mxu0 0
      %2306 = vmatpush1.bf16.xpose.msra.mxu0 0
      %2307 = vmatprep.subr.bf16.mxu0 0
      %2308 = vmatpush1.bf16.xpose.msra.mxu0 0
      %2309 = vmatprep.subr.bf16.mxu0 0
      %2310 = vmatpush1.bf16.xpose.msra.mxu0 0
      %2311 = vmatprep.subr.bf16.mxu0 0
      %2312 = vmatpush1.bf16.xpose.msra.mxu0 0
      %2313 = vmatprep.subr.bf16.mxu0 0
      %2314 = vmatpush1.bf16.xpose.msra.mxu0 0
      %2315 = vmatprep.subr.bf16.mxu0 0
      %2316 = vmatpush1.bf16.xpose.msra.mxu0 0
      %2317 = vmatprep.subr.bf16.mxu0 0
      %2318 = vmatpush1.bf16.xpose.msra.mxu0 0
      %2319 = vmatprep.subr.bf16.mxu0 0
      %2320 = vmatpush1.bf16.xpose.msra.mxu0 0
      %2321 = vmatprep.subr.bf16.mxu0 0
      %2322 = vmatpush1.bf16.xpose.msra.mxu0 0
      %2323 = vmatprep.mubr.bf16.mxu0 0
      %2324 = vmatmul.mubr.bf16.gmra.mrb[0].mxu0 %v2286
      %v2325 = vpop.f32.mrb[0].mxu0
      %v2326 = vadd.f32 0.0, %v2325
      %v2327 = vpop.f32.mrb[0].mxu0
      %v2328 = vpop.f32.mrb[0].mxu0
      %v2329 = vadd.f32 0.0, %v2328
      %v2330 = vpop.f32.mrb[0].mxu0
      %2331 = vdwg.mxu0
      %s2332 = scalar_lea.vmem %s5, 192
      %v2333 = vld [vmem:[%s2332] sm:$0xff]
      %v2334 = vld [vmem:[%s2332 + $0x8] sm:$0xff]
      %v2335 = vld [vmem:[%s2332 + $0x10] sm:$0xff]
      %v2336 = vld [vmem:[%s2332 + $0x18] sm:$0xff]
      %v2337 = vld [vmem:[%s2332 + $0x20] sm:$0xff]
      %v2338 = vld [vmem:[%s2332 + $0x28] sm:$0xff]
      %v2339 = vld [vmem:[%s2332 + $0x30] sm:$0xff]
      %v2340 = vld [vmem:[%s2332 + $0x38] sm:$0xff]
      %v2341 = vadd.f32 %v2173, %v2333
      %v2342 = vadd.f32 %v2176, %v2334
      %v2343 = vadd.f32 %v2224, %v2335
      %v2344 = vadd.f32 %v2227, %v2336
      %v2345 = vadd.f32 %v2275, %v2337
      %v2346 = vadd.f32 %v2278, %v2338
      %v2347 = vadd.f32 %v2326, %v2339
      %v2348 = vadd.f32 %v2329, %v2340
      %v2349 = vsel %vm787, %v2341, -inf
      %2350 = vmax.xlane.f32.xlu0 %v2349
      %v2351 = vpop.xlane.xlu0 %2350
      %v2352 = vsel %vm787, %v2342, -inf
      %2353 = vmax.xlane.f32.xlu0 %v2352
      %v2354 = vpop.xlane.xlu0 %2353
      %v2355 = vsel %vm787, %v2343, -inf
      %2356 = vmax.xlane.f32.xlu0 %v2355
      %v2357 = vpop.xlane.xlu0 %2356
      %v2358 = vsel %vm787, %v2344, -inf
      %2359 = vmax.xlane.f32.xlu0 %v2358
      %v2360 = vpop.xlane.xlu0 %2359
      %v2361 = vsel %vm787, %v2345, -inf
      %2362 = vmax.xlane.f32.xlu0 %v2361
      %v2363 = vpop.xlane.xlu0 %2362
      %v2364 = vsel %vm787, %v2346, -inf
      %2365 = vmax.xlane.f32.xlu0 %v2364
      %v2366 = vpop.xlane.xlu0 %2365
      %v2367 = vsel %vm787, %v2347, -inf
      %2368 = vmax.xlane.f32.xlu0 %v2367
      %v2369 = vpop.xlane.xlu0 %2368
      %v2370 = vsel %vm787, %v2348, -inf
      %2371 = vmax.xlane.f32.xlu0 %v2370
      %v2372 = vpop.xlane.xlu0 %2371
      %v2373 = vsub.f32 %v2341, %v2351
      %v2374 = vsub.f32 %v2342, %v2354
      %v2375 = vsub.f32 %v2343, %v2357
      %v2376 = vsub.f32 %v2344, %v2360
      %v2377 = vsub.f32 %v2345, %v2363
      %v2378 = vsub.f32 %v2346, %v2366
      %v2379 = vsub.f32 %v2347, %v2369
      %v2380 = vsub.f32 %v2348, %v2372
      %v2381 = vmul.f32 %v2373, 1.442695
      %v2382 = vpow.pop %v2381
      %v2383 = vmul.f32 %v2374, 1.442695
      %v2384 = vpow.pop %v2383
      %v2385 = vmul.f32 %v2375, 1.442695
      %v2386 = vpow.pop %v2385
      %v2387 = vmul.f32 %v2376, 1.442695
      %v2388 = vpow.pop %v2387
      %v2389 = vmul.f32 %v2377, 1.442695
      %v2390 = vpow.pop %v2389
      %v2391 = vmul.f32 %v2378, 1.442695
      %v2392 = vpow.pop %v2391
      %v2393 = vmul.f32 %v2379, 1.442695
      %v2394 = vpow.pop %v2393
      %v2395 = vmul.f32 %v2380, 1.442695
      %v2396 = vpow.pop %v2395
      %v2397 = vsel %vm787, %v2382, 0.0
      %2398 = vadd.xlane.f32.xlu0 %v2397
      %v2399 = vpop.xlane.xlu0 %2398
      %v2400 = vsel %vm787, %v2384, 0.0
      %2401 = vadd.xlane.f32.xlu0 %v2400
      %v2402 = vpop.xlane.xlu0 %2401
      %v2403 = vsel %vm787, %v2386, 0.0
      %2404 = vadd.xlane.f32.xlu0 %v2403
      %v2405 = vpop.xlane.xlu0 %2404
      %v2406 = vsel %vm787, %v2388, 0.0
      %2407 = vadd.xlane.f32.xlu0 %v2406
      %v2408 = vpop.xlane.xlu0 %2407
      %v2409 = vsel %vm787, %v2390, 0.0
      %2410 = vadd.xlane.f32.xlu0 %v2409
      %v2411 = vpop.xlane.xlu0 %2410
      %v2412 = vsel %vm787, %v2392, 0.0
      %2413 = vadd.xlane.f32.xlu0 %v2412
      %v2414 = vpop.xlane.xlu0 %2413
      %v2415 = vsel %vm787, %v2394, 0.0
      %2416 = vadd.xlane.f32.xlu0 %v2415
      %v2417 = vpop.xlane.xlu0 %2416
      %v2418 = vsel %vm787, %v2396, 0.0
      %2419 = vadd.xlane.f32.xlu0 %v2418
      %v2420 = vpop.xlane.xlu0 %2419
      %v2421 = vrcp.pop %v2399
      %v2422 = vrcp.pop %v2402
      %v2423 = vrcp.pop %v2405
      %v2424 = vrcp.pop %v2408
      %v2425 = vrcp.pop %v2411
      %v2426 = vrcp.pop %v2414
      %v2427 = vrcp.pop %v2417
      %v2428 = vrcp.pop %v2420
      %v2429 = vmul.f32 %v2382, %v2421
      %v2430 = vmul.f32 %v2384, %v2422
      %v2431 = vmul.f32 %v2386, %v2423
      %v2432 = vmul.f32 %v2388, %v2424
      %v2433 = vmul.f32 %v2390, %v2425
      %v2434 = vmul.f32 %v2392, %v2426
      %v2435 = vmul.f32 %v2394, %v2427
      %v2436 = vmul.f32 %v2396, %v2428
      %v2437 = vpack.c.bf16 %v2430, %v2429
      %v2438 = vpack.c.bf16 %v2432, %v2431
      %v2439 = vpack.c.bf16 %v2434, %v2433
      %v2440 = vpack.c.bf16 %v2436, %v2435
      %2441 = vrot.lane.b32.xlu0 %v566, 40
      %v2442 = vpop.permute.xlu0 %2441
      %v2445 = vsel %vm787, %v2437, 0
      %2447 = vmatprep.subr.bf16.mxu0 0
      %2448 = vmatpush1.bf16.msra.mxu0 %v2442
      %2449 = vmatprep.subr.bf16.mxu0 0
      %2450 = vmatpush1.bf16.msra.mxu0 0
      %2451 = vmatprep.subr.bf16.mxu0 0
      %2452 = vmatpush1.bf16.msra.mxu0 0
      %2453 = vmatprep.subr.bf16.mxu0 0
      %2454 = vmatpush1.bf16.msra.mxu0 0
      %2455 = vmatprep.subr.bf16.mxu0 0
      %2456 = vmatpush1.bf16.msra.mxu0 0
      %2457 = vmatprep.subr.bf16.mxu0 0
      %2458 = vmatpush1.bf16.msra.mxu0 0
      %2459 = vmatprep.subr.bf16.mxu0 0
      %2460 = vmatpush1.bf16.msra.mxu0 0
      %2461 = vmatprep.subr.bf16.mxu0 0
      %2462 = vmatpush1.bf16.msra.mxu0 0
      %2463 = vmatprep.subr.bf16.mxu0 0
      %2464 = vmatpush1.bf16.msra.mxu0 0
      %2465 = vmatprep.subr.bf16.mxu0 0
      %2466 = vmatpush1.bf16.msra.mxu0 0
      %2467 = vmatprep.subr.bf16.mxu0 0
      %2468 = vmatpush1.bf16.msra.mxu0 0
      %2469 = vmatprep.subr.bf16.mxu0 0
      %2470 = vmatpush1.bf16.msra.mxu0 0
      %2471 = vmatprep.subr.bf16.mxu0 0
      %2472 = vmatpush1.bf16.msra.mxu0 0
      %2473 = vmatprep.subr.bf16.mxu0 0
      %2474 = vmatpush1.bf16.msra.mxu0 0
      %2475 = vmatprep.subr.bf16.mxu0 0
      %2476 = vmatpush1.bf16.msra.mxu0 0
      %2477 = vmatprep.subr.bf16.mxu0 0
      %2478 = vmatpush1.bf16.msra.mxu0 0
      %2479 = vmatprep.mubr.bf16.mxu0 0
      %2480 = vmatmul.mubr.bf16.gmra.mrb[0].mxu0 %v2445
      %v2481 = vpop.f32.mrb[0].mxu0
      %v2482 = vadd.f32 0.0, %v2481
      %v2483 = vpop.f32.mrb[0].mxu0
      %v2484 = vpop.f32.mrb[0].mxu0
      %v2485 = vadd.f32 0.0, %v2484
      %v2486 = vpop.f32.mrb[0].mxu0
      %2487 = vdwg.mxu0
      %2488 = vrot.lane.b32.xlu0 %v567, 40
      %v2489 = vpop.permute.xlu0 %2488
      %v2492 = vsel %vm787, %v2438, 0
      %2494 = vmatprep.subr.bf16.mxu0 0
      %2495 = vmatpush1.bf16.msra.mxu0 %v2489
      %2496 = vmatprep.subr.bf16.mxu0 0
      %2497 = vmatpush1.bf16.msra.mxu0 0
      %2498 = vmatprep.subr.bf16.mxu0 0
      %2499 = vmatpush1.bf16.msra.mxu0 0
      %2500 = vmatprep.subr.bf16.mxu0 0
      %2501 = vmatpush1.bf16.msra.mxu0 0
      %2502 = vmatprep.subr.bf16.mxu0 0
      %2503 = vmatpush1.bf16.msra.mxu0 0
      %2504 = vmatprep.subr.bf16.mxu0 0
      %2505 = vmatpush1.bf16.msra.mxu0 0
      %2506 = vmatprep.subr.bf16.mxu0 0
      %2507 = vmatpush1.bf16.msra.mxu0 0
      %2508 = vmatprep.subr.bf16.mxu0 0
      %2509 = vmatpush1.bf16.msra.mxu0 0
      %2510 = vmatprep.subr.bf16.mxu0 0
      %2511 = vmatpush1.bf16.msra.mxu0 0
      %2512 = vmatprep.subr.bf16.mxu0 0
      %2513 = vmatpush1.bf16.msra.mxu0 0
      %2514 = vmatprep.subr.bf16.mxu0 0
      %2515 = vmatpush1.bf16.msra.mxu0 0
      %2516 = vmatprep.subr.bf16.mxu0 0
      %2517 = vmatpush1.bf16.msra.mxu0 0
      %2518 = vmatprep.subr.bf16.mxu0 0
      %2519 = vmatpush1.bf16.msra.mxu0 0
      %2520 = vmatprep.subr.bf16.mxu0 0
      %2521 = vmatpush1.bf16.msra.mxu0 0
      %2522 = vmatprep.subr.bf16.mxu0 0
      %2523 = vmatpush1.bf16.msra.mxu0 0
      %2524 = vmatprep.subr.bf16.mxu0 0
      %2525 = vmatpush1.bf16.msra.mxu0 0
      %2526 = vmatprep.mubr.bf16.mxu0 0
      %2527 = vmatmul.mubr.bf16.gmra.mrb[0].mxu0 %v2492
      %v2528 = vpop.f32.mrb[0].mxu0
      %v2529 = vadd.f32 0.0, %v2528
      %v2530 = vpop.f32.mrb[0].mxu0
      %v2531 = vpop.f32.mrb[0].mxu0
      %v2532 = vadd.f32 0.0, %v2531
      %v2533 = vpop.f32.mrb[0].mxu0
      %2534 = vdwg.mxu0
      %2535 = vrot.lane.b32.xlu0 %v568, 40
      %v2536 = vpop.permute.xlu0 %2535
      %v2539 = vsel %vm787, %v2439, 0
      %2541 = vmatprep.subr.bf16.mxu0 0
      %2542 = vmatpush1.bf16.msra.mxu0 %v2536
      %2543 = vmatprep.subr.bf16.mxu0 0
      %2544 = vmatpush1.bf16.msra.mxu0 0
      %2545 = vmatprep.subr.bf16.mxu0 0
      %2546 = vmatpush1.bf16.msra.mxu0 0
      %2547 = vmatprep.subr.bf16.mxu0 0
      %2548 = vmatpush1.bf16.msra.mxu0 0
      %2549 = vmatprep.subr.bf16.mxu0 0
      %2550 = vmatpush1.bf16.msra.mxu0 0
      %2551 = vmatprep.subr.bf16.mxu0 0
      %2552 = vmatpush1.bf16.msra.mxu0 0
      %2553 = vmatprep.subr.bf16.mxu0 0
      %2554 = vmatpush1.bf16.msra.mxu0 0
      %2555 = vmatprep.subr.bf16.mxu0 0
      %2556 = vmatpush1.bf16.msra.mxu0 0
      %2557 = vmatprep.subr.bf16.mxu0 0
      %2558 = vmatpush1.bf16.msra.mxu0 0
      %2559 = vmatprep.subr.bf16.mxu0 0
      %2560 = vmatpush1.bf16.msra.mxu0 0
      %2561 = vmatprep.subr.bf16.mxu0 0
      %2562 = vmatpush1.bf16.msra.mxu0 0
      %2563 = vmatprep.subr.bf16.mxu0 0
      %2564 = vmatpush1.bf16.msra.mxu0 0
      %2565 = vmatprep.subr.bf16.mxu0 0
      %2566 = vmatpush1.bf16.msra.mxu0 0
      %2567 = vmatprep.subr.bf16.mxu0 0
      %2568 = vmatpush1.bf16.msra.mxu0 0
      %2569 = vmatprep.subr.bf16.mxu0 0
      %2570 = vmatpush1.bf16.msra.mxu0 0
      %2571 = vmatprep.subr.bf16.mxu0 0
      %2572 = vmatpush1.bf16.msra.mxu0 0
      %2573 = vmatprep.mubr.bf16.mxu0 0
      %2574 = vmatmul.mubr.bf16.gmra.mrb[0].mxu0 %v2539
      %v2575 = vpop.f32.mrb[0].mxu0
      %v2576 = vadd.f32 0.0, %v2575
      %v2577 = vpop.f32.mrb[0].mxu0
      %v2578 = vpop.f32.mrb[0].mxu0
      %v2579 = vadd.f32 0.0, %v2578
      %v2580 = vpop.f32.mrb[0].mxu0
      %2581 = vdwg.mxu0
      %2582 = vrot.lane.b32.xlu0 %v569, 40
      %v2583 = vpop.permute.xlu0 %2582
      %v2586 = vsel %vm787, %v2440, 0
      %2588 = vmatprep.subr.bf16.mxu0 0
      %2589 = vmatpush1.bf16.msra.mxu0 %v2583
      %2590 = vmatprep.subr.bf16.mxu0 0
      %2591 = vmatpush1.bf16.msra.mxu0 0
      %2592 = vmatprep.subr.bf16.mxu0 0
      %2593 = vmatpush1.bf16.msra.mxu0 0
      %2594 = vmatprep.subr.bf16.mxu0 0
      %2595 = vmatpush1.bf16.msra.mxu0 0
      %2596 = vmatprep.subr.bf16.mxu0 0
      %2597 = vmatpush1.bf16.msra.mxu0 0
      %2598 = vmatprep.subr.bf16.mxu0 0
      %2599 = vmatpush1.bf16.msra.mxu0 0
      %2600 = vmatprep.subr.bf16.mxu0 0
      %2601 = vmatpush1.bf16.msra.mxu0 0
      %2602 = vmatprep.subr.bf16.mxu0 0
      %2603 = vmatpush1.bf16.msra.mxu0 0
      %2604 = vmatprep.subr.bf16.mxu0 0
      %2605 = vmatpush1.bf16.msra.mxu0 0
      %2606 = vmatprep.subr.bf16.mxu0 0
      %2607 = vmatpush1.bf16.msra.mxu0 0
      %2608 = vmatprep.subr.bf16.mxu0 0
      %2609 = vmatpush1.bf16.msra.mxu0 0
      %2610 = vmatprep.subr.bf16.mxu0 0
      %2611 = vmatpush1.bf16.msra.mxu0 0
      %2612 = vmatprep.subr.bf16.mxu0 0
      %2613 = vmatpush1.bf16.msra.mxu0 0
      %2614 = vmatprep.subr.bf16.mxu0 0
      %2615 = vmatpush1.bf16.msra.mxu0 0
      %2616 = vmatprep.subr.bf16.mxu0 0
      %2617 = vmatpush1.bf16.msra.mxu0 0
      %2618 = vmatprep.subr.bf16.mxu0 0
      %2619 = vmatpush1.bf16.msra.mxu0 0
      %2620 = vmatprep.mubr.bf16.mxu0 0
      %2621 = vmatmul.mubr.bf16.gmra.mrb[0].mxu0 %v2586
      %v2622 = vpop.f32.mrb[0].mxu0
      %v2623 = vadd.f32 0.0, %v2622
      %v2624 = vpop.f32.mrb[0].mxu0
      %v2625 = vpop.f32.mrb[0].mxu0
      %v2626 = vadd.f32 0.0, %v2625
      %v2627 = vpop.f32.mrb[0].mxu0
      %2628 = vdwg.mxu0
      %v2629 = vpack.c.bf16 %v2485, %v2482
      %v2630 = vpack.c.bf16 %v2532, %v2529
      %v2631 = vpack.c.bf16 %v2579, %v2576
      %v2632 = vpack.c.bf16 %v2626, %v2623
      %2637 = vrot.lane.b32.xlu0 %v2629, 24
      %v2638 = vpop.permute.xlu0 %2637
      %2639 = vrot.lane.b32.xlu0 %v2630, 24
      %v2640 = vpop.permute.xlu0 %2639
      %2641 = vrot.lane.b32.xlu0 %v2631, 24
      %v2642 = vpop.permute.xlu0 %2641
      %2643 = vrot.lane.b32.xlu0 %v2632, 24
      %v2644 = vpop.permute.xlu0 %2643
      %vm2649 = vcmask 261312
      %2650 = vst.msk [vmem:[#allocation2] sm:$0xff] %vm2649, %v2638
      %2651 = vst.msk [vmem:[#allocation2 + $0x8] sm:$0xff] %vm2649, %v2640
      %2652 = vst.msk [vmem:[#allocation2 + $0x10] sm:$0xff] %vm2649, %v2642
      %2653 = vst.msk [vmem:[#allocation2 + $0x18] sm:$0xff] %vm2649, %v2644
      %v2654 = vld [vmem:[#allocation2] sm:$0xff]
      %v2655 = vld [vmem:[#allocation2 + $0x8] sm:$0xff]
      %v2656 = vld [vmem:[#allocation2 + $0x10] sm:$0xff]
      %v2657 = vld [vmem:[#allocation2 + $0x18] sm:$0xff]
      %v2658 = vld [vmem:[%s6] sm:$0xf]
      %v2659 = vld [vmem:[%s6 + $0x4] sm:$0xf]
      %v2660 = vld [vmem:[%s6 + $0x8] sm:$0xf]
      %v2661 = vld [vmem:[%s6 + $0xc] sm:$0xf]
      %v2662 = vld [vmem:[%s7] sm:$0x1]
      %v2664 = vlaneseq
      %v2665 = vshrl.u32 %v2664, 7
      %v2666 = vsub.s32 0, %v2665
      %v2667 = vrot.slane %v2662, %v2666
      %v2673 = vunpack.c.l.b16 %v2658
      %v2674 = vunpack.c.l.b16 %v2659
      %v2675 = vunpack.c.l.b16 %v2660
      %v2676 = vunpack.c.l.b16 %v2661
      %v2677 = vpack.c.b16 %v2674, %v2673
      %v2678 = vpack.c.b16 %v2676, %v2675
      %v2682 = vsel %vm326, %v2654, 0
      %v2685 = vsel %vm326, %v2655, 0
      %v2688 = vsel %vm326, %v2656, 0
      %v2691 = vsel %vm326, %v2657, 0
      %2693 = vmatprep.subr.bf16.mxu0 0
      %2694 = vmatpush1.bf16.msra.mxu0 %v2677
      %2695 = vmatprep.subr.bf16.mxu0 0
      %2696 = vmatpush1.bf16.msra.mxu0 %v2678
      %2697 = vmatprep.subr.bf16.mxu0 0
      %2698 = vmatpush1.bf16.msra.mxu0 0
      %2699 = vmatprep.subr.bf16.mxu0 0
      %2700 = vmatpush1.bf16.msra.mxu0 0
      %2701 = vmatprep.subr.bf16.mxu0 0
      %2702 = vmatpush1.bf16.msra.mxu0 0
      %2703 = vmatprep.subr.bf16.mxu0 0
      %2704 = vmatpush1.bf16.msra.mxu0 0
      %2705 = vmatprep.subr.bf16.mxu0 0
      %2706 = vmatpush1.bf16.msra.mxu0 0
      %2707 = vmatprep.subr.bf16.mxu0 0
      %2708 = vmatpush1.bf16.msra.mxu0 0
      %2709 = vmatprep.subr.bf16.mxu0 0
      %2710 = vmatpush1.bf16.msra.mxu0 0
      %2711 = vmatprep.subr.bf16.mxu0 0
      %2712 = vmatpush1.bf16.msra.mxu0 0
      %2713 = vmatprep.subr.bf16.mxu0 0
      %2714 = vmatpush1.bf16.msra.mxu0 0
      %2715 = vmatprep.subr.bf16.mxu0 0
      %2716 = vmatpush1.bf16.msra.mxu0 0
      %2717 = vmatprep.subr.bf16.mxu0 0
      %2718 = vmatpush1.bf16.msra.mxu0 0
      %2719 = vmatprep.subr.bf16.mxu0 0
      %2720 = vmatpush1.bf16.msra.mxu0 0
      %2721 = vmatprep.subr.bf16.mxu0 0
      %2722 = vmatpush1.bf16.msra.mxu0 0
      %2723 = vmatprep.subr.bf16.mxu0 0
      %2724 = vmatpush1.bf16.msra.mxu0 0
      %2725 = vmatprep.mubr.bf16.mxu0 0
      %2726 = vmatmul.mubr.bf16.gmra.mrb[0].mxu0 %v2682
      %v2727 = vpop.f32.mrb[0].mxu0
      %v2728 = vadd.f32 %v2667, %v2727
      %v2729 = vpop.f32.mrb[0].mxu0
      %v2730 = vpop.f32.mrb[0].mxu0
      %v2731 = vadd.f32 %v2667, %v2730
      %v2732 = vpop.f32.mrb[0].mxu0
      %2733 = vmatprep.mubr.bf16.mxu0 0
      %2734 = vmatmul.mubr.bf16.gmra.mrb[0].mxu0 %v2685
      %v2735 = vpop.f32.mrb[0].mxu0
      %v2736 = vadd.f32 %v2667, %v2735
      %v2737 = vpop.f32.mrb[0].mxu0
      %v2738 = vpop.f32.mrb[0].mxu0
      %v2739 = vadd.f32 %v2667, %v2738
      %v2740 = vpop.f32.mrb[0].mxu0
      %2741 = vmatprep.mubr.bf16.mxu0 0
      %2742 = vmatmul.mubr.bf16.gmra.mrb[0].mxu0 %v2688
      %v2743 = vpop.f32.mrb[0].mxu0
      %v2744 = vadd.f32 %v2667, %v2743
      %v2745 = vpop.f32.mrb[0].mxu0
      %v2746 = vpop.f32.mrb[0].mxu0
      %v2747 = vadd.f32 %v2667, %v2746
      %v2748 = vpop.f32.mrb[0].mxu0
      %2749 = vmatprep.mubr.bf16.mxu0 0
      %2750 = vmatmul.mubr.bf16.gmra.mrb[0].mxu0 %v2691
      %v2751 = vpop.f32.mrb[0].mxu0
      %v2752 = vadd.f32 %v2667, %v2751
      %v2753 = vpop.f32.mrb[0].mxu0
      %v2754 = vpop.f32.mrb[0].mxu0
      %v2755 = vadd.f32 %v2667, %v2754
      %v2756 = vpop.f32.mrb[0].mxu0
      %2757 = vdwg.mxu0
      %v2758 = vpack.c.bf16 %v2731, %v2728
      %v2759 = vpack.c.bf16 %v2739, %v2736
      %v2760 = vpack.c.bf16 %v2747, %v2744
      %v2761 = vpack.c.bf16 %v2755, %v2752
      %v2766 = vunpack.c.l.b16 %v2758
      %v2767 = vunpack.c.h.b16 %v2758
      %v2768 = vunpack.c.l.b16 %v2759
      %v2769 = vunpack.c.h.b16 %v2759
      %v2770 = vunpack.c.l.b16 %v2760
      %v2771 = vunpack.c.h.b16 %v2760
      %v2772 = vunpack.c.l.b16 %v2761
      %v2773 = vunpack.c.h.b16 %v2761
      %v2774 = vpack.c.b16 %v2766, %v2766
      %v2775 = vpack.c.b16 %v2767, %v2767
      %v2776 = vpack.c.b16 %v2768, %v2768
      %v2777 = vpack.c.b16 %v2769, %v2769
      %v2778 = vpack.c.b16 %v2770, %v2770
      %v2779 = vpack.c.b16 %v2771, %v2771
      %v2780 = vpack.c.b16 %v2772, %v2772
      %v2781 = vpack.c.b16 %v2773, %v2773
      %vm2790 = vcmask 257024
      %2791 = vst.msk [vmem:[%s307] sm:$0xf] %vm2790, %v2774
      %2792 = vst.msk [vmem:[%s307 + $0x4] sm:$0xf] %vm2790, %v2775
      %2793 = vst.msk [vmem:[%s307 + $0x8] sm:$0xf] %vm2790, %v2776
      %2794 = vst.msk [vmem:[%s307 + $0xc] sm:$0xf] %vm2790, %v2777
      %2795 = vst.msk [vmem:[%s307 + $0x10] sm:$0xf] %vm2790, %v2778
      %2796 = vst.msk [vmem:[%s307 + $0x14] sm:$0xf] %vm2790, %v2779
      %2797 = vst.msk [vmem:[%s307 + $0x18] sm:$0xf] %vm2790, %v2780
      %2798 = vst.msk [vmem:[%s307 + $0x1c] sm:$0xf] %vm2790, %v2781
      %s2799 = smul.u32 8, %s19
      %p2800 = scmp.lt.s32.totalorder %s2799, 15
      %s2801 = scalar_select %p2800, %s2799, 15
      %s2802 = smul.addr %s2801, 4
      %s2803 = scalar_lea.vmem %s8, %s2802
      // Predicated region
      $region53: #{basic_layer_forward.6} parent=51 // pred_check
        %p2804 = pneg %p210
      $region54: #{basic_layer_forward.6} parent=51 // pred_check_branch
        %2806 = sbr.rel (%p2804) target = $region56
      $region55: #{basic_layer_forward.6} parent=51 // pred_region
        %s2807 = smul.u32 8, %s19
      $region56: #{basic_layer_forward.6} parent=51 // pred_fallthru
        _
    $region52: #{basic_layer_forward.6} parent=5 // pred_fallthru
      _
    %p2808 = scmp.le.s32.totalorder 2, %s14
    // Predicated region
    $region57: #{basic_layer_forward.6} parent=5 // pred_check
      %p2809 = pneg %p2808
    $region58: #{basic_layer_forward.6} parent=5 // pred_check_branch
      %2811 = sbr.rel (%p2809) target = $region60
    $region59: #{basic_layer_forward.6} parent=5 // pred_region
      %s2812 = ssub.s32 %s14, 2
      // Predicated region
      $region61: #{basic_layer_forward.6} parent=59 // pred_check
        %p2813 = pneg %p216
      $region62: #{basic_layer_forward.6} parent=59 // pred_check_branch
        %2815 = sbr.rel (%p2813) target = $region64
      $region63: #{basic_layer_forward.6} parent=59 // pred_region
        %s2816 = smul.u32 8, %s20
        %p2817 = scmp.lt.s32.totalorder %s2816, 15
        %s2818 = scalar_select %p2817, %s2816, 15
        %s2819 = smul.addr %s2818, 4
        %s2820 = scalar_lea.vmem %s8, %s2819
      $region64: #{basic_layer_forward.6} parent=59 // pred_fallthru
        _
    $region60: #{basic_layer_forward.6} parent=5 // pred_fallthru
      _
  $region6: #{basic_layer_forward.6} parent=0 // loop_footer
    %s18 = sadd.s32 1, %s14
  $region7: #{basic_layer_forward.6} parent=0 // loop_footer_branch
    %13 = sbr.rel target = $region3
  $region8: #{basic_layer_forward.6} parent=0 // loop_exit
    _

</llo_original>
